<compile_context>
chip_gen: v5e
topology: v5e:2x2
jax: 0.10.0
libtpu: 0.0.40
codegen_flags: <defaults>
</compile_context>

<pallas_src>
import jax
import jax.numpy as jnp
from jax.experimental import pallas as pl
from jax.experimental.pallas import tpu as pltpu

EPS = 1e-5   # torch.nn.InstanceNorm2d default eps
LANE = 128   # TPU vreg lane width


def residual_block_kernel(x_ref, w1_ref, w2_ref, p_ref, o_ref):
    """One grid step: NB full images.

    x_ref / o_ref : (NB, H, W, Cp)  float32
    w1_ref/w2_ref : (9*Cp, Cp)      matmul dtype (bf16 or f32), tap-major rows
    p_ref         : (8, Cp)         float32, rows = [b1, g1, be1, b2, g2, be2, 0, 0]
    """
    x = x_ref[...].astype(jnp.float32)             # (NB, H, W, Cp)
    nb, H, W, Cp = x.shape
    mm = w1_ref.dtype                              # MXU operand dtype

    prm = p_ref[...]                               # (8, Cp) f32
    b1, g1, be1 = prm[0:1], prm[1:2], prm[2:3]     # each (1, Cp)
    b2, g2, be2 = prm[3:4], prm[4:5], prm[5:6]

    def reflect_pad1(t):
        # ReflectionPad2d(1): index -1 -> 1, index H -> H-2 (assumes H, W >= 2)
        t = jnp.concatenate([t[:, 1:2], t, t[:, H - 2:H - 1]], axis=1)
        t = jnp.concatenate([t[:, :, 1:2], t, t[:, :, W - 2:W - 1]], axis=2)
        return t                                   # (NB, H+2, W+2, Cp)

    def conv3x3(t, w_ref, b):
        # t in matmul dtype. im2col: one (NB*H*W, 9*Cp) buffer, one MXU matmul
        # with K = 9*Cp instead of nine K=Cp matmuls.
        p = reflect_pad1(t)
        cols = jnp.concatenate(
            [p[:, dh:dh + H, dw:dw + W, :] for dh in range(3) for dw in range(3)],
            axis=-1,
        ).reshape(nb * H * W, 9 * Cp)
        y = jnp.dot(cols, w_ref[...], preferred_element_type=jnp.float32)
        return y.reshape(nb, H * W, Cp) + b[None]  # (NB, H*W, Cp) f32

    def inst_norm(y, g, be):
        # per-(sample, channel) stats over the spatial axis, biased variance (f32)
        mean = jnp.mean(y, axis=1, keepdims=True)
        var = jnp.mean((y - mean) ** 2, axis=1, keepdims=True)
        return (y - mean) * jax.lax.rsqrt(var + EPS) * g[None] + be[None]

    h = inst_norm(conv3x3(x.astype(mm), w1_ref, b1), g1, be1)
    h = jnp.maximum(h, 0.0)                        # ReLU
    h = h.reshape(nb, H, W, Cp)
    h2 = inst_norm(conv3x3(h.astype(mm), w2_ref, b2), g2, be2)
    out = h2.reshape(nb, H, W, Cp) + x             # residual add (f32)
    o_ref[...] = out.astype(o_ref.dtype)


def residual_block(x_nchw, params, *, mm_dtype=jnp.bfloat16):
    """x_nchw: (N, C, H, W) float32, same layout as the PyTorch module's input."""
    (w1, b1, g1, be1, w2, b2, g2, be2) = params
    N, C, H, W = x_nchw.shape
    Cp = ((C + LANE - 1) // LANE) * LANE                 # lane-dense channel count
    nb = next(d for d in (8, 4, 2, 1) if N % d == 0)     # samples per grid step

    x = jnp.transpose(x_nchw, (0, 2, 3, 1))              # NHWC for the kernel
    if Cp != C:
        x = jnp.pad(x, ((0, 0), (0, 0), (0, 0), (0, Cp - C)))

    def prep_w(w):  # (kh, kw, Cin, Cout) -> (9*Cp, Cp), tap-major rows
        wp = jnp.pad(w, ((0, 0), (0, 0), (0, Cp - C), (0, Cp - C)))
        return wp.reshape(9 * Cp, Cp).astype(mm_dtype)

    def prep_v(v):
        return jnp.pad(v.astype(jnp.float32), (0, Cp - C))

    # Pack all per-channel params into a single (8, Cp) tile (one DMA / step).
    zero = jnp.zeros((Cp,), jnp.float32)
    prm = jnp.stack([prep_v(b1), prep_v(g1), prep_v(be1),
                     prep_v(b2), prep_v(g2), prep_v(be2), zero, zero], axis=0)

    img_spec = pl.BlockSpec((nb, H, W, Cp), lambda n: (n, 0, 0, 0))
    w_spec = pl.BlockSpec((9 * Cp, Cp), lambda n: (0, 0))   # grid-invariant
    p_spec = pl.BlockSpec((8, Cp), lambda n: (0, 0))        # grid-invariant

    out = pl.pallas_call(
        residual_block_kernel,
        out_shape=jax.ShapeDtypeStruct((N, H, W, Cp), x.dtype),
        grid=(N // nb,),
        in_specs=[img_spec, w_spec, w_spec, p_spec],
        out_specs=img_spec,
        compiler_params=pltpu.CompilerParams(
            dimension_semantics=("parallel",)),
    )(x, prep_w(w1), prep_w(w2), prm)

    out = out[..., :C]                                   # drop channel padding
    return jnp.transpose(out, (0, 3, 1, 2))              # back to NCHW


# ----------------------- pure-JAX f32 reference (for validation) -------------
def ref_residual_block(x, params):
    (w1, b1, g1, be1, w2, b2, g2, be2) = params

    def conv(t, w, b):  # t: NCHW, w: (kh, kw, Cin, Cout)
        tp = jnp.pad(t, ((0, 0), (0, 0), (1, 1), (1, 1)), mode="reflect")
        w_oihw = jnp.transpose(w, (3, 2, 0, 1))
        y = jax.lax.conv_general_dilated(
            tp, w_oihw, window_strides=(1, 1), padding="VALID",
            dimension_numbers=("NCHW", "OIHW", "NCHW"))
        return y + b[None, :, None, None]

    def inorm(y, g, be):
        mean = y.mean(axis=(2, 3), keepdims=True)
        var = ((y - mean) ** 2).mean(axis=(2, 3), keepdims=True)
        return (y - mean) / jnp.sqrt(var + EPS) * g[None, :, None, None] \
            + be[None, :, None, None]

    h = jax.nn.relu(inorm(conv(x, w1, b1), g1, be1))
    h = inorm(conv(h, w2, b2), g2, be2)
    return h + x


if __name__ == "__main__":
    N, C, H, W = 2, 4, 16, 16
    key = jax.random.PRNGKey(0)
    ks = jax.random.split(key, 9)

    x = jax.random.normal(ks[0], (N, C, H, W), jnp.float32)
    # Conv weights stored as (kh, kw, Cin, Cout); IN affine params per channel.
    w1 = 0.1 * jax.random.normal(ks[1], (3, 3, C, C), jnp.float32)
    b1 = 0.1 * jax.random.normal(ks[2], (C,), jnp.float32)
    g1 = 1.0 + 0.1 * jax.random.normal(ks[3], (C,), jnp.float32)
    be1 = 0.1 * jax.random.normal(ks[4], (C,), jnp.float32)
    w2 = 0.1 * jax.random.normal(ks[5], (3, 3, C, C), jnp.float32)
    b2 = 0.1 * jax.random.normal(ks[6], (C,), jnp.float32)
    g2 = 1.0 + 0.1 * jax.random.normal(ks[7], (C,), jnp.float32)
    be2 = 0.1 * jax.random.normal(ks[8], (C,), jnp.float32)
    params = (w1, b1, g1, be1, w2, b2, g2, be2)

    ref = ref_residual_block(x, params)

    # f32-matmul variant: tight check of the kernel logic against the reference.
    run_f32 = jax.jit(lambda xx, pp: residual_block(xx, pp, mm_dtype=jnp.float32))
    out_f32 = jax.block_until_ready(run_f32(x, params))
    assert out_f32.shape == (N, C, H, W)
    err_f32 = float(jnp.max(jnp.abs(out_f32 - ref)))
    assert jnp.allclose(out_f32, ref, rtol=1e-4, atol=1e-4), \
        f"f32 variant max abs err = {err_f32}"

    # bf16-MXU variant (the performance configuration): bf16-level sanity bound
    # against the exact-f32 reference (norm math / residual stay in f32).
    run_bf16 = jax.jit(lambda xx, pp: residual_block(xx, pp, mm_dtype=jnp.bfloat16))
    out_bf16 = jax.block_until_ready(run_bf16(x, params))
    err_bf16 = float(jnp.max(jnp.abs(out_bf16 - ref)))
    assert jnp.allclose(out_bf16, ref, rtol=5e-2, atol=5e-2), \
        f"bf16 variant max abs err = {err_bf16}"

    print("KERNEL_OK")
</pallas_src>

<mosaic_0001>
module attributes {stable_mosaic.version = 11 : i64} {
  func.func @residual_block_kernel(%arg0: i32, %arg1: memref<2x16x16x128xf32, #tpu.memory_space<vmem>>, %arg2: memref<1152x128xf32, #tpu.memory_space<vmem>>, %arg3: memref<1152x128xf32, #tpu.memory_space<vmem>>, %arg4: memref<8x128xf32, #tpu.memory_space<vmem>>, %arg5: memref<2x16x16x128xf32, #tpu.memory_space<vmem>>) attributes {dimension_semantics = [#tpu.dimension_semantics<parallel>], iteration_bounds = array<i64: 1>, scalar_prefetch = 0 : i64, scratch_operands = 0 : i64, tpu.core_type = #tpu.core_type<tc>, window_params = [{transform_indices = @transform_0, window_bounds = array<i64: 2, 16, 16, 128>}, {pipeline_mode = #tpu.pipeline_mode<synchronous>, transform_indices = @transform_1, window_bounds = array<i64: 1152, 128>}, {pipeline_mode = #tpu.pipeline_mode<synchronous>, transform_indices = @transform_2, window_bounds = array<i64: 1152, 128>}, {pipeline_mode = #tpu.pipeline_mode<synchronous>, transform_indices = @transform_3, window_bounds = array<i64: 8, 128>}, {transform_indices = @transform_4, window_bounds = array<i64: 2, 16, 16, 128>}]} {
    %c0 = arith.constant 0 : index
    %c0_0 = arith.constant 0 : index
    %c0_1 = arith.constant 0 : index
    %c0_2 = arith.constant 0 : index
    %0 = vector.load %arg1[%c0, %c0_0, %c0_1, %c0_2] : memref<2x16x16x128xf32, #tpu.memory_space<vmem>>, vector<2x16x16x128xf32>
    %c0_3 = arith.constant 0 : index
    %c0_4 = arith.constant 0 : index
    %1 = vector.load %arg4[%c0_3, %c0_4] : memref<8x128xf32, #tpu.memory_space<vmem>>, vector<8x128xf32>
    %2 = vector.extract_strided_slice %1 {offsets = [0, 0], sizes = [1, 128], strides = [1, 1]} : vector<8x128xf32> to vector<1x128xf32>
    %3 = vector.extract_strided_slice %1 {offsets = [1, 0], sizes = [1, 128], strides = [1, 1]} : vector<8x128xf32> to vector<1x128xf32>
    %4 = vector.extract_strided_slice %1 {offsets = [2, 0], sizes = [1, 128], strides = [1, 1]} : vector<8x128xf32> to vector<1x128xf32>
    %5 = vector.extract_strided_slice %1 {offsets = [3, 0], sizes = [1, 128], strides = [1, 1]} : vector<8x128xf32> to vector<1x128xf32>
    %6 = vector.extract_strided_slice %1 {offsets = [4, 0], sizes = [1, 128], strides = [1, 1]} : vector<8x128xf32> to vector<1x128xf32>
    %7 = vector.extract_strided_slice %1 {offsets = [5, 0], sizes = [1, 128], strides = [1, 1]} : vector<8x128xf32> to vector<1x128xf32>
    %8 = vector.extract_strided_slice %0 {offsets = [0, 1, 0, 0], sizes = [2, 1, 16, 128], strides = [1, 1, 1, 1]} : vector<2x16x16x128xf32> to vector<2x1x16x128xf32>
    %9 = vector.extract_strided_slice %0 {offsets = [0, 14, 0, 0], sizes = [2, 1, 16, 128], strides = [1, 1, 1, 1]} : vector<2x16x16x128xf32> to vector<2x1x16x128xf32>
    %10 = tpu.concatenate %8, %0, %9 in 1 : vector<2x1x16x128xf32>, vector<2x16x16x128xf32>, vector<2x1x16x128xf32> -> vector<2x18x16x128xf32>
    %11 = vector.extract_strided_slice %10 {offsets = [0, 0, 1, 0], sizes = [2, 18, 1, 128], strides = [1, 1, 1, 1]} : vector<2x18x16x128xf32> to vector<2x18x1x128xf32>
    %12 = vector.extract_strided_slice %10 {offsets = [0, 0, 14, 0], sizes = [2, 18, 1, 128], strides = [1, 1, 1, 1]} : vector<2x18x16x128xf32> to vector<2x18x1x128xf32>
    %13 = tpu.concatenate %11, %10, %12 in 2 : vector<2x18x1x128xf32>, vector<2x18x16x128xf32>, vector<2x18x1x128xf32> -> vector<2x18x18x128xf32>
    %14 = vector.extract_strided_slice %13 {offsets = [0, 0, 0, 0], sizes = [2, 16, 16, 128], strides = [1, 1, 1, 1]} : vector<2x18x18x128xf32> to vector<2x16x16x128xf32>
    %15 = vector.extract_strided_slice %13 {offsets = [0, 0, 1, 0], sizes = [2, 16, 16, 128], strides = [1, 1, 1, 1]} : vector<2x18x18x128xf32> to vector<2x16x16x128xf32>
    %16 = vector.extract_strided_slice %13 {offsets = [0, 0, 2, 0], sizes = [2, 16, 16, 128], strides = [1, 1, 1, 1]} : vector<2x18x18x128xf32> to vector<2x16x16x128xf32>
    %17 = vector.extract_strided_slice %13 {offsets = [0, 1, 0, 0], sizes = [2, 16, 16, 128], strides = [1, 1, 1, 1]} : vector<2x18x18x128xf32> to vector<2x16x16x128xf32>
    %18 = vector.extract_strided_slice %13 {offsets = [0, 1, 1, 0], sizes = [2, 16, 16, 128], strides = [1, 1, 1, 1]} : vector<2x18x18x128xf32> to vector<2x16x16x128xf32>
    %19 = vector.extract_strided_slice %13 {offsets = [0, 1, 2, 0], sizes = [2, 16, 16, 128], strides = [1, 1, 1, 1]} : vector<2x18x18x128xf32> to vector<2x16x16x128xf32>
    %20 = vector.extract_strided_slice %13 {offsets = [0, 2, 0, 0], sizes = [2, 16, 16, 128], strides = [1, 1, 1, 1]} : vector<2x18x18x128xf32> to vector<2x16x16x128xf32>
    %21 = vector.extract_strided_slice %13 {offsets = [0, 2, 1, 0], sizes = [2, 16, 16, 128], strides = [1, 1, 1, 1]} : vector<2x18x18x128xf32> to vector<2x16x16x128xf32>
    %22 = vector.extract_strided_slice %13 {offsets = [0, 2, 2, 0], sizes = [2, 16, 16, 128], strides = [1, 1, 1, 1]} : vector<2x18x18x128xf32> to vector<2x16x16x128xf32>
    %23 = tpu.concatenate %14, %15, %16, %17, %18, %19, %20, %21, %22 in 3 : vector<2x16x16x128xf32>, vector<2x16x16x128xf32>, vector<2x16x16x128xf32>, vector<2x16x16x128xf32>, vector<2x16x16x128xf32>, vector<2x16x16x128xf32>, vector<2x16x16x128xf32>, vector<2x16x16x128xf32>, vector<2x16x16x128xf32> -> vector<2x16x16x1152xf32>
    %24 = vector.shape_cast %23 : vector<2x16x16x1152xf32> to vector<512x1152xf32>
    %c0_5 = arith.constant 0 : index
    %c0_6 = arith.constant 0 : index
    %25 = vector.load %arg2[%c0_5, %c0_6] : memref<1152x128xf32, #tpu.memory_space<vmem>>, vector<1152x128xf32>
    %cst = arith.constant dense<0.000000e+00> : vector<512x128xf32>
    %26 = tpu.matmul %24, %25, %cst {dimension_numbers = #tpu.dot_dimension_numbers<[1], [0], [0], [1], [0, 0, 1, 1], [], []>} : vector<512x1152xf32>, vector<1152x128xf32>, vector<512x128xf32> -> vector<512x128xf32>
    %27 = vector.shape_cast %26 : vector<512x128xf32> to vector<2x256x128xf32>
    %28 = vector.shape_cast %2 : vector<1x128xf32> to vector<1x1x128xf32>
    %29 = vector.broadcast %28 : vector<1x1x128xf32> to vector<2x256x128xf32>
    %30 = arith.addf %27, %29 : vector<2x256x128xf32>
    %cst_7 = arith.constant dense<0.000000e+00> : vector<2x128xf32>
    %31 = vector.multi_reduction <add>, %30, %cst_7 [1] : vector<2x256x128xf32> to vector<2x128xf32>
    %32 = vector.shape_cast %31 : vector<2x128xf32> to vector<2x1x128xf32>
    %cst_8 = arith.constant 2.560000e+02 : f32
    %33 = vector.broadcast %cst_8 : f32 to vector<2x1x128xf32>
    %34 = arith.divf %32, %33 : vector<2x1x128xf32>
    %35 = vector.broadcast %34 : vector<2x1x128xf32> to vector<2x256x128xf32>
    %36 = arith.subf %30, %35 : vector<2x256x128xf32>
    %37 = arith.mulf %36, %36 : vector<2x256x128xf32>
    %cst_9 = arith.constant dense<0.000000e+00> : vector<2x128xf32>
    %38 = vector.multi_reduction <add>, %37, %cst_9 [1] : vector<2x256x128xf32> to vector<2x128xf32>
    %39 = vector.shape_cast %38 : vector<2x128xf32> to vector<2x1x128xf32>
    %cst_10 = arith.constant 2.560000e+02 : f32
    %40 = vector.broadcast %cst_10 : f32 to vector<2x1x128xf32>
    %41 = arith.divf %39, %40 : vector<2x1x128xf32>
    %42 = vector.broadcast %34 : vector<2x1x128xf32> to vector<2x256x128xf32>
    %43 = arith.subf %30, %42 : vector<2x256x128xf32>
    %cst_11 = arith.constant 9.99999974E-6 : f32
    %44 = vector.broadcast %cst_11 : f32 to vector<2x1x128xf32>
    %45 = arith.addf %41, %44 : vector<2x1x128xf32>
    %46 = math.rsqrt %45 : vector<2x1x128xf32>
    %47 = vector.broadcast %46 : vector<2x1x128xf32> to vector<2x256x128xf32>
    %48 = arith.mulf %43, %47 : vector<2x256x128xf32>
    %49 = vector.shape_cast %3 : vector<1x128xf32> to vector<1x1x128xf32>
    %50 = vector.broadcast %49 : vector<1x1x128xf32> to vector<2x256x128xf32>
    %51 = arith.mulf %48, %50 : vector<2x256x128xf32>
    %52 = vector.shape_cast %4 : vector<1x128xf32> to vector<1x1x128xf32>
    %53 = vector.broadcast %52 : vector<1x1x128xf32> to vector<2x256x128xf32>
    %54 = arith.addf %51, %53 : vector<2x256x128xf32>
    %cst_12 = arith.constant 0.000000e+00 : f32
    %55 = vector.broadcast %cst_12 : f32 to vector<2x256x128xf32>
    %56 = arith.maximumf %54, %55 : vector<2x256x128xf32>
    %57 = vector.shape_cast %56 : vector<2x256x128xf32> to vector<2x16x16x128xf32>
    %58 = vector.extract_strided_slice %57 {offsets = [0, 1, 0, 0], sizes = [2, 1, 16, 128], strides = [1, 1, 1, 1]} : vector<2x16x16x128xf32> to vector<2x1x16x128xf32>
    %59 = vector.extract_strided_slice %57 {offsets = [0, 14, 0, 0], sizes = [2, 1, 16, 128], strides = [1, 1, 1, 1]} : vector<2x16x16x128xf32> to vector<2x1x16x128xf32>
    %60 = tpu.concatenate %58, %57, %59 in 1 : vector<2x1x16x128xf32>, vector<2x16x16x128xf32>, vector<2x1x16x128xf32> -> vector<2x18x16x128xf32>
    %61 = vector.extract_strided_slice %60 {offsets = [0, 0, 1, 0], sizes = [2, 18, 1, 128], strides = [1, 1, 1, 1]} : vector<2x18x16x128xf32> to vector<2x18x1x128xf32>
    %62 = vector.extract_strided_slice %60 {offsets = [0, 0, 14, 0], sizes = [2, 18, 1, 128], strides = [1, 1, 1, 1]} : vector<2x18x16x128xf32> to vector<2x18x1x128xf32>
    %63 = tpu.concatenate %61, %60, %62 in 2 : vector<2x18x1x128xf32>, vector<2x18x16x128xf32>, vector<2x18x1x128xf32> -> vector<2x18x18x128xf32>
    %64 = vector.extract_strided_slice %63 {offsets = [0, 0, 0, 0], sizes = [2, 16, 16, 128], strides = [1, 1, 1, 1]} : vector<2x18x18x128xf32> to vector<2x16x16x128xf32>
    %65 = vector.extract_strided_slice %63 {offsets = [0, 0, 1, 0], sizes = [2, 16, 16, 128], strides = [1, 1, 1, 1]} : vector<2x18x18x128xf32> to vector<2x16x16x128xf32>
    %66 = vector.extract_strided_slice %63 {offsets = [0, 0, 2, 0], sizes = [2, 16, 16, 128], strides = [1, 1, 1, 1]} : vector<2x18x18x128xf32> to vector<2x16x16x128xf32>
    %67 = vector.extract_strided_slice %63 {offsets = [0, 1, 0, 0], sizes = [2, 16, 16, 128], strides = [1, 1, 1, 1]} : vector<2x18x18x128xf32> to vector<2x16x16x128xf32>
    %68 = vector.extract_strided_slice %63 {offsets = [0, 1, 1, 0], sizes = [2, 16, 16, 128], strides = [1, 1, 1, 1]} : vector<2x18x18x128xf32> to vector<2x16x16x128xf32>
    %69 = vector.extract_strided_slice %63 {offsets = [0, 1, 2, 0], sizes = [2, 16, 16, 128], strides = [1, 1, 1, 1]} : vector<2x18x18x128xf32> to vector<2x16x16x128xf32>
    %70 = vector.extract_strided_slice %63 {offsets = [0, 2, 0, 0], sizes = [2, 16, 16, 128], strides = [1, 1, 1, 1]} : vector<2x18x18x128xf32> to vector<2x16x16x128xf32>
    %71 = vector.extract_strided_slice %63 {offsets = [0, 2, 1, 0], sizes = [2, 16, 16, 128], strides = [1, 1, 1, 1]} : vector<2x18x18x128xf32> to vector<2x16x16x128xf32>
    %72 = vector.extract_strided_slice %63 {offsets = [0, 2, 2, 0], sizes = [2, 16, 16, 128], strides = [1, 1, 1, 1]} : vector<2x18x18x128xf32> to vector<2x16x16x128xf32>
    %73 = tpu.concatenate %64, %65, %66, %67, %68, %69, %70, %71, %72 in 3 : vector<2x16x16x128xf32>, vector<2x16x16x128xf32>, vector<2x16x16x128xf32>, vector<2x16x16x128xf32>, vector<2x16x16x128xf32>, vector<2x16x16x128xf32>, vector<2x16x16x128xf32>, vector<2x16x16x128xf32>, vector<2x16x16x128xf32> -> vector<2x16x16x1152xf32>
    %74 = vector.shape_cast %73 : vector<2x16x16x1152xf32> to vector<512x1152xf32>
    %c0_13 = arith.constant 0 : index
    %c0_14 = arith.constant 0 : index
    %75 = vector.load %arg3[%c0_13, %c0_14] : memref<1152x128xf32, #tpu.memory_space<vmem>>, vector<1152x128xf32>
    %cst_15 = arith.constant dense<0.000000e+00> : vector<512x128xf32>
    %76 = tpu.matmul %74, %75, %cst_15 {dimension_numbers = #tpu.dot_dimension_numbers<[1], [0], [0], [1], [0, 0, 1, 1], [], []>} : vector<512x1152xf32>, vector<1152x128xf32>, vector<512x128xf32> -> vector<512x128xf32>
    %77 = vector.shape_cast %76 : vector<512x128xf32> to vector<2x256x128xf32>
    %78 = vector.shape_cast %5 : vector<1x128xf32> to vector<1x1x128xf32>
    %79 = vector.broadcast %78 : vector<1x1x128xf32> to vector<2x256x128xf32>
    %80 = arith.addf %77, %79 : vector<2x256x128xf32>
    %cst_16 = arith.constant dense<0.000000e+00> : vector<2x128xf32>
    %81 = vector.multi_reduction <add>, %80, %cst_16 [1] : vector<2x256x128xf32> to vector<2x128xf32>
    %82 = vector.shape_cast %81 : vector<2x128xf32> to vector<2x1x128xf32>
    %cst_17 = arith.constant 2.560000e+02 : f32
    %83 = vector.broadcast %cst_17 : f32 to vector<2x1x128xf32>
    %84 = arith.divf %82, %83 : vector<2x1x128xf32>
    %85 = vector.broadcast %84 : vector<2x1x128xf32> to vector<2x256x128xf32>
    %86 = arith.subf %80, %85 : vector<2x256x128xf32>
    %87 = arith.mulf %86, %86 : vector<2x256x128xf32>
    %cst_18 = arith.constant dense<0.000000e+00> : vector<2x128xf32>
    %88 = vector.multi_reduction <add>, %87, %cst_18 [1] : vector<2x256x128xf32> to vector<2x128xf32>
    %89 = vector.shape_cast %88 : vector<2x128xf32> to vector<2x1x128xf32>
    %cst_19 = arith.constant 2.560000e+02 : f32
    %90 = vector.broadcast %cst_19 : f32 to vector<2x1x128xf32>
    %91 = arith.divf %89, %90 : vector<2x1x128xf32>
    %92 = vector.broadcast %84 : vector<2x1x128xf32> to vector<2x256x128xf32>
    %93 = arith.subf %80, %92 : vector<2x256x128xf32>
    %cst_20 = arith.constant 9.99999974E-6 : f32
    %94 = vector.broadcast %cst_20 : f32 to vector<2x1x128xf32>
    %95 = arith.addf %91, %94 : vector<2x1x128xf32>
    %96 = math.rsqrt %95 : vector<2x1x128xf32>
    %97 = vector.broadcast %96 : vector<2x1x128xf32> to vector<2x256x128xf32>
    %98 = arith.mulf %93, %97 : vector<2x256x128xf32>
    %99 = vector.shape_cast %6 : vector<1x128xf32> to vector<1x1x128xf32>
    %100 = vector.broadcast %99 : vector<1x1x128xf32> to vector<2x256x128xf32>
    %101 = arith.mulf %98, %100 : vector<2x256x128xf32>
    %102 = vector.shape_cast %7 : vector<1x128xf32> to vector<1x1x128xf32>
    %103 = vector.broadcast %102 : vector<1x1x128xf32> to vector<2x256x128xf32>
    %104 = arith.addf %101, %103 : vector<2x256x128xf32>
    %105 = vector.shape_cast %104 : vector<2x256x128xf32> to vector<2x16x16x128xf32>
    %106 = arith.addf %105, %0 : vector<2x16x16x128xf32>
    %c0_21 = arith.constant 0 : index
    %c0_22 = arith.constant 0 : index
    %c0_23 = arith.constant 0 : index
    %c0_24 = arith.constant 0 : index
    %107 = vector.load %arg5[%c0_21, %c0_22, %c0_23, %c0_24] : memref<2x16x16x128xf32, #tpu.memory_space<vmem>>, vector<2x16x16x128xf32>
    tpu.vector_store %arg5[%c0_21, %c0_22, %c0_23, %c0_24], %106 {strides = array<i32>} : memref<2x16x16x128xf32, #tpu.memory_space<vmem>>, vector<2x16x16x128xf32>,
    return
  }
  func.func @transform_0(%arg0: i32) -> (i32, i32, i32, i32) {
    %c0_i32 = arith.constant 0 : i32
    %c0_i32_0 = arith.constant 0 : i32
    %c0_i32_1 = arith.constant 0 : i32
    %c0_i32_2 = arith.constant 0 : i32
    return %arg0, %c0_i32, %c0_i32_0, %c0_i32_1 : i32, i32, i32, i32
  }
  func.func @transform_1(%arg0: i32) -> (i32, i32) {
    %c0_i32 = arith.constant 0 : i32
    %c0_i32_0 = arith.constant 0 : i32
    %c0_i32_1 = arith.constant 0 : i32
    return %c0_i32, %c0_i32_0 : i32, i32
  }
  func.func @transform_2(%arg0: i32) -> (i32, i32) {
    %c0_i32 = arith.constant 0 : i32
    %c0_i32_0 = arith.constant 0 : i32
    %c0_i32_1 = arith.constant 0 : i32
    return %c0_i32, %c0_i32_0 : i32, i32
  }
  func.func @transform_3(%arg0: i32) -> (i32, i32) {
    %c0_i32 = arith.constant 0 : i32
    %c0_i32_0 = arith.constant 0 : i32
    %c0_i32_1 = arith.constant 0 : i32
    return %c0_i32, %c0_i32_0 : i32, i32
  }
  func.func @transform_4(%arg0: i32) -> (i32, i32, i32, i32) {
    %c0_i32 = arith.constant 0 : i32
    %c0_i32_0 = arith.constant 0 : i32
    %c0_i32_1 = arith.constant 0 : i32
    %c0_i32_2 = arith.constant 0 : i32
    return %arg0, %c0_i32, %c0_i32_0, %c0_i32_1 : i32, i32, i32, i32
  }
}

</mosaic_0001>

<llo_original>
// kernel: _lambda_.1
$region0: #{_lambda_.1}
  #allocation0 [shape = 'u32[]', space=smem, size = 0x4, offset = 0x4, fixed_abs, tag = 'smem constant byte address 0x4 - core index']
  #allocation1 [shape = 'u32[72,128]{1,0:T(1,128)}', space=vmem, size = 0x9000, scoped, tag = 'internal scratch']
  %s0 = inlined_call_operand.vmem [shape: f32[2,16,16,128], index: 0, kind: input, shape index: {}]
  %s1 = inlined_call_operand.vmem [shape: f32[1152,128], index: 1, kind: input, shape index: {}]
  %s2 = inlined_call_operand.vmem [shape: f32[1152,128], index: 2, kind: input, shape index: {}]
  %s3 = inlined_call_operand.vmem [shape: f32[8,128], index: 3, kind: input, shape index: {}]
  %s4 = inlined_call_operand.vmem [shape: f32[2,16,16,128], index: 4, kind: output, shape index: {}]
  %s5 = sld [smem:[#allocation0]]
  $region26: #{_lambda_.1} parent=0
    _
  %s7 = ssub.s32 1, %s5
  %s8 = scalar_select 0, %s7, %s5
  // Predicated region
  $region2: #{_lambda_.1} parent=0 // pred_check
    _
  $region3: #{_lambda_.1} parent=0 // pred_check_branch
    %10 = sbr.rel (0) target = $region5
  $region4: #{_lambda_.1} parent=0 // pred_region
    _
  $region5: #{_lambda_.1} parent=0 // pred_fallthru
    _
  // Predicated region
  $region6: #{_lambda_.1} parent=0 // pred_check
    _
  $region7: #{_lambda_.1} parent=0 // pred_check_branch
    %12 = sbr.rel (0) target = $region9
  $region8: #{_lambda_.1} parent=0 // pred_region
    _
  $region9: #{_lambda_.1} parent=0 // pred_fallthru
    _
  // Predicated region
  $region10: #{_lambda_.1} parent=0 // pred_check
    _
  $region11: #{_lambda_.1} parent=0 // pred_check_branch
    %14 = sbr.rel (0) target = $region13
  $region12: #{_lambda_.1} parent=0 // pred_region
    _
  $region13: #{_lambda_.1} parent=0 // pred_fallthru
    _
  // Predicated region
  $region14: #{_lambda_.1} parent=0 // pred_check
    _
  $region15: #{_lambda_.1} parent=0 // pred_check_branch
    %16 = sbr.rel (0) target = $region17
  $region16: #{_lambda_.1} parent=0 // pred_region
    _
  $region17: #{_lambda_.1} parent=0 // pred_fallthru
    _
  %v17 = vld [vmem:[%s0] sm:$0xff]
  %v18 = vld [vmem:[%s0 + $0x8] sm:$0xff]
  %v19 = vld [vmem:[%s0 + $0x10] sm:$0xff]
  %v20 = vld [vmem:[%s0 + $0x18] sm:$0xff]
  %v21 = vld [vmem:[%s0 + $0x20] sm:$0xff]
  %v22 = vld [vmem:[%s0 + $0x28] sm:$0xff]
  %v23 = vld [vmem:[%s0 + $0x30] sm:$0xff]
  %v24 = vld [vmem:[%s0 + $0x38] sm:$0xff]
  %v25 = vld [vmem:[%s0 + $0x40] sm:$0xff]
  %v26 = vld [vmem:[%s0 + $0x48] sm:$0xff]
  %v27 = vld [vmem:[%s0 + $0x50] sm:$0xff]
  %v28 = vld [vmem:[%s0 + $0x58] sm:$0xff]
  %v29 = vld [vmem:[%s0 + $0x60] sm:$0xff]
  %v30 = vld [vmem:[%s0 + $0x68] sm:$0xff]
  %v31 = vld [vmem:[%s0 + $0x70] sm:$0xff]
  %v32 = vld [vmem:[%s0 + $0x78] sm:$0xff]
  %v33 = vld [vmem:[%s0 + $0x80] sm:$0xff]
  %v34 = vld [vmem:[%s0 + $0x88] sm:$0xff]
  %v35 = vld [vmem:[%s0 + $0x90] sm:$0xff]
  %v36 = vld [vmem:[%s0 + $0x98] sm:$0xff]
  %v37 = vld [vmem:[%s0 + $0xa0] sm:$0xff]
  %v38 = vld [vmem:[%s0 + $0xa8] sm:$0xff]
  %v39 = vld [vmem:[%s0 + $0xb0] sm:$0xff]
  %v40 = vld [vmem:[%s0 + $0xb8] sm:$0xff]
  %v41 = vld [vmem:[%s0 + $0xc0] sm:$0xff]
  %v42 = vld [vmem:[%s0 + $0xc8] sm:$0xff]
  %v43 = vld [vmem:[%s0 + $0xd0] sm:$0xff]
  %v44 = vld [vmem:[%s0 + $0xd8] sm:$0xff]
  %v45 = vld [vmem:[%s0 + $0xe0] sm:$0xff]
  %v46 = vld [vmem:[%s0 + $0xe8] sm:$0xff]
  %v47 = vld [vmem:[%s0 + $0xf0] sm:$0xff]
  %v48 = vld [vmem:[%s0 + $0xf8] sm:$0xff]
  %v49 = vld [vmem:[%s0 + $0x100] sm:$0xff]
  %v50 = vld [vmem:[%s0 + $0x108] sm:$0xff]
  %v51 = vld [vmem:[%s0 + $0x110] sm:$0xff]
  %v52 = vld [vmem:[%s0 + $0x118] sm:$0xff]
  %v53 = vld [vmem:[%s0 + $0x120] sm:$0xff]
  %v54 = vld [vmem:[%s0 + $0x128] sm:$0xff]
  %v55 = vld [vmem:[%s0 + $0x130] sm:$0xff]
  %v56 = vld [vmem:[%s0 + $0x138] sm:$0xff]
  %v57 = vld [vmem:[%s0 + $0x140] sm:$0xff]
  %v58 = vld [vmem:[%s0 + $0x148] sm:$0xff]
  %v59 = vld [vmem:[%s0 + $0x150] sm:$0xff]
  %v60 = vld [vmem:[%s0 + $0x158] sm:$0xff]
  %v61 = vld [vmem:[%s0 + $0x160] sm:$0xff]
  %v62 = vld [vmem:[%s0 + $0x168] sm:$0xff]
  %v63 = vld [vmem:[%s0 + $0x170] sm:$0xff]
  %v64 = vld [vmem:[%s0 + $0x178] sm:$0xff]
  %v65 = vld [vmem:[%s0 + $0x180] sm:$0xff]
  %v66 = vld [vmem:[%s0 + $0x188] sm:$0xff]
  %v67 = vld [vmem:[%s0 + $0x190] sm:$0xff]
  %v68 = vld [vmem:[%s0 + $0x198] sm:$0xff]
  %v69 = vld [vmem:[%s0 + $0x1a0] sm:$0xff]
  %v70 = vld [vmem:[%s0 + $0x1a8] sm:$0xff]
  %v71 = vld [vmem:[%s0 + $0x1b0] sm:$0xff]
  %v72 = vld [vmem:[%s0 + $0x1b8] sm:$0xff]
  %v73 = vld [vmem:[%s0 + $0x1c0] sm:$0xff]
  %v74 = vld [vmem:[%s0 + $0x1c8] sm:$0xff]
  %v75 = vld [vmem:[%s0 + $0x1d0] sm:$0xff]
  %v76 = vld [vmem:[%s0 + $0x1d8] sm:$0xff]
  %v77 = vld [vmem:[%s0 + $0x1e0] sm:$0xff]
  %v78 = vld [vmem:[%s0 + $0x1e8] sm:$0xff]
  %v79 = vld [vmem:[%s0 + $0x1f0] sm:$0xff]
  %v80 = vld [vmem:[%s0 + $0x1f8] sm:$0xff]
  %v81 = vld [vmem:[%s3] sm:$0xff]
  %v114 = vrot.slane %v19, 1
  %v115 = vrot.slane %v17, 1
  %v116 = vrot.slane %v21, 1
  %v117 = vrot.slane %v23, 1
  %v118 = vrot.slane %v25, 1
  %v119 = vrot.slane %v27, 1
  %v120 = vrot.slane %v29, 1
  %v121 = vrot.slane %v31, 1
  %v122 = vrot.slane %v33, 1
  %v123 = vrot.slane %v35, 1
  %v124 = vrot.slane %v37, 1
  %v125 = vrot.slane %v39, 1
  %v126 = vrot.slane %v41, 1
  %v127 = vrot.slane %v43, 1
  %v128 = vrot.slane %v45, 1
  %v129 = vrot.slane %v47, 1
  %v130 = vrot.slane %v51, 1
  %v131 = vrot.slane %v49, 1
  %v132 = vrot.slane %v53, 1
  %v133 = vrot.slane %v55, 1
  %v134 = vrot.slane %v57, 1
  %v135 = vrot.slane %v59, 1
  %v136 = vrot.slane %v61, 1
  %v137 = vrot.slane %v63, 1
  %v138 = vrot.slane %v65, 1
  %v139 = vrot.slane %v67, 1
  %v140 = vrot.slane %v69, 1
  %v141 = vrot.slane %v71, 1
  %v142 = vrot.slane %v73, 1
  %v143 = vrot.slane %v75, 1
  %v144 = vrot.slane %v77, 1
  %v145 = vrot.slane %v79, 1
  %vm210 = vcmask 1040384
  %v211 = vrot.slane %v19, 7
  %v212 = vrot.slane %v20, 7
  %v213 = vsel %vm210, %v211, %v212
  %v214 = vrot.slane %v17, 7
  %v215 = vrot.slane %v18, 7
  %v216 = vsel %vm210, %v214, %v215
  %v217 = vrot.slane %v21, 7
  %v218 = vrot.slane %v22, 7
  %v219 = vsel %vm210, %v217, %v218
  %v220 = vrot.slane %v23, 7
  %v221 = vrot.slane %v24, 7
  %v222 = vsel %vm210, %v220, %v221
  %v223 = vrot.slane %v25, 7
  %v224 = vrot.slane %v26, 7
  %v225 = vsel %vm210, %v223, %v224
  %v226 = vrot.slane %v27, 7
  %v227 = vrot.slane %v28, 7
  %v228 = vsel %vm210, %v226, %v227
  %v229 = vrot.slane %v29, 7
  %v230 = vrot.slane %v30, 7
  %v231 = vsel %vm210, %v229, %v230
  %v232 = vrot.slane %v31, 7
  %v233 = vrot.slane %v32, 7
  %v234 = vsel %vm210, %v232, %v233
  %v235 = vrot.slane %v33, 7
  %v236 = vrot.slane %v34, 7
  %v237 = vsel %vm210, %v235, %v236
  %v238 = vrot.slane %v35, 7
  %v239 = vrot.slane %v36, 7
  %v240 = vsel %vm210, %v238, %v239
  %v241 = vrot.slane %v37, 7
  %v242 = vrot.slane %v38, 7
  %v243 = vsel %vm210, %v241, %v242
  %v244 = vrot.slane %v39, 7
  %v245 = vrot.slane %v40, 7
  %v246 = vsel %vm210, %v244, %v245
  %v247 = vrot.slane %v41, 7
  %v248 = vrot.slane %v42, 7
  %v249 = vsel %vm210, %v247, %v248
  %v250 = vrot.slane %v43, 7
  %v251 = vrot.slane %v44, 7
  %v252 = vsel %vm210, %v250, %v251
  %v253 = vrot.slane %v45, 7
  %v254 = vrot.slane %v46, 7
  %v255 = vsel %vm210, %v253, %v254
  %v256 = vrot.slane %v47, 7
  %v257 = vrot.slane %v48, 7
  %v258 = vsel %vm210, %v256, %v257
  %v259 = vrot.slane %v51, 7
  %v260 = vrot.slane %v52, 7
  %v261 = vsel %vm210, %v259, %v260
  %v262 = vrot.slane %v49, 7
  %v263 = vrot.slane %v50, 7
  %v264 = vsel %vm210, %v262, %v263
  %v265 = vrot.slane %v53, 7
  %v266 = vrot.slane %v54, 7
  %v267 = vsel %vm210, %v265, %v266
  %v268 = vrot.slane %v55, 7
  %v269 = vrot.slane %v56, 7
  %v270 = vsel %vm210, %v268, %v269
  %v271 = vrot.slane %v57, 7
  %v272 = vrot.slane %v58, 7
  %v273 = vsel %vm210, %v271, %v272
  %v274 = vrot.slane %v59, 7
  %v275 = vrot.slane %v60, 7
  %v276 = vsel %vm210, %v274, %v275
  %v277 = vrot.slane %v61, 7
  %v278 = vrot.slane %v62, 7
  %v279 = vsel %vm210, %v277, %v278
  %v280 = vrot.slane %v63, 7
  %v281 = vrot.slane %v64, 7
  %v282 = vsel %vm210, %v280, %v281
  %v283 = vrot.slane %v65, 7
  %v284 = vrot.slane %v66, 7
  %v285 = vsel %vm210, %v283, %v284
  %v286 = vrot.slane %v67, 7
  %v287 = vrot.slane %v68, 7
  %v288 = vsel %vm210, %v286, %v287
  %v289 = vrot.slane %v69, 7
  %v290 = vrot.slane %v70, 7
  %v291 = vsel %vm210, %v289, %v290
  %v292 = vrot.slane %v71, 7
  %v293 = vrot.slane %v72, 7
  %v294 = vsel %vm210, %v292, %v293
  %v295 = vrot.slane %v73, 7
  %v296 = vrot.slane %v74, 7
  %v297 = vsel %vm210, %v295, %v296
  %v298 = vrot.slane %v75, 7
  %v299 = vrot.slane %v76, 7
  %v300 = vsel %vm210, %v298, %v299
  %v301 = vrot.slane %v77, 7
  %v302 = vrot.slane %v78, 7
  %v303 = vsel %vm210, %v301, %v302
  %v304 = vrot.slane %v79, 7
  %v305 = vrot.slane %v80, 7
  %v306 = vsel %vm210, %v304, %v305
  %v403 = vrot.slane %v20, 5
  %v404 = vrot.slane %v18, 5
  %v405 = vrot.slane %v22, 5
  %v406 = vrot.slane %v24, 5
  %v407 = vrot.slane %v26, 5
  %v408 = vrot.slane %v28, 5
  %v409 = vrot.slane %v30, 5
  %v410 = vrot.slane %v32, 5
  %v411 = vrot.slane %v34, 5
  %v412 = vrot.slane %v36, 5
  %v413 = vrot.slane %v38, 5
  %v414 = vrot.slane %v40, 5
  %v415 = vrot.slane %v42, 5
  %v416 = vrot.slane %v44, 5
  %v417 = vrot.slane %v46, 5
  %v418 = vrot.slane %v48, 5
  %v419 = vrot.slane %v52, 5
  %v420 = vrot.slane %v50, 5
  %v421 = vrot.slane %v54, 5
  %v422 = vrot.slane %v56, 5
  %v423 = vrot.slane %v58, 5
  %v424 = vrot.slane %v60, 5
  %v425 = vrot.slane %v62, 5
  %v426 = vrot.slane %v64, 5
  %v427 = vrot.slane %v66, 5
  %v428 = vrot.slane %v68, 5
  %v429 = vrot.slane %v70, 5
  %v430 = vrot.slane %v72, 5
  %v431 = vrot.slane %v74, 5
  %v432 = vrot.slane %v76, 5
  %v433 = vrot.slane %v78, 5
  %v434 = vrot.slane %v80, 5
  %v467 = vsel %vm210, %v114, %v211
  %v468 = vsel %vm210, %v115, %v214
  %v469 = vsel %vm210, %v116, %v217
  %v470 = vsel %vm210, %v117, %v220
  %v471 = vsel %vm210, %v118, %v223
  %v472 = vsel %vm210, %v119, %v226
  %v473 = vsel %vm210, %v120, %v229
  %v474 = vsel %vm210, %v121, %v232
  %v475 = vsel %vm210, %v122, %v235
  %v476 = vsel %vm210, %v123, %v238
  %v477 = vsel %vm210, %v124, %v241
  %v478 = vsel %vm210, %v125, %v244
  %v479 = vsel %vm210, %v126, %v247
  %v480 = vsel %vm210, %v127, %v250
  %v481 = vsel %vm210, %v128, %v253
  %v482 = vsel %vm210, %v129, %v256
  %v483 = vsel %vm210, %v130, %v259
  %v484 = vsel %vm210, %v131, %v262
  %v485 = vsel %vm210, %v132, %v265
  %v486 = vsel %vm210, %v133, %v268
  %v487 = vsel %vm210, %v134, %v271
  %v488 = vsel %vm210, %v135, %v274
  %v489 = vsel %vm210, %v136, %v277
  %v490 = vsel %vm210, %v137, %v280
  %v491 = vsel %vm210, %v138, %v283
  %v492 = vsel %vm210, %v139, %v286
  %v493 = vsel %vm210, %v140, %v289
  %v494 = vsel %vm210, %v141, %v292
  %v495 = vsel %vm210, %v142, %v295
  %v496 = vsel %vm210, %v143, %v298
  %v497 = vsel %vm210, %v144, %v301
  %v498 = vsel %vm210, %v145, %v304
  %v499 = vsel %vm210, %v212, %v403
  %v500 = vsel %vm210, %v215, %v404
  %v501 = vsel %vm210, %v218, %v405
  %v502 = vsel %vm210, %v221, %v406
  %v503 = vsel %vm210, %v224, %v407
  %v504 = vsel %vm210, %v227, %v408
  %v505 = vsel %vm210, %v230, %v409
  %v506 = vsel %vm210, %v233, %v410
  %v507 = vsel %vm210, %v236, %v411
  %v508 = vsel %vm210, %v239, %v412
  %v509 = vsel %vm210, %v242, %v413
  %v510 = vsel %vm210, %v245, %v414
  %v511 = vsel %vm210, %v248, %v415
  %v512 = vsel %vm210, %v251, %v416
  %v513 = vsel %vm210, %v254, %v417
  %v514 = vsel %vm210, %v257, %v418
  %v515 = vsel %vm210, %v260, %v419
  %v516 = vsel %vm210, %v263, %v420
  %v517 = vsel %vm210, %v266, %v421
  %v518 = vsel %vm210, %v269, %v422
  %v519 = vsel %vm210, %v272, %v423
  %v520 = vsel %vm210, %v275, %v424
  %v521 = vsel %vm210, %v278, %v425
  %v522 = vsel %vm210, %v281, %v426
  %v523 = vsel %vm210, %v284, %v427
  %v524 = vsel %vm210, %v287, %v428
  %v525 = vsel %vm210, %v290, %v429
  %v526 = vsel %vm210, %v293, %v430
  %v527 = vsel %vm210, %v296, %v431
  %v528 = vsel %vm210, %v299, %v432
  %v529 = vsel %vm210, %v302, %v433
  %v530 = vsel %vm210, %v305, %v434
  %vm591 = vcmask 1046528
  %v592 = vrot.slane %v467, 1
  %v593 = vrot.slane %v213, 1
  %v594 = vsel %vm591, %v592, %v593
  %v595 = vrot.slane %v499, 1
  %v596 = vsel %vm591, %v593, %v595
  %v597 = vrot.slane %v468, 1
  %v598 = vrot.slane %v216, 1
  %v599 = vsel %vm591, %v597, %v598
  %v600 = vrot.slane %v500, 1
  %v601 = vsel %vm591, %v598, %v600
  %v602 = vrot.slane %v469, 1
  %v603 = vrot.slane %v219, 1
  %v604 = vsel %vm591, %v602, %v603
  %v605 = vrot.slane %v501, 1
  %v606 = vsel %vm591, %v603, %v605
  %v607 = vrot.slane %v470, 1
  %v608 = vrot.slane %v222, 1
  %v609 = vsel %vm591, %v607, %v608
  %v610 = vrot.slane %v502, 1
  %v611 = vsel %vm591, %v608, %v610
  %v612 = vrot.slane %v471, 1
  %v613 = vrot.slane %v225, 1
  %v614 = vsel %vm591, %v612, %v613
  %v615 = vrot.slane %v503, 1
  %v616 = vsel %vm591, %v613, %v615
  %v617 = vrot.slane %v472, 1
  %v618 = vrot.slane %v228, 1
  %v619 = vsel %vm591, %v617, %v618
  %v620 = vrot.slane %v504, 1
  %v621 = vsel %vm591, %v618, %v620
  %v622 = vrot.slane %v473, 1
  %v623 = vrot.slane %v231, 1
  %v624 = vsel %vm591, %v622, %v623
  %v625 = vrot.slane %v505, 1
  %v626 = vsel %vm591, %v623, %v625
  %v627 = vrot.slane %v474, 1
  %v628 = vrot.slane %v234, 1
  %v629 = vsel %vm591, %v627, %v628
  %v630 = vrot.slane %v506, 1
  %v631 = vsel %vm591, %v628, %v630
  %v632 = vrot.slane %v475, 1
  %v633 = vrot.slane %v237, 1
  %v634 = vsel %vm591, %v632, %v633
  %v635 = vrot.slane %v507, 1
  %v636 = vsel %vm591, %v633, %v635
  %v637 = vrot.slane %v476, 1
  %v638 = vrot.slane %v240, 1
  %v639 = vsel %vm591, %v637, %v638
  %v640 = vrot.slane %v508, 1
  %v641 = vsel %vm591, %v638, %v640
  %v642 = vrot.slane %v477, 1
  %v643 = vrot.slane %v243, 1
  %v644 = vsel %vm591, %v642, %v643
  %v645 = vrot.slane %v509, 1
  %v646 = vsel %vm591, %v643, %v645
  %v647 = vrot.slane %v478, 1
  %v648 = vrot.slane %v246, 1
  %v649 = vsel %vm591, %v647, %v648
  %v650 = vrot.slane %v510, 1
  %v651 = vsel %vm591, %v648, %v650
  %v652 = vrot.slane %v479, 1
  %v653 = vrot.slane %v249, 1
  %v654 = vsel %vm591, %v652, %v653
  %v655 = vrot.slane %v511, 1
  %v656 = vsel %vm591, %v653, %v655
  %v657 = vrot.slane %v480, 1
  %v658 = vrot.slane %v252, 1
  %v659 = vsel %vm591, %v657, %v658
  %v660 = vrot.slane %v512, 1
  %v661 = vsel %vm591, %v658, %v660
  %v662 = vrot.slane %v481, 1
  %v663 = vrot.slane %v255, 1
  %v664 = vsel %vm591, %v662, %v663
  %v665 = vrot.slane %v513, 1
  %v666 = vsel %vm591, %v663, %v665
  %v667 = vrot.slane %v483, 1
  %v668 = vrot.slane %v261, 1
  %v669 = vsel %vm591, %v667, %v668
  %v670 = vrot.slane %v515, 1
  %v671 = vsel %vm591, %v668, %v670
  %v672 = vrot.slane %v484, 1
  %v673 = vrot.slane %v264, 1
  %v674 = vsel %vm591, %v672, %v673
  %v675 = vrot.slane %v516, 1
  %v676 = vsel %vm591, %v673, %v675
  %v677 = vrot.slane %v485, 1
  %v678 = vrot.slane %v267, 1
  %v679 = vsel %vm591, %v677, %v678
  %v680 = vrot.slane %v517, 1
  %v681 = vsel %vm591, %v678, %v680
  %v682 = vrot.slane %v486, 1
  %v683 = vrot.slane %v270, 1
  %v684 = vsel %vm591, %v682, %v683
  %v685 = vrot.slane %v518, 1
  %v686 = vsel %vm591, %v683, %v685
  %v687 = vrot.slane %v487, 1
  %v688 = vrot.slane %v273, 1
  %v689 = vsel %vm591, %v687, %v688
  %v690 = vrot.slane %v519, 1
  %v691 = vsel %vm591, %v688, %v690
  %v692 = vrot.slane %v488, 1
  %v693 = vrot.slane %v276, 1
  %v694 = vsel %vm591, %v692, %v693
  %v695 = vrot.slane %v520, 1
  %v696 = vsel %vm591, %v693, %v695
  %v697 = vrot.slane %v489, 1
  %v698 = vrot.slane %v279, 1
  %v699 = vsel %vm591, %v697, %v698
  %v700 = vrot.slane %v521, 1
  %v701 = vsel %vm591, %v698, %v700
  %v702 = vrot.slane %v490, 1
  %v703 = vrot.slane %v282, 1
  %v704 = vsel %vm591, %v702, %v703
  %v705 = vrot.slane %v522, 1
  %v706 = vsel %vm591, %v703, %v705
  %v707 = vrot.slane %v491, 1
  %v708 = vrot.slane %v285, 1
  %v709 = vsel %vm591, %v707, %v708
  %v710 = vrot.slane %v523, 1
  %v711 = vsel %vm591, %v708, %v710
  %v712 = vrot.slane %v492, 1
  %v713 = vrot.slane %v288, 1
  %v714 = vsel %vm591, %v712, %v713
  %v715 = vrot.slane %v524, 1
  %v716 = vsel %vm591, %v713, %v715
  %v717 = vrot.slane %v493, 1
  %v718 = vrot.slane %v291, 1
  %v719 = vsel %vm591, %v717, %v718
  %v720 = vrot.slane %v525, 1
  %v721 = vsel %vm591, %v718, %v720
  %v722 = vrot.slane %v494, 1
  %v723 = vrot.slane %v294, 1
  %v724 = vsel %vm591, %v722, %v723
  %v725 = vrot.slane %v526, 1
  %v726 = vsel %vm591, %v723, %v725
  %v727 = vrot.slane %v495, 1
  %v728 = vrot.slane %v297, 1
  %v729 = vsel %vm591, %v727, %v728
  %v730 = vrot.slane %v527, 1
  %v731 = vsel %vm591, %v728, %v730
  %v732 = vrot.slane %v496, 1
  %v733 = vrot.slane %v300, 1
  %v734 = vsel %vm591, %v732, %v733
  %v735 = vrot.slane %v528, 1
  %v736 = vsel %vm591, %v733, %v735
  %v737 = vrot.slane %v497, 1
  %v738 = vrot.slane %v303, 1
  %v739 = vsel %vm591, %v737, %v738
  %v740 = vrot.slane %v529, 1
  %v741 = vsel %vm591, %v738, %v740
  %vm802 = vcmask 1045504
  %v803 = vrot.slane %v467, 2
  %v804 = vrot.slane %v213, 2
  %v805 = vsel %vm802, %v803, %v804
  %v806 = vrot.slane %v499, 2
  %v807 = vsel %vm802, %v804, %v806
  %v808 = vrot.slane %v468, 2
  %v809 = vrot.slane %v216, 2
  %v810 = vsel %vm802, %v808, %v809
  %v811 = vrot.slane %v500, 2
  %v812 = vsel %vm802, %v809, %v811
  %v813 = vrot.slane %v469, 2
  %v814 = vrot.slane %v219, 2
  %v815 = vsel %vm802, %v813, %v814
  %v816 = vrot.slane %v501, 2
  %v817 = vsel %vm802, %v814, %v816
  %v818 = vrot.slane %v470, 2
  %v819 = vrot.slane %v222, 2
  %v820 = vsel %vm802, %v818, %v819
  %v821 = vrot.slane %v502, 2
  %v822 = vsel %vm802, %v819, %v821
  %v823 = vrot.slane %v471, 2
  %v824 = vrot.slane %v225, 2
  %v825 = vsel %vm802, %v823, %v824
  %v826 = vrot.slane %v503, 2
  %v827 = vsel %vm802, %v824, %v826
  %v828 = vrot.slane %v472, 2
  %v829 = vrot.slane %v228, 2
  %v830 = vsel %vm802, %v828, %v829
  %v831 = vrot.slane %v504, 2
  %v832 = vsel %vm802, %v829, %v831
  %v833 = vrot.slane %v473, 2
  %v834 = vrot.slane %v231, 2
  %v835 = vsel %vm802, %v833, %v834
  %v836 = vrot.slane %v505, 2
  %v837 = vsel %vm802, %v834, %v836
  %v838 = vrot.slane %v474, 2
  %v839 = vrot.slane %v234, 2
  %v840 = vsel %vm802, %v838, %v839
  %v841 = vrot.slane %v506, 2
  %v842 = vsel %vm802, %v839, %v841
  %v843 = vrot.slane %v475, 2
  %v844 = vrot.slane %v237, 2
  %v845 = vsel %vm802, %v843, %v844
  %v846 = vrot.slane %v507, 2
  %v847 = vsel %vm802, %v844, %v846
  %v848 = vrot.slane %v476, 2
  %v849 = vrot.slane %v240, 2
  %v850 = vsel %vm802, %v848, %v849
  %v851 = vrot.slane %v508, 2
  %v852 = vsel %vm802, %v849, %v851
  %v853 = vrot.slane %v477, 2
  %v854 = vrot.slane %v243, 2
  %v855 = vsel %vm802, %v853, %v854
  %v856 = vrot.slane %v509, 2
  %v857 = vsel %vm802, %v854, %v856
  %v858 = vrot.slane %v478, 2
  %v859 = vrot.slane %v246, 2
  %v860 = vsel %vm802, %v858, %v859
  %v861 = vrot.slane %v510, 2
  %v862 = vsel %vm802, %v859, %v861
  %v863 = vrot.slane %v479, 2
  %v864 = vrot.slane %v249, 2
  %v865 = vsel %vm802, %v863, %v864
  %v866 = vrot.slane %v511, 2
  %v867 = vsel %vm802, %v864, %v866
  %v868 = vrot.slane %v480, 2
  %v869 = vrot.slane %v252, 2
  %v870 = vsel %vm802, %v868, %v869
  %v871 = vrot.slane %v512, 2
  %v872 = vsel %vm802, %v869, %v871
  %v873 = vrot.slane %v481, 2
  %v874 = vrot.slane %v255, 2
  %v875 = vsel %vm802, %v873, %v874
  %v876 = vrot.slane %v513, 2
  %v877 = vsel %vm802, %v874, %v876
  %v878 = vrot.slane %v483, 2
  %v879 = vrot.slane %v261, 2
  %v880 = vsel %vm802, %v878, %v879
  %v881 = vrot.slane %v515, 2
  %v882 = vsel %vm802, %v879, %v881
  %v883 = vrot.slane %v484, 2
  %v884 = vrot.slane %v264, 2
  %v885 = vsel %vm802, %v883, %v884
  %v886 = vrot.slane %v516, 2
  %v887 = vsel %vm802, %v884, %v886
  %v888 = vrot.slane %v485, 2
  %v889 = vrot.slane %v267, 2
  %v890 = vsel %vm802, %v888, %v889
  %v891 = vrot.slane %v517, 2
  %v892 = vsel %vm802, %v889, %v891
  %v893 = vrot.slane %v486, 2
  %v894 = vrot.slane %v270, 2
  %v895 = vsel %vm802, %v893, %v894
  %v896 = vrot.slane %v518, 2
  %v897 = vsel %vm802, %v894, %v896
  %v898 = vrot.slane %v487, 2
  %v899 = vrot.slane %v273, 2
  %v900 = vsel %vm802, %v898, %v899
  %v901 = vrot.slane %v519, 2
  %v902 = vsel %vm802, %v899, %v901
  %v903 = vrot.slane %v488, 2
  %v904 = vrot.slane %v276, 2
  %v905 = vsel %vm802, %v903, %v904
  %v906 = vrot.slane %v520, 2
  %v907 = vsel %vm802, %v904, %v906
  %v908 = vrot.slane %v489, 2
  %v909 = vrot.slane %v279, 2
  %v910 = vsel %vm802, %v908, %v909
  %v911 = vrot.slane %v521, 2
  %v912 = vsel %vm802, %v909, %v911
  %v913 = vrot.slane %v490, 2
  %v914 = vrot.slane %v282, 2
  %v915 = vsel %vm802, %v913, %v914
  %v916 = vrot.slane %v522, 2
  %v917 = vsel %vm802, %v914, %v916
  %v918 = vrot.slane %v491, 2
  %v919 = vrot.slane %v285, 2
  %v920 = vsel %vm802, %v918, %v919
  %v921 = vrot.slane %v523, 2
  %v922 = vsel %vm802, %v919, %v921
  %v923 = vrot.slane %v492, 2
  %v924 = vrot.slane %v288, 2
  %v925 = vsel %vm802, %v923, %v924
  %v926 = vrot.slane %v524, 2
  %v927 = vsel %vm802, %v924, %v926
  %v928 = vrot.slane %v493, 2
  %v929 = vrot.slane %v291, 2
  %v930 = vsel %vm802, %v928, %v929
  %v931 = vrot.slane %v525, 2
  %v932 = vsel %vm802, %v929, %v931
  %v933 = vrot.slane %v494, 2
  %v934 = vrot.slane %v294, 2
  %v935 = vsel %vm802, %v933, %v934
  %v936 = vrot.slane %v526, 2
  %v937 = vsel %vm802, %v934, %v936
  %v938 = vrot.slane %v495, 2
  %v939 = vrot.slane %v297, 2
  %v940 = vsel %vm802, %v938, %v939
  %v941 = vrot.slane %v527, 2
  %v942 = vsel %vm802, %v939, %v941
  %v943 = vrot.slane %v496, 2
  %v944 = vrot.slane %v300, 2
  %v945 = vsel %vm802, %v943, %v944
  %v946 = vrot.slane %v528, 2
  %v947 = vsel %vm802, %v944, %v946
  %v948 = vrot.slane %v497, 2
  %v949 = vrot.slane %v303, 2
  %v950 = vsel %vm802, %v948, %v949
  %v951 = vrot.slane %v529, 2
  %v952 = vsel %vm802, %v949, %v951
  %v1017 = vrot.slane %v482, 1
  %v1018 = vrot.slane %v258, 1
  %v1019 = vsel %vm591, %v1017, %v1018
  %v1020 = vrot.slane %v514, 1
  %v1021 = vsel %vm591, %v1018, %v1020
  %v1022 = vrot.slane %v498, 1
  %v1023 = vrot.slane %v306, 1
  %v1024 = vsel %vm591, %v1022, %v1023
  %v1025 = vrot.slane %v530, 1
  %v1026 = vsel %vm591, %v1023, %v1025
  %v1031 = vrot.slane %v482, 2
  %v1032 = vrot.slane %v258, 2
  %v1033 = vsel %vm802, %v1031, %v1032
  %v1034 = vrot.slane %v514, 2
  %v1035 = vsel %vm802, %v1032, %v1034
  %v1036 = vrot.slane %v498, 2
  %v1037 = vrot.slane %v306, 2
  %v1038 = vsel %vm802, %v1036, %v1037
  %v1039 = vrot.slane %v530, 2
  %v1040 = vsel %vm802, %v1037, %v1039
  %v1045 = vld [vmem:[%s1] sm:$0xff]
  %v1046 = vld [vmem:[%s1 + $0x8] sm:$0xff]
  %v1047 = vld [vmem:[%s1 + $0x10] sm:$0xff]
  %v1048 = vld [vmem:[%s1 + $0x18] sm:$0xff]
  %v1049 = vld [vmem:[%s1 + $0x20] sm:$0xff]
  %v1050 = vld [vmem:[%s1 + $0x28] sm:$0xff]
  %v1051 = vld [vmem:[%s1 + $0x30] sm:$0xff]
  %v1052 = vld [vmem:[%s1 + $0x38] sm:$0xff]
  %v1053 = vld [vmem:[%s1 + $0x40] sm:$0xff]
  %v1054 = vld [vmem:[%s1 + $0x48] sm:$0xff]
  %v1055 = vld [vmem:[%s1 + $0x50] sm:$0xff]
  %v1056 = vld [vmem:[%s1 + $0x58] sm:$0xff]
  %v1057 = vld [vmem:[%s1 + $0x60] sm:$0xff]
  %v1058 = vld [vmem:[%s1 + $0x68] sm:$0xff]
  %v1059 = vld [vmem:[%s1 + $0x70] sm:$0xff]
  %v1060 = vld [vmem:[%s1 + $0x78] sm:$0xff]
  %v1061 = vld [vmem:[%s1 + $0x80] sm:$0xff]
  %v1062 = vld [vmem:[%s1 + $0x88] sm:$0xff]
  %v1063 = vld [vmem:[%s1 + $0x90] sm:$0xff]
  %v1064 = vld [vmem:[%s1 + $0x98] sm:$0xff]
  %v1065 = vld [vmem:[%s1 + $0xa0] sm:$0xff]
  %v1066 = vld [vmem:[%s1 + $0xa8] sm:$0xff]
  %v1067 = vld [vmem:[%s1 + $0xb0] sm:$0xff]
  %v1068 = vld [vmem:[%s1 + $0xb8] sm:$0xff]
  %v1069 = vld [vmem:[%s1 + $0xc0] sm:$0xff]
  %v1070 = vld [vmem:[%s1 + $0xc8] sm:$0xff]
  %v1071 = vld [vmem:[%s1 + $0xd0] sm:$0xff]
  %v1072 = vld [vmem:[%s1 + $0xd8] sm:$0xff]
  %v1073 = vld [vmem:[%s1 + $0xe0] sm:$0xff]
  %v1074 = vld [vmem:[%s1 + $0xe8] sm:$0xff]
  %v1075 = vld [vmem:[%s1 + $0xf0] sm:$0xff]
  %v1076 = vld [vmem:[%s1 + $0xf8] sm:$0xff]
  %v1077 = vld [vmem:[%s1 + $0x100] sm:$0xff]
  %v1078 = vld [vmem:[%s1 + $0x108] sm:$0xff]
  %v1079 = vld [vmem:[%s1 + $0x110] sm:$0xff]
  %v1080 = vld [vmem:[%s1 + $0x118] sm:$0xff]
  %v1081 = vld [vmem:[%s1 + $0x120] sm:$0xff]
  %v1082 = vld [vmem:[%s1 + $0x128] sm:$0xff]
  %v1083 = vld [vmem:[%s1 + $0x130] sm:$0xff]
  %v1084 = vld [vmem:[%s1 + $0x138] sm:$0xff]
  %v1085 = vld [vmem:[%s1 + $0x140] sm:$0xff]
  %v1086 = vld [vmem:[%s1 + $0x148] sm:$0xff]
  %v1087 = vld [vmem:[%s1 + $0x150] sm:$0xff]
  %v1088 = vld [vmem:[%s1 + $0x158] sm:$0xff]
  %v1089 = vld [vmem:[%s1 + $0x160] sm:$0xff]
  %v1090 = vld [vmem:[%s1 + $0x168] sm:$0xff]
  %v1091 = vld [vmem:[%s1 + $0x170] sm:$0xff]
  %v1092 = vld [vmem:[%s1 + $0x178] sm:$0xff]
  %v1093 = vld [vmem:[%s1 + $0x180] sm:$0xff]
  %v1094 = vld [vmem:[%s1 + $0x188] sm:$0xff]
  %v1095 = vld [vmem:[%s1 + $0x190] sm:$0xff]
  %v1096 = vld [vmem:[%s1 + $0x198] sm:$0xff]
  %v1097 = vld [vmem:[%s1 + $0x1a0] sm:$0xff]
  %v1098 = vld [vmem:[%s1 + $0x1a8] sm:$0xff]
  %v1099 = vld [vmem:[%s1 + $0x1b0] sm:$0xff]
  %v1100 = vld [vmem:[%s1 + $0x1b8] sm:$0xff]
  %v1101 = vld [vmem:[%s1 + $0x1c0] sm:$0xff]
  %v1102 = vld [vmem:[%s1 + $0x1c8] sm:$0xff]
  %v1103 = vld [vmem:[%s1 + $0x1d0] sm:$0xff]
  %v1104 = vld [vmem:[%s1 + $0x1d8] sm:$0xff]
  %v1105 = vld [vmem:[%s1 + $0x1e0] sm:$0xff]
  %v1106 = vld [vmem:[%s1 + $0x1e8] sm:$0xff]
  %v1107 = vld [vmem:[%s1 + $0x1f0] sm:$0xff]
  %v1108 = vld [vmem:[%s1 + $0x1f8] sm:$0xff]
  %v1109 = vld [vmem:[%s1 + $0x200] sm:$0xff]
  %v1110 = vld [vmem:[%s1 + $0x208] sm:$0xff]
  %v1111 = vld [vmem:[%s1 + $0x210] sm:$0xff]
  %v1112 = vld [vmem:[%s1 + $0x218] sm:$0xff]
  %v1113 = vld [vmem:[%s1 + $0x220] sm:$0xff]
  %v1114 = vld [vmem:[%s1 + $0x228] sm:$0xff]
  %v1115 = vld [vmem:[%s1 + $0x230] sm:$0xff]
  %v1116 = vld [vmem:[%s1 + $0x238] sm:$0xff]
  %v1117 = vld [vmem:[%s1 + $0x240] sm:$0xff]
  %v1118 = vld [vmem:[%s1 + $0x248] sm:$0xff]
  %v1119 = vld [vmem:[%s1 + $0x250] sm:$0xff]
  %v1120 = vld [vmem:[%s1 + $0x258] sm:$0xff]
  %v1121 = vld [vmem:[%s1 + $0x260] sm:$0xff]
  %v1122 = vld [vmem:[%s1 + $0x268] sm:$0xff]
  %v1123 = vld [vmem:[%s1 + $0x270] sm:$0xff]
  %v1124 = vld [vmem:[%s1 + $0x278] sm:$0xff]
  %v1125 = vld [vmem:[%s1 + $0x280] sm:$0xff]
  %v1126 = vld [vmem:[%s1 + $0x288] sm:$0xff]
  %v1127 = vld [vmem:[%s1 + $0x290] sm:$0xff]
  %v1128 = vld [vmem:[%s1 + $0x298] sm:$0xff]
  %v1129 = vld [vmem:[%s1 + $0x2a0] sm:$0xff]
  %v1130 = vld [vmem:[%s1 + $0x2a8] sm:$0xff]
  %v1131 = vld [vmem:[%s1 + $0x2b0] sm:$0xff]
  %v1132 = vld [vmem:[%s1 + $0x2b8] sm:$0xff]
  %v1133 = vld [vmem:[%s1 + $0x2c0] sm:$0xff]
  %v1134 = vld [vmem:[%s1 + $0x2c8] sm:$0xff]
  %v1135 = vld [vmem:[%s1 + $0x2d0] sm:$0xff]
  %v1136 = vld [vmem:[%s1 + $0x2d8] sm:$0xff]
  %v1137 = vld [vmem:[%s1 + $0x2e0] sm:$0xff]
  %v1138 = vld [vmem:[%s1 + $0x2e8] sm:$0xff]
  %v1139 = vld [vmem:[%s1 + $0x2f0] sm:$0xff]
  %v1140 = vld [vmem:[%s1 + $0x2f8] sm:$0xff]
  %v1141 = vld [vmem:[%s1 + $0x300] sm:$0xff]
  %v1142 = vld [vmem:[%s1 + $0x308] sm:$0xff]
  %v1143 = vld [vmem:[%s1 + $0x310] sm:$0xff]
  %v1144 = vld [vmem:[%s1 + $0x318] sm:$0xff]
  %v1145 = vld [vmem:[%s1 + $0x320] sm:$0xff]
  %v1146 = vld [vmem:[%s1 + $0x328] sm:$0xff]
  %v1147 = vld [vmem:[%s1 + $0x330] sm:$0xff]
  %v1148 = vld [vmem:[%s1 + $0x338] sm:$0xff]
  %v1149 = vld [vmem:[%s1 + $0x340] sm:$0xff]
  %v1150 = vld [vmem:[%s1 + $0x348] sm:$0xff]
  %v1151 = vld [vmem:[%s1 + $0x350] sm:$0xff]
  %v1152 = vld [vmem:[%s1 + $0x358] sm:$0xff]
  %v1153 = vld [vmem:[%s1 + $0x360] sm:$0xff]
  %v1154 = vld [vmem:[%s1 + $0x368] sm:$0xff]
  %v1155 = vld [vmem:[%s1 + $0x370] sm:$0xff]
  %v1156 = vld [vmem:[%s1 + $0x378] sm:$0xff]
  %v1157 = vld [vmem:[%s1 + $0x380] sm:$0xff]
  %v1158 = vld [vmem:[%s1 + $0x388] sm:$0xff]
  %v1159 = vld [vmem:[%s1 + $0x390] sm:$0xff]
  %v1160 = vld [vmem:[%s1 + $0x398] sm:$0xff]
  %v1161 = vld [vmem:[%s1 + $0x3a0] sm:$0xff]
  %v1162 = vld [vmem:[%s1 + $0x3a8] sm:$0xff]
  %v1163 = vld [vmem:[%s1 + $0x3b0] sm:$0xff]
  %v1164 = vld [vmem:[%s1 + $0x3b8] sm:$0xff]
  %v1165 = vld [vmem:[%s1 + $0x3c0] sm:$0xff]
  %v1166 = vld [vmem:[%s1 + $0x3c8] sm:$0xff]
  %v1167 = vld [vmem:[%s1 + $0x3d0] sm:$0xff]
  %v1168 = vld [vmem:[%s1 + $0x3d8] sm:$0xff]
  %v1169 = vld [vmem:[%s1 + $0x3e0] sm:$0xff]
  %v1170 = vld [vmem:[%s1 + $0x3e8] sm:$0xff]
  %v1171 = vld [vmem:[%s1 + $0x3f0] sm:$0xff]
  %v1172 = vld [vmem:[%s1 + $0x3f8] sm:$0xff]
  %v1173 = vld [vmem:[%s1 + $0x400] sm:$0xff]
  %v1174 = vld [vmem:[%s1 + $0x408] sm:$0xff]
  %v1175 = vld [vmem:[%s1 + $0x410] sm:$0xff]
  %v1176 = vld [vmem:[%s1 + $0x418] sm:$0xff]
  %v1177 = vld [vmem:[%s1 + $0x420] sm:$0xff]
  %v1178 = vld [vmem:[%s1 + $0x428] sm:$0xff]
  %v1179 = vld [vmem:[%s1 + $0x430] sm:$0xff]
  %v1180 = vld [vmem:[%s1 + $0x438] sm:$0xff]
  %v1181 = vld [vmem:[%s1 + $0x440] sm:$0xff]
  %v1182 = vld [vmem:[%s1 + $0x448] sm:$0xff]
  %v1183 = vld [vmem:[%s1 + $0x450] sm:$0xff]
  %v1184 = vld [vmem:[%s1 + $0x458] sm:$0xff]
  %v1185 = vld [vmem:[%s1 + $0x460] sm:$0xff]
  %v1186 = vld [vmem:[%s1 + $0x468] sm:$0xff]
  %v1187 = vld [vmem:[%s1 + $0x470] sm:$0xff]
  %v1188 = vld [vmem:[%s1 + $0x478] sm:$0xff]
  %1189 = vmatpush.msra.mxu0 %v1060
  %1190 = vmatpush.msra.mxu0 %v1059
  %1191 = vmatpush.msra.mxu0 %v1058
  %1192 = vmatpush.msra.mxu0 %v1057
  %1193 = vmatpush.msra.mxu0 %v1056
  %1194 = vmatpush.msra.mxu0 %v1055
  %1195 = vmatpush.msra.mxu0 %v1054
  %1196 = vmatpush.msra.mxu0 %v1053
  %1197 = vmatpush.msra.mxu0 %v1052
  %1198 = vmatpush.msra.mxu0 %v1051
  %1199 = vmatpush.msra.mxu0 %v1050
  %1200 = vmatpush.msra.mxu0 %v1049
  %1201 = vmatpush.msra.mxu0 %v1048
  %1202 = vmatpush.msra.mxu0 %v1047
  %1203 = vmatpush.msra.mxu0 %v1046
  %1204 = vmatpush.msra.mxu0 %v1045
  %1205 = vmatmul.f32.gmra.mxu0 %v467
  %v1206 = vpop.f32.mrf.mxu0
  %v1207 = vadd.f32 0.0, %v1206
  %1208 = vmatmul.f32.gmra.mxu0 %v213
  %v1209 = vpop.f32.mrf.mxu0
  %v1210 = vadd.f32 0.0, %v1209
  %1211 = vmatmul.f32.gmra.mxu0 %v468
  %v1212 = vpop.f32.mrf.mxu0
  %v1213 = vadd.f32 0.0, %v1212
  %1214 = vmatmul.f32.gmra.mxu0 %v216
  %v1215 = vpop.f32.mrf.mxu0
  %v1216 = vadd.f32 0.0, %v1215
  %1217 = vmatmul.f32.gmra.mxu0 %v467
  %v1218 = vpop.f32.mrf.mxu0
  %v1219 = vadd.f32 0.0, %v1218
  %1220 = vmatmul.f32.gmra.mxu0 %v213
  %v1221 = vpop.f32.mrf.mxu0
  %v1222 = vadd.f32 0.0, %v1221
  %1223 = vmatmul.f32.gmra.mxu0 %v469
  %v1224 = vpop.f32.mrf.mxu0
  %v1225 = vadd.f32 0.0, %v1224
  %1226 = vmatmul.f32.gmra.mxu0 %v219
  %v1227 = vpop.f32.mrf.mxu0
  %v1228 = vadd.f32 0.0, %v1227
  %1229 = vmatmul.f32.gmra.mxu0 %v470
  %v1230 = vpop.f32.mrf.mxu0
  %v1231 = vadd.f32 0.0, %v1230
  %1232 = vmatmul.f32.gmra.mxu0 %v222
  %v1233 = vpop.f32.mrf.mxu0
  %v1234 = vadd.f32 0.0, %v1233
  %1235 = vmatmul.f32.gmra.mxu0 %v471
  %v1236 = vpop.f32.mrf.mxu0
  %v1237 = vadd.f32 0.0, %v1236
  %1238 = vmatmul.f32.gmra.mxu0 %v225
  %v1239 = vpop.f32.mrf.mxu0
  %v1240 = vadd.f32 0.0, %v1239
  %1241 = vmatmul.f32.gmra.mxu0 %v472
  %v1242 = vpop.f32.mrf.mxu0
  %v1243 = vadd.f32 0.0, %v1242
  %1244 = vmatmul.f32.gmra.mxu0 %v228
  %v1245 = vpop.f32.mrf.mxu0
  %v1246 = vadd.f32 0.0, %v1245
  %1247 = vmatmul.f32.gmra.mxu0 %v473
  %v1248 = vpop.f32.mrf.mxu0
  %v1249 = vadd.f32 0.0, %v1248
  %1250 = vmatmul.f32.gmra.mxu0 %v231
  %v1251 = vpop.f32.mrf.mxu0
  %v1252 = vadd.f32 0.0, %v1251
  %1253 = vmatmul.f32.gmra.mxu0 %v474
  %v1254 = vpop.f32.mrf.mxu0
  %v1255 = vadd.f32 0.0, %v1254
  %1256 = vmatmul.f32.gmra.mxu0 %v234
  %v1257 = vpop.f32.mrf.mxu0
  %v1258 = vadd.f32 0.0, %v1257
  %1259 = vmatmul.f32.gmra.mxu0 %v475
  %v1260 = vpop.f32.mrf.mxu0
  %v1261 = vadd.f32 0.0, %v1260
  %1262 = vmatmul.f32.gmra.mxu0 %v237
  %v1263 = vpop.f32.mrf.mxu0
  %v1264 = vadd.f32 0.0, %v1263
  %1265 = vmatmul.f32.gmra.mxu0 %v476
  %v1266 = vpop.f32.mrf.mxu0
  %v1267 = vadd.f32 0.0, %v1266
  %1268 = vmatmul.f32.gmra.mxu0 %v240
  %v1269 = vpop.f32.mrf.mxu0
  %v1270 = vadd.f32 0.0, %v1269
  %1271 = vmatmul.f32.gmra.mxu0 %v477
  %v1272 = vpop.f32.mrf.mxu0
  %v1273 = vadd.f32 0.0, %v1272
  %1274 = vmatmul.f32.gmra.mxu0 %v243
  %v1275 = vpop.f32.mrf.mxu0
  %v1276 = vadd.f32 0.0, %v1275
  %1277 = vmatmul.f32.gmra.mxu0 %v478
  %v1278 = vpop.f32.mrf.mxu0
  %v1279 = vadd.f32 0.0, %v1278
  %1280 = vmatmul.f32.gmra.mxu0 %v246
  %v1281 = vpop.f32.mrf.mxu0
  %v1282 = vadd.f32 0.0, %v1281
  %1283 = vmatmul.f32.gmra.mxu0 %v479
  %v1284 = vpop.f32.mrf.mxu0
  %v1285 = vadd.f32 0.0, %v1284
  %1286 = vmatmul.f32.gmra.mxu0 %v249
  %v1287 = vpop.f32.mrf.mxu0
  %v1288 = vadd.f32 0.0, %v1287
  %1289 = vmatmul.f32.gmra.mxu0 %v480
  %v1290 = vpop.f32.mrf.mxu0
  %v1291 = vadd.f32 0.0, %v1290
  %1292 = vmatmul.f32.gmra.mxu0 %v252
  %v1293 = vpop.f32.mrf.mxu0
  %v1294 = vadd.f32 0.0, %v1293
  %1295 = vmatmul.f32.gmra.mxu0 %v481
  %v1296 = vpop.f32.mrf.mxu0
  %v1297 = vadd.f32 0.0, %v1296
  %1298 = vmatmul.f32.gmra.mxu0 %v255
  %v1299 = vpop.f32.mrf.mxu0
  %v1300 = vadd.f32 0.0, %v1299
  %1301 = vmatmul.f32.gmra.mxu0 %v483
  %v1302 = vpop.f32.mrf.mxu0
  %v1303 = vadd.f32 0.0, %v1302
  %1304 = vmatmul.f32.gmra.mxu0 %v261
  %v1305 = vpop.f32.mrf.mxu0
  %v1306 = vadd.f32 0.0, %v1305
  %1307 = vmatmul.f32.gmra.mxu0 %v484
  %v1308 = vpop.f32.mrf.mxu0
  %v1309 = vadd.f32 0.0, %v1308
  %1310 = vmatmul.f32.gmra.mxu0 %v264
  %v1311 = vpop.f32.mrf.mxu0
  %v1312 = vadd.f32 0.0, %v1311
  %1313 = vmatmul.f32.gmra.mxu0 %v483
  %v1314 = vpop.f32.mrf.mxu0
  %v1315 = vadd.f32 0.0, %v1314
  %1316 = vmatmul.f32.gmra.mxu0 %v261
  %v1317 = vpop.f32.mrf.mxu0
  %v1318 = vadd.f32 0.0, %v1317
  %1319 = vmatmul.f32.gmra.mxu0 %v485
  %v1320 = vpop.f32.mrf.mxu0
  %v1321 = vadd.f32 0.0, %v1320
  %1322 = vmatmul.f32.gmra.mxu0 %v267
  %v1323 = vpop.f32.mrf.mxu0
  %v1324 = vadd.f32 0.0, %v1323
  %1325 = vmatmul.f32.gmra.mxu0 %v486
  %v1326 = vpop.f32.mrf.mxu0
  %v1327 = vadd.f32 0.0, %v1326
  %1328 = vmatmul.f32.gmra.mxu0 %v270
  %v1329 = vpop.f32.mrf.mxu0
  %v1330 = vadd.f32 0.0, %v1329
  %1331 = vmatmul.f32.gmra.mxu0 %v487
  %v1332 = vpop.f32.mrf.mxu0
  %v1333 = vadd.f32 0.0, %v1332
  %1334 = vmatmul.f32.gmra.mxu0 %v273
  %v1335 = vpop.f32.mrf.mxu0
  %v1336 = vadd.f32 0.0, %v1335
  %1337 = vmatmul.f32.gmra.mxu0 %v488
  %v1338 = vpop.f32.mrf.mxu0
  %v1339 = vadd.f32 0.0, %v1338
  %1340 = vmatmul.f32.gmra.mxu0 %v276
  %v1341 = vpop.f32.mrf.mxu0
  %v1342 = vadd.f32 0.0, %v1341
  %1343 = vmatmul.f32.gmra.mxu0 %v489
  %v1344 = vpop.f32.mrf.mxu0
  %v1345 = vadd.f32 0.0, %v1344
  %1346 = vmatmul.f32.gmra.mxu0 %v279
  %v1347 = vpop.f32.mrf.mxu0
  %v1348 = vadd.f32 0.0, %v1347
  %1349 = vmatmul.f32.gmra.mxu0 %v490
  %v1350 = vpop.f32.mrf.mxu0
  %v1351 = vadd.f32 0.0, %v1350
  %1352 = vmatmul.f32.gmra.mxu0 %v282
  %v1353 = vpop.f32.mrf.mxu0
  %v1354 = vadd.f32 0.0, %v1353
  %1355 = vmatmul.f32.gmra.mxu0 %v491
  %v1356 = vpop.f32.mrf.mxu0
  %v1357 = vadd.f32 0.0, %v1356
  %1358 = vmatmul.f32.gmra.mxu0 %v285
  %v1359 = vpop.f32.mrf.mxu0
  %v1360 = vadd.f32 0.0, %v1359
  %1361 = vmatmul.f32.gmra.mxu0 %v492
  %v1362 = vpop.f32.mrf.mxu0
  %v1363 = vadd.f32 0.0, %v1362
  %1364 = vmatmul.f32.gmra.mxu0 %v288
  %v1365 = vpop.f32.mrf.mxu0
  %v1366 = vadd.f32 0.0, %v1365
  %1367 = vmatmul.f32.gmra.mxu0 %v493
  %v1368 = vpop.f32.mrf.mxu0
  %v1369 = vadd.f32 0.0, %v1368
  %1370 = vmatmul.f32.gmra.mxu0 %v291
  %v1371 = vpop.f32.mrf.mxu0
  %v1372 = vadd.f32 0.0, %v1371
  %1373 = vmatmul.f32.gmra.mxu0 %v494
  %v1374 = vpop.f32.mrf.mxu0
  %v1375 = vadd.f32 0.0, %v1374
  %1376 = vmatmul.f32.gmra.mxu0 %v294
  %v1377 = vpop.f32.mrf.mxu0
  %v1378 = vadd.f32 0.0, %v1377
  %1379 = vmatmul.f32.gmra.mxu0 %v495
  %v1380 = vpop.f32.mrf.mxu0
  %v1381 = vadd.f32 0.0, %v1380
  %1382 = vmatmul.f32.gmra.mxu0 %v297
  %v1383 = vpop.f32.mrf.mxu0
  %v1384 = vadd.f32 0.0, %v1383
  %1385 = vmatmul.f32.gmra.mxu0 %v496
  %v1386 = vpop.f32.mrf.mxu0
  %v1387 = vadd.f32 0.0, %v1386
  %1388 = vmatmul.f32.gmra.mxu0 %v300
  %v1389 = vpop.f32.mrf.mxu0
  %v1390 = vadd.f32 0.0, %v1389
  %1391 = vmatmul.f32.gmra.mxu0 %v497
  %v1392 = vpop.f32.mrf.mxu0
  %v1393 = vadd.f32 0.0, %v1392
  %1394 = vmatmul.f32.gmra.mxu0 %v303
  %v1395 = vpop.f32.mrf.mxu0
  %v1396 = vadd.f32 0.0, %v1395
  %1397 = vdwg.mxu0
  %1398 = vmatpush.msra.mxu0 %v1076
  %1399 = vmatpush.msra.mxu0 %v1075
  %1400 = vmatpush.msra.mxu0 %v1074
  %1401 = vmatpush.msra.mxu0 %v1073
  %1402 = vmatpush.msra.mxu0 %v1072
  %1403 = vmatpush.msra.mxu0 %v1071
  %1404 = vmatpush.msra.mxu0 %v1070
  %1405 = vmatpush.msra.mxu0 %v1069
  %1406 = vmatpush.msra.mxu0 %v1068
  %1407 = vmatpush.msra.mxu0 %v1067
  %1408 = vmatpush.msra.mxu0 %v1066
  %1409 = vmatpush.msra.mxu0 %v1065
  %1410 = vmatpush.msra.mxu0 %v1064
  %1411 = vmatpush.msra.mxu0 %v1063
  %1412 = vmatpush.msra.mxu0 %v1062
  %1413 = vmatpush.msra.mxu0 %v1061
  %1414 = vmatmul.f32.gmra.mxu0 %v594
  %v1415 = vpop.f32.mrf.mxu0
  %v1416 = vadd.f32 %v1207, %v1415
  %1417 = vmatmul.f32.gmra.mxu0 %v596
  %v1418 = vpop.f32.mrf.mxu0
  %v1419 = vadd.f32 %v1210, %v1418
  %1420 = vmatmul.f32.gmra.mxu0 %v599
  %v1421 = vpop.f32.mrf.mxu0
  %v1422 = vadd.f32 %v1213, %v1421
  %1423 = vmatmul.f32.gmra.mxu0 %v601
  %v1424 = vpop.f32.mrf.mxu0
  %v1425 = vadd.f32 %v1216, %v1424
  %1426 = vmatmul.f32.gmra.mxu0 %v594
  %v1427 = vpop.f32.mrf.mxu0
  %v1428 = vadd.f32 %v1219, %v1427
  %1429 = vmatmul.f32.gmra.mxu0 %v596
  %v1430 = vpop.f32.mrf.mxu0
  %v1431 = vadd.f32 %v1222, %v1430
  %1432 = vmatmul.f32.gmra.mxu0 %v604
  %v1433 = vpop.f32.mrf.mxu0
  %v1434 = vadd.f32 %v1225, %v1433
  %1435 = vmatmul.f32.gmra.mxu0 %v606
  %v1436 = vpop.f32.mrf.mxu0
  %v1437 = vadd.f32 %v1228, %v1436
  %1438 = vmatmul.f32.gmra.mxu0 %v609
  %v1439 = vpop.f32.mrf.mxu0
  %v1440 = vadd.f32 %v1231, %v1439
  %1441 = vmatmul.f32.gmra.mxu0 %v611
  %v1442 = vpop.f32.mrf.mxu0
  %v1443 = vadd.f32 %v1234, %v1442
  %1444 = vmatmul.f32.gmra.mxu0 %v614
  %v1445 = vpop.f32.mrf.mxu0
  %v1446 = vadd.f32 %v1237, %v1445
  %1447 = vmatmul.f32.gmra.mxu0 %v616
  %v1448 = vpop.f32.mrf.mxu0
  %v1449 = vadd.f32 %v1240, %v1448
  %1450 = vmatmul.f32.gmra.mxu0 %v619
  %v1451 = vpop.f32.mrf.mxu0
  %v1452 = vadd.f32 %v1243, %v1451
  %1453 = vmatmul.f32.gmra.mxu0 %v621
  %v1454 = vpop.f32.mrf.mxu0
  %v1455 = vadd.f32 %v1246, %v1454
  %1456 = vmatmul.f32.gmra.mxu0 %v624
  %v1457 = vpop.f32.mrf.mxu0
  %v1458 = vadd.f32 %v1249, %v1457
  %1459 = vmatmul.f32.gmra.mxu0 %v626
  %v1460 = vpop.f32.mrf.mxu0
  %v1461 = vadd.f32 %v1252, %v1460
  %1462 = vmatmul.f32.gmra.mxu0 %v629
  %v1463 = vpop.f32.mrf.mxu0
  %v1464 = vadd.f32 %v1255, %v1463
  %1465 = vmatmul.f32.gmra.mxu0 %v631
  %v1466 = vpop.f32.mrf.mxu0
  %v1467 = vadd.f32 %v1258, %v1466
  %1468 = vmatmul.f32.gmra.mxu0 %v634
  %v1469 = vpop.f32.mrf.mxu0
  %v1470 = vadd.f32 %v1261, %v1469
  %1471 = vmatmul.f32.gmra.mxu0 %v636
  %v1472 = vpop.f32.mrf.mxu0
  %v1473 = vadd.f32 %v1264, %v1472
  %1474 = vmatmul.f32.gmra.mxu0 %v639
  %v1475 = vpop.f32.mrf.mxu0
  %v1476 = vadd.f32 %v1267, %v1475
  %1477 = vmatmul.f32.gmra.mxu0 %v641
  %v1478 = vpop.f32.mrf.mxu0
  %v1479 = vadd.f32 %v1270, %v1478
  %1480 = vmatmul.f32.gmra.mxu0 %v644
  %v1481 = vpop.f32.mrf.mxu0
  %v1482 = vadd.f32 %v1273, %v1481
  %1483 = vmatmul.f32.gmra.mxu0 %v646
  %v1484 = vpop.f32.mrf.mxu0
  %v1485 = vadd.f32 %v1276, %v1484
  %1486 = vmatmul.f32.gmra.mxu0 %v649
  %v1487 = vpop.f32.mrf.mxu0
  %v1488 = vadd.f32 %v1279, %v1487
  %1489 = vmatmul.f32.gmra.mxu0 %v651
  %v1490 = vpop.f32.mrf.mxu0
  %v1491 = vadd.f32 %v1282, %v1490
  %1492 = vmatmul.f32.gmra.mxu0 %v654
  %v1493 = vpop.f32.mrf.mxu0
  %v1494 = vadd.f32 %v1285, %v1493
  %1495 = vmatmul.f32.gmra.mxu0 %v656
  %v1496 = vpop.f32.mrf.mxu0
  %v1497 = vadd.f32 %v1288, %v1496
  %1498 = vmatmul.f32.gmra.mxu0 %v659
  %v1499 = vpop.f32.mrf.mxu0
  %v1500 = vadd.f32 %v1291, %v1499
  %1501 = vmatmul.f32.gmra.mxu0 %v661
  %v1502 = vpop.f32.mrf.mxu0
  %v1503 = vadd.f32 %v1294, %v1502
  %1504 = vmatmul.f32.gmra.mxu0 %v664
  %v1505 = vpop.f32.mrf.mxu0
  %v1506 = vadd.f32 %v1297, %v1505
  %1507 = vmatmul.f32.gmra.mxu0 %v666
  %v1508 = vpop.f32.mrf.mxu0
  %v1509 = vadd.f32 %v1300, %v1508
  %1510 = vmatmul.f32.gmra.mxu0 %v669
  %v1511 = vpop.f32.mrf.mxu0
  %v1512 = vadd.f32 %v1303, %v1511
  %1513 = vmatmul.f32.gmra.mxu0 %v671
  %v1514 = vpop.f32.mrf.mxu0
  %v1515 = vadd.f32 %v1306, %v1514
  %1516 = vmatmul.f32.gmra.mxu0 %v674
  %v1517 = vpop.f32.mrf.mxu0
  %v1518 = vadd.f32 %v1309, %v1517
  %1519 = vmatmul.f32.gmra.mxu0 %v676
  %v1520 = vpop.f32.mrf.mxu0
  %v1521 = vadd.f32 %v1312, %v1520
  %1522 = vmatmul.f32.gmra.mxu0 %v669
  %v1523 = vpop.f32.mrf.mxu0
  %v1524 = vadd.f32 %v1315, %v1523
  %1525 = vmatmul.f32.gmra.mxu0 %v671
  %v1526 = vpop.f32.mrf.mxu0
  %v1527 = vadd.f32 %v1318, %v1526
  %1528 = vmatmul.f32.gmra.mxu0 %v679
  %v1529 = vpop.f32.mrf.mxu0
  %v1530 = vadd.f32 %v1321, %v1529
  %1531 = vmatmul.f32.gmra.mxu0 %v681
  %v1532 = vpop.f32.mrf.mxu0
  %v1533 = vadd.f32 %v1324, %v1532
  %1534 = vmatmul.f32.gmra.mxu0 %v684
  %v1535 = vpop.f32.mrf.mxu0
  %v1536 = vadd.f32 %v1327, %v1535
  %1537 = vmatmul.f32.gmra.mxu0 %v686
  %v1538 = vpop.f32.mrf.mxu0
  %v1539 = vadd.f32 %v1330, %v1538
  %1540 = vmatmul.f32.gmra.mxu0 %v689
  %v1541 = vpop.f32.mrf.mxu0
  %v1542 = vadd.f32 %v1333, %v1541
  %1543 = vmatmul.f32.gmra.mxu0 %v691
  %v1544 = vpop.f32.mrf.mxu0
  %v1545 = vadd.f32 %v1336, %v1544
  %1546 = vmatmul.f32.gmra.mxu0 %v694
  %v1547 = vpop.f32.mrf.mxu0
  %v1548 = vadd.f32 %v1339, %v1547
  %1549 = vmatmul.f32.gmra.mxu0 %v696
  %v1550 = vpop.f32.mrf.mxu0
  %v1551 = vadd.f32 %v1342, %v1550
  %1552 = vmatmul.f32.gmra.mxu0 %v699
  %v1553 = vpop.f32.mrf.mxu0
  %v1554 = vadd.f32 %v1345, %v1553
  %1555 = vmatmul.f32.gmra.mxu0 %v701
  %v1556 = vpop.f32.mrf.mxu0
  %v1557 = vadd.f32 %v1348, %v1556
  %1558 = vmatmul.f32.gmra.mxu0 %v704
  %v1559 = vpop.f32.mrf.mxu0
  %v1560 = vadd.f32 %v1351, %v1559
  %1561 = vmatmul.f32.gmra.mxu0 %v706
  %v1562 = vpop.f32.mrf.mxu0
  %v1563 = vadd.f32 %v1354, %v1562
  %1564 = vmatmul.f32.gmra.mxu0 %v709
  %v1565 = vpop.f32.mrf.mxu0
  %v1566 = vadd.f32 %v1357, %v1565
  %1567 = vmatmul.f32.gmra.mxu0 %v711
  %v1568 = vpop.f32.mrf.mxu0
  %v1569 = vadd.f32 %v1360, %v1568
  %1570 = vmatmul.f32.gmra.mxu0 %v714
  %v1571 = vpop.f32.mrf.mxu0
  %v1572 = vadd.f32 %v1363, %v1571
  %1573 = vmatmul.f32.gmra.mxu0 %v716
  %v1574 = vpop.f32.mrf.mxu0
  %v1575 = vadd.f32 %v1366, %v1574
  %1576 = vmatmul.f32.gmra.mxu0 %v719
  %v1577 = vpop.f32.mrf.mxu0
  %v1578 = vadd.f32 %v1369, %v1577
  %1579 = vmatmul.f32.gmra.mxu0 %v721
  %v1580 = vpop.f32.mrf.mxu0
  %v1581 = vadd.f32 %v1372, %v1580
  %1582 = vmatmul.f32.gmra.mxu0 %v724
  %v1583 = vpop.f32.mrf.mxu0
  %v1584 = vadd.f32 %v1375, %v1583
  %1585 = vmatmul.f32.gmra.mxu0 %v726
  %v1586 = vpop.f32.mrf.mxu0
  %v1587 = vadd.f32 %v1378, %v1586
  %1588 = vmatmul.f32.gmra.mxu0 %v729
  %v1589 = vpop.f32.mrf.mxu0
  %v1590 = vadd.f32 %v1381, %v1589
  %1591 = vmatmul.f32.gmra.mxu0 %v731
  %v1592 = vpop.f32.mrf.mxu0
  %v1593 = vadd.f32 %v1384, %v1592
  %1594 = vmatmul.f32.gmra.mxu0 %v734
  %v1595 = vpop.f32.mrf.mxu0
  %v1596 = vadd.f32 %v1387, %v1595
  %1597 = vmatmul.f32.gmra.mxu0 %v736
  %v1598 = vpop.f32.mrf.mxu0
  %v1599 = vadd.f32 %v1390, %v1598
  %1600 = vmatmul.f32.gmra.mxu0 %v739
  %v1601 = vpop.f32.mrf.mxu0
  %v1602 = vadd.f32 %v1393, %v1601
  %1603 = vmatmul.f32.gmra.mxu0 %v741
  %v1604 = vpop.f32.mrf.mxu0
  %v1605 = vadd.f32 %v1396, %v1604
  %1606 = vdwg.mxu0
  %1607 = vmatpush.msra.mxu0 %v1092
  %1608 = vmatpush.msra.mxu0 %v1091
  %1609 = vmatpush.msra.mxu0 %v1090
  %1610 = vmatpush.msra.mxu0 %v1089
  %1611 = vmatpush.msra.mxu0 %v1088
  %1612 = vmatpush.msra.mxu0 %v1087
  %1613 = vmatpush.msra.mxu0 %v1086
  %1614 = vmatpush.msra.mxu0 %v1085
  %1615 = vmatpush.msra.mxu0 %v1084
  %1616 = vmatpush.msra.mxu0 %v1083
  %1617 = vmatpush.msra.mxu0 %v1082
  %1618 = vmatpush.msra.mxu0 %v1081
  %1619 = vmatpush.msra.mxu0 %v1080
  %1620 = vmatpush.msra.mxu0 %v1079
  %1621 = vmatpush.msra.mxu0 %v1078
  %1622 = vmatpush.msra.mxu0 %v1077
  %1623 = vmatmul.f32.gmra.mxu0 %v805
  %v1624 = vpop.f32.mrf.mxu0
  %v1625 = vadd.f32 %v1416, %v1624
  %1626 = vmatmul.f32.gmra.mxu0 %v807
  %v1627 = vpop.f32.mrf.mxu0
  %v1628 = vadd.f32 %v1419, %v1627
  %1629 = vmatmul.f32.gmra.mxu0 %v810
  %v1630 = vpop.f32.mrf.mxu0
  %v1631 = vadd.f32 %v1422, %v1630
  %1632 = vmatmul.f32.gmra.mxu0 %v812
  %v1633 = vpop.f32.mrf.mxu0
  %v1634 = vadd.f32 %v1425, %v1633
  %1635 = vmatmul.f32.gmra.mxu0 %v805
  %v1636 = vpop.f32.mrf.mxu0
  %v1637 = vadd.f32 %v1428, %v1636
  %1638 = vmatmul.f32.gmra.mxu0 %v807
  %v1639 = vpop.f32.mrf.mxu0
  %v1640 = vadd.f32 %v1431, %v1639
  %1641 = vmatmul.f32.gmra.mxu0 %v815
  %v1642 = vpop.f32.mrf.mxu0
  %v1643 = vadd.f32 %v1434, %v1642
  %1644 = vmatmul.f32.gmra.mxu0 %v817
  %v1645 = vpop.f32.mrf.mxu0
  %v1646 = vadd.f32 %v1437, %v1645
  %1647 = vmatmul.f32.gmra.mxu0 %v820
  %v1648 = vpop.f32.mrf.mxu0
  %v1649 = vadd.f32 %v1440, %v1648
  %1650 = vmatmul.f32.gmra.mxu0 %v822
  %v1651 = vpop.f32.mrf.mxu0
  %v1652 = vadd.f32 %v1443, %v1651
  %1653 = vmatmul.f32.gmra.mxu0 %v825
  %v1654 = vpop.f32.mrf.mxu0
  %v1655 = vadd.f32 %v1446, %v1654
  %1656 = vmatmul.f32.gmra.mxu0 %v827
  %v1657 = vpop.f32.mrf.mxu0
  %v1658 = vadd.f32 %v1449, %v1657
  %1659 = vmatmul.f32.gmra.mxu0 %v830
  %v1660 = vpop.f32.mrf.mxu0
  %v1661 = vadd.f32 %v1452, %v1660
  %1662 = vmatmul.f32.gmra.mxu0 %v832
  %v1663 = vpop.f32.mrf.mxu0
  %v1664 = vadd.f32 %v1455, %v1663
  %1665 = vmatmul.f32.gmra.mxu0 %v835
  %v1666 = vpop.f32.mrf.mxu0
  %v1667 = vadd.f32 %v1458, %v1666
  %1668 = vmatmul.f32.gmra.mxu0 %v837
  %v1669 = vpop.f32.mrf.mxu0
  %v1670 = vadd.f32 %v1461, %v1669
  %1671 = vmatmul.f32.gmra.mxu0 %v840
  %v1672 = vpop.f32.mrf.mxu0
  %v1673 = vadd.f32 %v1464, %v1672
  %1674 = vmatmul.f32.gmra.mxu0 %v842
  %v1675 = vpop.f32.mrf.mxu0
  %v1676 = vadd.f32 %v1467, %v1675
  %1677 = vmatmul.f32.gmra.mxu0 %v845
  %v1678 = vpop.f32.mrf.mxu0
  %v1679 = vadd.f32 %v1470, %v1678
  %1680 = vmatmul.f32.gmra.mxu0 %v847
  %v1681 = vpop.f32.mrf.mxu0
  %v1682 = vadd.f32 %v1473, %v1681
  %1683 = vmatmul.f32.gmra.mxu0 %v850
  %v1684 = vpop.f32.mrf.mxu0
  %v1685 = vadd.f32 %v1476, %v1684
  %1686 = vmatmul.f32.gmra.mxu0 %v852
  %v1687 = vpop.f32.mrf.mxu0
  %v1688 = vadd.f32 %v1479, %v1687
  %1689 = vmatmul.f32.gmra.mxu0 %v855
  %v1690 = vpop.f32.mrf.mxu0
  %v1691 = vadd.f32 %v1482, %v1690
  %1692 = vmatmul.f32.gmra.mxu0 %v857
  %v1693 = vpop.f32.mrf.mxu0
  %v1694 = vadd.f32 %v1485, %v1693
  %1695 = vmatmul.f32.gmra.mxu0 %v860
  %v1696 = vpop.f32.mrf.mxu0
  %v1697 = vadd.f32 %v1488, %v1696
  %1698 = vmatmul.f32.gmra.mxu0 %v862
  %v1699 = vpop.f32.mrf.mxu0
  %v1700 = vadd.f32 %v1491, %v1699
  %1701 = vmatmul.f32.gmra.mxu0 %v865
  %v1702 = vpop.f32.mrf.mxu0
  %v1703 = vadd.f32 %v1494, %v1702
  %1704 = vmatmul.f32.gmra.mxu0 %v867
  %v1705 = vpop.f32.mrf.mxu0
  %v1706 = vadd.f32 %v1497, %v1705
  %1707 = vmatmul.f32.gmra.mxu0 %v870
  %v1708 = vpop.f32.mrf.mxu0
  %v1709 = vadd.f32 %v1500, %v1708
  %1710 = vmatmul.f32.gmra.mxu0 %v872
  %v1711 = vpop.f32.mrf.mxu0
  %v1712 = vadd.f32 %v1503, %v1711
  %1713 = vmatmul.f32.gmra.mxu0 %v875
  %v1714 = vpop.f32.mrf.mxu0
  %v1715 = vadd.f32 %v1506, %v1714
  %1716 = vmatmul.f32.gmra.mxu0 %v877
  %v1717 = vpop.f32.mrf.mxu0
  %v1718 = vadd.f32 %v1509, %v1717
  %1719 = vmatmul.f32.gmra.mxu0 %v880
  %v1720 = vpop.f32.mrf.mxu0
  %v1721 = vadd.f32 %v1512, %v1720
  %1722 = vmatmul.f32.gmra.mxu0 %v882
  %v1723 = vpop.f32.mrf.mxu0
  %v1724 = vadd.f32 %v1515, %v1723
  %1725 = vmatmul.f32.gmra.mxu0 %v885
  %v1726 = vpop.f32.mrf.mxu0
  %v1727 = vadd.f32 %v1518, %v1726
  %1728 = vmatmul.f32.gmra.mxu0 %v887
  %v1729 = vpop.f32.mrf.mxu0
  %v1730 = vadd.f32 %v1521, %v1729
  %1731 = vmatmul.f32.gmra.mxu0 %v880
  %v1732 = vpop.f32.mrf.mxu0
  %v1733 = vadd.f32 %v1524, %v1732
  %1734 = vmatmul.f32.gmra.mxu0 %v882
  %v1735 = vpop.f32.mrf.mxu0
  %v1736 = vadd.f32 %v1527, %v1735
  %1737 = vmatmul.f32.gmra.mxu0 %v890
  %v1738 = vpop.f32.mrf.mxu0
  %v1739 = vadd.f32 %v1530, %v1738
  %1740 = vmatmul.f32.gmra.mxu0 %v892
  %v1741 = vpop.f32.mrf.mxu0
  %v1742 = vadd.f32 %v1533, %v1741
  %1743 = vmatmul.f32.gmra.mxu0 %v895
  %v1744 = vpop.f32.mrf.mxu0
  %v1745 = vadd.f32 %v1536, %v1744
  %1746 = vmatmul.f32.gmra.mxu0 %v897
  %v1747 = vpop.f32.mrf.mxu0
  %v1748 = vadd.f32 %v1539, %v1747
  %1749 = vmatmul.f32.gmra.mxu0 %v900
  %v1750 = vpop.f32.mrf.mxu0
  %v1751 = vadd.f32 %v1542, %v1750
  %1752 = vmatmul.f32.gmra.mxu0 %v902
  %v1753 = vpop.f32.mrf.mxu0
  %v1754 = vadd.f32 %v1545, %v1753
  %1755 = vmatmul.f32.gmra.mxu0 %v905
  %v1756 = vpop.f32.mrf.mxu0
  %v1757 = vadd.f32 %v1548, %v1756
  %1758 = vmatmul.f32.gmra.mxu0 %v907
  %v1759 = vpop.f32.mrf.mxu0
  %v1760 = vadd.f32 %v1551, %v1759
  %1761 = vmatmul.f32.gmra.mxu0 %v910
  %v1762 = vpop.f32.mrf.mxu0
  %v1763 = vadd.f32 %v1554, %v1762
  %1764 = vmatmul.f32.gmra.mxu0 %v912
  %v1765 = vpop.f32.mrf.mxu0
  %v1766 = vadd.f32 %v1557, %v1765
  %1767 = vmatmul.f32.gmra.mxu0 %v915
  %v1768 = vpop.f32.mrf.mxu0
  %v1769 = vadd.f32 %v1560, %v1768
  %1770 = vmatmul.f32.gmra.mxu0 %v917
  %v1771 = vpop.f32.mrf.mxu0
  %v1772 = vadd.f32 %v1563, %v1771
  %1773 = vmatmul.f32.gmra.mxu0 %v920
  %v1774 = vpop.f32.mrf.mxu0
  %v1775 = vadd.f32 %v1566, %v1774
  %1776 = vmatmul.f32.gmra.mxu0 %v922
  %v1777 = vpop.f32.mrf.mxu0
  %v1778 = vadd.f32 %v1569, %v1777
  %1779 = vmatmul.f32.gmra.mxu0 %v925
  %v1780 = vpop.f32.mrf.mxu0
  %v1781 = vadd.f32 %v1572, %v1780
  %1782 = vmatmul.f32.gmra.mxu0 %v927
  %v1783 = vpop.f32.mrf.mxu0
  %v1784 = vadd.f32 %v1575, %v1783
  %1785 = vmatmul.f32.gmra.mxu0 %v930
  %v1786 = vpop.f32.mrf.mxu0
  %v1787 = vadd.f32 %v1578, %v1786
  %1788 = vmatmul.f32.gmra.mxu0 %v932
  %v1789 = vpop.f32.mrf.mxu0
  %v1790 = vadd.f32 %v1581, %v1789
  %1791 = vmatmul.f32.gmra.mxu0 %v935
  %v1792 = vpop.f32.mrf.mxu0
  %v1793 = vadd.f32 %v1584, %v1792
  %1794 = vmatmul.f32.gmra.mxu0 %v937
  %v1795 = vpop.f32.mrf.mxu0
  %v1796 = vadd.f32 %v1587, %v1795
  %1797 = vmatmul.f32.gmra.mxu0 %v940
  %v1798 = vpop.f32.mrf.mxu0
  %v1799 = vadd.f32 %v1590, %v1798
  %1800 = vmatmul.f32.gmra.mxu0 %v942
  %v1801 = vpop.f32.mrf.mxu0
  %v1802 = vadd.f32 %v1593, %v1801
  %1803 = vmatmul.f32.gmra.mxu0 %v945
  %v1804 = vpop.f32.mrf.mxu0
  %v1805 = vadd.f32 %v1596, %v1804
  %1806 = vmatmul.f32.gmra.mxu0 %v947
  %v1807 = vpop.f32.mrf.mxu0
  %v1808 = vadd.f32 %v1599, %v1807
  %1809 = vmatmul.f32.gmra.mxu0 %v950
  %v1810 = vpop.f32.mrf.mxu0
  %v1811 = vadd.f32 %v1602, %v1810
  %1812 = vmatmul.f32.gmra.mxu0 %v952
  %v1813 = vpop.f32.mrf.mxu0
  %v1814 = vadd.f32 %v1605, %v1813
  %1815 = vdwg.mxu0
  %1816 = vmatpush.msra.mxu0 %v1108
  %1817 = vmatpush.msra.mxu0 %v1107
  %1818 = vmatpush.msra.mxu0 %v1106
  %1819 = vmatpush.msra.mxu0 %v1105
  %1820 = vmatpush.msra.mxu0 %v1104
  %1821 = vmatpush.msra.mxu0 %v1103
  %1822 = vmatpush.msra.mxu0 %v1102
  %1823 = vmatpush.msra.mxu0 %v1101
  %1824 = vmatpush.msra.mxu0 %v1100
  %1825 = vmatpush.msra.mxu0 %v1099
  %1826 = vmatpush.msra.mxu0 %v1098
  %1827 = vmatpush.msra.mxu0 %v1097
  %1828 = vmatpush.msra.mxu0 %v1096
  %1829 = vmatpush.msra.mxu0 %v1095
  %1830 = vmatpush.msra.mxu0 %v1094
  %1831 = vmatpush.msra.mxu0 %v1093
  %1832 = vmatmul.f32.gmra.mxu0 %v468
  %v1833 = vpop.f32.mrf.mxu0
  %v1834 = vadd.f32 %v1625, %v1833
  %1835 = vmatmul.f32.gmra.mxu0 %v216
  %v1836 = vpop.f32.mrf.mxu0
  %v1837 = vadd.f32 %v1628, %v1836
  %1838 = vmatmul.f32.gmra.mxu0 %v467
  %v1839 = vpop.f32.mrf.mxu0
  %v1840 = vadd.f32 %v1631, %v1839
  %1841 = vmatmul.f32.gmra.mxu0 %v213
  %v1842 = vpop.f32.mrf.mxu0
  %v1843 = vadd.f32 %v1634, %v1842
  %1844 = vmatmul.f32.gmra.mxu0 %v469
  %v1845 = vpop.f32.mrf.mxu0
  %v1846 = vadd.f32 %v1637, %v1845
  %1847 = vmatmul.f32.gmra.mxu0 %v219
  %v1848 = vpop.f32.mrf.mxu0
  %v1849 = vadd.f32 %v1640, %v1848
  %1850 = vmatmul.f32.gmra.mxu0 %v470
  %v1851 = vpop.f32.mrf.mxu0
  %v1852 = vadd.f32 %v1643, %v1851
  %1853 = vmatmul.f32.gmra.mxu0 %v222
  %v1854 = vpop.f32.mrf.mxu0
  %v1855 = vadd.f32 %v1646, %v1854
  %1856 = vmatmul.f32.gmra.mxu0 %v471
  %v1857 = vpop.f32.mrf.mxu0
  %v1858 = vadd.f32 %v1649, %v1857
  %1859 = vmatmul.f32.gmra.mxu0 %v225
  %v1860 = vpop.f32.mrf.mxu0
  %v1861 = vadd.f32 %v1652, %v1860
  %1862 = vmatmul.f32.gmra.mxu0 %v472
  %v1863 = vpop.f32.mrf.mxu0
  %v1864 = vadd.f32 %v1655, %v1863
  %1865 = vmatmul.f32.gmra.mxu0 %v228
  %v1866 = vpop.f32.mrf.mxu0
  %v1867 = vadd.f32 %v1658, %v1866
  %1868 = vmatmul.f32.gmra.mxu0 %v473
  %v1869 = vpop.f32.mrf.mxu0
  %v1870 = vadd.f32 %v1661, %v1869
  %1871 = vmatmul.f32.gmra.mxu0 %v231
  %v1872 = vpop.f32.mrf.mxu0
  %v1873 = vadd.f32 %v1664, %v1872
  %1874 = vmatmul.f32.gmra.mxu0 %v474
  %v1875 = vpop.f32.mrf.mxu0
  %v1876 = vadd.f32 %v1667, %v1875
  %1877 = vmatmul.f32.gmra.mxu0 %v234
  %v1878 = vpop.f32.mrf.mxu0
  %v1879 = vadd.f32 %v1670, %v1878
  %1880 = vmatmul.f32.gmra.mxu0 %v475
  %v1881 = vpop.f32.mrf.mxu0
  %v1882 = vadd.f32 %v1673, %v1881
  %1883 = vmatmul.f32.gmra.mxu0 %v237
  %v1884 = vpop.f32.mrf.mxu0
  %v1885 = vadd.f32 %v1676, %v1884
  %1886 = vmatmul.f32.gmra.mxu0 %v476
  %v1887 = vpop.f32.mrf.mxu0
  %v1888 = vadd.f32 %v1679, %v1887
  %1889 = vmatmul.f32.gmra.mxu0 %v240
  %v1890 = vpop.f32.mrf.mxu0
  %v1891 = vadd.f32 %v1682, %v1890
  %1892 = vmatmul.f32.gmra.mxu0 %v477
  %v1893 = vpop.f32.mrf.mxu0
  %v1894 = vadd.f32 %v1685, %v1893
  %1895 = vmatmul.f32.gmra.mxu0 %v243
  %v1896 = vpop.f32.mrf.mxu0
  %v1897 = vadd.f32 %v1688, %v1896
  %1898 = vmatmul.f32.gmra.mxu0 %v478
  %v1899 = vpop.f32.mrf.mxu0
  %v1900 = vadd.f32 %v1691, %v1899
  %1901 = vmatmul.f32.gmra.mxu0 %v246
  %v1902 = vpop.f32.mrf.mxu0
  %v1903 = vadd.f32 %v1694, %v1902
  %1904 = vmatmul.f32.gmra.mxu0 %v479
  %v1905 = vpop.f32.mrf.mxu0
  %v1906 = vadd.f32 %v1697, %v1905
  %1907 = vmatmul.f32.gmra.mxu0 %v249
  %v1908 = vpop.f32.mrf.mxu0
  %v1909 = vadd.f32 %v1700, %v1908
  %1910 = vmatmul.f32.gmra.mxu0 %v480
  %v1911 = vpop.f32.mrf.mxu0
  %v1912 = vadd.f32 %v1703, %v1911
  %1913 = vmatmul.f32.gmra.mxu0 %v252
  %v1914 = vpop.f32.mrf.mxu0
  %v1915 = vadd.f32 %v1706, %v1914
  %1916 = vmatmul.f32.gmra.mxu0 %v481
  %v1917 = vpop.f32.mrf.mxu0
  %v1918 = vadd.f32 %v1709, %v1917
  %1919 = vmatmul.f32.gmra.mxu0 %v255
  %v1920 = vpop.f32.mrf.mxu0
  %v1921 = vadd.f32 %v1712, %v1920
  %1922 = vmatmul.f32.gmra.mxu0 %v482
  %v1923 = vpop.f32.mrf.mxu0
  %v1924 = vadd.f32 %v1715, %v1923
  %1925 = vmatmul.f32.gmra.mxu0 %v258
  %v1926 = vpop.f32.mrf.mxu0
  %v1927 = vadd.f32 %v1718, %v1926
  %1928 = vmatmul.f32.gmra.mxu0 %v484
  %v1929 = vpop.f32.mrf.mxu0
  %v1930 = vadd.f32 %v1721, %v1929
  %1931 = vmatmul.f32.gmra.mxu0 %v264
  %v1932 = vpop.f32.mrf.mxu0
  %v1933 = vadd.f32 %v1724, %v1932
  %1934 = vmatmul.f32.gmra.mxu0 %v483
  %v1935 = vpop.f32.mrf.mxu0
  %v1936 = vadd.f32 %v1727, %v1935
  %1937 = vmatmul.f32.gmra.mxu0 %v261
  %v1938 = vpop.f32.mrf.mxu0
  %v1939 = vadd.f32 %v1730, %v1938
  %1940 = vmatmul.f32.gmra.mxu0 %v485
  %v1941 = vpop.f32.mrf.mxu0
  %v1942 = vadd.f32 %v1733, %v1941
  %1943 = vmatmul.f32.gmra.mxu0 %v267
  %v1944 = vpop.f32.mrf.mxu0
  %v1945 = vadd.f32 %v1736, %v1944
  %1946 = vmatmul.f32.gmra.mxu0 %v486
  %v1947 = vpop.f32.mrf.mxu0
  %v1948 = vadd.f32 %v1739, %v1947
  %1949 = vmatmul.f32.gmra.mxu0 %v270
  %v1950 = vpop.f32.mrf.mxu0
  %v1951 = vadd.f32 %v1742, %v1950
  %1952 = vmatmul.f32.gmra.mxu0 %v487
  %v1953 = vpop.f32.mrf.mxu0
  %v1954 = vadd.f32 %v1745, %v1953
  %1955 = vmatmul.f32.gmra.mxu0 %v273
  %v1956 = vpop.f32.mrf.mxu0
  %v1957 = vadd.f32 %v1748, %v1956
  %1958 = vmatmul.f32.gmra.mxu0 %v488
  %v1959 = vpop.f32.mrf.mxu0
  %v1960 = vadd.f32 %v1751, %v1959
  %1961 = vmatmul.f32.gmra.mxu0 %v276
  %v1962 = vpop.f32.mrf.mxu0
  %v1963 = vadd.f32 %v1754, %v1962
  %1964 = vmatmul.f32.gmra.mxu0 %v489
  %v1965 = vpop.f32.mrf.mxu0
  %v1966 = vadd.f32 %v1757, %v1965
  %1967 = vmatmul.f32.gmra.mxu0 %v279
  %v1968 = vpop.f32.mrf.mxu0
  %v1969 = vadd.f32 %v1760, %v1968
  %1970 = vmatmul.f32.gmra.mxu0 %v490
  %v1971 = vpop.f32.mrf.mxu0
  %v1972 = vadd.f32 %v1763, %v1971
  %1973 = vmatmul.f32.gmra.mxu0 %v282
  %v1974 = vpop.f32.mrf.mxu0
  %v1975 = vadd.f32 %v1766, %v1974
  %1976 = vmatmul.f32.gmra.mxu0 %v491
  %v1977 = vpop.f32.mrf.mxu0
  %v1978 = vadd.f32 %v1769, %v1977
  %1979 = vmatmul.f32.gmra.mxu0 %v285
  %v1980 = vpop.f32.mrf.mxu0
  %v1981 = vadd.f32 %v1772, %v1980
  %1982 = vmatmul.f32.gmra.mxu0 %v492
  %v1983 = vpop.f32.mrf.mxu0
  %v1984 = vadd.f32 %v1775, %v1983
  %1985 = vmatmul.f32.gmra.mxu0 %v288
  %v1986 = vpop.f32.mrf.mxu0
  %v1987 = vadd.f32 %v1778, %v1986
  %1988 = vmatmul.f32.gmra.mxu0 %v493
  %v1989 = vpop.f32.mrf.mxu0
  %v1990 = vadd.f32 %v1781, %v1989
  %1991 = vmatmul.f32.gmra.mxu0 %v291
  %v1992 = vpop.f32.mrf.mxu0
  %v1993 = vadd.f32 %v1784, %v1992
  %1994 = vmatmul.f32.gmra.mxu0 %v494
  %v1995 = vpop.f32.mrf.mxu0
  %v1996 = vadd.f32 %v1787, %v1995
  %1997 = vmatmul.f32.gmra.mxu0 %v294
  %v1998 = vpop.f32.mrf.mxu0
  %v1999 = vadd.f32 %v1790, %v1998
  %2000 = vmatmul.f32.gmra.mxu0 %v495
  %v2001 = vpop.f32.mrf.mxu0
  %v2002 = vadd.f32 %v1793, %v2001
  %2003 = vmatmul.f32.gmra.mxu0 %v297
  %v2004 = vpop.f32.mrf.mxu0
  %v2005 = vadd.f32 %v1796, %v2004
  %2006 = vmatmul.f32.gmra.mxu0 %v496
  %v2007 = vpop.f32.mrf.mxu0
  %v2008 = vadd.f32 %v1799, %v2007
  %2009 = vmatmul.f32.gmra.mxu0 %v300
  %v2010 = vpop.f32.mrf.mxu0
  %v2011 = vadd.f32 %v1802, %v2010
  %2012 = vmatmul.f32.gmra.mxu0 %v497
  %v2013 = vpop.f32.mrf.mxu0
  %v2014 = vadd.f32 %v1805, %v2013
  %2015 = vmatmul.f32.gmra.mxu0 %v303
  %v2016 = vpop.f32.mrf.mxu0
  %v2017 = vadd.f32 %v1808, %v2016
  %2018 = vmatmul.f32.gmra.mxu0 %v498
  %v2019 = vpop.f32.mrf.mxu0
  %v2020 = vadd.f32 %v1811, %v2019
  %2021 = vmatmul.f32.gmra.mxu0 %v306
  %v2022 = vpop.f32.mrf.mxu0
  %v2023 = vadd.f32 %v1814, %v2022
  %2024 = vdwg.mxu0
  %2025 = vmatpush.msra.mxu0 %v1124
  %2026 = vmatpush.msra.mxu0 %v1123
  %2027 = vmatpush.msra.mxu0 %v1122
  %2028 = vmatpush.msra.mxu0 %v1121
  %2029 = vmatpush.msra.mxu0 %v1120
  %2030 = vmatpush.msra.mxu0 %v1119
  %2031 = vmatpush.msra.mxu0 %v1118
  %2032 = vmatpush.msra.mxu0 %v1117
  %2033 = vmatpush.msra.mxu0 %v1116
  %2034 = vmatpush.msra.mxu0 %v1115
  %2035 = vmatpush.msra.mxu0 %v1114
  %2036 = vmatpush.msra.mxu0 %v1113
  %2037 = vmatpush.msra.mxu0 %v1112
  %2038 = vmatpush.msra.mxu0 %v1111
  %2039 = vmatpush.msra.mxu0 %v1110
  %2040 = vmatpush.msra.mxu0 %v1109
  %2041 = vmatmul.f32.gmra.mxu0 %v599
  %v2042 = vpop.f32.mrf.mxu0
  %v2043 = vadd.f32 %v1834, %v2042
  %2044 = vmatmul.f32.gmra.mxu0 %v601
  %v2045 = vpop.f32.mrf.mxu0
  %v2046 = vadd.f32 %v1837, %v2045
  %2047 = vmatmul.f32.gmra.mxu0 %v594
  %v2048 = vpop.f32.mrf.mxu0
  %v2049 = vadd.f32 %v1840, %v2048
  %2050 = vmatmul.f32.gmra.mxu0 %v596
  %v2051 = vpop.f32.mrf.mxu0
  %v2052 = vadd.f32 %v1843, %v2051
  %2053 = vmatmul.f32.gmra.mxu0 %v604
  %v2054 = vpop.f32.mrf.mxu0
  %v2055 = vadd.f32 %v1846, %v2054
  %2056 = vmatmul.f32.gmra.mxu0 %v606
  %v2057 = vpop.f32.mrf.mxu0
  %v2058 = vadd.f32 %v1849, %v2057
  %2059 = vmatmul.f32.gmra.mxu0 %v609
  %v2060 = vpop.f32.mrf.mxu0
  %v2061 = vadd.f32 %v1852, %v2060
  %2062 = vmatmul.f32.gmra.mxu0 %v611
  %v2063 = vpop.f32.mrf.mxu0
  %v2064 = vadd.f32 %v1855, %v2063
  %2065 = vmatmul.f32.gmra.mxu0 %v614
  %v2066 = vpop.f32.mrf.mxu0
  %v2067 = vadd.f32 %v1858, %v2066
  %2068 = vmatmul.f32.gmra.mxu0 %v616
  %v2069 = vpop.f32.mrf.mxu0
  %v2070 = vadd.f32 %v1861, %v2069
  %2071 = vmatmul.f32.gmra.mxu0 %v619
  %v2072 = vpop.f32.mrf.mxu0
  %v2073 = vadd.f32 %v1864, %v2072
  %2074 = vmatmul.f32.gmra.mxu0 %v621
  %v2075 = vpop.f32.mrf.mxu0
  %v2076 = vadd.f32 %v1867, %v2075
  %2077 = vmatmul.f32.gmra.mxu0 %v624
  %v2078 = vpop.f32.mrf.mxu0
  %v2079 = vadd.f32 %v1870, %v2078
  %2080 = vmatmul.f32.gmra.mxu0 %v626
  %v2081 = vpop.f32.mrf.mxu0
  %v2082 = vadd.f32 %v1873, %v2081
  %2083 = vmatmul.f32.gmra.mxu0 %v629
  %v2084 = vpop.f32.mrf.mxu0
  %v2085 = vadd.f32 %v1876, %v2084
  %2086 = vmatmul.f32.gmra.mxu0 %v631
  %v2087 = vpop.f32.mrf.mxu0
  %v2088 = vadd.f32 %v1879, %v2087
  %2089 = vmatmul.f32.gmra.mxu0 %v634
  %v2090 = vpop.f32.mrf.mxu0
  %v2091 = vadd.f32 %v1882, %v2090
  %2092 = vmatmul.f32.gmra.mxu0 %v636
  %v2093 = vpop.f32.mrf.mxu0
  %v2094 = vadd.f32 %v1885, %v2093
  %2095 = vmatmul.f32.gmra.mxu0 %v639
  %v2096 = vpop.f32.mrf.mxu0
  %v2097 = vadd.f32 %v1888, %v2096
  %2098 = vmatmul.f32.gmra.mxu0 %v641
  %v2099 = vpop.f32.mrf.mxu0
  %v2100 = vadd.f32 %v1891, %v2099
  %2101 = vmatmul.f32.gmra.mxu0 %v644
  %v2102 = vpop.f32.mrf.mxu0
  %v2103 = vadd.f32 %v1894, %v2102
  %2104 = vmatmul.f32.gmra.mxu0 %v646
  %v2105 = vpop.f32.mrf.mxu0
  %v2106 = vadd.f32 %v1897, %v2105
  %2107 = vmatmul.f32.gmra.mxu0 %v649
  %v2108 = vpop.f32.mrf.mxu0
  %v2109 = vadd.f32 %v1900, %v2108
  %2110 = vmatmul.f32.gmra.mxu0 %v651
  %v2111 = vpop.f32.mrf.mxu0
  %v2112 = vadd.f32 %v1903, %v2111
  %2113 = vmatmul.f32.gmra.mxu0 %v654
  %v2114 = vpop.f32.mrf.mxu0
  %v2115 = vadd.f32 %v1906, %v2114
  %2116 = vmatmul.f32.gmra.mxu0 %v656
  %v2117 = vpop.f32.mrf.mxu0
  %v2118 = vadd.f32 %v1909, %v2117
  %2119 = vmatmul.f32.gmra.mxu0 %v659
  %v2120 = vpop.f32.mrf.mxu0
  %v2121 = vadd.f32 %v1912, %v2120
  %2122 = vmatmul.f32.gmra.mxu0 %v661
  %v2123 = vpop.f32.mrf.mxu0
  %v2124 = vadd.f32 %v1915, %v2123
  %2125 = vmatmul.f32.gmra.mxu0 %v664
  %v2126 = vpop.f32.mrf.mxu0
  %v2127 = vadd.f32 %v1918, %v2126
  %2128 = vmatmul.f32.gmra.mxu0 %v666
  %v2129 = vpop.f32.mrf.mxu0
  %v2130 = vadd.f32 %v1921, %v2129
  %2131 = vmatmul.f32.gmra.mxu0 %v1019
  %v2132 = vpop.f32.mrf.mxu0
  %v2133 = vadd.f32 %v1924, %v2132
  %2134 = vmatmul.f32.gmra.mxu0 %v1021
  %v2135 = vpop.f32.mrf.mxu0
  %v2136 = vadd.f32 %v1927, %v2135
  %2137 = vmatmul.f32.gmra.mxu0 %v674
  %v2138 = vpop.f32.mrf.mxu0
  %v2139 = vadd.f32 %v1930, %v2138
  %2140 = vmatmul.f32.gmra.mxu0 %v676
  %v2141 = vpop.f32.mrf.mxu0
  %v2142 = vadd.f32 %v1933, %v2141
  %2143 = vmatmul.f32.gmra.mxu0 %v669
  %v2144 = vpop.f32.mrf.mxu0
  %v2145 = vadd.f32 %v1936, %v2144
  %2146 = vmatmul.f32.gmra.mxu0 %v671
  %v2147 = vpop.f32.mrf.mxu0
  %v2148 = vadd.f32 %v1939, %v2147
  %2149 = vmatmul.f32.gmra.mxu0 %v679
  %v2150 = vpop.f32.mrf.mxu0
  %v2151 = vadd.f32 %v1942, %v2150
  %2152 = vmatmul.f32.gmra.mxu0 %v681
  %v2153 = vpop.f32.mrf.mxu0
  %v2154 = vadd.f32 %v1945, %v2153
  %2155 = vmatmul.f32.gmra.mxu0 %v684
  %v2156 = vpop.f32.mrf.mxu0
  %v2157 = vadd.f32 %v1948, %v2156
  %2158 = vmatmul.f32.gmra.mxu0 %v686
  %v2159 = vpop.f32.mrf.mxu0
  %v2160 = vadd.f32 %v1951, %v2159
  %2161 = vmatmul.f32.gmra.mxu0 %v689
  %v2162 = vpop.f32.mrf.mxu0
  %v2163 = vadd.f32 %v1954, %v2162
  %2164 = vmatmul.f32.gmra.mxu0 %v691
  %v2165 = vpop.f32.mrf.mxu0
  %v2166 = vadd.f32 %v1957, %v2165
  %2167 = vmatmul.f32.gmra.mxu0 %v694
  %v2168 = vpop.f32.mrf.mxu0
  %v2169 = vadd.f32 %v1960, %v2168
  %2170 = vmatmul.f32.gmra.mxu0 %v696
  %v2171 = vpop.f32.mrf.mxu0
  %v2172 = vadd.f32 %v1963, %v2171
  %2173 = vmatmul.f32.gmra.mxu0 %v699
  %v2174 = vpop.f32.mrf.mxu0
  %v2175 = vadd.f32 %v1966, %v2174
  %2176 = vmatmul.f32.gmra.mxu0 %v701
  %v2177 = vpop.f32.mrf.mxu0
  %v2178 = vadd.f32 %v1969, %v2177
  %2179 = vmatmul.f32.gmra.mxu0 %v704
  %v2180 = vpop.f32.mrf.mxu0
  %v2181 = vadd.f32 %v1972, %v2180
  %2182 = vmatmul.f32.gmra.mxu0 %v706
  %v2183 = vpop.f32.mrf.mxu0
  %v2184 = vadd.f32 %v1975, %v2183
  %2185 = vmatmul.f32.gmra.mxu0 %v709
  %v2186 = vpop.f32.mrf.mxu0
  %v2187 = vadd.f32 %v1978, %v2186
  %2188 = vmatmul.f32.gmra.mxu0 %v711
  %v2189 = vpop.f32.mrf.mxu0
  %v2190 = vadd.f32 %v1981, %v2189
  %2191 = vmatmul.f32.gmra.mxu0 %v714
  %v2192 = vpop.f32.mrf.mxu0
  %v2193 = vadd.f32 %v1984, %v2192
  %2194 = vmatmul.f32.gmra.mxu0 %v716
  %v2195 = vpop.f32.mrf.mxu0
  %v2196 = vadd.f32 %v1987, %v2195
  %2197 = vmatmul.f32.gmra.mxu0 %v719
  %v2198 = vpop.f32.mrf.mxu0
  %v2199 = vadd.f32 %v1990, %v2198
  %2200 = vmatmul.f32.gmra.mxu0 %v721
  %v2201 = vpop.f32.mrf.mxu0
  %v2202 = vadd.f32 %v1993, %v2201
  %2203 = vmatmul.f32.gmra.mxu0 %v724
  %v2204 = vpop.f32.mrf.mxu0
  %v2205 = vadd.f32 %v1996, %v2204
  %2206 = vmatmul.f32.gmra.mxu0 %v726
  %v2207 = vpop.f32.mrf.mxu0
  %v2208 = vadd.f32 %v1999, %v2207
  %2209 = vmatmul.f32.gmra.mxu0 %v729
  %v2210 = vpop.f32.mrf.mxu0
  %v2211 = vadd.f32 %v2002, %v2210
  %2212 = vmatmul.f32.gmra.mxu0 %v731
  %v2213 = vpop.f32.mrf.mxu0
  %v2214 = vadd.f32 %v2005, %v2213
  %2215 = vmatmul.f32.gmra.mxu0 %v734
  %v2216 = vpop.f32.mrf.mxu0
  %v2217 = vadd.f32 %v2008, %v2216
  %2218 = vmatmul.f32.gmra.mxu0 %v736
  %v2219 = vpop.f32.mrf.mxu0
  %v2220 = vadd.f32 %v2011, %v2219
  %2221 = vmatmul.f32.gmra.mxu0 %v739
  %v2222 = vpop.f32.mrf.mxu0
  %v2223 = vadd.f32 %v2014, %v2222
  %2224 = vmatmul.f32.gmra.mxu0 %v741
  %v2225 = vpop.f32.mrf.mxu0
  %v2226 = vadd.f32 %v2017, %v2225
  %2227 = vmatmul.f32.gmra.mxu0 %v1024
  %v2228 = vpop.f32.mrf.mxu0
  %v2229 = vadd.f32 %v2020, %v2228
  %2230 = vmatmul.f32.gmra.mxu0 %v1026
  %v2231 = vpop.f32.mrf.mxu0
  %v2232 = vadd.f32 %v2023, %v2231
  %2233 = vdwg.mxu0
  %2234 = vmatpush.msra.mxu0 %v1140
  %2235 = vmatpush.msra.mxu0 %v1139
  %2236 = vmatpush.msra.mxu0 %v1138
  %2237 = vmatpush.msra.mxu0 %v1137
  %2238 = vmatpush.msra.mxu0 %v1136
  %2239 = vmatpush.msra.mxu0 %v1135
  %2240 = vmatpush.msra.mxu0 %v1134
  %2241 = vmatpush.msra.mxu0 %v1133
  %2242 = vmatpush.msra.mxu0 %v1132
  %2243 = vmatpush.msra.mxu0 %v1131
  %2244 = vmatpush.msra.mxu0 %v1130
  %2245 = vmatpush.msra.mxu0 %v1129
  %2246 = vmatpush.msra.mxu0 %v1128
  %2247 = vmatpush.msra.mxu0 %v1127
  %2248 = vmatpush.msra.mxu0 %v1126
  %2249 = vmatpush.msra.mxu0 %v1125
  %2250 = vmatmul.f32.gmra.mxu0 %v810
  %v2251 = vpop.f32.mrf.mxu0
  %v2252 = vadd.f32 %v2043, %v2251
  %2253 = vmatmul.f32.gmra.mxu0 %v812
  %v2254 = vpop.f32.mrf.mxu0
  %v2255 = vadd.f32 %v2046, %v2254
  %2256 = vmatmul.f32.gmra.mxu0 %v805
  %v2257 = vpop.f32.mrf.mxu0
  %v2258 = vadd.f32 %v2049, %v2257
  %2259 = vmatmul.f32.gmra.mxu0 %v807
  %v2260 = vpop.f32.mrf.mxu0
  %v2261 = vadd.f32 %v2052, %v2260
  %2262 = vmatmul.f32.gmra.mxu0 %v815
  %v2263 = vpop.f32.mrf.mxu0
  %v2264 = vadd.f32 %v2055, %v2263
  %2265 = vmatmul.f32.gmra.mxu0 %v817
  %v2266 = vpop.f32.mrf.mxu0
  %v2267 = vadd.f32 %v2058, %v2266
  %2268 = vmatmul.f32.gmra.mxu0 %v820
  %v2269 = vpop.f32.mrf.mxu0
  %v2270 = vadd.f32 %v2061, %v2269
  %2271 = vmatmul.f32.gmra.mxu0 %v822
  %v2272 = vpop.f32.mrf.mxu0
  %v2273 = vadd.f32 %v2064, %v2272
  %2274 = vmatmul.f32.gmra.mxu0 %v825
  %v2275 = vpop.f32.mrf.mxu0
  %v2276 = vadd.f32 %v2067, %v2275
  %2277 = vmatmul.f32.gmra.mxu0 %v827
  %v2278 = vpop.f32.mrf.mxu0
  %v2279 = vadd.f32 %v2070, %v2278
  %2280 = vmatmul.f32.gmra.mxu0 %v830
  %v2281 = vpop.f32.mrf.mxu0
  %v2282 = vadd.f32 %v2073, %v2281
  %2283 = vmatmul.f32.gmra.mxu0 %v832
  %v2284 = vpop.f32.mrf.mxu0
  %v2285 = vadd.f32 %v2076, %v2284
  %2286 = vmatmul.f32.gmra.mxu0 %v835
  %v2287 = vpop.f32.mrf.mxu0
  %v2288 = vadd.f32 %v2079, %v2287
  %2289 = vmatmul.f32.gmra.mxu0 %v837
  %v2290 = vpop.f32.mrf.mxu0
  %v2291 = vadd.f32 %v2082, %v2290
  %2292 = vmatmul.f32.gmra.mxu0 %v840
  %v2293 = vpop.f32.mrf.mxu0
  %v2294 = vadd.f32 %v2085, %v2293
  %2295 = vmatmul.f32.gmra.mxu0 %v842
  %v2296 = vpop.f32.mrf.mxu0
  %v2297 = vadd.f32 %v2088, %v2296
  %2298 = vmatmul.f32.gmra.mxu0 %v845
  %v2299 = vpop.f32.mrf.mxu0
  %v2300 = vadd.f32 %v2091, %v2299
  %2301 = vmatmul.f32.gmra.mxu0 %v847
  %v2302 = vpop.f32.mrf.mxu0
  %v2303 = vadd.f32 %v2094, %v2302
  %2304 = vmatmul.f32.gmra.mxu0 %v850
  %v2305 = vpop.f32.mrf.mxu0
  %v2306 = vadd.f32 %v2097, %v2305
  %2307 = vmatmul.f32.gmra.mxu0 %v852
  %v2308 = vpop.f32.mrf.mxu0
  %v2309 = vadd.f32 %v2100, %v2308
  %2310 = vmatmul.f32.gmra.mxu0 %v855
  %v2311 = vpop.f32.mrf.mxu0
  %v2312 = vadd.f32 %v2103, %v2311
  %2313 = vmatmul.f32.gmra.mxu0 %v857
  %v2314 = vpop.f32.mrf.mxu0
  %v2315 = vadd.f32 %v2106, %v2314
  %2316 = vmatmul.f32.gmra.mxu0 %v860
  %v2317 = vpop.f32.mrf.mxu0
  %v2318 = vadd.f32 %v2109, %v2317
  %2319 = vmatmul.f32.gmra.mxu0 %v862
  %v2320 = vpop.f32.mrf.mxu0
  %v2321 = vadd.f32 %v2112, %v2320
  %2322 = vmatmul.f32.gmra.mxu0 %v865
  %v2323 = vpop.f32.mrf.mxu0
  %v2324 = vadd.f32 %v2115, %v2323
  %2325 = vmatmul.f32.gmra.mxu0 %v867
  %v2326 = vpop.f32.mrf.mxu0
  %v2327 = vadd.f32 %v2118, %v2326
  %2328 = vmatmul.f32.gmra.mxu0 %v870
  %v2329 = vpop.f32.mrf.mxu0
  %v2330 = vadd.f32 %v2121, %v2329
  %2331 = vmatmul.f32.gmra.mxu0 %v872
  %v2332 = vpop.f32.mrf.mxu0
  %v2333 = vadd.f32 %v2124, %v2332
  %2334 = vmatmul.f32.gmra.mxu0 %v875
  %v2335 = vpop.f32.mrf.mxu0
  %v2336 = vadd.f32 %v2127, %v2335
  %2337 = vmatmul.f32.gmra.mxu0 %v877
  %v2338 = vpop.f32.mrf.mxu0
  %v2339 = vadd.f32 %v2130, %v2338
  %2340 = vmatmul.f32.gmra.mxu0 %v1033
  %v2341 = vpop.f32.mrf.mxu0
  %v2342 = vadd.f32 %v2133, %v2341
  %2343 = vmatmul.f32.gmra.mxu0 %v1035
  %v2344 = vpop.f32.mrf.mxu0
  %v2345 = vadd.f32 %v2136, %v2344
  %2346 = vmatmul.f32.gmra.mxu0 %v885
  %v2347 = vpop.f32.mrf.mxu0
  %v2348 = vadd.f32 %v2139, %v2347
  %2349 = vmatmul.f32.gmra.mxu0 %v887
  %v2350 = vpop.f32.mrf.mxu0
  %v2351 = vadd.f32 %v2142, %v2350
  %2352 = vmatmul.f32.gmra.mxu0 %v880
  %v2353 = vpop.f32.mrf.mxu0
  %v2354 = vadd.f32 %v2145, %v2353
  %2355 = vmatmul.f32.gmra.mxu0 %v882
  %v2356 = vpop.f32.mrf.mxu0
  %v2357 = vadd.f32 %v2148, %v2356
  %2358 = vmatmul.f32.gmra.mxu0 %v890
  %v2359 = vpop.f32.mrf.mxu0
  %v2360 = vadd.f32 %v2151, %v2359
  %2361 = vmatmul.f32.gmra.mxu0 %v892
  %v2362 = vpop.f32.mrf.mxu0
  %v2363 = vadd.f32 %v2154, %v2362
  %2364 = vmatmul.f32.gmra.mxu0 %v895
  %v2365 = vpop.f32.mrf.mxu0
  %v2366 = vadd.f32 %v2157, %v2365
  %2367 = vmatmul.f32.gmra.mxu0 %v897
  %v2368 = vpop.f32.mrf.mxu0
  %v2369 = vadd.f32 %v2160, %v2368
  %2370 = vmatmul.f32.gmra.mxu0 %v900
  %v2371 = vpop.f32.mrf.mxu0
  %v2372 = vadd.f32 %v2163, %v2371
  %2373 = vmatmul.f32.gmra.mxu0 %v902
  %v2374 = vpop.f32.mrf.mxu0
  %v2375 = vadd.f32 %v2166, %v2374
  %2376 = vmatmul.f32.gmra.mxu0 %v905
  %v2377 = vpop.f32.mrf.mxu0
  %v2378 = vadd.f32 %v2169, %v2377
  %2379 = vmatmul.f32.gmra.mxu0 %v907
  %v2380 = vpop.f32.mrf.mxu0
  %v2381 = vadd.f32 %v2172, %v2380
  %2382 = vmatmul.f32.gmra.mxu0 %v910
  %v2383 = vpop.f32.mrf.mxu0
  %v2384 = vadd.f32 %v2175, %v2383
  %2385 = vmatmul.f32.gmra.mxu0 %v912
  %v2386 = vpop.f32.mrf.mxu0
  %v2387 = vadd.f32 %v2178, %v2386
  %2388 = vmatmul.f32.gmra.mxu0 %v915
  %v2389 = vpop.f32.mrf.mxu0
  %v2390 = vadd.f32 %v2181, %v2389
  %2391 = vmatmul.f32.gmra.mxu0 %v917
  %v2392 = vpop.f32.mrf.mxu0
  %v2393 = vadd.f32 %v2184, %v2392
  %2394 = vmatmul.f32.gmra.mxu0 %v920
  %v2395 = vpop.f32.mrf.mxu0
  %v2396 = vadd.f32 %v2187, %v2395
  %2397 = vmatmul.f32.gmra.mxu0 %v922
  %v2398 = vpop.f32.mrf.mxu0
  %v2399 = vadd.f32 %v2190, %v2398
  %2400 = vmatmul.f32.gmra.mxu0 %v925
  %v2401 = vpop.f32.mrf.mxu0
  %v2402 = vadd.f32 %v2193, %v2401
  %2403 = vmatmul.f32.gmra.mxu0 %v927
  %v2404 = vpop.f32.mrf.mxu0
  %v2405 = vadd.f32 %v2196, %v2404
  %2406 = vmatmul.f32.gmra.mxu0 %v930
  %v2407 = vpop.f32.mrf.mxu0
  %v2408 = vadd.f32 %v2199, %v2407
  %2409 = vmatmul.f32.gmra.mxu0 %v932
  %v2410 = vpop.f32.mrf.mxu0
  %v2411 = vadd.f32 %v2202, %v2410
  %2412 = vmatmul.f32.gmra.mxu0 %v935
  %v2413 = vpop.f32.mrf.mxu0
  %v2414 = vadd.f32 %v2205, %v2413
  %2415 = vmatmul.f32.gmra.mxu0 %v937
  %v2416 = vpop.f32.mrf.mxu0
  %v2417 = vadd.f32 %v2208, %v2416
  %2418 = vmatmul.f32.gmra.mxu0 %v940
  %v2419 = vpop.f32.mrf.mxu0
  %v2420 = vadd.f32 %v2211, %v2419
  %2421 = vmatmul.f32.gmra.mxu0 %v942
  %v2422 = vpop.f32.mrf.mxu0
  %v2423 = vadd.f32 %v2214, %v2422
  %2424 = vmatmul.f32.gmra.mxu0 %v945
  %v2425 = vpop.f32.mrf.mxu0
  %v2426 = vadd.f32 %v2217, %v2425
  %2427 = vmatmul.f32.gmra.mxu0 %v947
  %v2428 = vpop.f32.mrf.mxu0
  %v2429 = vadd.f32 %v2220, %v2428
  %2430 = vmatmul.f32.gmra.mxu0 %v950
  %v2431 = vpop.f32.mrf.mxu0
  %v2432 = vadd.f32 %v2223, %v2431
  %2433 = vmatmul.f32.gmra.mxu0 %v952
  %v2434 = vpop.f32.mrf.mxu0
  %v2435 = vadd.f32 %v2226, %v2434
  %2436 = vmatmul.f32.gmra.mxu0 %v1038
  %v2437 = vpop.f32.mrf.mxu0
  %v2438 = vadd.f32 %v2229, %v2437
  %2439 = vmatmul.f32.gmra.mxu0 %v1040
  %v2440 = vpop.f32.mrf.mxu0
  %v2441 = vadd.f32 %v2232, %v2440
  %2442 = vdwg.mxu0
  %2443 = vmatpush.msra.mxu0 %v1156
  %2444 = vmatpush.msra.mxu0 %v1155
  %2445 = vmatpush.msra.mxu0 %v1154
  %2446 = vmatpush.msra.mxu0 %v1153
  %2447 = vmatpush.msra.mxu0 %v1152
  %2448 = vmatpush.msra.mxu0 %v1151
  %2449 = vmatpush.msra.mxu0 %v1150
  %2450 = vmatpush.msra.mxu0 %v1149
  %2451 = vmatpush.msra.mxu0 %v1148
  %2452 = vmatpush.msra.mxu0 %v1147
  %2453 = vmatpush.msra.mxu0 %v1146
  %2454 = vmatpush.msra.mxu0 %v1145
  %2455 = vmatpush.msra.mxu0 %v1144
  %2456 = vmatpush.msra.mxu0 %v1143
  %2457 = vmatpush.msra.mxu0 %v1142
  %2458 = vmatpush.msra.mxu0 %v1141
  %2459 = vmatmul.f32.gmra.mxu0 %v467
  %v2460 = vpop.f32.mrf.mxu0
  %v2461 = vadd.f32 %v2252, %v2460
  %2462 = vmatmul.f32.gmra.mxu0 %v213
  %v2463 = vpop.f32.mrf.mxu0
  %v2464 = vadd.f32 %v2255, %v2463
  %2465 = vmatmul.f32.gmra.mxu0 %v469
  %v2466 = vpop.f32.mrf.mxu0
  %v2467 = vadd.f32 %v2258, %v2466
  %2468 = vmatmul.f32.gmra.mxu0 %v219
  %v2469 = vpop.f32.mrf.mxu0
  %v2470 = vadd.f32 %v2261, %v2469
  %2471 = vmatmul.f32.gmra.mxu0 %v470
  %v2472 = vpop.f32.mrf.mxu0
  %v2473 = vadd.f32 %v2264, %v2472
  %2474 = vmatmul.f32.gmra.mxu0 %v222
  %v2475 = vpop.f32.mrf.mxu0
  %v2476 = vadd.f32 %v2267, %v2475
  %2477 = vmatmul.f32.gmra.mxu0 %v471
  %v2478 = vpop.f32.mrf.mxu0
  %v2479 = vadd.f32 %v2270, %v2478
  %2480 = vmatmul.f32.gmra.mxu0 %v225
  %v2481 = vpop.f32.mrf.mxu0
  %v2482 = vadd.f32 %v2273, %v2481
  %2483 = vmatmul.f32.gmra.mxu0 %v472
  %v2484 = vpop.f32.mrf.mxu0
  %v2485 = vadd.f32 %v2276, %v2484
  %2486 = vmatmul.f32.gmra.mxu0 %v228
  %v2487 = vpop.f32.mrf.mxu0
  %v2488 = vadd.f32 %v2279, %v2487
  %2489 = vmatmul.f32.gmra.mxu0 %v473
  %v2490 = vpop.f32.mrf.mxu0
  %v2491 = vadd.f32 %v2282, %v2490
  %2492 = vmatmul.f32.gmra.mxu0 %v231
  %v2493 = vpop.f32.mrf.mxu0
  %v2494 = vadd.f32 %v2285, %v2493
  %2495 = vmatmul.f32.gmra.mxu0 %v474
  %v2496 = vpop.f32.mrf.mxu0
  %v2497 = vadd.f32 %v2288, %v2496
  %2498 = vmatmul.f32.gmra.mxu0 %v234
  %v2499 = vpop.f32.mrf.mxu0
  %v2500 = vadd.f32 %v2291, %v2499
  %2501 = vmatmul.f32.gmra.mxu0 %v475
  %v2502 = vpop.f32.mrf.mxu0
  %v2503 = vadd.f32 %v2294, %v2502
  %2504 = vmatmul.f32.gmra.mxu0 %v237
  %v2505 = vpop.f32.mrf.mxu0
  %v2506 = vadd.f32 %v2297, %v2505
  %2507 = vmatmul.f32.gmra.mxu0 %v476
  %v2508 = vpop.f32.mrf.mxu0
  %v2509 = vadd.f32 %v2300, %v2508
  %2510 = vmatmul.f32.gmra.mxu0 %v240
  %v2511 = vpop.f32.mrf.mxu0
  %v2512 = vadd.f32 %v2303, %v2511
  %2513 = vmatmul.f32.gmra.mxu0 %v477
  %v2514 = vpop.f32.mrf.mxu0
  %v2515 = vadd.f32 %v2306, %v2514
  %2516 = vmatmul.f32.gmra.mxu0 %v243
  %v2517 = vpop.f32.mrf.mxu0
  %v2518 = vadd.f32 %v2309, %v2517
  %2519 = vmatmul.f32.gmra.mxu0 %v478
  %v2520 = vpop.f32.mrf.mxu0
  %v2521 = vadd.f32 %v2312, %v2520
  %2522 = vmatmul.f32.gmra.mxu0 %v246
  %v2523 = vpop.f32.mrf.mxu0
  %v2524 = vadd.f32 %v2315, %v2523
  %2525 = vmatmul.f32.gmra.mxu0 %v479
  %v2526 = vpop.f32.mrf.mxu0
  %v2527 = vadd.f32 %v2318, %v2526
  %2528 = vmatmul.f32.gmra.mxu0 %v249
  %v2529 = vpop.f32.mrf.mxu0
  %v2530 = vadd.f32 %v2321, %v2529
  %2531 = vmatmul.f32.gmra.mxu0 %v480
  %v2532 = vpop.f32.mrf.mxu0
  %v2533 = vadd.f32 %v2324, %v2532
  %2534 = vmatmul.f32.gmra.mxu0 %v252
  %v2535 = vpop.f32.mrf.mxu0
  %v2536 = vadd.f32 %v2327, %v2535
  %2537 = vmatmul.f32.gmra.mxu0 %v481
  %v2538 = vpop.f32.mrf.mxu0
  %v2539 = vadd.f32 %v2330, %v2538
  %2540 = vmatmul.f32.gmra.mxu0 %v255
  %v2541 = vpop.f32.mrf.mxu0
  %v2542 = vadd.f32 %v2333, %v2541
  %2543 = vmatmul.f32.gmra.mxu0 %v482
  %v2544 = vpop.f32.mrf.mxu0
  %v2545 = vadd.f32 %v2336, %v2544
  %2546 = vmatmul.f32.gmra.mxu0 %v258
  %v2547 = vpop.f32.mrf.mxu0
  %v2548 = vadd.f32 %v2339, %v2547
  %2549 = vmatmul.f32.gmra.mxu0 %v481
  %v2550 = vpop.f32.mrf.mxu0
  %v2551 = vadd.f32 %v2342, %v2550
  %2552 = vmatmul.f32.gmra.mxu0 %v255
  %v2553 = vpop.f32.mrf.mxu0
  %v2554 = vadd.f32 %v2345, %v2553
  %2555 = vmatmul.f32.gmra.mxu0 %v483
  %v2556 = vpop.f32.mrf.mxu0
  %v2557 = vadd.f32 %v2348, %v2556
  %2558 = vmatmul.f32.gmra.mxu0 %v261
  %v2559 = vpop.f32.mrf.mxu0
  %v2560 = vadd.f32 %v2351, %v2559
  %2561 = vmatmul.f32.gmra.mxu0 %v485
  %v2562 = vpop.f32.mrf.mxu0
  %v2563 = vadd.f32 %v2354, %v2562
  %2564 = vmatmul.f32.gmra.mxu0 %v267
  %v2565 = vpop.f32.mrf.mxu0
  %v2566 = vadd.f32 %v2357, %v2565
  %2567 = vmatmul.f32.gmra.mxu0 %v486
  %v2568 = vpop.f32.mrf.mxu0
  %v2569 = vadd.f32 %v2360, %v2568
  %2570 = vmatmul.f32.gmra.mxu0 %v270
  %v2571 = vpop.f32.mrf.mxu0
  %v2572 = vadd.f32 %v2363, %v2571
  %2573 = vmatmul.f32.gmra.mxu0 %v487
  %v2574 = vpop.f32.mrf.mxu0
  %v2575 = vadd.f32 %v2366, %v2574
  %2576 = vmatmul.f32.gmra.mxu0 %v273
  %v2577 = vpop.f32.mrf.mxu0
  %v2578 = vadd.f32 %v2369, %v2577
  %2579 = vmatmul.f32.gmra.mxu0 %v488
  %v2580 = vpop.f32.mrf.mxu0
  %v2581 = vadd.f32 %v2372, %v2580
  %2582 = vmatmul.f32.gmra.mxu0 %v276
  %v2583 = vpop.f32.mrf.mxu0
  %v2584 = vadd.f32 %v2375, %v2583
  %2585 = vmatmul.f32.gmra.mxu0 %v489
  %v2586 = vpop.f32.mrf.mxu0
  %v2587 = vadd.f32 %v2378, %v2586
  %2588 = vmatmul.f32.gmra.mxu0 %v279
  %v2589 = vpop.f32.mrf.mxu0
  %v2590 = vadd.f32 %v2381, %v2589
  %2591 = vmatmul.f32.gmra.mxu0 %v490
  %v2592 = vpop.f32.mrf.mxu0
  %v2593 = vadd.f32 %v2384, %v2592
  %2594 = vmatmul.f32.gmra.mxu0 %v282
  %v2595 = vpop.f32.mrf.mxu0
  %v2596 = vadd.f32 %v2387, %v2595
  %2597 = vmatmul.f32.gmra.mxu0 %v491
  %v2598 = vpop.f32.mrf.mxu0
  %v2599 = vadd.f32 %v2390, %v2598
  %2600 = vmatmul.f32.gmra.mxu0 %v285
  %v2601 = vpop.f32.mrf.mxu0
  %v2602 = vadd.f32 %v2393, %v2601
  %2603 = vmatmul.f32.gmra.mxu0 %v492
  %v2604 = vpop.f32.mrf.mxu0
  %v2605 = vadd.f32 %v2396, %v2604
  %2606 = vmatmul.f32.gmra.mxu0 %v288
  %v2607 = vpop.f32.mrf.mxu0
  %v2608 = vadd.f32 %v2399, %v2607
  %2609 = vmatmul.f32.gmra.mxu0 %v493
  %v2610 = vpop.f32.mrf.mxu0
  %v2611 = vadd.f32 %v2402, %v2610
  %2612 = vmatmul.f32.gmra.mxu0 %v291
  %v2613 = vpop.f32.mrf.mxu0
  %v2614 = vadd.f32 %v2405, %v2613
  %2615 = vmatmul.f32.gmra.mxu0 %v494
  %v2616 = vpop.f32.mrf.mxu0
  %v2617 = vadd.f32 %v2408, %v2616
  %2618 = vmatmul.f32.gmra.mxu0 %v294
  %v2619 = vpop.f32.mrf.mxu0
  %v2620 = vadd.f32 %v2411, %v2619
  %2621 = vmatmul.f32.gmra.mxu0 %v495
  %v2622 = vpop.f32.mrf.mxu0
  %v2623 = vadd.f32 %v2414, %v2622
  %2624 = vmatmul.f32.gmra.mxu0 %v297
  %v2625 = vpop.f32.mrf.mxu0
  %v2626 = vadd.f32 %v2417, %v2625
  %2627 = vmatmul.f32.gmra.mxu0 %v496
  %v2628 = vpop.f32.mrf.mxu0
  %v2629 = vadd.f32 %v2420, %v2628
  %2630 = vmatmul.f32.gmra.mxu0 %v300
  %v2631 = vpop.f32.mrf.mxu0
  %v2632 = vadd.f32 %v2423, %v2631
  %2633 = vmatmul.f32.gmra.mxu0 %v497
  %v2634 = vpop.f32.mrf.mxu0
  %v2635 = vadd.f32 %v2426, %v2634
  %2636 = vmatmul.f32.gmra.mxu0 %v303
  %v2637 = vpop.f32.mrf.mxu0
  %v2638 = vadd.f32 %v2429, %v2637
  %2639 = vmatmul.f32.gmra.mxu0 %v498
  %v2640 = vpop.f32.mrf.mxu0
  %v2641 = vadd.f32 %v2432, %v2640
  %2642 = vmatmul.f32.gmra.mxu0 %v306
  %v2643 = vpop.f32.mrf.mxu0
  %v2644 = vadd.f32 %v2435, %v2643
  %2645 = vmatmul.f32.gmra.mxu0 %v497
  %v2646 = vpop.f32.mrf.mxu0
  %v2647 = vadd.f32 %v2438, %v2646
  %2648 = vmatmul.f32.gmra.mxu0 %v303
  %v2649 = vpop.f32.mrf.mxu0
  %v2650 = vadd.f32 %v2441, %v2649
  %2651 = vdwg.mxu0
  %2652 = vmatpush.msra.mxu0 %v1172
  %2653 = vmatpush.msra.mxu0 %v1171
  %2654 = vmatpush.msra.mxu0 %v1170
  %2655 = vmatpush.msra.mxu0 %v1169
  %2656 = vmatpush.msra.mxu0 %v1168
  %2657 = vmatpush.msra.mxu0 %v1167
  %2658 = vmatpush.msra.mxu0 %v1166
  %2659 = vmatpush.msra.mxu0 %v1165
  %2660 = vmatpush.msra.mxu0 %v1164
  %2661 = vmatpush.msra.mxu0 %v1163
  %2662 = vmatpush.msra.mxu0 %v1162
  %2663 = vmatpush.msra.mxu0 %v1161
  %2664 = vmatpush.msra.mxu0 %v1160
  %2665 = vmatpush.msra.mxu0 %v1159
  %2666 = vmatpush.msra.mxu0 %v1158
  %2667 = vmatpush.msra.mxu0 %v1157
  %2668 = vmatmul.f32.gmra.mxu0 %v594
  %v2669 = vpop.f32.mrf.mxu0
  %v2670 = vadd.f32 %v2461, %v2669
  %2671 = vmatmul.f32.gmra.mxu0 %v596
  %v2672 = vpop.f32.mrf.mxu0
  %v2673 = vadd.f32 %v2464, %v2672
  %2674 = vmatmul.f32.gmra.mxu0 %v604
  %v2675 = vpop.f32.mrf.mxu0
  %v2676 = vadd.f32 %v2467, %v2675
  %2677 = vmatmul.f32.gmra.mxu0 %v606
  %v2678 = vpop.f32.mrf.mxu0
  %v2679 = vadd.f32 %v2470, %v2678
  %2680 = vmatmul.f32.gmra.mxu0 %v609
  %v2681 = vpop.f32.mrf.mxu0
  %v2682 = vadd.f32 %v2473, %v2681
  %2683 = vmatmul.f32.gmra.mxu0 %v611
  %v2684 = vpop.f32.mrf.mxu0
  %v2685 = vadd.f32 %v2476, %v2684
  %2686 = vmatmul.f32.gmra.mxu0 %v614
  %v2687 = vpop.f32.mrf.mxu0
  %v2688 = vadd.f32 %v2479, %v2687
  %2689 = vmatmul.f32.gmra.mxu0 %v616
  %v2690 = vpop.f32.mrf.mxu0
  %v2691 = vadd.f32 %v2482, %v2690
  %2692 = vmatmul.f32.gmra.mxu0 %v619
  %v2693 = vpop.f32.mrf.mxu0
  %v2694 = vadd.f32 %v2485, %v2693
  %2695 = vmatmul.f32.gmra.mxu0 %v621
  %v2696 = vpop.f32.mrf.mxu0
  %v2697 = vadd.f32 %v2488, %v2696
  %2698 = vmatmul.f32.gmra.mxu0 %v624
  %v2699 = vpop.f32.mrf.mxu0
  %v2700 = vadd.f32 %v2491, %v2699
  %2701 = vmatmul.f32.gmra.mxu0 %v626
  %v2702 = vpop.f32.mrf.mxu0
  %v2703 = vadd.f32 %v2494, %v2702
  %2704 = vmatmul.f32.gmra.mxu0 %v629
  %v2705 = vpop.f32.mrf.mxu0
  %v2706 = vadd.f32 %v2497, %v2705
  %2707 = vmatmul.f32.gmra.mxu0 %v631
  %v2708 = vpop.f32.mrf.mxu0
  %v2709 = vadd.f32 %v2500, %v2708
  %2710 = vmatmul.f32.gmra.mxu0 %v634
  %v2711 = vpop.f32.mrf.mxu0
  %v2712 = vadd.f32 %v2503, %v2711
  %2713 = vmatmul.f32.gmra.mxu0 %v636
  %v2714 = vpop.f32.mrf.mxu0
  %v2715 = vadd.f32 %v2506, %v2714
  %2716 = vmatmul.f32.gmra.mxu0 %v639
  %v2717 = vpop.f32.mrf.mxu0
  %v2718 = vadd.f32 %v2509, %v2717
  %2719 = vmatmul.f32.gmra.mxu0 %v641
  %v2720 = vpop.f32.mrf.mxu0
  %v2721 = vadd.f32 %v2512, %v2720
  %2722 = vmatmul.f32.gmra.mxu0 %v644
  %v2723 = vpop.f32.mrf.mxu0
  %v2724 = vadd.f32 %v2515, %v2723
  %2725 = vmatmul.f32.gmra.mxu0 %v646
  %v2726 = vpop.f32.mrf.mxu0
  %v2727 = vadd.f32 %v2518, %v2726
  %2728 = vmatmul.f32.gmra.mxu0 %v649
  %v2729 = vpop.f32.mrf.mxu0
  %v2730 = vadd.f32 %v2521, %v2729
  %2731 = vmatmul.f32.gmra.mxu0 %v651
  %v2732 = vpop.f32.mrf.mxu0
  %v2733 = vadd.f32 %v2524, %v2732
  %2734 = vmatmul.f32.gmra.mxu0 %v654
  %v2735 = vpop.f32.mrf.mxu0
  %v2736 = vadd.f32 %v2527, %v2735
  %2737 = vmatmul.f32.gmra.mxu0 %v656
  %v2738 = vpop.f32.mrf.mxu0
  %v2739 = vadd.f32 %v2530, %v2738
  %2740 = vmatmul.f32.gmra.mxu0 %v659
  %v2741 = vpop.f32.mrf.mxu0
  %v2742 = vadd.f32 %v2533, %v2741
  %2743 = vmatmul.f32.gmra.mxu0 %v661
  %v2744 = vpop.f32.mrf.mxu0
  %v2745 = vadd.f32 %v2536, %v2744
  %2746 = vmatmul.f32.gmra.mxu0 %v664
  %v2747 = vpop.f32.mrf.mxu0
  %v2748 = vadd.f32 %v2539, %v2747
  %2749 = vmatmul.f32.gmra.mxu0 %v666
  %v2750 = vpop.f32.mrf.mxu0
  %v2751 = vadd.f32 %v2542, %v2750
  %2752 = vmatmul.f32.gmra.mxu0 %v1019
  %v2753 = vpop.f32.mrf.mxu0
  %v2754 = vadd.f32 %v2545, %v2753
  %2755 = vmatmul.f32.gmra.mxu0 %v1021
  %v2756 = vpop.f32.mrf.mxu0
  %v2757 = vadd.f32 %v2548, %v2756
  %2758 = vmatmul.f32.gmra.mxu0 %v664
  %v2759 = vpop.f32.mrf.mxu0
  %v2760 = vadd.f32 %v2551, %v2759
  %2761 = vmatmul.f32.gmra.mxu0 %v666
  %v2762 = vpop.f32.mrf.mxu0
  %v2763 = vadd.f32 %v2554, %v2762
  %2764 = vmatmul.f32.gmra.mxu0 %v669
  %v2765 = vpop.f32.mrf.mxu0
  %v2766 = vadd.f32 %v2557, %v2765
  %2767 = vmatmul.f32.gmra.mxu0 %v671
  %v2768 = vpop.f32.mrf.mxu0
  %v2769 = vadd.f32 %v2560, %v2768
  %2770 = vmatmul.f32.gmra.mxu0 %v679
  %v2771 = vpop.f32.mrf.mxu0
  %v2772 = vadd.f32 %v2563, %v2771
  %2773 = vmatmul.f32.gmra.mxu0 %v681
  %v2774 = vpop.f32.mrf.mxu0
  %v2775 = vadd.f32 %v2566, %v2774
  %2776 = vmatmul.f32.gmra.mxu0 %v684
  %v2777 = vpop.f32.mrf.mxu0
  %v2778 = vadd.f32 %v2569, %v2777
  %2779 = vmatmul.f32.gmra.mxu0 %v686
  %v2780 = vpop.f32.mrf.mxu0
  %v2781 = vadd.f32 %v2572, %v2780
  %2782 = vmatmul.f32.gmra.mxu0 %v689
  %v2783 = vpop.f32.mrf.mxu0
  %v2784 = vadd.f32 %v2575, %v2783
  %2785 = vmatmul.f32.gmra.mxu0 %v691
  %v2786 = vpop.f32.mrf.mxu0
  %v2787 = vadd.f32 %v2578, %v2786
  %2788 = vmatmul.f32.gmra.mxu0 %v694
  %v2789 = vpop.f32.mrf.mxu0
  %v2790 = vadd.f32 %v2581, %v2789
  %2791 = vmatmul.f32.gmra.mxu0 %v696
  %v2792 = vpop.f32.mrf.mxu0
  %v2793 = vadd.f32 %v2584, %v2792
  %2794 = vmatmul.f32.gmra.mxu0 %v699
  %v2795 = vpop.f32.mrf.mxu0
  %v2796 = vadd.f32 %v2587, %v2795
  %2797 = vmatmul.f32.gmra.mxu0 %v701
  %v2798 = vpop.f32.mrf.mxu0
  %v2799 = vadd.f32 %v2590, %v2798
  %2800 = vmatmul.f32.gmra.mxu0 %v704
  %v2801 = vpop.f32.mrf.mxu0
  %v2802 = vadd.f32 %v2593, %v2801
  %2803 = vmatmul.f32.gmra.mxu0 %v706
  %v2804 = vpop.f32.mrf.mxu0
  %v2805 = vadd.f32 %v2596, %v2804
  %2806 = vmatmul.f32.gmra.mxu0 %v709
  %v2807 = vpop.f32.mrf.mxu0
  %v2808 = vadd.f32 %v2599, %v2807
  %2809 = vmatmul.f32.gmra.mxu0 %v711
  %v2810 = vpop.f32.mrf.mxu0
  %v2811 = vadd.f32 %v2602, %v2810
  %2812 = vmatmul.f32.gmra.mxu0 %v714
  %v2813 = vpop.f32.mrf.mxu0
  %v2814 = vadd.f32 %v2605, %v2813
  %2815 = vmatmul.f32.gmra.mxu0 %v716
  %v2816 = vpop.f32.mrf.mxu0
  %v2817 = vadd.f32 %v2608, %v2816
  %2818 = vmatmul.f32.gmra.mxu0 %v719
  %v2819 = vpop.f32.mrf.mxu0
  %v2820 = vadd.f32 %v2611, %v2819
  %2821 = vmatmul.f32.gmra.mxu0 %v721
  %v2822 = vpop.f32.mrf.mxu0
  %v2823 = vadd.f32 %v2614, %v2822
  %2824 = vmatmul.f32.gmra.mxu0 %v724
  %v2825 = vpop.f32.mrf.mxu0
  %v2826 = vadd.f32 %v2617, %v2825
  %2827 = vmatmul.f32.gmra.mxu0 %v726
  %v2828 = vpop.f32.mrf.mxu0
  %v2829 = vadd.f32 %v2620, %v2828
  %2830 = vmatmul.f32.gmra.mxu0 %v729
  %v2831 = vpop.f32.mrf.mxu0
  %v2832 = vadd.f32 %v2623, %v2831
  %2833 = vmatmul.f32.gmra.mxu0 %v731
  %v2834 = vpop.f32.mrf.mxu0
  %v2835 = vadd.f32 %v2626, %v2834
  %2836 = vmatmul.f32.gmra.mxu0 %v734
  %v2837 = vpop.f32.mrf.mxu0
  %v2838 = vadd.f32 %v2629, %v2837
  %2839 = vmatmul.f32.gmra.mxu0 %v736
  %v2840 = vpop.f32.mrf.mxu0
  %v2841 = vadd.f32 %v2632, %v2840
  %2842 = vmatmul.f32.gmra.mxu0 %v739
  %v2843 = vpop.f32.mrf.mxu0
  %v2844 = vadd.f32 %v2635, %v2843
  %2845 = vmatmul.f32.gmra.mxu0 %v741
  %v2846 = vpop.f32.mrf.mxu0
  %v2847 = vadd.f32 %v2638, %v2846
  %2848 = vmatmul.f32.gmra.mxu0 %v1024
  %v2849 = vpop.f32.mrf.mxu0
  %v2850 = vadd.f32 %v2641, %v2849
  %2851 = vmatmul.f32.gmra.mxu0 %v1026
  %v2852 = vpop.f32.mrf.mxu0
  %v2853 = vadd.f32 %v2644, %v2852
  %2854 = vmatmul.f32.gmra.mxu0 %v739
  %v2855 = vpop.f32.mrf.mxu0
  %v2856 = vadd.f32 %v2647, %v2855
  %2857 = vmatmul.f32.gmra.mxu0 %v741
  %v2858 = vpop.f32.mrf.mxu0
  %v2859 = vadd.f32 %v2650, %v2858
  %2860 = vdwg.mxu0
  %2861 = vmatpush.msra.mxu0 %v1188
  %2862 = vmatpush.msra.mxu0 %v1187
  %2863 = vmatpush.msra.mxu0 %v1186
  %2864 = vmatpush.msra.mxu0 %v1185
  %2865 = vmatpush.msra.mxu0 %v1184
  %2866 = vmatpush.msra.mxu0 %v1183
  %2867 = vmatpush.msra.mxu0 %v1182
  %2868 = vmatpush.msra.mxu0 %v1181
  %2869 = vmatpush.msra.mxu0 %v1180
  %2870 = vmatpush.msra.mxu0 %v1179
  %2871 = vmatpush.msra.mxu0 %v1178
  %2872 = vmatpush.msra.mxu0 %v1177
  %2873 = vmatpush.msra.mxu0 %v1176
  %2874 = vmatpush.msra.mxu0 %v1175
  %2875 = vmatpush.msra.mxu0 %v1174
  %2876 = vmatpush.msra.mxu0 %v1173
  %2877 = vmatmul.f32.gmra.mxu0 %v805
  %v2878 = vpop.f32.mrf.mxu0
  %v2879 = vadd.f32 %v2670, %v2878
  %2880 = vmatmul.f32.gmra.mxu0 %v807
  %v2881 = vpop.f32.mrf.mxu0
  %v2882 = vadd.f32 %v2673, %v2881
  %2883 = vmatmul.f32.gmra.mxu0 %v815
  %v2884 = vpop.f32.mrf.mxu0
  %v2885 = vadd.f32 %v2676, %v2884
  %2886 = vmatmul.f32.gmra.mxu0 %v817
  %v2887 = vpop.f32.mrf.mxu0
  %v2888 = vadd.f32 %v2679, %v2887
  %2889 = vmatmul.f32.gmra.mxu0 %v820
  %v2890 = vpop.f32.mrf.mxu0
  %v2891 = vadd.f32 %v2682, %v2890
  %2892 = vmatmul.f32.gmra.mxu0 %v822
  %v2893 = vpop.f32.mrf.mxu0
  %v2894 = vadd.f32 %v2685, %v2893
  %2895 = vmatmul.f32.gmra.mxu0 %v825
  %v2896 = vpop.f32.mrf.mxu0
  %v2897 = vadd.f32 %v2688, %v2896
  %2898 = vmatmul.f32.gmra.mxu0 %v827
  %v2899 = vpop.f32.mrf.mxu0
  %v2900 = vadd.f32 %v2691, %v2899
  %2901 = vmatmul.f32.gmra.mxu0 %v830
  %v2902 = vpop.f32.mrf.mxu0
  %v2903 = vadd.f32 %v2694, %v2902
  %2904 = vmatmul.f32.gmra.mxu0 %v832
  %v2905 = vpop.f32.mrf.mxu0
  %v2906 = vadd.f32 %v2697, %v2905
  %2907 = vmatmul.f32.gmra.mxu0 %v835
  %v2908 = vpop.f32.mrf.mxu0
  %v2909 = vadd.f32 %v2700, %v2908
  %2910 = vmatmul.f32.gmra.mxu0 %v837
  %v2911 = vpop.f32.mrf.mxu0
  %v2912 = vadd.f32 %v2703, %v2911
  %2913 = vmatmul.f32.gmra.mxu0 %v840
  %v2914 = vpop.f32.mrf.mxu0
  %v2915 = vadd.f32 %v2706, %v2914
  %2916 = vmatmul.f32.gmra.mxu0 %v842
  %v2917 = vpop.f32.mrf.mxu0
  %v2918 = vadd.f32 %v2709, %v2917
  %2919 = vmatmul.f32.gmra.mxu0 %v845
  %v2920 = vpop.f32.mrf.mxu0
  %v2921 = vadd.f32 %v2712, %v2920
  %2922 = vmatmul.f32.gmra.mxu0 %v847
  %v2923 = vpop.f32.mrf.mxu0
  %v2924 = vadd.f32 %v2715, %v2923
  %2925 = vmatmul.f32.gmra.mxu0 %v850
  %v2926 = vpop.f32.mrf.mxu0
  %v2927 = vadd.f32 %v2718, %v2926
  %2928 = vmatmul.f32.gmra.mxu0 %v852
  %v2929 = vpop.f32.mrf.mxu0
  %v2930 = vadd.f32 %v2721, %v2929
  %2931 = vmatmul.f32.gmra.mxu0 %v855
  %v2932 = vpop.f32.mrf.mxu0
  %v2933 = vadd.f32 %v2724, %v2932
  %2934 = vmatmul.f32.gmra.mxu0 %v857
  %v2935 = vpop.f32.mrf.mxu0
  %v2936 = vadd.f32 %v2727, %v2935
  %2937 = vmatmul.f32.gmra.mxu0 %v860
  %v2938 = vpop.f32.mrf.mxu0
  %v2939 = vadd.f32 %v2730, %v2938
  %2940 = vmatmul.f32.gmra.mxu0 %v862
  %v2941 = vpop.f32.mrf.mxu0
  %v2942 = vadd.f32 %v2733, %v2941
  %2943 = vmatmul.f32.gmra.mxu0 %v865
  %v2944 = vpop.f32.mrf.mxu0
  %v2945 = vadd.f32 %v2736, %v2944
  %2946 = vmatmul.f32.gmra.mxu0 %v867
  %v2947 = vpop.f32.mrf.mxu0
  %v2948 = vadd.f32 %v2739, %v2947
  %2949 = vmatmul.f32.gmra.mxu0 %v870
  %v2950 = vpop.f32.mrf.mxu0
  %v2951 = vadd.f32 %v2742, %v2950
  %2952 = vmatmul.f32.gmra.mxu0 %v872
  %v2953 = vpop.f32.mrf.mxu0
  %v2954 = vadd.f32 %v2745, %v2953
  %2955 = vmatmul.f32.gmra.mxu0 %v875
  %v2956 = vpop.f32.mrf.mxu0
  %v2957 = vadd.f32 %v2748, %v2956
  %2958 = vmatmul.f32.gmra.mxu0 %v877
  %v2959 = vpop.f32.mrf.mxu0
  %v2960 = vadd.f32 %v2751, %v2959
  %2961 = vmatmul.f32.gmra.mxu0 %v1033
  %v2962 = vpop.f32.mrf.mxu0
  %v2963 = vadd.f32 %v2754, %v2962
  %2964 = vmatmul.f32.gmra.mxu0 %v1035
  %v2965 = vpop.f32.mrf.mxu0
  %v2966 = vadd.f32 %v2757, %v2965
  %2967 = vmatmul.f32.gmra.mxu0 %v875
  %v2968 = vpop.f32.mrf.mxu0
  %v2969 = vadd.f32 %v2760, %v2968
  %2970 = vmatmul.f32.gmra.mxu0 %v877
  %v2971 = vpop.f32.mrf.mxu0
  %v2972 = vadd.f32 %v2763, %v2971
  %2973 = vmatmul.f32.gmra.mxu0 %v880
  %v2974 = vpop.f32.mrf.mxu0
  %v2975 = vadd.f32 %v2766, %v2974
  %2976 = vmatmul.f32.gmra.mxu0 %v882
  %v2977 = vpop.f32.mrf.mxu0
  %v2978 = vadd.f32 %v2769, %v2977
  %2979 = vmatmul.f32.gmra.mxu0 %v890
  %v2980 = vpop.f32.mrf.mxu0
  %v2981 = vadd.f32 %v2772, %v2980
  %2982 = vmatmul.f32.gmra.mxu0 %v892
  %v2983 = vpop.f32.mrf.mxu0
  %v2984 = vadd.f32 %v2775, %v2983
  %2985 = vmatmul.f32.gmra.mxu0 %v895
  %v2986 = vpop.f32.mrf.mxu0
  %v2987 = vadd.f32 %v2778, %v2986
  %2988 = vmatmul.f32.gmra.mxu0 %v897
  %v2989 = vpop.f32.mrf.mxu0
  %v2990 = vadd.f32 %v2781, %v2989
  %2991 = vmatmul.f32.gmra.mxu0 %v900
  %v2992 = vpop.f32.mrf.mxu0
  %v2993 = vadd.f32 %v2784, %v2992
  %2994 = vmatmul.f32.gmra.mxu0 %v902
  %v2995 = vpop.f32.mrf.mxu0
  %v2996 = vadd.f32 %v2787, %v2995
  %2997 = vmatmul.f32.gmra.mxu0 %v905
  %v2998 = vpop.f32.mrf.mxu0
  %v2999 = vadd.f32 %v2790, %v2998
  %3000 = vmatmul.f32.gmra.mxu0 %v907
  %v3001 = vpop.f32.mrf.mxu0
  %v3002 = vadd.f32 %v2793, %v3001
  %3003 = vmatmul.f32.gmra.mxu0 %v910
  %v3004 = vpop.f32.mrf.mxu0
  %v3005 = vadd.f32 %v2796, %v3004
  %3006 = vmatmul.f32.gmra.mxu0 %v912
  %v3007 = vpop.f32.mrf.mxu0
  %v3008 = vadd.f32 %v2799, %v3007
  %3009 = vmatmul.f32.gmra.mxu0 %v915
  %v3010 = vpop.f32.mrf.mxu0
  %v3011 = vadd.f32 %v2802, %v3010
  %3012 = vmatmul.f32.gmra.mxu0 %v917
  %v3013 = vpop.f32.mrf.mxu0
  %v3014 = vadd.f32 %v2805, %v3013
  %3015 = vmatmul.f32.gmra.mxu0 %v920
  %v3016 = vpop.f32.mrf.mxu0
  %v3017 = vadd.f32 %v2808, %v3016
  %3018 = vmatmul.f32.gmra.mxu0 %v922
  %v3019 = vpop.f32.mrf.mxu0
  %v3020 = vadd.f32 %v2811, %v3019
  %3021 = vmatmul.f32.gmra.mxu0 %v925
  %v3022 = vpop.f32.mrf.mxu0
  %v3023 = vadd.f32 %v2814, %v3022
  %3024 = vmatmul.f32.gmra.mxu0 %v927
  %v3025 = vpop.f32.mrf.mxu0
  %v3026 = vadd.f32 %v2817, %v3025
  %3027 = vmatmul.f32.gmra.mxu0 %v930
  %v3028 = vpop.f32.mrf.mxu0
  %v3029 = vadd.f32 %v2820, %v3028
  %3030 = vmatmul.f32.gmra.mxu0 %v932
  %v3031 = vpop.f32.mrf.mxu0
  %v3032 = vadd.f32 %v2823, %v3031
  %3033 = vmatmul.f32.gmra.mxu0 %v935
  %v3034 = vpop.f32.mrf.mxu0
  %v3035 = vadd.f32 %v2826, %v3034
  %3036 = vmatmul.f32.gmra.mxu0 %v937
  %v3037 = vpop.f32.mrf.mxu0
  %v3038 = vadd.f32 %v2829, %v3037
  %3039 = vmatmul.f32.gmra.mxu0 %v940
  %v3040 = vpop.f32.mrf.mxu0
  %v3041 = vadd.f32 %v2832, %v3040
  %3042 = vmatmul.f32.gmra.mxu0 %v942
  %v3043 = vpop.f32.mrf.mxu0
  %v3044 = vadd.f32 %v2835, %v3043
  %3045 = vmatmul.f32.gmra.mxu0 %v945
  %v3046 = vpop.f32.mrf.mxu0
  %v3047 = vadd.f32 %v2838, %v3046
  %3048 = vmatmul.f32.gmra.mxu0 %v947
  %v3049 = vpop.f32.mrf.mxu0
  %v3050 = vadd.f32 %v2841, %v3049
  %3051 = vmatmul.f32.gmra.mxu0 %v950
  %v3052 = vpop.f32.mrf.mxu0
  %v3053 = vadd.f32 %v2844, %v3052
  %3054 = vmatmul.f32.gmra.mxu0 %v952
  %v3055 = vpop.f32.mrf.mxu0
  %v3056 = vadd.f32 %v2847, %v3055
  %3057 = vmatmul.f32.gmra.mxu0 %v1038
  %v3058 = vpop.f32.mrf.mxu0
  %v3059 = vadd.f32 %v2850, %v3058
  %3060 = vmatmul.f32.gmra.mxu0 %v1040
  %v3061 = vpop.f32.mrf.mxu0
  %v3062 = vadd.f32 %v2853, %v3061
  %3063 = vmatmul.f32.gmra.mxu0 %v950
  %v3064 = vpop.f32.mrf.mxu0
  %v3065 = vadd.f32 %v2856, %v3064
  %3066 = vmatmul.f32.gmra.mxu0 %v952
  %v3067 = vpop.f32.mrf.mxu0
  %v3068 = vadd.f32 %v2859, %v3067
  %3069 = vdwg.mxu0
  %v3070 = vperm.slane %v81, 0
  %v3071 = vadd.f32 %v2879, %v3070
  %v3072 = vadd.f32 %v2882, %v3070
  %v3073 = vadd.f32 %v2885, %v3070
  %v3074 = vadd.f32 %v2888, %v3070
  %v3075 = vadd.f32 %v2891, %v3070
  %v3076 = vadd.f32 %v2894, %v3070
  %v3077 = vadd.f32 %v2897, %v3070
  %v3078 = vadd.f32 %v2900, %v3070
  %v3079 = vadd.f32 %v2903, %v3070
  %v3080 = vadd.f32 %v2906, %v3070
  %v3081 = vadd.f32 %v2909, %v3070
  %v3082 = vadd.f32 %v2912, %v3070
  %v3083 = vadd.f32 %v2915, %v3070
  %v3084 = vadd.f32 %v2918, %v3070
  %v3085 = vadd.f32 %v2921, %v3070
  %v3086 = vadd.f32 %v2924, %v3070
  %v3087 = vadd.f32 %v2927, %v3070
  %v3088 = vadd.f32 %v2930, %v3070
  %v3089 = vadd.f32 %v2933, %v3070
  %v3090 = vadd.f32 %v2936, %v3070
  %v3091 = vadd.f32 %v2939, %v3070
  %v3092 = vadd.f32 %v2942, %v3070
  %v3093 = vadd.f32 %v2945, %v3070
  %v3094 = vadd.f32 %v2948, %v3070
  %v3095 = vadd.f32 %v2951, %v3070
  %v3096 = vadd.f32 %v2954, %v3070
  %v3097 = vadd.f32 %v2957, %v3070
  %v3098 = vadd.f32 %v2960, %v3070
  %v3099 = vadd.f32 %v2963, %v3070
  %v3100 = vadd.f32 %v2966, %v3070
  %v3101 = vadd.f32 %v2969, %v3070
  %v3102 = vadd.f32 %v2972, %v3070
  %v3103 = vadd.f32 %v2975, %v3070
  %v3104 = vadd.f32 %v2978, %v3070
  %v3105 = vadd.f32 %v2981, %v3070
  %v3106 = vadd.f32 %v2984, %v3070
  %v3107 = vadd.f32 %v2987, %v3070
  %v3108 = vadd.f32 %v2990, %v3070
  %v3109 = vadd.f32 %v2993, %v3070
  %v3110 = vadd.f32 %v2996, %v3070
  %v3111 = vadd.f32 %v2999, %v3070
  %v3112 = vadd.f32 %v3002, %v3070
  %v3113 = vadd.f32 %v3005, %v3070
  %v3114 = vadd.f32 %v3008, %v3070
  %v3115 = vadd.f32 %v3011, %v3070
  %v3116 = vadd.f32 %v3014, %v3070
  %v3117 = vadd.f32 %v3017, %v3070
  %v3118 = vadd.f32 %v3020, %v3070
  %v3119 = vadd.f32 %v3023, %v3070
  %v3120 = vadd.f32 %v3026, %v3070
  %v3121 = vadd.f32 %v3029, %v3070
  %v3122 = vadd.f32 %v3032, %v3070
  %v3123 = vadd.f32 %v3035, %v3070
  %v3124 = vadd.f32 %v3038, %v3070
  %v3125 = vadd.f32 %v3041, %v3070
  %v3126 = vadd.f32 %v3044, %v3070
  %v3127 = vadd.f32 %v3047, %v3070
  %v3128 = vadd.f32 %v3050, %v3070
  %v3129 = vadd.f32 %v3053, %v3070
  %v3130 = vadd.f32 %v3056, %v3070
  %v3131 = vadd.f32 %v3059, %v3070
  %v3132 = vadd.f32 %v3062, %v3070
  %v3133 = vadd.f32 %v3065, %v3070
  %v3134 = vadd.f32 %v3068, %v3070
  %v3135 = vadd.f32 %v3071, %v3072
  %v3136 = vadd.f32 %v3135, %v3073
  %v3137 = vadd.f32 %v3136, %v3074
  %v3138 = vadd.f32 %v3137, %v3075
  %v3139 = vadd.f32 %v3138, %v3076
  %v3140 = vadd.f32 %v3139, %v3077
  %v3141 = vadd.f32 %v3140, %v3078
  %v3142 = vadd.f32 %v3141, %v3079
  %v3143 = vadd.f32 %v3142, %v3080
  %v3144 = vadd.f32 %v3143, %v3081
  %v3145 = vadd.f32 %v3144, %v3082
  %v3146 = vadd.f32 %v3145, %v3083
  %v3147 = vadd.f32 %v3146, %v3084
  %v3148 = vadd.f32 %v3147, %v3085
  %v3149 = vadd.f32 %v3148, %v3086
  %v3150 = vadd.f32 %v3149, %v3087
  %v3151 = vadd.f32 %v3150, %v3088
  %v3152 = vadd.f32 %v3151, %v3089
  %v3153 = vadd.f32 %v3152, %v3090
  %v3154 = vadd.f32 %v3153, %v3091
  %v3155 = vadd.f32 %v3154, %v3092
  %v3156 = vadd.f32 %v3155, %v3093
  %v3157 = vadd.f32 %v3156, %v3094
  %v3158 = vadd.f32 %v3157, %v3095
  %v3159 = vadd.f32 %v3158, %v3096
  %v3160 = vadd.f32 %v3159, %v3097
  %v3161 = vadd.f32 %v3160, %v3098
  %v3162 = vadd.f32 %v3161, %v3099
  %v3163 = vadd.f32 %v3162, %v3100
  %v3164 = vadd.f32 %v3163, %v3101
  %v3165 = vadd.f32 %v3164, %v3102
  %v3166 = vrot.slane %v3165, 4
  %v3167 = vadd.f32 %v3165, %v3166
  %v3168 = vrot.slane %v3167, 2
  %v3169 = vadd.f32 %v3167, %v3168
  %v3170 = vrot.slane %v3169, 1
  %v3171 = vadd.f32 %v3169, %v3170
  %v3172 = vadd.f32 %v3103, %v3104
  %v3173 = vadd.f32 %v3172, %v3105
  %v3174 = vadd.f32 %v3173, %v3106
  %v3175 = vadd.f32 %v3174, %v3107
  %v3176 = vadd.f32 %v3175, %v3108
  %v3177 = vadd.f32 %v3176, %v3109
  %v3178 = vadd.f32 %v3177, %v3110
  %v3179 = vadd.f32 %v3178, %v3111
  %v3180 = vadd.f32 %v3179, %v3112
  %v3181 = vadd.f32 %v3180, %v3113
  %v3182 = vadd.f32 %v3181, %v3114
  %v3183 = vadd.f32 %v3182, %v3115
  %v3184 = vadd.f32 %v3183, %v3116
  %v3185 = vadd.f32 %v3184, %v3117
  %v3186 = vadd.f32 %v3185, %v3118
  %v3187 = vadd.f32 %v3186, %v3119
  %v3188 = vadd.f32 %v3187, %v3120
  %v3189 = vadd.f32 %v3188, %v3121
  %v3190 = vadd.f32 %v3189, %v3122
  %v3191 = vadd.f32 %v3190, %v3123
  %v3192 = vadd.f32 %v3191, %v3124
  %v3193 = vadd.f32 %v3192, %v3125
  %v3194 = vadd.f32 %v3193, %v3126
  %v3195 = vadd.f32 %v3194, %v3127
  %v3196 = vadd.f32 %v3195, %v3128
  %v3197 = vadd.f32 %v3196, %v3129
  %v3198 = vadd.f32 %v3197, %v3130
  %v3199 = vadd.f32 %v3198, %v3131
  %v3200 = vadd.f32 %v3199, %v3132
  %v3201 = vadd.f32 %v3200, %v3133
  %v3202 = vadd.f32 %v3201, %v3134
  %v3203 = vrot.slane %v3202, 4
  %v3204 = vadd.f32 %v3202, %v3203
  %v3205 = vrot.slane %v3204, 2
  %v3206 = vadd.f32 %v3204, %v3205
  %v3207 = vrot.slane %v3206, 1
  %v3208 = vadd.f32 %v3206, %v3207
  %v3209 = vrcp.pop 256.0
  %v3210 = vmul.f32 256.0, %v3209
  %v3211 = vsub.f32 1.0, %v3210
  %v3212 = vmul.f32 %v3209, %v3211
  %v3213 = vadd.f32 %v3209, %v3212
  %vm3214 = vweird.f32 %v3209
  %v3215 = vsel %vm3214, %v3209, %v3213
  %v3216 = vmul.f32 %v3171, %v3215
  %v3217 = vmul.f32 %v3208, %v3215
  %v3218 = vsub.f32 %v3071, %v3216
  %v3219 = vsub.f32 %v3072, %v3216
  %v3220 = vsub.f32 %v3073, %v3216
  %v3221 = vsub.f32 %v3074, %v3216
  %v3222 = vsub.f32 %v3075, %v3216
  %v3223 = vsub.f32 %v3076, %v3216
  %v3224 = vsub.f32 %v3077, %v3216
  %v3225 = vsub.f32 %v3078, %v3216
  %v3226 = vsub.f32 %v3079, %v3216
  %v3227 = vsub.f32 %v3080, %v3216
  %v3228 = vsub.f32 %v3081, %v3216
  %v3229 = vsub.f32 %v3082, %v3216
  %v3230 = vsub.f32 %v3083, %v3216
  %v3231 = vsub.f32 %v3084, %v3216
  %v3232 = vsub.f32 %v3085, %v3216
  %v3233 = vsub.f32 %v3086, %v3216
  %v3234 = vsub.f32 %v3087, %v3216
  %v3235 = vsub.f32 %v3088, %v3216
  %v3236 = vsub.f32 %v3089, %v3216
  %v3237 = vsub.f32 %v3090, %v3216
  %v3238 = vsub.f32 %v3091, %v3216
  %v3239 = vsub.f32 %v3092, %v3216
  %v3240 = vsub.f32 %v3093, %v3216
  %v3241 = vsub.f32 %v3094, %v3216
  %v3242 = vsub.f32 %v3095, %v3216
  %v3243 = vsub.f32 %v3096, %v3216
  %v3244 = vsub.f32 %v3097, %v3216
  %v3245 = vsub.f32 %v3098, %v3216
  %v3246 = vsub.f32 %v3099, %v3216
  %v3247 = vsub.f32 %v3100, %v3216
  %v3248 = vsub.f32 %v3101, %v3216
  %v3249 = vsub.f32 %v3102, %v3216
  %v3250 = vsub.f32 %v3103, %v3217
  %v3251 = vsub.f32 %v3104, %v3217
  %v3252 = vsub.f32 %v3105, %v3217
  %v3253 = vsub.f32 %v3106, %v3217
  %v3254 = vsub.f32 %v3107, %v3217
  %v3255 = vsub.f32 %v3108, %v3217
  %v3256 = vsub.f32 %v3109, %v3217
  %v3257 = vsub.f32 %v3110, %v3217
  %v3258 = vsub.f32 %v3111, %v3217
  %v3259 = vsub.f32 %v3112, %v3217
  %v3260 = vsub.f32 %v3113, %v3217
  %v3261 = vsub.f32 %v3114, %v3217
  %v3262 = vsub.f32 %v3115, %v3217
  %v3263 = vsub.f32 %v3116, %v3217
  %v3264 = vsub.f32 %v3117, %v3217
  %v3265 = vsub.f32 %v3118, %v3217
  %v3266 = vsub.f32 %v3119, %v3217
  %v3267 = vsub.f32 %v3120, %v3217
  %v3268 = vsub.f32 %v3121, %v3217
  %v3269 = vsub.f32 %v3122, %v3217
  %v3270 = vsub.f32 %v3123, %v3217
  %v3271 = vsub.f32 %v3124, %v3217
  %v3272 = vsub.f32 %v3125, %v3217
  %v3273 = vsub.f32 %v3126, %v3217
  %v3274 = vsub.f32 %v3127, %v3217
  %v3275 = vsub.f32 %v3128, %v3217
  %v3276 = vsub.f32 %v3129, %v3217
  %v3277 = vsub.f32 %v3130, %v3217
  %v3278 = vsub.f32 %v3131, %v3217
  %v3279 = vsub.f32 %v3132, %v3217
  %v3280 = vsub.f32 %v3133, %v3217
  %v3281 = vsub.f32 %v3134, %v3217
  %v3282 = vmul.f32 %v3218, %v3218
  %v3283 = vmul.f32 %v3219, %v3219
  %v3284 = vmul.f32 %v3220, %v3220
  %v3285 = vmul.f32 %v3221, %v3221
  %v3286 = vmul.f32 %v3222, %v3222
  %v3287 = vmul.f32 %v3223, %v3223
  %v3288 = vmul.f32 %v3224, %v3224
  %v3289 = vmul.f32 %v3225, %v3225
  %v3290 = vmul.f32 %v3226, %v3226
  %v3291 = vmul.f32 %v3227, %v3227
  %v3292 = vmul.f32 %v3228, %v3228
  %v3293 = vmul.f32 %v3229, %v3229
  %v3294 = vmul.f32 %v3230, %v3230
  %v3295 = vmul.f32 %v3231, %v3231
  %v3296 = vmul.f32 %v3232, %v3232
  %v3297 = vmul.f32 %v3233, %v3233
  %v3298 = vmul.f32 %v3234, %v3234
  %v3299 = vmul.f32 %v3235, %v3235
  %v3300 = vmul.f32 %v3236, %v3236
  %v3301 = vmul.f32 %v3237, %v3237
  %v3302 = vmul.f32 %v3238, %v3238
  %v3303 = vmul.f32 %v3239, %v3239
  %v3304 = vmul.f32 %v3240, %v3240
  %v3305 = vmul.f32 %v3241, %v3241
  %v3306 = vmul.f32 %v3242, %v3242
  %v3307 = vmul.f32 %v3243, %v3243
  %v3308 = vmul.f32 %v3244, %v3244
  %v3309 = vmul.f32 %v3245, %v3245
  %v3310 = vmul.f32 %v3246, %v3246
  %v3311 = vmul.f32 %v3247, %v3247
  %v3312 = vmul.f32 %v3248, %v3248
  %v3313 = vmul.f32 %v3249, %v3249
  %v3314 = vmul.f32 %v3250, %v3250
  %v3315 = vmul.f32 %v3251, %v3251
  %v3316 = vmul.f32 %v3252, %v3252
  %v3317 = vmul.f32 %v3253, %v3253
  %v3318 = vmul.f32 %v3254, %v3254
  %v3319 = vmul.f32 %v3255, %v3255
  %v3320 = vmul.f32 %v3256, %v3256
  %v3321 = vmul.f32 %v3257, %v3257
  %v3322 = vmul.f32 %v3258, %v3258
  %v3323 = vmul.f32 %v3259, %v3259
  %v3324 = vmul.f32 %v3260, %v3260
  %v3325 = vmul.f32 %v3261, %v3261
  %v3326 = vmul.f32 %v3262, %v3262
  %v3327 = vmul.f32 %v3263, %v3263
  %v3328 = vmul.f32 %v3264, %v3264
  %v3329 = vmul.f32 %v3265, %v3265
  %v3330 = vmul.f32 %v3266, %v3266
  %v3331 = vmul.f32 %v3267, %v3267
  %v3332 = vmul.f32 %v3268, %v3268
  %v3333 = vmul.f32 %v3269, %v3269
  %v3334 = vmul.f32 %v3270, %v3270
  %v3335 = vmul.f32 %v3271, %v3271
  %v3336 = vmul.f32 %v3272, %v3272
  %v3337 = vmul.f32 %v3273, %v3273
  %v3338 = vmul.f32 %v3274, %v3274
  %v3339 = vmul.f32 %v3275, %v3275
  %v3340 = vmul.f32 %v3276, %v3276
  %v3341 = vmul.f32 %v3277, %v3277
  %v3342 = vmul.f32 %v3278, %v3278
  %v3343 = vmul.f32 %v3279, %v3279
  %v3344 = vmul.f32 %v3280, %v3280
  %v3345 = vmul.f32 %v3281, %v3281
  %v3346 = vadd.f32 %v3282, %v3283
  %v3347 = vadd.f32 %v3346, %v3284
  %v3348 = vadd.f32 %v3347, %v3285
  %v3349 = vadd.f32 %v3348, %v3286
  %v3350 = vadd.f32 %v3349, %v3287
  %v3351 = vadd.f32 %v3350, %v3288
  %v3352 = vadd.f32 %v3351, %v3289
  %v3353 = vadd.f32 %v3352, %v3290
  %v3354 = vadd.f32 %v3353, %v3291
  %v3355 = vadd.f32 %v3354, %v3292
  %v3356 = vadd.f32 %v3355, %v3293
  %v3357 = vadd.f32 %v3356, %v3294
  %v3358 = vadd.f32 %v3357, %v3295
  %v3359 = vadd.f32 %v3358, %v3296
  %v3360 = vadd.f32 %v3359, %v3297
  %v3361 = vadd.f32 %v3360, %v3298
  %v3362 = vadd.f32 %v3361, %v3299
  %v3363 = vadd.f32 %v3362, %v3300
  %v3364 = vadd.f32 %v3363, %v3301
  %v3365 = vadd.f32 %v3364, %v3302
  %v3366 = vadd.f32 %v3365, %v3303
  %v3367 = vadd.f32 %v3366, %v3304
  %v3368 = vadd.f32 %v3367, %v3305
  %v3369 = vadd.f32 %v3368, %v3306
  %v3370 = vadd.f32 %v3369, %v3307
  %v3371 = vadd.f32 %v3370, %v3308
  %v3372 = vadd.f32 %v3371, %v3309
  %v3373 = vadd.f32 %v3372, %v3310
  %v3374 = vadd.f32 %v3373, %v3311
  %v3375 = vadd.f32 %v3374, %v3312
  %v3376 = vadd.f32 %v3375, %v3313
  %v3377 = vrot.slane %v3376, 4
  %v3378 = vadd.f32 %v3376, %v3377
  %v3379 = vrot.slane %v3378, 2
  %v3380 = vadd.f32 %v3378, %v3379
  %v3381 = vrot.slane %v3380, 1
  %v3382 = vadd.f32 %v3380, %v3381
  %v3383 = vadd.f32 %v3314, %v3315
  %v3384 = vadd.f32 %v3383, %v3316
  %v3385 = vadd.f32 %v3384, %v3317
  %v3386 = vadd.f32 %v3385, %v3318
  %v3387 = vadd.f32 %v3386, %v3319
  %v3388 = vadd.f32 %v3387, %v3320
  %v3389 = vadd.f32 %v3388, %v3321
  %v3390 = vadd.f32 %v3389, %v3322
  %v3391 = vadd.f32 %v3390, %v3323
  %v3392 = vadd.f32 %v3391, %v3324
  %v3393 = vadd.f32 %v3392, %v3325
  %v3394 = vadd.f32 %v3393, %v3326
  %v3395 = vadd.f32 %v3394, %v3327
  %v3396 = vadd.f32 %v3395, %v3328
  %v3397 = vadd.f32 %v3396, %v3329
  %v3398 = vadd.f32 %v3397, %v3330
  %v3399 = vadd.f32 %v3398, %v3331
  %v3400 = vadd.f32 %v3399, %v3332
  %v3401 = vadd.f32 %v3400, %v3333
  %v3402 = vadd.f32 %v3401, %v3334
  %v3403 = vadd.f32 %v3402, %v3335
  %v3404 = vadd.f32 %v3403, %v3336
  %v3405 = vadd.f32 %v3404, %v3337
  %v3406 = vadd.f32 %v3405, %v3338
  %v3407 = vadd.f32 %v3406, %v3339
  %v3408 = vadd.f32 %v3407, %v3340
  %v3409 = vadd.f32 %v3408, %v3341
  %v3410 = vadd.f32 %v3409, %v3342
  %v3411 = vadd.f32 %v3410, %v3343
  %v3412 = vadd.f32 %v3411, %v3344
  %v3413 = vadd.f32 %v3412, %v3345
  %v3414 = vrot.slane %v3413, 4
  %v3415 = vadd.f32 %v3413, %v3414
  %v3416 = vrot.slane %v3415, 2
  %v3417 = vadd.f32 %v3415, %v3416
  %v3418 = vrot.slane %v3417, 1
  %v3419 = vadd.f32 %v3417, %v3418
  %v3420 = vmul.f32 %v3382, %v3215
  %v3421 = vmul.f32 %v3419, %v3215
  %v3422 = vadd.f32 %v3420, 1e-05
  %v3423 = vadd.f32 %v3421, 1e-05
  %v3424 = vrsqrt.pop %v3422
  %v3425 = vmul.f32 %v3424, %v3422
  %v3426 = vmul.f32 %v3425, %v3424
  %v3427 = vmul.f32 0.5, %v3426
  %v3428 = vsub.f32 1.5, %v3427
  %v3429 = vmul.f32 %v3424, %v3428
  %vm3430 = vweird.f32 %v3422
  %vm3431 = vweird.f32 %v3424
  %vm3432 = vmor %vm3430, %vm3431
  %v3433 = vsel %vm3432, %v3424, %v3429
  %v3434 = vrsqrt.pop %v3423
  %v3435 = vmul.f32 %v3434, %v3423
  %v3436 = vmul.f32 %v3435, %v3434
  %v3437 = vmul.f32 0.5, %v3436
  %v3438 = vsub.f32 1.5, %v3437
  %v3439 = vmul.f32 %v3434, %v3438
  %vm3440 = vweird.f32 %v3423
  %vm3441 = vweird.f32 %v3434
  %vm3442 = vmor %vm3440, %vm3441
  %v3443 = vsel %vm3442, %v3434, %v3439
  %v3444 = vmul.f32 %v3218, %v3433
  %v3445 = vmul.f32 %v3219, %v3433
  %v3446 = vmul.f32 %v3220, %v3433
  %v3447 = vmul.f32 %v3221, %v3433
  %v3448 = vmul.f32 %v3222, %v3433
  %v3449 = vmul.f32 %v3223, %v3433
  %v3450 = vmul.f32 %v3224, %v3433
  %v3451 = vmul.f32 %v3225, %v3433
  %v3452 = vmul.f32 %v3226, %v3433
  %v3453 = vmul.f32 %v3227, %v3433
  %v3454 = vmul.f32 %v3228, %v3433
  %v3455 = vmul.f32 %v3229, %v3433
  %v3456 = vmul.f32 %v3230, %v3433
  %v3457 = vmul.f32 %v3231, %v3433
  %v3458 = vmul.f32 %v3232, %v3433
  %v3459 = vmul.f32 %v3233, %v3433
  %v3460 = vmul.f32 %v3234, %v3433
  %v3461 = vmul.f32 %v3235, %v3433
  %v3462 = vmul.f32 %v3236, %v3433
  %v3463 = vmul.f32 %v3237, %v3433
  %v3464 = vmul.f32 %v3238, %v3433
  %v3465 = vmul.f32 %v3239, %v3433
  %v3466 = vmul.f32 %v3240, %v3433
  %v3467 = vmul.f32 %v3241, %v3433
  %v3468 = vmul.f32 %v3242, %v3433
  %v3469 = vmul.f32 %v3243, %v3433
  %v3470 = vmul.f32 %v3244, %v3433
  %v3471 = vmul.f32 %v3245, %v3433
  %v3472 = vmul.f32 %v3246, %v3433
  %v3473 = vmul.f32 %v3247, %v3433
  %v3474 = vmul.f32 %v3248, %v3433
  %v3475 = vmul.f32 %v3249, %v3433
  %v3476 = vmul.f32 %v3250, %v3443
  %v3477 = vmul.f32 %v3251, %v3443
  %v3478 = vmul.f32 %v3252, %v3443
  %v3479 = vmul.f32 %v3253, %v3443
  %v3480 = vmul.f32 %v3254, %v3443
  %v3481 = vmul.f32 %v3255, %v3443
  %v3482 = vmul.f32 %v3256, %v3443
  %v3483 = vmul.f32 %v3257, %v3443
  %v3484 = vmul.f32 %v3258, %v3443
  %v3485 = vmul.f32 %v3259, %v3443
  %v3486 = vmul.f32 %v3260, %v3443
  %v3487 = vmul.f32 %v3261, %v3443
  %v3488 = vmul.f32 %v3262, %v3443
  %v3489 = vmul.f32 %v3263, %v3443
  %v3490 = vmul.f32 %v3264, %v3443
  %v3491 = vmul.f32 %v3265, %v3443
  %v3492 = vmul.f32 %v3266, %v3443
  %v3493 = vmul.f32 %v3267, %v3443
  %v3494 = vmul.f32 %v3268, %v3443
  %v3495 = vmul.f32 %v3269, %v3443
  %v3496 = vmul.f32 %v3270, %v3443
  %v3497 = vmul.f32 %v3271, %v3443
  %v3498 = vmul.f32 %v3272, %v3443
  %v3499 = vmul.f32 %v3273, %v3443
  %v3500 = vmul.f32 %v3274, %v3443
  %v3501 = vmul.f32 %v3275, %v3443
  %v3502 = vmul.f32 %v3276, %v3443
  %v3503 = vmul.f32 %v3277, %v3443
  %v3504 = vmul.f32 %v3278, %v3443
  %v3505 = vmul.f32 %v3279, %v3443
  %v3506 = vmul.f32 %v3280, %v3443
  %v3507 = vmul.f32 %v3281, %v3443
  %v3508 = vperm.slane %v81, 1
  %v3509 = vmul.f32 %v3444, %v3508
  %v3510 = vmul.f32 %v3445, %v3508
  %v3511 = vmul.f32 %v3446, %v3508
  %v3512 = vmul.f32 %v3447, %v3508
  %v3513 = vmul.f32 %v3448, %v3508
  %v3514 = vmul.f32 %v3449, %v3508
  %v3515 = vmul.f32 %v3450, %v3508
  %v3516 = vmul.f32 %v3451, %v3508
  %v3517 = vmul.f32 %v3452, %v3508
  %v3518 = vmul.f32 %v3453, %v3508
  %v3519 = vmul.f32 %v3454, %v3508
  %v3520 = vmul.f32 %v3455, %v3508
  %v3521 = vmul.f32 %v3456, %v3508
  %v3522 = vmul.f32 %v3457, %v3508
  %v3523 = vmul.f32 %v3458, %v3508
  %v3524 = vmul.f32 %v3459, %v3508
  %v3525 = vmul.f32 %v3460, %v3508
  %v3526 = vmul.f32 %v3461, %v3508
  %v3527 = vmul.f32 %v3462, %v3508
  %v3528 = vmul.f32 %v3463, %v3508
  %v3529 = vmul.f32 %v3464, %v3508
  %v3530 = vmul.f32 %v3465, %v3508
  %v3531 = vmul.f32 %v3466, %v3508
  %v3532 = vmul.f32 %v3467, %v3508
  %v3533 = vmul.f32 %v3468, %v3508
  %v3534 = vmul.f32 %v3469, %v3508
  %v3535 = vmul.f32 %v3470, %v3508
  %v3536 = vmul.f32 %v3471, %v3508
  %v3537 = vmul.f32 %v3472, %v3508
  %v3538 = vmul.f32 %v3473, %v3508
  %v3539 = vmul.f32 %v3474, %v3508
  %v3540 = vmul.f32 %v3475, %v3508
  %v3541 = vmul.f32 %v3476, %v3508
  %v3542 = vmul.f32 %v3477, %v3508
  %v3543 = vmul.f32 %v3478, %v3508
  %v3544 = vmul.f32 %v3479, %v3508
  %v3545 = vmul.f32 %v3480, %v3508
  %v3546 = vmul.f32 %v3481, %v3508
  %v3547 = vmul.f32 %v3482, %v3508
  %v3548 = vmul.f32 %v3483, %v3508
  %v3549 = vmul.f32 %v3484, %v3508
  %v3550 = vmul.f32 %v3485, %v3508
  %v3551 = vmul.f32 %v3486, %v3508
  %v3552 = vmul.f32 %v3487, %v3508
  %v3553 = vmul.f32 %v3488, %v3508
  %v3554 = vmul.f32 %v3489, %v3508
  %v3555 = vmul.f32 %v3490, %v3508
  %v3556 = vmul.f32 %v3491, %v3508
  %v3557 = vmul.f32 %v3492, %v3508
  %v3558 = vmul.f32 %v3493, %v3508
  %v3559 = vmul.f32 %v3494, %v3508
  %v3560 = vmul.f32 %v3495, %v3508
  %v3561 = vmul.f32 %v3496, %v3508
  %v3562 = vmul.f32 %v3497, %v3508
  %v3563 = vmul.f32 %v3498, %v3508
  %v3564 = vmul.f32 %v3499, %v3508
  %v3565 = vmul.f32 %v3500, %v3508
  %v3566 = vmul.f32 %v3501, %v3508
  %v3567 = vmul.f32 %v3502, %v3508
  %v3568 = vmul.f32 %v3503, %v3508
  %v3569 = vmul.f32 %v3504, %v3508
  %v3570 = vmul.f32 %v3505, %v3508
  %v3571 = vmul.f32 %v3506, %v3508
  %v3572 = vmul.f32 %v3507, %v3508
  %v3573 = vperm.slane %v81, 2
  %v3574 = vadd.f32 %v3509, %v3573
  %v3575 = vadd.f32 %v3510, %v3573
  %v3576 = vadd.f32 %v3511, %v3573
  %v3577 = vadd.f32 %v3512, %v3573
  %v3578 = vadd.f32 %v3513, %v3573
  %v3579 = vadd.f32 %v3514, %v3573
  %v3580 = vadd.f32 %v3515, %v3573
  %v3581 = vadd.f32 %v3516, %v3573
  %v3582 = vadd.f32 %v3517, %v3573
  %v3583 = vadd.f32 %v3518, %v3573
  %v3584 = vadd.f32 %v3519, %v3573
  %v3585 = vadd.f32 %v3520, %v3573
  %v3586 = vadd.f32 %v3521, %v3573
  %v3587 = vadd.f32 %v3522, %v3573
  %v3588 = vadd.f32 %v3523, %v3573
  %v3589 = vadd.f32 %v3524, %v3573
  %v3590 = vadd.f32 %v3525, %v3573
  %v3591 = vadd.f32 %v3526, %v3573
  %v3592 = vadd.f32 %v3527, %v3573
  %v3593 = vadd.f32 %v3528, %v3573
  %v3594 = vadd.f32 %v3529, %v3573
  %v3595 = vadd.f32 %v3530, %v3573
  %v3596 = vadd.f32 %v3531, %v3573
  %v3597 = vadd.f32 %v3532, %v3573
  %v3598 = vadd.f32 %v3533, %v3573
  %v3599 = vadd.f32 %v3534, %v3573
  %v3600 = vadd.f32 %v3535, %v3573
  %v3601 = vadd.f32 %v3536, %v3573
  %v3602 = vadd.f32 %v3537, %v3573
  %v3603 = vadd.f32 %v3538, %v3573
  %v3604 = vadd.f32 %v3539, %v3573
  %v3605 = vadd.f32 %v3540, %v3573
  %v3606 = vadd.f32 %v3541, %v3573
  %v3607 = vadd.f32 %v3542, %v3573
  %v3608 = vadd.f32 %v3543, %v3573
  %v3609 = vadd.f32 %v3544, %v3573
  %v3610 = vadd.f32 %v3545, %v3573
  %v3611 = vadd.f32 %v3546, %v3573
  %v3612 = vadd.f32 %v3547, %v3573
  %v3613 = vadd.f32 %v3548, %v3573
  %v3614 = vadd.f32 %v3549, %v3573
  %v3615 = vadd.f32 %v3550, %v3573
  %v3616 = vadd.f32 %v3551, %v3573
  %v3617 = vadd.f32 %v3552, %v3573
  %v3618 = vadd.f32 %v3553, %v3573
  %v3619 = vadd.f32 %v3554, %v3573
  %v3620 = vadd.f32 %v3555, %v3573
  %v3621 = vadd.f32 %v3556, %v3573
  %v3622 = vadd.f32 %v3557, %v3573
  %v3623 = vadd.f32 %v3558, %v3573
  %v3624 = vadd.f32 %v3559, %v3573
  %v3625 = vadd.f32 %v3560, %v3573
  %v3626 = vadd.f32 %v3561, %v3573
  %v3627 = vadd.f32 %v3562, %v3573
  %v3628 = vadd.f32 %v3563, %v3573
  %v3629 = vadd.f32 %v3564, %v3573
  %v3630 = vadd.f32 %v3565, %v3573
  %v3631 = vadd.f32 %v3566, %v3573
  %v3632 = vadd.f32 %v3567, %v3573
  %v3633 = vadd.f32 %v3568, %v3573
  %v3634 = vadd.f32 %v3569, %v3573
  %v3635 = vadd.f32 %v3570, %v3573
  %v3636 = vadd.f32 %v3571, %v3573
  %v3637 = vadd.f32 %v3572, %v3573
  %v3638 = vmax.f32 %v3574, 0.0
  %v3639 = vmax.f32 %v3575, 0.0
  %v3640 = vmax.f32 %v3576, 0.0
  %v3641 = vmax.f32 %v3577, 0.0
  %v3642 = vmax.f32 %v3578, 0.0
  %v3643 = vmax.f32 %v3579, 0.0
  %v3644 = vmax.f32 %v3580, 0.0
  %v3645 = vmax.f32 %v3581, 0.0
  %v3646 = vmax.f32 %v3582, 0.0
  %v3647 = vmax.f32 %v3583, 0.0
  %v3648 = vmax.f32 %v3584, 0.0
  %v3649 = vmax.f32 %v3585, 0.0
  %v3650 = vmax.f32 %v3586, 0.0
  %v3651 = vmax.f32 %v3587, 0.0
  %v3652 = vmax.f32 %v3588, 0.0
  %v3653 = vmax.f32 %v3589, 0.0
  %v3654 = vmax.f32 %v3590, 0.0
  %v3655 = vmax.f32 %v3591, 0.0
  %v3656 = vmax.f32 %v3592, 0.0
  %v3657 = vmax.f32 %v3593, 0.0
  %v3658 = vmax.f32 %v3594, 0.0
  %v3659 = vmax.f32 %v3595, 0.0
  %v3660 = vmax.f32 %v3596, 0.0
  %v3661 = vmax.f32 %v3597, 0.0
  %v3662 = vmax.f32 %v3598, 0.0
  %v3663 = vmax.f32 %v3599, 0.0
  %v3664 = vmax.f32 %v3600, 0.0
  %v3665 = vmax.f32 %v3601, 0.0
  %v3666 = vmax.f32 %v3602, 0.0
  %v3667 = vmax.f32 %v3603, 0.0
  %v3668 = vmax.f32 %v3604, 0.0
  %v3669 = vmax.f32 %v3605, 0.0
  %v3670 = vmax.f32 %v3606, 0.0
  %v3671 = vmax.f32 %v3607, 0.0
  %v3672 = vmax.f32 %v3608, 0.0
  %v3673 = vmax.f32 %v3609, 0.0
  %v3674 = vmax.f32 %v3610, 0.0
  %v3675 = vmax.f32 %v3611, 0.0
  %v3676 = vmax.f32 %v3612, 0.0
  %v3677 = vmax.f32 %v3613, 0.0
  %v3678 = vmax.f32 %v3614, 0.0
  %v3679 = vmax.f32 %v3615, 0.0
  %v3680 = vmax.f32 %v3616, 0.0
  %v3681 = vmax.f32 %v3617, 0.0
  %v3682 = vmax.f32 %v3618, 0.0
  %v3683 = vmax.f32 %v3619, 0.0
  %v3684 = vmax.f32 %v3620, 0.0
  %v3685 = vmax.f32 %v3621, 0.0
  %v3686 = vmax.f32 %v3622, 0.0
  %v3687 = vmax.f32 %v3623, 0.0
  %v3688 = vmax.f32 %v3624, 0.0
  %v3689 = vmax.f32 %v3625, 0.0
  %v3690 = vmax.f32 %v3626, 0.0
  %v3691 = vmax.f32 %v3627, 0.0
  %v3692 = vmax.f32 %v3628, 0.0
  %v3693 = vmax.f32 %v3629, 0.0
  %v3694 = vmax.f32 %v3630, 0.0
  %v3695 = vmax.f32 %v3631, 0.0
  %v3696 = vmax.f32 %v3632, 0.0
  %v3697 = vmax.f32 %v3633, 0.0
  %v3698 = vmax.f32 %v3634, 0.0
  %v3699 = vmax.f32 %v3635, 0.0
  %v3700 = vmax.f32 %v3636, 0.0
  %v3701 = vmax.f32 %v3637, 0.0
  %v3734 = vrot.slane %v3640, 1
  %v3735 = vrot.slane %v3638, 1
  %v3736 = vrot.slane %v3642, 1
  %v3737 = vrot.slane %v3644, 1
  %v3738 = vrot.slane %v3646, 1
  %v3739 = vrot.slane %v3648, 1
  %v3740 = vrot.slane %v3650, 1
  %v3741 = vrot.slane %v3652, 1
  %v3742 = vrot.slane %v3654, 1
  %v3743 = vrot.slane %v3656, 1
  %v3744 = vrot.slane %v3658, 1
  %v3745 = vrot.slane %v3660, 1
  %v3746 = vrot.slane %v3662, 1
  %v3747 = vrot.slane %v3664, 1
  %v3748 = vrot.slane %v3666, 1
  %v3749 = vrot.slane %v3668, 1
  %v3750 = vrot.slane %v3672, 1
  %v3751 = vrot.slane %v3670, 1
  %v3752 = vrot.slane %v3674, 1
  %v3753 = vrot.slane %v3676, 1
  %v3754 = vrot.slane %v3678, 1
  %v3755 = vrot.slane %v3680, 1
  %v3756 = vrot.slane %v3682, 1
  %v3757 = vrot.slane %v3684, 1
  %v3758 = vrot.slane %v3686, 1
  %v3759 = vrot.slane %v3688, 1
  %v3760 = vrot.slane %v3690, 1
  %v3761 = vrot.slane %v3692, 1
  %v3762 = vrot.slane %v3694, 1
  %v3763 = vrot.slane %v3696, 1
  %v3764 = vrot.slane %v3698, 1
  %v3765 = vrot.slane %v3700, 1
  %v3830 = vrot.slane %v3640, 7
  %v3831 = vrot.slane %v3641, 7
  %v3832 = vsel %vm210, %v3830, %v3831
  %v3833 = vrot.slane %v3638, 7
  %v3834 = vrot.slane %v3639, 7
  %v3835 = vsel %vm210, %v3833, %v3834
  %v3836 = vrot.slane %v3642, 7
  %v3837 = vrot.slane %v3643, 7
  %v3838 = vsel %vm210, %v3836, %v3837
  %v3839 = vrot.slane %v3644, 7
  %v3840 = vrot.slane %v3645, 7
  %v3841 = vsel %vm210, %v3839, %v3840
  %v3842 = vrot.slane %v3646, 7
  %v3843 = vrot.slane %v3647, 7
  %v3844 = vsel %vm210, %v3842, %v3843
  %v3845 = vrot.slane %v3648, 7
  %v3846 = vrot.slane %v3649, 7
  %v3847 = vsel %vm210, %v3845, %v3846
  %v3848 = vrot.slane %v3650, 7
  %v3849 = vrot.slane %v3651, 7
  %v3850 = vsel %vm210, %v3848, %v3849
  %v3851 = vrot.slane %v3652, 7
  %v3852 = vrot.slane %v3653, 7
  %v3853 = vsel %vm210, %v3851, %v3852
  %v3854 = vrot.slane %v3654, 7
  %v3855 = vrot.slane %v3655, 7
  %v3856 = vsel %vm210, %v3854, %v3855
  %v3857 = vrot.slane %v3656, 7
  %v3858 = vrot.slane %v3657, 7
  %v3859 = vsel %vm210, %v3857, %v3858
  %v3860 = vrot.slane %v3658, 7
  %v3861 = vrot.slane %v3659, 7
  %v3862 = vsel %vm210, %v3860, %v3861
  %v3863 = vrot.slane %v3660, 7
  %v3864 = vrot.slane %v3661, 7
  %v3865 = vsel %vm210, %v3863, %v3864
  %v3866 = vrot.slane %v3662, 7
  %v3867 = vrot.slane %v3663, 7
  %v3868 = vsel %vm210, %v3866, %v3867
  %v3869 = vrot.slane %v3664, 7
  %v3870 = vrot.slane %v3665, 7
  %v3871 = vsel %vm210, %v3869, %v3870
  %v3872 = vrot.slane %v3666, 7
  %v3873 = vrot.slane %v3667, 7
  %v3874 = vsel %vm210, %v3872, %v3873
  %v3875 = vrot.slane %v3668, 7
  %v3876 = vrot.slane %v3669, 7
  %v3877 = vsel %vm210, %v3875, %v3876
  %v3878 = vrot.slane %v3672, 7
  %v3879 = vrot.slane %v3673, 7
  %v3880 = vsel %vm210, %v3878, %v3879
  %v3881 = vrot.slane %v3670, 7
  %v3882 = vrot.slane %v3671, 7
  %v3883 = vsel %vm210, %v3881, %v3882
  %v3884 = vrot.slane %v3674, 7
  %v3885 = vrot.slane %v3675, 7
  %v3886 = vsel %vm210, %v3884, %v3885
  %v3887 = vrot.slane %v3676, 7
  %v3888 = vrot.slane %v3677, 7
  %v3889 = vsel %vm210, %v3887, %v3888
  %v3890 = vrot.slane %v3678, 7
  %v3891 = vrot.slane %v3679, 7
  %v3892 = vsel %vm210, %v3890, %v3891
  %v3893 = vrot.slane %v3680, 7
  %v3894 = vrot.slane %v3681, 7
  %v3895 = vsel %vm210, %v3893, %v3894
  %v3896 = vrot.slane %v3682, 7
  %v3897 = vrot.slane %v3683, 7
  %v3898 = vsel %vm210, %v3896, %v3897
  %v3899 = vrot.slane %v3684, 7
  %v3900 = vrot.slane %v3685, 7
  %v3901 = vsel %vm210, %v3899, %v3900
  %v3902 = vrot.slane %v3686, 7
  %v3903 = vrot.slane %v3687, 7
  %v3904 = vsel %vm210, %v3902, %v3903
  %v3905 = vrot.slane %v3688, 7
  %v3906 = vrot.slane %v3689, 7
  %v3907 = vsel %vm210, %v3905, %v3906
  %v3908 = vrot.slane %v3690, 7
  %v3909 = vrot.slane %v3691, 7
  %v3910 = vsel %vm210, %v3908, %v3909
  %v3911 = vrot.slane %v3692, 7
  %v3912 = vrot.slane %v3693, 7
  %v3913 = vsel %vm210, %v3911, %v3912
  %v3914 = vrot.slane %v3694, 7
  %v3915 = vrot.slane %v3695, 7
  %v3916 = vsel %vm210, %v3914, %v3915
  %v3917 = vrot.slane %v3696, 7
  %v3918 = vrot.slane %v3697, 7
  %v3919 = vsel %vm210, %v3917, %v3918
  %v3920 = vrot.slane %v3698, 7
  %v3921 = vrot.slane %v3699, 7
  %v3922 = vsel %vm210, %v3920, %v3921
  %v3923 = vrot.slane %v3700, 7
  %v3924 = vrot.slane %v3701, 7
  %v3925 = vsel %vm210, %v3923, %v3924
  %v4022 = vrot.slane %v3641, 5
  %v4023 = vrot.slane %v3639, 5
  %v4024 = vrot.slane %v3643, 5
  %v4025 = vrot.slane %v3645, 5
  %v4026 = vrot.slane %v3647, 5
  %v4027 = vrot.slane %v3649, 5
  %v4028 = vrot.slane %v3651, 5
  %v4029 = vrot.slane %v3653, 5
  %v4030 = vrot.slane %v3655, 5
  %v4031 = vrot.slane %v3657, 5
  %v4032 = vrot.slane %v3659, 5
  %v4033 = vrot.slane %v3661, 5
  %v4034 = vrot.slane %v3663, 5
  %v4035 = vrot.slane %v3665, 5
  %v4036 = vrot.slane %v3667, 5
  %v4037 = vrot.slane %v3669, 5
  %v4038 = vrot.slane %v3673, 5
  %v4039 = vrot.slane %v3671, 5
  %v4040 = vrot.slane %v3675, 5
  %v4041 = vrot.slane %v3677, 5
  %v4042 = vrot.slane %v3679, 5
  %v4043 = vrot.slane %v3681, 5
  %v4044 = vrot.slane %v3683, 5
  %v4045 = vrot.slane %v3685, 5
  %v4046 = vrot.slane %v3687, 5
  %v4047 = vrot.slane %v3689, 5
  %v4048 = vrot.slane %v3691, 5
  %v4049 = vrot.slane %v3693, 5
  %v4050 = vrot.slane %v3695, 5
  %v4051 = vrot.slane %v3697, 5
  %v4052 = vrot.slane %v3699, 5
  %v4053 = vrot.slane %v3701, 5
  %v4086 = vsel %vm210, %v3734, %v3830
  %v4087 = vsel %vm210, %v3735, %v3833
  %v4088 = vsel %vm210, %v3736, %v3836
  %v4089 = vsel %vm210, %v3737, %v3839
  %v4090 = vsel %vm210, %v3738, %v3842
  %v4091 = vsel %vm210, %v3739, %v3845
  %v4092 = vsel %vm210, %v3740, %v3848
  %v4093 = vsel %vm210, %v3741, %v3851
  %v4094 = vsel %vm210, %v3742, %v3854
  %v4095 = vsel %vm210, %v3743, %v3857
  %v4096 = vsel %vm210, %v3744, %v3860
  %v4097 = vsel %vm210, %v3745, %v3863
  %v4098 = vsel %vm210, %v3746, %v3866
  %v4099 = vsel %vm210, %v3747, %v3869
  %v4100 = vsel %vm210, %v3748, %v3872
  %v4101 = vsel %vm210, %v3749, %v3875
  %v4102 = vsel %vm210, %v3750, %v3878
  %v4103 = vsel %vm210, %v3751, %v3881
  %v4104 = vsel %vm210, %v3752, %v3884
  %v4105 = vsel %vm210, %v3753, %v3887
  %v4106 = vsel %vm210, %v3754, %v3890
  %v4107 = vsel %vm210, %v3755, %v3893
  %v4108 = vsel %vm210, %v3756, %v3896
  %v4109 = vsel %vm210, %v3757, %v3899
  %v4110 = vsel %vm210, %v3758, %v3902
  %v4111 = vsel %vm210, %v3759, %v3905
  %v4112 = vsel %vm210, %v3760, %v3908
  %v4113 = vsel %vm210, %v3761, %v3911
  %v4114 = vsel %vm210, %v3762, %v3914
  %v4115 = vsel %vm210, %v3763, %v3917
  %v4116 = vsel %vm210, %v3764, %v3920
  %v4117 = vsel %vm210, %v3765, %v3923
  %v4118 = vsel %vm210, %v3831, %v4022
  %v4119 = vsel %vm210, %v3834, %v4023
  %v4120 = vsel %vm210, %v3837, %v4024
  %v4121 = vsel %vm210, %v3840, %v4025
  %v4122 = vsel %vm210, %v3843, %v4026
  %v4123 = vsel %vm210, %v3846, %v4027
  %v4124 = vsel %vm210, %v3849, %v4028
  %v4125 = vsel %vm210, %v3852, %v4029
  %v4126 = vsel %vm210, %v3855, %v4030
  %v4127 = vsel %vm210, %v3858, %v4031
  %v4128 = vsel %vm210, %v3861, %v4032
  %v4129 = vsel %vm210, %v3864, %v4033
  %v4130 = vsel %vm210, %v3867, %v4034
  %v4131 = vsel %vm210, %v3870, %v4035
  %v4132 = vsel %vm210, %v3873, %v4036
  %v4133 = vsel %vm210, %v3876, %v4037
  %v4134 = vsel %vm210, %v3879, %v4038
  %v4135 = vsel %vm210, %v3882, %v4039
  %v4136 = vsel %vm210, %v3885, %v4040
  %v4137 = vsel %vm210, %v3888, %v4041
  %v4138 = vsel %vm210, %v3891, %v4042
  %v4139 = vsel %vm210, %v3894, %v4043
  %v4140 = vsel %vm210, %v3897, %v4044
  %v4141 = vsel %vm210, %v3900, %v4045
  %v4142 = vsel %vm210, %v3903, %v4046
  %v4143 = vsel %vm210, %v3906, %v4047
  %v4144 = vsel %vm210, %v3909, %v4048
  %v4145 = vsel %vm210, %v3912, %v4049
  %v4146 = vsel %vm210, %v3915, %v4050
  %v4147 = vsel %vm210, %v3918, %v4051
  %v4148 = vsel %vm210, %v3921, %v4052
  %v4149 = vsel %vm210, %v3924, %v4053
  %v4210 = vrot.slane %v4086, 1
  %v4211 = vrot.slane %v3832, 1
  %v4212 = vsel %vm591, %v4210, %v4211
  %v4213 = vrot.slane %v4118, 1
  %v4214 = vsel %vm591, %v4211, %v4213
  %v4215 = vrot.slane %v4087, 1
  %v4216 = vrot.slane %v3835, 1
  %v4217 = vsel %vm591, %v4215, %v4216
  %v4218 = vrot.slane %v4119, 1
  %v4219 = vsel %vm591, %v4216, %v4218
  %v4220 = vrot.slane %v4088, 1
  %v4221 = vrot.slane %v3838, 1
  %v4222 = vsel %vm591, %v4220, %v4221
  %v4223 = vrot.slane %v4120, 1
  %v4224 = vsel %vm591, %v4221, %v4223
  %v4225 = vrot.slane %v4089, 1
  %v4226 = vrot.slane %v3841, 1
  %v4227 = vsel %vm591, %v4225, %v4226
  %v4228 = vrot.slane %v4121, 1
  %v4229 = vsel %vm591, %v4226, %v4228
  %v4230 = vrot.slane %v4090, 1
  %v4231 = vrot.slane %v3844, 1
  %v4232 = vsel %vm591, %v4230, %v4231
  %v4233 = vrot.slane %v4122, 1
  %v4234 = vsel %vm591, %v4231, %v4233
  %v4235 = vrot.slane %v4091, 1
  %v4236 = vrot.slane %v3847, 1
  %v4237 = vsel %vm591, %v4235, %v4236
  %v4238 = vrot.slane %v4123, 1
  %v4239 = vsel %vm591, %v4236, %v4238
  %v4240 = vrot.slane %v4092, 1
  %v4241 = vrot.slane %v3850, 1
  %v4242 = vsel %vm591, %v4240, %v4241
  %v4243 = vrot.slane %v4124, 1
  %v4244 = vsel %vm591, %v4241, %v4243
  %v4245 = vrot.slane %v4093, 1
  %v4246 = vrot.slane %v3853, 1
  %v4247 = vsel %vm591, %v4245, %v4246
  %v4248 = vrot.slane %v4125, 1
  %v4249 = vsel %vm591, %v4246, %v4248
  %v4250 = vrot.slane %v4094, 1
  %v4251 = vrot.slane %v3856, 1
  %v4252 = vsel %vm591, %v4250, %v4251
  %v4253 = vrot.slane %v4126, 1
  %v4254 = vsel %vm591, %v4251, %v4253
  %v4255 = vrot.slane %v4095, 1
  %v4256 = vrot.slane %v3859, 1
  %v4257 = vsel %vm591, %v4255, %v4256
  %v4258 = vrot.slane %v4127, 1
  %v4259 = vsel %vm591, %v4256, %v4258
  %v4260 = vrot.slane %v4096, 1
  %v4261 = vrot.slane %v3862, 1
  %v4262 = vsel %vm591, %v4260, %v4261
  %v4263 = vrot.slane %v4128, 1
  %v4264 = vsel %vm591, %v4261, %v4263
  %v4265 = vrot.slane %v4097, 1
  %v4266 = vrot.slane %v3865, 1
  %v4267 = vsel %vm591, %v4265, %v4266
  %v4268 = vrot.slane %v4129, 1
  %v4269 = vsel %vm591, %v4266, %v4268
  %v4270 = vrot.slane %v4098, 1
  %v4271 = vrot.slane %v3868, 1
  %v4272 = vsel %vm591, %v4270, %v4271
  %v4273 = vrot.slane %v4130, 1
  %v4274 = vsel %vm591, %v4271, %v4273
  %v4275 = vrot.slane %v4099, 1
  %v4276 = vrot.slane %v3871, 1
  %v4277 = vsel %vm591, %v4275, %v4276
  %v4278 = vrot.slane %v4131, 1
  %v4279 = vsel %vm591, %v4276, %v4278
  %v4280 = vrot.slane %v4100, 1
  %v4281 = vrot.slane %v3874, 1
  %v4282 = vsel %vm591, %v4280, %v4281
  %v4283 = vrot.slane %v4132, 1
  %v4284 = vsel %vm591, %v4281, %v4283
  %v4285 = vrot.slane %v4102, 1
  %v4286 = vrot.slane %v3880, 1
  %v4287 = vsel %vm591, %v4285, %v4286
  %v4288 = vrot.slane %v4134, 1
  %v4289 = vsel %vm591, %v4286, %v4288
  %v4290 = vrot.slane %v4103, 1
  %v4291 = vrot.slane %v3883, 1
  %v4292 = vsel %vm591, %v4290, %v4291
  %v4293 = vrot.slane %v4135, 1
  %v4294 = vsel %vm591, %v4291, %v4293
  %v4295 = vrot.slane %v4104, 1
  %v4296 = vrot.slane %v3886, 1
  %v4297 = vsel %vm591, %v4295, %v4296
  %v4298 = vrot.slane %v4136, 1
  %v4299 = vsel %vm591, %v4296, %v4298
  %v4300 = vrot.slane %v4105, 1
  %v4301 = vrot.slane %v3889, 1
  %v4302 = vsel %vm591, %v4300, %v4301
  %v4303 = vrot.slane %v4137, 1
  %v4304 = vsel %vm591, %v4301, %v4303
  %v4305 = vrot.slane %v4106, 1
  %v4306 = vrot.slane %v3892, 1
  %v4307 = vsel %vm591, %v4305, %v4306
  %v4308 = vrot.slane %v4138, 1
  %v4309 = vsel %vm591, %v4306, %v4308
  %v4310 = vrot.slane %v4107, 1
  %v4311 = vrot.slane %v3895, 1
  %v4312 = vsel %vm591, %v4310, %v4311
  %v4313 = vrot.slane %v4139, 1
  %v4314 = vsel %vm591, %v4311, %v4313
  %v4315 = vrot.slane %v4108, 1
  %v4316 = vrot.slane %v3898, 1
  %v4317 = vsel %vm591, %v4315, %v4316
  %v4318 = vrot.slane %v4140, 1
  %v4319 = vsel %vm591, %v4316, %v4318
  %v4320 = vrot.slane %v4109, 1
  %v4321 = vrot.slane %v3901, 1
  %v4322 = vsel %vm591, %v4320, %v4321
  %v4323 = vrot.slane %v4141, 1
  %v4324 = vsel %vm591, %v4321, %v4323
  %v4325 = vrot.slane %v4110, 1
  %v4326 = vrot.slane %v3904, 1
  %v4327 = vsel %vm591, %v4325, %v4326
  %v4328 = vrot.slane %v4142, 1
  %v4329 = vsel %vm591, %v4326, %v4328
  %v4330 = vrot.slane %v4111, 1
  %v4331 = vrot.slane %v3907, 1
  %v4332 = vsel %vm591, %v4330, %v4331
  %v4333 = vrot.slane %v4143, 1
  %v4334 = vsel %vm591, %v4331, %v4333
  %v4335 = vrot.slane %v4112, 1
  %v4336 = vrot.slane %v3910, 1
  %v4337 = vsel %vm591, %v4335, %v4336
  %v4338 = vrot.slane %v4144, 1
  %v4339 = vsel %vm591, %v4336, %v4338
  %v4340 = vrot.slane %v4113, 1
  %v4341 = vrot.slane %v3913, 1
  %v4342 = vsel %vm591, %v4340, %v4341
  %v4343 = vrot.slane %v4145, 1
  %v4344 = vsel %vm591, %v4341, %v4343
  %v4345 = vrot.slane %v4114, 1
  %v4346 = vrot.slane %v3916, 1
  %v4347 = vsel %vm591, %v4345, %v4346
  %v4348 = vrot.slane %v4146, 1
  %v4349 = vsel %vm591, %v4346, %v4348
  %v4350 = vrot.slane %v4115, 1
  %v4351 = vrot.slane %v3919, 1
  %v4352 = vsel %vm591, %v4350, %v4351
  %v4353 = vrot.slane %v4147, 1
  %v4354 = vsel %vm591, %v4351, %v4353
  %v4355 = vrot.slane %v4116, 1
  %v4356 = vrot.slane %v3922, 1
  %v4357 = vsel %vm591, %v4355, %v4356
  %v4358 = vrot.slane %v4148, 1
  %v4359 = vsel %vm591, %v4356, %v4358
  %v4420 = vrot.slane %v4086, 2
  %v4421 = vrot.slane %v3832, 2
  %v4422 = vsel %vm802, %v4420, %v4421
  %v4423 = vrot.slane %v4118, 2
  %v4424 = vsel %vm802, %v4421, %v4423
  %v4425 = vrot.slane %v4087, 2
  %v4426 = vrot.slane %v3835, 2
  %v4427 = vsel %vm802, %v4425, %v4426
  %v4428 = vrot.slane %v4119, 2
  %v4429 = vsel %vm802, %v4426, %v4428
  %v4430 = vrot.slane %v4088, 2
  %v4431 = vrot.slane %v3838, 2
  %v4432 = vsel %vm802, %v4430, %v4431
  %v4433 = vrot.slane %v4120, 2
  %v4434 = vsel %vm802, %v4431, %v4433
  %v4435 = vrot.slane %v4089, 2
  %v4436 = vrot.slane %v3841, 2
  %v4437 = vsel %vm802, %v4435, %v4436
  %v4438 = vrot.slane %v4121, 2
  %v4439 = vsel %vm802, %v4436, %v4438
  %v4440 = vrot.slane %v4090, 2
  %v4441 = vrot.slane %v3844, 2
  %v4442 = vsel %vm802, %v4440, %v4441
  %v4443 = vrot.slane %v4122, 2
  %v4444 = vsel %vm802, %v4441, %v4443
  %v4445 = vrot.slane %v4091, 2
  %v4446 = vrot.slane %v3847, 2
  %v4447 = vsel %vm802, %v4445, %v4446
  %v4448 = vrot.slane %v4123, 2
  %v4449 = vsel %vm802, %v4446, %v4448
  %v4450 = vrot.slane %v4092, 2
  %v4451 = vrot.slane %v3850, 2
  %v4452 = vsel %vm802, %v4450, %v4451
  %v4453 = vrot.slane %v4124, 2
  %v4454 = vsel %vm802, %v4451, %v4453
  %v4455 = vrot.slane %v4093, 2
  %v4456 = vrot.slane %v3853, 2
  %v4457 = vsel %vm802, %v4455, %v4456
  %v4458 = vrot.slane %v4125, 2
  %v4459 = vsel %vm802, %v4456, %v4458
  %v4460 = vrot.slane %v4094, 2
  %v4461 = vrot.slane %v3856, 2
  %v4462 = vsel %vm802, %v4460, %v4461
  %v4463 = vrot.slane %v4126, 2
  %v4464 = vsel %vm802, %v4461, %v4463
  %v4465 = vrot.slane %v4095, 2
  %v4466 = vrot.slane %v3859, 2
  %v4467 = vsel %vm802, %v4465, %v4466
  %v4468 = vrot.slane %v4127, 2
  %v4469 = vsel %vm802, %v4466, %v4468
  %v4470 = vrot.slane %v4096, 2
  %v4471 = vrot.slane %v3862, 2
  %v4472 = vsel %vm802, %v4470, %v4471
  %v4473 = vrot.slane %v4128, 2
  %v4474 = vsel %vm802, %v4471, %v4473
  %v4475 = vrot.slane %v4097, 2
  %v4476 = vrot.slane %v3865, 2
  %v4477 = vsel %vm802, %v4475, %v4476
  %v4478 = vrot.slane %v4129, 2
  %v4479 = vsel %vm802, %v4476, %v4478
  %v4480 = vrot.slane %v4098, 2
  %v4481 = vrot.slane %v3868, 2
  %v4482 = vsel %vm802, %v4480, %v4481
  %v4483 = vrot.slane %v4130, 2
  %v4484 = vsel %vm802, %v4481, %v4483
  %v4485 = vrot.slane %v4099, 2
  %v4486 = vrot.slane %v3871, 2
  %v4487 = vsel %vm802, %v4485, %v4486
  %v4488 = vrot.slane %v4131, 2
  %v4489 = vsel %vm802, %v4486, %v4488
  %v4490 = vrot.slane %v4100, 2
  %v4491 = vrot.slane %v3874, 2
  %v4492 = vsel %vm802, %v4490, %v4491
  %v4493 = vrot.slane %v4132, 2
  %v4494 = vsel %vm802, %v4491, %v4493
  %v4495 = vrot.slane %v4102, 2
  %v4496 = vrot.slane %v3880, 2
  %v4497 = vsel %vm802, %v4495, %v4496
  %v4498 = vrot.slane %v4134, 2
  %v4499 = vsel %vm802, %v4496, %v4498
  %v4500 = vrot.slane %v4103, 2
  %v4501 = vrot.slane %v3883, 2
  %v4502 = vsel %vm802, %v4500, %v4501
  %v4503 = vrot.slane %v4135, 2
  %v4504 = vsel %vm802, %v4501, %v4503
  %v4505 = vrot.slane %v4104, 2
  %v4506 = vrot.slane %v3886, 2
  %v4507 = vsel %vm802, %v4505, %v4506
  %v4508 = vrot.slane %v4136, 2
  %v4509 = vsel %vm802, %v4506, %v4508
  %v4510 = vrot.slane %v4105, 2
  %v4511 = vrot.slane %v3889, 2
  %v4512 = vsel %vm802, %v4510, %v4511
  %v4513 = vrot.slane %v4137, 2
  %v4514 = vsel %vm802, %v4511, %v4513
  %v4515 = vrot.slane %v4106, 2
  %v4516 = vrot.slane %v3892, 2
  %v4517 = vsel %vm802, %v4515, %v4516
  %v4518 = vrot.slane %v4138, 2
  %v4519 = vsel %vm802, %v4516, %v4518
  %v4520 = vrot.slane %v4107, 2
  %v4521 = vrot.slane %v3895, 2
  %v4522 = vsel %vm802, %v4520, %v4521
  %v4523 = vrot.slane %v4139, 2
  %v4524 = vsel %vm802, %v4521, %v4523
  %v4525 = vrot.slane %v4108, 2
  %v4526 = vrot.slane %v3898, 2
  %v4527 = vsel %vm802, %v4525, %v4526
  %v4528 = vrot.slane %v4140, 2
  %v4529 = vsel %vm802, %v4526, %v4528
  %v4530 = vrot.slane %v4109, 2
  %v4531 = vrot.slane %v3901, 2
  %v4532 = vsel %vm802, %v4530, %v4531
  %v4533 = vrot.slane %v4141, 2
  %v4534 = vsel %vm802, %v4531, %v4533
  %v4535 = vrot.slane %v4110, 2
  %v4536 = vrot.slane %v3904, 2
  %v4537 = vsel %vm802, %v4535, %v4536
  %v4538 = vrot.slane %v4142, 2
  %v4539 = vsel %vm802, %v4536, %v4538
  %v4540 = vrot.slane %v4111, 2
  %v4541 = vrot.slane %v3907, 2
  %v4542 = vsel %vm802, %v4540, %v4541
  %v4543 = vrot.slane %v4143, 2
  %v4544 = vsel %vm802, %v4541, %v4543
  %v4545 = vrot.slane %v4112, 2
  %v4546 = vrot.slane %v3910, 2
  %v4547 = vsel %vm802, %v4545, %v4546
  %v4548 = vrot.slane %v4144, 2
  %v4549 = vsel %vm802, %v4546, %v4548
  %v4550 = vrot.slane %v4113, 2
  %v4551 = vrot.slane %v3913, 2
  %v4552 = vsel %vm802, %v4550, %v4551
  %v4553 = vrot.slane %v4145, 2
  %v4554 = vsel %vm802, %v4551, %v4553
  %v4555 = vrot.slane %v4114, 2
  %v4556 = vrot.slane %v3916, 2
  %v4557 = vsel %vm802, %v4555, %v4556
  %v4558 = vrot.slane %v4146, 2
  %v4559 = vsel %vm802, %v4556, %v4558
  %v4560 = vrot.slane %v4115, 2
  %v4561 = vrot.slane %v3919, 2
  %v4562 = vsel %vm802, %v4560, %v4561
  %v4563 = vrot.slane %v4147, 2
  %v4564 = vsel %vm802, %v4561, %v4563
  %v4565 = vrot.slane %v4116, 2
  %v4566 = vrot.slane %v3922, 2
  %v4567 = vsel %vm802, %v4565, %v4566
  %v4568 = vrot.slane %v4148, 2
  %v4569 = vsel %vm802, %v4566, %v4568
  %v4634 = vrot.slane %v4101, 1
  %v4635 = vrot.slane %v3877, 1
  %v4636 = vsel %vm591, %v4634, %v4635
  %v4637 = vrot.slane %v4133, 1
  %v4638 = vsel %vm591, %v4635, %v4637
  %v4639 = vrot.slane %v4117, 1
  %v4640 = vrot.slane %v3925, 1
  %v4641 = vsel %vm591, %v4639, %v4640
  %v4642 = vrot.slane %v4149, 1
  %v4643 = vsel %vm591, %v4640, %v4642
  %v4648 = vrot.slane %v4101, 2
  %v4649 = vrot.slane %v3877, 2
  %v4650 = vsel %vm802, %v4648, %v4649
  %v4651 = vrot.slane %v4133, 2
  %v4652 = vsel %vm802, %v4649, %v4651
  %v4653 = vrot.slane %v4117, 2
  %v4654 = vrot.slane %v3925, 2
  %v4655 = vsel %vm802, %v4653, %v4654
  %v4656 = vrot.slane %v4149, 2
  %v4657 = vsel %vm802, %v4654, %v4656
  %v4662 = vld [vmem:[%s2] sm:$0xff]
  %v4663 = vld [vmem:[%s2 + $0x8] sm:$0xff]
  %v4664 = vld [vmem:[%s2 + $0x10] sm:$0xff]
  %v4665 = vld [vmem:[%s2 + $0x18] sm:$0xff]
  %v4666 = vld [vmem:[%s2 + $0x20] sm:$0xff]
  %v4667 = vld [vmem:[%s2 + $0x28] sm:$0xff]
  %v4668 = vld [vmem:[%s2 + $0x30] sm:$0xff]
  %v4669 = vld [vmem:[%s2 + $0x38] sm:$0xff]
  %v4670 = vld [vmem:[%s2 + $0x40] sm:$0xff]
  %v4671 = vld [vmem:[%s2 + $0x48] sm:$0xff]
  %v4672 = vld [vmem:[%s2 + $0x50] sm:$0xff]
  %v4673 = vld [vmem:[%s2 + $0x58] sm:$0xff]
  %v4674 = vld [vmem:[%s2 + $0x60] sm:$0xff]
  %v4675 = vld [vmem:[%s2 + $0x68] sm:$0xff]
  %v4676 = vld [vmem:[%s2 + $0x70] sm:$0xff]
  %v4677 = vld [vmem:[%s2 + $0x78] sm:$0xff]
  %v4678 = vld [vmem:[%s2 + $0x80] sm:$0xff]
  %v4679 = vld [vmem:[%s2 + $0x88] sm:$0xff]
  %v4680 = vld [vmem:[%s2 + $0x90] sm:$0xff]
  %v4681 = vld [vmem:[%s2 + $0x98] sm:$0xff]
  %v4682 = vld [vmem:[%s2 + $0xa0] sm:$0xff]
  %v4683 = vld [vmem:[%s2 + $0xa8] sm:$0xff]
  %v4684 = vld [vmem:[%s2 + $0xb0] sm:$0xff]
  %v4685 = vld [vmem:[%s2 + $0xb8] sm:$0xff]
  %v4686 = vld [vmem:[%s2 + $0xc0] sm:$0xff]
  %v4687 = vld [vmem:[%s2 + $0xc8] sm:$0xff]
  %v4688 = vld [vmem:[%s2 + $0xd0] sm:$0xff]
  %v4689 = vld [vmem:[%s2 + $0xd8] sm:$0xff]
  %v4690 = vld [vmem:[%s2 + $0xe0] sm:$0xff]
  %v4691 = vld [vmem:[%s2 + $0xe8] sm:$0xff]
  %v4692 = vld [vmem:[%s2 + $0xf0] sm:$0xff]
  %v4693 = vld [vmem:[%s2 + $0xf8] sm:$0xff]
  %v4694 = vld [vmem:[%s2 + $0x100] sm:$0xff]
  %v4695 = vld [vmem:[%s2 + $0x108] sm:$0xff]
  %v4696 = vld [vmem:[%s2 + $0x110] sm:$0xff]
  %v4697 = vld [vmem:[%s2 + $0x118] sm:$0xff]
  %v4698 = vld [vmem:[%s2 + $0x120] sm:$0xff]
  %v4699 = vld [vmem:[%s2 + $0x128] sm:$0xff]
  %v4700 = vld [vmem:[%s2 + $0x130] sm:$0xff]
  %v4701 = vld [vmem:[%s2 + $0x138] sm:$0xff]
  %v4702 = vld [vmem:[%s2 + $0x140] sm:$0xff]
  %v4703 = vld [vmem:[%s2 + $0x148] sm:$0xff]
  %v4704 = vld [vmem:[%s2 + $0x150] sm:$0xff]
  %v4705 = vld [vmem:[%s2 + $0x158] sm:$0xff]
  %v4706 = vld [vmem:[%s2 + $0x160] sm:$0xff]
  %v4707 = vld [vmem:[%s2 + $0x168] sm:$0xff]
  %v4708 = vld [vmem:[%s2 + $0x170] sm:$0xff]
  %v4709 = vld [vmem:[%s2 + $0x178] sm:$0xff]
  %v4710 = vld [vmem:[%s2 + $0x180] sm:$0xff]
  %v4711 = vld [vmem:[%s2 + $0x188] sm:$0xff]
  %v4712 = vld [vmem:[%s2 + $0x190] sm:$0xff]
  %v4713 = vld [vmem:[%s2 + $0x198] sm:$0xff]
  %v4714 = vld [vmem:[%s2 + $0x1a0] sm:$0xff]
  %v4715 = vld [vmem:[%s2 + $0x1a8] sm:$0xff]
  %v4716 = vld [vmem:[%s2 + $0x1b0] sm:$0xff]
  %v4717 = vld [vmem:[%s2 + $0x1b8] sm:$0xff]
  %v4718 = vld [vmem:[%s2 + $0x1c0] sm:$0xff]
  %v4719 = vld [vmem:[%s2 + $0x1c8] sm:$0xff]
  %v4720 = vld [vmem:[%s2 + $0x1d0] sm:$0xff]
  %v4721 = vld [vmem:[%s2 + $0x1d8] sm:$0xff]
  %v4722 = vld [vmem:[%s2 + $0x1e0] sm:$0xff]
  %v4723 = vld [vmem:[%s2 + $0x1e8] sm:$0xff]
  %v4724 = vld [vmem:[%s2 + $0x1f0] sm:$0xff]
  %v4725 = vld [vmem:[%s2 + $0x1f8] sm:$0xff]
  %v4726 = vld [vmem:[%s2 + $0x200] sm:$0xff]
  %v4727 = vld [vmem:[%s2 + $0x208] sm:$0xff]
  %v4728 = vld [vmem:[%s2 + $0x210] sm:$0xff]
  %v4729 = vld [vmem:[%s2 + $0x218] sm:$0xff]
  %v4730 = vld [vmem:[%s2 + $0x220] sm:$0xff]
  %v4731 = vld [vmem:[%s2 + $0x228] sm:$0xff]
  %v4732 = vld [vmem:[%s2 + $0x230] sm:$0xff]
  %v4733 = vld [vmem:[%s2 + $0x238] sm:$0xff]
  %v4734 = vld [vmem:[%s2 + $0x240] sm:$0xff]
  %v4735 = vld [vmem:[%s2 + $0x248] sm:$0xff]
  %v4736 = vld [vmem:[%s2 + $0x250] sm:$0xff]
  %v4737 = vld [vmem:[%s2 + $0x258] sm:$0xff]
  %v4738 = vld [vmem:[%s2 + $0x260] sm:$0xff]
  %v4739 = vld [vmem:[%s2 + $0x268] sm:$0xff]
  %v4740 = vld [vmem:[%s2 + $0x270] sm:$0xff]
  %v4741 = vld [vmem:[%s2 + $0x278] sm:$0xff]
  %v4742 = vld [vmem:[%s2 + $0x280] sm:$0xff]
  %v4743 = vld [vmem:[%s2 + $0x288] sm:$0xff]
  %v4744 = vld [vmem:[%s2 + $0x290] sm:$0xff]
  %v4745 = vld [vmem:[%s2 + $0x298] sm:$0xff]
  %v4746 = vld [vmem:[%s2 + $0x2a0] sm:$0xff]
  %v4747 = vld [vmem:[%s2 + $0x2a8] sm:$0xff]
  %v4748 = vld [vmem:[%s2 + $0x2b0] sm:$0xff]
  %v4749 = vld [vmem:[%s2 + $0x2b8] sm:$0xff]
  %v4750 = vld [vmem:[%s2 + $0x2c0] sm:$0xff]
  %v4751 = vld [vmem:[%s2 + $0x2c8] sm:$0xff]
  %v4752 = vld [vmem:[%s2 + $0x2d0] sm:$0xff]
  %v4753 = vld [vmem:[%s2 + $0x2d8] sm:$0xff]
  %v4754 = vld [vmem:[%s2 + $0x2e0] sm:$0xff]
  %v4755 = vld [vmem:[%s2 + $0x2e8] sm:$0xff]
  %v4756 = vld [vmem:[%s2 + $0x2f0] sm:$0xff]
  %v4757 = vld [vmem:[%s2 + $0x2f8] sm:$0xff]
  %v4758 = vld [vmem:[%s2 + $0x300] sm:$0xff]
  %v4759 = vld [vmem:[%s2 + $0x308] sm:$0xff]
  %v4760 = vld [vmem:[%s2 + $0x310] sm:$0xff]
  %v4761 = vld [vmem:[%s2 + $0x318] sm:$0xff]
  %v4762 = vld [vmem:[%s2 + $0x320] sm:$0xff]
  %v4763 = vld [vmem:[%s2 + $0x328] sm:$0xff]
  %v4764 = vld [vmem:[%s2 + $0x330] sm:$0xff]
  %v4765 = vld [vmem:[%s2 + $0x338] sm:$0xff]
  %v4766 = vld [vmem:[%s2 + $0x340] sm:$0xff]
  %v4767 = vld [vmem:[%s2 + $0x348] sm:$0xff]
  %v4768 = vld [vmem:[%s2 + $0x350] sm:$0xff]
  %v4769 = vld [vmem:[%s2 + $0x358] sm:$0xff]
  %v4770 = vld [vmem:[%s2 + $0x360] sm:$0xff]
  %v4771 = vld [vmem:[%s2 + $0x368] sm:$0xff]
  %v4772 = vld [vmem:[%s2 + $0x370] sm:$0xff]
  %v4773 = vld [vmem:[%s2 + $0x378] sm:$0xff]
  %v4774 = vld [vmem:[%s2 + $0x380] sm:$0xff]
  %v4775 = vld [vmem:[%s2 + $0x388] sm:$0xff]
  %v4776 = vld [vmem:[%s2 + $0x390] sm:$0xff]
  %v4777 = vld [vmem:[%s2 + $0x398] sm:$0xff]
  %v4778 = vld [vmem:[%s2 + $0x3a0] sm:$0xff]
  %v4779 = vld [vmem:[%s2 + $0x3a8] sm:$0xff]
  %v4780 = vld [vmem:[%s2 + $0x3b0] sm:$0xff]
  %v4781 = vld [vmem:[%s2 + $0x3b8] sm:$0xff]
  %v4782 = vld [vmem:[%s2 + $0x3c0] sm:$0xff]
  %v4783 = vld [vmem:[%s2 + $0x3c8] sm:$0xff]
  %v4784 = vld [vmem:[%s2 + $0x3d0] sm:$0xff]
  %v4785 = vld [vmem:[%s2 + $0x3d8] sm:$0xff]
  %v4786 = vld [vmem:[%s2 + $0x3e0] sm:$0xff]
  %v4787 = vld [vmem:[%s2 + $0x3e8] sm:$0xff]
  %v4788 = vld [vmem:[%s2 + $0x3f0] sm:$0xff]
  %v4789 = vld [vmem:[%s2 + $0x3f8] sm:$0xff]
  %v4790 = vld [vmem:[%s2 + $0x400] sm:$0xff]
  %v4791 = vld [vmem:[%s2 + $0x408] sm:$0xff]
  %v4792 = vld [vmem:[%s2 + $0x410] sm:$0xff]
  %v4793 = vld [vmem:[%s2 + $0x418] sm:$0xff]
  %v4794 = vld [vmem:[%s2 + $0x420] sm:$0xff]
  %v4795 = vld [vmem:[%s2 + $0x428] sm:$0xff]
  %v4796 = vld [vmem:[%s2 + $0x430] sm:$0xff]
  %v4797 = vld [vmem:[%s2 + $0x438] sm:$0xff]
  %v4798 = vld [vmem:[%s2 + $0x440] sm:$0xff]
  %v4799 = vld [vmem:[%s2 + $0x448] sm:$0xff]
  %v4800 = vld [vmem:[%s2 + $0x450] sm:$0xff]
  %v4801 = vld [vmem:[%s2 + $0x458] sm:$0xff]
  %v4802 = vld [vmem:[%s2 + $0x460] sm:$0xff]
  %v4803 = vld [vmem:[%s2 + $0x468] sm:$0xff]
  %v4804 = vld [vmem:[%s2 + $0x470] sm:$0xff]
  %v4805 = vld [vmem:[%s2 + $0x478] sm:$0xff]
  %4806 = vmatpush.msra.mxu0 %v4677
  %4807 = vmatpush.msra.mxu0 %v4676
  %4808 = vmatpush.msra.mxu0 %v4675
  %4809 = vmatpush.msra.mxu0 %v4674
  %4810 = vmatpush.msra.mxu0 %v4673
  %4811 = vmatpush.msra.mxu0 %v4672
  %4812 = vmatpush.msra.mxu0 %v4671
  %4813 = vmatpush.msra.mxu0 %v4670
  %4814 = vmatpush.msra.mxu0 %v4669
  %4815 = vmatpush.msra.mxu0 %v4668
  %4816 = vmatpush.msra.mxu0 %v4667
  %4817 = vmatpush.msra.mxu0 %v4666
  %4818 = vmatpush.msra.mxu0 %v4665
  %4819 = vmatpush.msra.mxu0 %v4664
  %4820 = vmatpush.msra.mxu0 %v4663
  %4821 = vmatpush.msra.mxu0 %v4662
  %4822 = vmatmul.f32.gmra.mxu0 %v4086
  %v4823 = vpop.f32.mrf.mxu0
  %v4824 = vadd.f32 0.0, %v4823
  %4825 = vmatmul.f32.gmra.mxu0 %v3832
  %v4826 = vpop.f32.mrf.mxu0
  %v4827 = vadd.f32 0.0, %v4826
  %4828 = vmatmul.f32.gmra.mxu0 %v4087
  %v4829 = vpop.f32.mrf.mxu0
  %v4830 = vadd.f32 0.0, %v4829
  %4831 = vmatmul.f32.gmra.mxu0 %v3835
  %v4832 = vpop.f32.mrf.mxu0
  %v4833 = vadd.f32 0.0, %v4832
  %4834 = vmatmul.f32.gmra.mxu0 %v4086
  %v4835 = vpop.f32.mrf.mxu0
  %v4836 = vadd.f32 0.0, %v4835
  %4837 = vmatmul.f32.gmra.mxu0 %v3832
  %v4838 = vpop.f32.mrf.mxu0
  %v4839 = vadd.f32 0.0, %v4838
  %4840 = vmatmul.f32.gmra.mxu0 %v4088
  %v4841 = vpop.f32.mrf.mxu0
  %v4842 = vadd.f32 0.0, %v4841
  %4843 = vmatmul.f32.gmra.mxu0 %v3838
  %v4844 = vpop.f32.mrf.mxu0
  %v4845 = vadd.f32 0.0, %v4844
  %4846 = vmatmul.f32.gmra.mxu0 %v4089
  %v4847 = vpop.f32.mrf.mxu0
  %v4848 = vadd.f32 0.0, %v4847
  %4849 = vmatmul.f32.gmra.mxu0 %v3841
  %v4850 = vpop.f32.mrf.mxu0
  %v4851 = vadd.f32 0.0, %v4850
  %4852 = vmatmul.f32.gmra.mxu0 %v4090
  %v4853 = vpop.f32.mrf.mxu0
  %v4854 = vadd.f32 0.0, %v4853
  %4855 = vmatmul.f32.gmra.mxu0 %v3844
  %v4856 = vpop.f32.mrf.mxu0
  %v4857 = vadd.f32 0.0, %v4856
  %4858 = vmatmul.f32.gmra.mxu0 %v4091
  %v4859 = vpop.f32.mrf.mxu0
  %v4860 = vadd.f32 0.0, %v4859
  %4861 = vmatmul.f32.gmra.mxu0 %v3847
  %v4862 = vpop.f32.mrf.mxu0
  %v4863 = vadd.f32 0.0, %v4862
  %4864 = vmatmul.f32.gmra.mxu0 %v4092
  %v4865 = vpop.f32.mrf.mxu0
  %v4866 = vadd.f32 0.0, %v4865
  %4867 = vmatmul.f32.gmra.mxu0 %v3850
  %v4868 = vpop.f32.mrf.mxu0
  %v4869 = vadd.f32 0.0, %v4868
  %4870 = vmatmul.f32.gmra.mxu0 %v4093
  %v4871 = vpop.f32.mrf.mxu0
  %v4872 = vadd.f32 0.0, %v4871
  %4873 = vmatmul.f32.gmra.mxu0 %v3853
  %v4874 = vpop.f32.mrf.mxu0
  %v4875 = vadd.f32 0.0, %v4874
  %4876 = vmatmul.f32.gmra.mxu0 %v4094
  %v4877 = vpop.f32.mrf.mxu0
  %v4878 = vadd.f32 0.0, %v4877
  %4879 = vmatmul.f32.gmra.mxu0 %v3856
  %v4880 = vpop.f32.mrf.mxu0
  %v4881 = vadd.f32 0.0, %v4880
  %4882 = vmatmul.f32.gmra.mxu0 %v4095
  %v4883 = vpop.f32.mrf.mxu0
  %v4884 = vadd.f32 0.0, %v4883
  %4885 = vmatmul.f32.gmra.mxu0 %v3859
  %v4886 = vpop.f32.mrf.mxu0
  %v4887 = vadd.f32 0.0, %v4886
  %4888 = vmatmul.f32.gmra.mxu0 %v4096
  %v4889 = vpop.f32.mrf.mxu0
  %v4890 = vadd.f32 0.0, %v4889
  %4891 = vmatmul.f32.gmra.mxu0 %v3862
  %v4892 = vpop.f32.mrf.mxu0
  %v4893 = vadd.f32 0.0, %v4892
  %4894 = vmatmul.f32.gmra.mxu0 %v4097
  %v4895 = vpop.f32.mrf.mxu0
  %v4896 = vadd.f32 0.0, %v4895
  %4897 = vmatmul.f32.gmra.mxu0 %v3865
  %v4898 = vpop.f32.mrf.mxu0
  %v4899 = vadd.f32 0.0, %v4898
  %4900 = vmatmul.f32.gmra.mxu0 %v4098
  %v4901 = vpop.f32.mrf.mxu0
  %v4902 = vadd.f32 0.0, %v4901
  %4903 = vmatmul.f32.gmra.mxu0 %v3868
  %v4904 = vpop.f32.mrf.mxu0
  %v4905 = vadd.f32 0.0, %v4904
  %4906 = vmatmul.f32.gmra.mxu0 %v4099
  %v4907 = vpop.f32.mrf.mxu0
  %v4908 = vadd.f32 0.0, %v4907
  %4909 = vmatmul.f32.gmra.mxu0 %v3871
  %v4910 = vpop.f32.mrf.mxu0
  %v4911 = vadd.f32 0.0, %v4910
  %4912 = vmatmul.f32.gmra.mxu0 %v4100
  %v4913 = vpop.f32.mrf.mxu0
  %v4914 = vadd.f32 0.0, %v4913
  %4915 = vmatmul.f32.gmra.mxu0 %v3874
  %v4916 = vpop.f32.mrf.mxu0
  %v4917 = vadd.f32 0.0, %v4916
  %4918 = vmatmul.f32.gmra.mxu0 %v4102
  %v4919 = vpop.f32.mrf.mxu0
  %v4920 = vadd.f32 0.0, %v4919
  %4921 = vmatmul.f32.gmra.mxu0 %v3880
  %v4922 = vpop.f32.mrf.mxu0
  %v4923 = vadd.f32 0.0, %v4922
  %4924 = vmatmul.f32.gmra.mxu0 %v4103
  %v4925 = vpop.f32.mrf.mxu0
  %v4926 = vadd.f32 0.0, %v4925
  %4927 = vmatmul.f32.gmra.mxu0 %v3883
  %v4928 = vpop.f32.mrf.mxu0
  %v4929 = vadd.f32 0.0, %v4928
  %4930 = vmatmul.f32.gmra.mxu0 %v4102
  %v4931 = vpop.f32.mrf.mxu0
  %v4932 = vadd.f32 0.0, %v4931
  %4933 = vmatmul.f32.gmra.mxu0 %v3880
  %v4934 = vpop.f32.mrf.mxu0
  %v4935 = vadd.f32 0.0, %v4934
  %4936 = vmatmul.f32.gmra.mxu0 %v4104
  %v4937 = vpop.f32.mrf.mxu0
  %v4938 = vadd.f32 0.0, %v4937
  %4939 = vmatmul.f32.gmra.mxu0 %v3886
  %v4940 = vpop.f32.mrf.mxu0
  %v4941 = vadd.f32 0.0, %v4940
  %4942 = vmatmul.f32.gmra.mxu0 %v4105
  %v4943 = vpop.f32.mrf.mxu0
  %v4944 = vadd.f32 0.0, %v4943
  %4945 = vmatmul.f32.gmra.mxu0 %v3889
  %v4946 = vpop.f32.mrf.mxu0
  %v4947 = vadd.f32 0.0, %v4946
  %4948 = vmatmul.f32.gmra.mxu0 %v4106
  %v4949 = vpop.f32.mrf.mxu0
  %v4950 = vadd.f32 0.0, %v4949
  %4951 = vmatmul.f32.gmra.mxu0 %v3892
  %v4952 = vpop.f32.mrf.mxu0
  %v4953 = vadd.f32 0.0, %v4952
  %4954 = vmatmul.f32.gmra.mxu0 %v4107
  %v4955 = vpop.f32.mrf.mxu0
  %v4956 = vadd.f32 0.0, %v4955
  %4957 = vmatmul.f32.gmra.mxu0 %v3895
  %v4958 = vpop.f32.mrf.mxu0
  %v4959 = vadd.f32 0.0, %v4958
  %4960 = vmatmul.f32.gmra.mxu0 %v4108
  %v4961 = vpop.f32.mrf.mxu0
  %v4962 = vadd.f32 0.0, %v4961
  %4963 = vmatmul.f32.gmra.mxu0 %v3898
  %v4964 = vpop.f32.mrf.mxu0
  %v4965 = vadd.f32 0.0, %v4964
  %4966 = vmatmul.f32.gmra.mxu0 %v4109
  %v4967 = vpop.f32.mrf.mxu0
  %v4968 = vadd.f32 0.0, %v4967
  %4969 = vmatmul.f32.gmra.mxu0 %v3901
  %v4970 = vpop.f32.mrf.mxu0
  %v4971 = vadd.f32 0.0, %v4970
  %4972 = vmatmul.f32.gmra.mxu0 %v4110
  %v4973 = vpop.f32.mrf.mxu0
  %v4974 = vadd.f32 0.0, %v4973
  %4975 = vmatmul.f32.gmra.mxu0 %v3904
  %v4976 = vpop.f32.mrf.mxu0
  %v4977 = vadd.f32 0.0, %v4976
  %4978 = vmatmul.f32.gmra.mxu0 %v4111
  %v4979 = vpop.f32.mrf.mxu0
  %v4980 = vadd.f32 0.0, %v4979
  %4981 = vmatmul.f32.gmra.mxu0 %v3907
  %v4982 = vpop.f32.mrf.mxu0
  %v4983 = vadd.f32 0.0, %v4982
  %4984 = vmatmul.f32.gmra.mxu0 %v4112
  %v4985 = vpop.f32.mrf.mxu0
  %v4986 = vadd.f32 0.0, %v4985
  %4987 = vmatmul.f32.gmra.mxu0 %v3910
  %v4988 = vpop.f32.mrf.mxu0
  %v4989 = vadd.f32 0.0, %v4988
  %4990 = vmatmul.f32.gmra.mxu0 %v4113
  %v4991 = vpop.f32.mrf.mxu0
  %v4992 = vadd.f32 0.0, %v4991
  %4993 = vmatmul.f32.gmra.mxu0 %v3913
  %v4994 = vpop.f32.mrf.mxu0
  %v4995 = vadd.f32 0.0, %v4994
  %4996 = vmatmul.f32.gmra.mxu0 %v4114
  %v4997 = vpop.f32.mrf.mxu0
  %v4998 = vadd.f32 0.0, %v4997
  %4999 = vmatmul.f32.gmra.mxu0 %v3916
  %v5000 = vpop.f32.mrf.mxu0
  %v5001 = vadd.f32 0.0, %v5000
  %5002 = vmatmul.f32.gmra.mxu0 %v4115
  %v5003 = vpop.f32.mrf.mxu0
  %v5004 = vadd.f32 0.0, %v5003
  %5005 = vmatmul.f32.gmra.mxu0 %v3919
  %v5006 = vpop.f32.mrf.mxu0
  %v5007 = vadd.f32 0.0, %v5006
  %5008 = vmatmul.f32.gmra.mxu0 %v4116
  %v5009 = vpop.f32.mrf.mxu0
  %v5010 = vadd.f32 0.0, %v5009
  %5011 = vmatmul.f32.gmra.mxu0 %v3922
  %v5012 = vpop.f32.mrf.mxu0
  %v5013 = vadd.f32 0.0, %v5012
  %5014 = vdwg.mxu0
  %5015 = vmatpush.msra.mxu0 %v4693
  %5016 = vmatpush.msra.mxu0 %v4692
  %5017 = vmatpush.msra.mxu0 %v4691
  %5018 = vmatpush.msra.mxu0 %v4690
  %5019 = vmatpush.msra.mxu0 %v4689
  %5020 = vmatpush.msra.mxu0 %v4688
  %5021 = vmatpush.msra.mxu0 %v4687
  %5022 = vmatpush.msra.mxu0 %v4686
  %5023 = vmatpush.msra.mxu0 %v4685
  %5024 = vmatpush.msra.mxu0 %v4684
  %5025 = vmatpush.msra.mxu0 %v4683
  %5026 = vmatpush.msra.mxu0 %v4682
  %5027 = vmatpush.msra.mxu0 %v4681
  %5028 = vmatpush.msra.mxu0 %v4680
  %5029 = vmatpush.msra.mxu0 %v4679
  %5030 = vmatpush.msra.mxu0 %v4678
  %5031 = vmatmul.f32.gmra.mxu0 %v4212
  %v5032 = vpop.f32.mrf.mxu0
  %v5033 = vadd.f32 %v4824, %v5032
  %5034 = vmatmul.f32.gmra.mxu0 %v4214
  %v5035 = vpop.f32.mrf.mxu0
  %v5036 = vadd.f32 %v4827, %v5035
  %5037 = vmatmul.f32.gmra.mxu0 %v4217
  %v5038 = vpop.f32.mrf.mxu0
  %v5039 = vadd.f32 %v4830, %v5038
  %5040 = vmatmul.f32.gmra.mxu0 %v4219
  %v5041 = vpop.f32.mrf.mxu0
  %v5042 = vadd.f32 %v4833, %v5041
  %5043 = vmatmul.f32.gmra.mxu0 %v4212
  %v5044 = vpop.f32.mrf.mxu0
  %v5045 = vadd.f32 %v4836, %v5044
  %5046 = vmatmul.f32.gmra.mxu0 %v4214
  %v5047 = vpop.f32.mrf.mxu0
  %v5048 = vadd.f32 %v4839, %v5047
  %5049 = vmatmul.f32.gmra.mxu0 %v4222
  %v5050 = vpop.f32.mrf.mxu0
  %v5051 = vadd.f32 %v4842, %v5050
  %5052 = vmatmul.f32.gmra.mxu0 %v4224
  %v5053 = vpop.f32.mrf.mxu0
  %v5054 = vadd.f32 %v4845, %v5053
  %5055 = vmatmul.f32.gmra.mxu0 %v4227
  %v5056 = vpop.f32.mrf.mxu0
  %v5057 = vadd.f32 %v4848, %v5056
  %5058 = vmatmul.f32.gmra.mxu0 %v4229
  %v5059 = vpop.f32.mrf.mxu0
  %v5060 = vadd.f32 %v4851, %v5059
  %5061 = vmatmul.f32.gmra.mxu0 %v4232
  %v5062 = vpop.f32.mrf.mxu0
  %v5063 = vadd.f32 %v4854, %v5062
  %5064 = vmatmul.f32.gmra.mxu0 %v4234
  %v5065 = vpop.f32.mrf.mxu0
  %v5066 = vadd.f32 %v4857, %v5065
  %5067 = vmatmul.f32.gmra.mxu0 %v4237
  %v5068 = vpop.f32.mrf.mxu0
  %v5069 = vadd.f32 %v4860, %v5068
  %5070 = vmatmul.f32.gmra.mxu0 %v4239
  %v5071 = vpop.f32.mrf.mxu0
  %v5072 = vadd.f32 %v4863, %v5071
  %5073 = vmatmul.f32.gmra.mxu0 %v4242
  %v5074 = vpop.f32.mrf.mxu0
  %v5075 = vadd.f32 %v4866, %v5074
  %5076 = vmatmul.f32.gmra.mxu0 %v4244
  %v5077 = vpop.f32.mrf.mxu0
  %v5078 = vadd.f32 %v4869, %v5077
  %5079 = vmatmul.f32.gmra.mxu0 %v4247
  %v5080 = vpop.f32.mrf.mxu0
  %v5081 = vadd.f32 %v4872, %v5080
  %5082 = vmatmul.f32.gmra.mxu0 %v4249
  %v5083 = vpop.f32.mrf.mxu0
  %v5084 = vadd.f32 %v4875, %v5083
  %5085 = vmatmul.f32.gmra.mxu0 %v4252
  %v5086 = vpop.f32.mrf.mxu0
  %v5087 = vadd.f32 %v4878, %v5086
  %5088 = vmatmul.f32.gmra.mxu0 %v4254
  %v5089 = vpop.f32.mrf.mxu0
  %v5090 = vadd.f32 %v4881, %v5089
  %5091 = vmatmul.f32.gmra.mxu0 %v4257
  %v5092 = vpop.f32.mrf.mxu0
  %v5093 = vadd.f32 %v4884, %v5092
  %5094 = vmatmul.f32.gmra.mxu0 %v4259
  %v5095 = vpop.f32.mrf.mxu0
  %v5096 = vadd.f32 %v4887, %v5095
  %5097 = vmatmul.f32.gmra.mxu0 %v4262
  %v5098 = vpop.f32.mrf.mxu0
  %v5099 = vadd.f32 %v4890, %v5098
  %5100 = vmatmul.f32.gmra.mxu0 %v4264
  %v5101 = vpop.f32.mrf.mxu0
  %v5102 = vadd.f32 %v4893, %v5101
  %5103 = vmatmul.f32.gmra.mxu0 %v4267
  %v5104 = vpop.f32.mrf.mxu0
  %v5105 = vadd.f32 %v4896, %v5104
  %5106 = vmatmul.f32.gmra.mxu0 %v4269
  %v5107 = vpop.f32.mrf.mxu0
  %v5108 = vadd.f32 %v4899, %v5107
  %5109 = vmatmul.f32.gmra.mxu0 %v4272
  %v5110 = vpop.f32.mrf.mxu0
  %v5111 = vadd.f32 %v4902, %v5110
  %5112 = vmatmul.f32.gmra.mxu0 %v4274
  %v5113 = vpop.f32.mrf.mxu0
  %v5114 = vadd.f32 %v4905, %v5113
  %5115 = vmatmul.f32.gmra.mxu0 %v4277
  %v5116 = vpop.f32.mrf.mxu0
  %v5117 = vadd.f32 %v4908, %v5116
  %5118 = vmatmul.f32.gmra.mxu0 %v4279
  %v5119 = vpop.f32.mrf.mxu0
  %v5120 = vadd.f32 %v4911, %v5119
  %5121 = vmatmul.f32.gmra.mxu0 %v4282
  %v5122 = vpop.f32.mrf.mxu0
  %v5123 = vadd.f32 %v4914, %v5122
  %5124 = vmatmul.f32.gmra.mxu0 %v4284
  %v5125 = vpop.f32.mrf.mxu0
  %v5126 = vadd.f32 %v4917, %v5125
  %5127 = vmatmul.f32.gmra.mxu0 %v4287
  %v5128 = vpop.f32.mrf.mxu0
  %v5129 = vadd.f32 %v4920, %v5128
  %5130 = vmatmul.f32.gmra.mxu0 %v4289
  %v5131 = vpop.f32.mrf.mxu0
  %v5132 = vadd.f32 %v4923, %v5131
  %5133 = vmatmul.f32.gmra.mxu0 %v4292
  %v5134 = vpop.f32.mrf.mxu0
  %v5135 = vadd.f32 %v4926, %v5134
  %5136 = vmatmul.f32.gmra.mxu0 %v4294
  %v5137 = vpop.f32.mrf.mxu0
  %v5138 = vadd.f32 %v4929, %v5137
  %5139 = vmatmul.f32.gmra.mxu0 %v4287
  %v5140 = vpop.f32.mrf.mxu0
  %v5141 = vadd.f32 %v4932, %v5140
  %5142 = vmatmul.f32.gmra.mxu0 %v4289
  %v5143 = vpop.f32.mrf.mxu0
  %v5144 = vadd.f32 %v4935, %v5143
  %5145 = vmatmul.f32.gmra.mxu0 %v4297
  %v5146 = vpop.f32.mrf.mxu0
  %v5147 = vadd.f32 %v4938, %v5146
  %5148 = vmatmul.f32.gmra.mxu0 %v4299
  %v5149 = vpop.f32.mrf.mxu0
  %v5150 = vadd.f32 %v4941, %v5149
  %5151 = vmatmul.f32.gmra.mxu0 %v4302
  %v5152 = vpop.f32.mrf.mxu0
  %v5153 = vadd.f32 %v4944, %v5152
  %5154 = vmatmul.f32.gmra.mxu0 %v4304
  %v5155 = vpop.f32.mrf.mxu0
  %v5156 = vadd.f32 %v4947, %v5155
  %5157 = vmatmul.f32.gmra.mxu0 %v4307
  %v5158 = vpop.f32.mrf.mxu0
  %v5159 = vadd.f32 %v4950, %v5158
  %5160 = vmatmul.f32.gmra.mxu0 %v4309
  %v5161 = vpop.f32.mrf.mxu0
  %v5162 = vadd.f32 %v4953, %v5161
  %5163 = vmatmul.f32.gmra.mxu0 %v4312
  %v5164 = vpop.f32.mrf.mxu0
  %v5165 = vadd.f32 %v4956, %v5164
  %5166 = vmatmul.f32.gmra.mxu0 %v4314
  %v5167 = vpop.f32.mrf.mxu0
  %v5168 = vadd.f32 %v4959, %v5167
  %5169 = vmatmul.f32.gmra.mxu0 %v4317
  %v5170 = vpop.f32.mrf.mxu0
  %v5171 = vadd.f32 %v4962, %v5170
  %5172 = vmatmul.f32.gmra.mxu0 %v4319
  %v5173 = vpop.f32.mrf.mxu0
  %v5174 = vadd.f32 %v4965, %v5173
  %5175 = vmatmul.f32.gmra.mxu0 %v4322
  %v5176 = vpop.f32.mrf.mxu0
  %v5177 = vadd.f32 %v4968, %v5176
  %5178 = vmatmul.f32.gmra.mxu0 %v4324
  %v5179 = vpop.f32.mrf.mxu0
  %v5180 = vadd.f32 %v4971, %v5179
  %5181 = vmatmul.f32.gmra.mxu0 %v4327
  %v5182 = vpop.f32.mrf.mxu0
  %v5183 = vadd.f32 %v4974, %v5182
  %5184 = vmatmul.f32.gmra.mxu0 %v4329
  %v5185 = vpop.f32.mrf.mxu0
  %v5186 = vadd.f32 %v4977, %v5185
  %5187 = vmatmul.f32.gmra.mxu0 %v4332
  %v5188 = vpop.f32.mrf.mxu0
  %v5189 = vadd.f32 %v4980, %v5188
  %5190 = vmatmul.f32.gmra.mxu0 %v4334
  %v5191 = vpop.f32.mrf.mxu0
  %v5192 = vadd.f32 %v4983, %v5191
  %5193 = vmatmul.f32.gmra.mxu0 %v4337
  %v5194 = vpop.f32.mrf.mxu0
  %v5195 = vadd.f32 %v4986, %v5194
  %5196 = vmatmul.f32.gmra.mxu0 %v4339
  %v5197 = vpop.f32.mrf.mxu0
  %v5198 = vadd.f32 %v4989, %v5197
  %5199 = vmatmul.f32.gmra.mxu0 %v4342
  %v5200 = vpop.f32.mrf.mxu0
  %v5201 = vadd.f32 %v4992, %v5200
  %5202 = vmatmul.f32.gmra.mxu0 %v4344
  %v5203 = vpop.f32.mrf.mxu0
  %v5204 = vadd.f32 %v4995, %v5203
  %5205 = vmatmul.f32.gmra.mxu0 %v4347
  %v5206 = vpop.f32.mrf.mxu0
  %v5207 = vadd.f32 %v4998, %v5206
  %5208 = vmatmul.f32.gmra.mxu0 %v4349
  %v5209 = vpop.f32.mrf.mxu0
  %v5210 = vadd.f32 %v5001, %v5209
  %5211 = vmatmul.f32.gmra.mxu0 %v4352
  %v5212 = vpop.f32.mrf.mxu0
  %v5213 = vadd.f32 %v5004, %v5212
  %5214 = vmatmul.f32.gmra.mxu0 %v4354
  %v5215 = vpop.f32.mrf.mxu0
  %v5216 = vadd.f32 %v5007, %v5215
  %5217 = vmatmul.f32.gmra.mxu0 %v4357
  %v5218 = vpop.f32.mrf.mxu0
  %v5219 = vadd.f32 %v5010, %v5218
  %5220 = vmatmul.f32.gmra.mxu0 %v4359
  %v5221 = vpop.f32.mrf.mxu0
  %v5222 = vadd.f32 %v5013, %v5221
  %5223 = vdwg.mxu0
  %5224 = vmatpush.msra.mxu0 %v4709
  %5225 = vmatpush.msra.mxu0 %v4708
  %5226 = vmatpush.msra.mxu0 %v4707
  %5227 = vmatpush.msra.mxu0 %v4706
  %5228 = vmatpush.msra.mxu0 %v4705
  %5229 = vmatpush.msra.mxu0 %v4704
  %5230 = vmatpush.msra.mxu0 %v4703
  %5231 = vmatpush.msra.mxu0 %v4702
  %5232 = vmatpush.msra.mxu0 %v4701
  %5233 = vmatpush.msra.mxu0 %v4700
  %5234 = vmatpush.msra.mxu0 %v4699
  %5235 = vmatpush.msra.mxu0 %v4698
  %5236 = vmatpush.msra.mxu0 %v4697
  %5237 = vmatpush.msra.mxu0 %v4696
  %5238 = vmatpush.msra.mxu0 %v4695
  %5239 = vmatpush.msra.mxu0 %v4694
  %5240 = vmatmul.f32.gmra.mxu0 %v4422
  %v5241 = vpop.f32.mrf.mxu0
  %v5242 = vadd.f32 %v5033, %v5241
  %5243 = vmatmul.f32.gmra.mxu0 %v4424
  %v5244 = vpop.f32.mrf.mxu0
  %v5245 = vadd.f32 %v5036, %v5244
  %5246 = vmatmul.f32.gmra.mxu0 %v4427
  %v5247 = vpop.f32.mrf.mxu0
  %v5248 = vadd.f32 %v5039, %v5247
  %5249 = vmatmul.f32.gmra.mxu0 %v4429
  %v5250 = vpop.f32.mrf.mxu0
  %v5251 = vadd.f32 %v5042, %v5250
  %5252 = vmatmul.f32.gmra.mxu0 %v4422
  %v5253 = vpop.f32.mrf.mxu0
  %v5254 = vadd.f32 %v5045, %v5253
  %5255 = vmatmul.f32.gmra.mxu0 %v4424
  %v5256 = vpop.f32.mrf.mxu0
  %v5257 = vadd.f32 %v5048, %v5256
  %5258 = vmatmul.f32.gmra.mxu0 %v4432
  %v5259 = vpop.f32.mrf.mxu0
  %v5260 = vadd.f32 %v5051, %v5259
  %5261 = vmatmul.f32.gmra.mxu0 %v4434
  %v5262 = vpop.f32.mrf.mxu0
  %v5263 = vadd.f32 %v5054, %v5262
  %5264 = vmatmul.f32.gmra.mxu0 %v4437
  %v5265 = vpop.f32.mrf.mxu0
  %v5266 = vadd.f32 %v5057, %v5265
  %5267 = vmatmul.f32.gmra.mxu0 %v4439
  %v5268 = vpop.f32.mrf.mxu0
  %v5269 = vadd.f32 %v5060, %v5268
  %5270 = vmatmul.f32.gmra.mxu0 %v4442
  %v5271 = vpop.f32.mrf.mxu0
  %v5272 = vadd.f32 %v5063, %v5271
  %5273 = vmatmul.f32.gmra.mxu0 %v4444
  %v5274 = vpop.f32.mrf.mxu0
  %v5275 = vadd.f32 %v5066, %v5274
  %5276 = vmatmul.f32.gmra.mxu0 %v4447
  %v5277 = vpop.f32.mrf.mxu0
  %v5278 = vadd.f32 %v5069, %v5277
  %5279 = vmatmul.f32.gmra.mxu0 %v4449
  %v5280 = vpop.f32.mrf.mxu0
  %v5281 = vadd.f32 %v5072, %v5280
  %5282 = vmatmul.f32.gmra.mxu0 %v4452
  %v5283 = vpop.f32.mrf.mxu0
  %v5284 = vadd.f32 %v5075, %v5283
  %5285 = vmatmul.f32.gmra.mxu0 %v4454
  %v5286 = vpop.f32.mrf.mxu0
  %v5287 = vadd.f32 %v5078, %v5286
  %5288 = vmatmul.f32.gmra.mxu0 %v4457
  %v5289 = vpop.f32.mrf.mxu0
  %v5290 = vadd.f32 %v5081, %v5289
  %5291 = vmatmul.f32.gmra.mxu0 %v4459
  %v5292 = vpop.f32.mrf.mxu0
  %v5293 = vadd.f32 %v5084, %v5292
  %5294 = vmatmul.f32.gmra.mxu0 %v4462
  %v5295 = vpop.f32.mrf.mxu0
  %v5296 = vadd.f32 %v5087, %v5295
  %5297 = vmatmul.f32.gmra.mxu0 %v4464
  %v5298 = vpop.f32.mrf.mxu0
  %v5299 = vadd.f32 %v5090, %v5298
  %5300 = vmatmul.f32.gmra.mxu0 %v4467
  %v5301 = vpop.f32.mrf.mxu0
  %v5302 = vadd.f32 %v5093, %v5301
  %5303 = vmatmul.f32.gmra.mxu0 %v4469
  %v5304 = vpop.f32.mrf.mxu0
  %v5305 = vadd.f32 %v5096, %v5304
  %5306 = vmatmul.f32.gmra.mxu0 %v4472
  %v5307 = vpop.f32.mrf.mxu0
  %v5308 = vadd.f32 %v5099, %v5307
  %5309 = vmatmul.f32.gmra.mxu0 %v4474
  %v5310 = vpop.f32.mrf.mxu0
  %v5311 = vadd.f32 %v5102, %v5310
  %5312 = vmatmul.f32.gmra.mxu0 %v4477
  %v5313 = vpop.f32.mrf.mxu0
  %v5314 = vadd.f32 %v5105, %v5313
  %5315 = vmatmul.f32.gmra.mxu0 %v4479
  %v5316 = vpop.f32.mrf.mxu0
  %v5317 = vadd.f32 %v5108, %v5316
  %5318 = vmatmul.f32.gmra.mxu0 %v4482
  %v5319 = vpop.f32.mrf.mxu0
  %v5320 = vadd.f32 %v5111, %v5319
  %5321 = vmatmul.f32.gmra.mxu0 %v4484
  %v5322 = vpop.f32.mrf.mxu0
  %v5323 = vadd.f32 %v5114, %v5322
  %5324 = vmatmul.f32.gmra.mxu0 %v4487
  %v5325 = vpop.f32.mrf.mxu0
  %v5326 = vadd.f32 %v5117, %v5325
  %5327 = vmatmul.f32.gmra.mxu0 %v4489
  %v5328 = vpop.f32.mrf.mxu0
  %v5329 = vadd.f32 %v5120, %v5328
  %5330 = vmatmul.f32.gmra.mxu0 %v4492
  %v5331 = vpop.f32.mrf.mxu0
  %v5332 = vadd.f32 %v5123, %v5331
  %5333 = vmatmul.f32.gmra.mxu0 %v4494
  %v5334 = vpop.f32.mrf.mxu0
  %v5335 = vadd.f32 %v5126, %v5334
  %5336 = vmatmul.f32.gmra.mxu0 %v4497
  %v5337 = vpop.f32.mrf.mxu0
  %v5338 = vadd.f32 %v5129, %v5337
  %5339 = vmatmul.f32.gmra.mxu0 %v4499
  %v5340 = vpop.f32.mrf.mxu0
  %v5341 = vadd.f32 %v5132, %v5340
  %5342 = vmatmul.f32.gmra.mxu0 %v4502
  %v5343 = vpop.f32.mrf.mxu0
  %v5344 = vadd.f32 %v5135, %v5343
  %5345 = vmatmul.f32.gmra.mxu0 %v4504
  %v5346 = vpop.f32.mrf.mxu0
  %v5347 = vadd.f32 %v5138, %v5346
  %5348 = vmatmul.f32.gmra.mxu0 %v4497
  %v5349 = vpop.f32.mrf.mxu0
  %v5350 = vadd.f32 %v5141, %v5349
  %5351 = vmatmul.f32.gmra.mxu0 %v4499
  %v5352 = vpop.f32.mrf.mxu0
  %v5353 = vadd.f32 %v5144, %v5352
  %5354 = vmatmul.f32.gmra.mxu0 %v4507
  %v5355 = vpop.f32.mrf.mxu0
  %v5356 = vadd.f32 %v5147, %v5355
  %5357 = vmatmul.f32.gmra.mxu0 %v4509
  %v5358 = vpop.f32.mrf.mxu0
  %v5359 = vadd.f32 %v5150, %v5358
  %5360 = vmatmul.f32.gmra.mxu0 %v4512
  %v5361 = vpop.f32.mrf.mxu0
  %v5362 = vadd.f32 %v5153, %v5361
  %5363 = vmatmul.f32.gmra.mxu0 %v4514
  %v5364 = vpop.f32.mrf.mxu0
  %v5365 = vadd.f32 %v5156, %v5364
  %5366 = vmatmul.f32.gmra.mxu0 %v4517
  %v5367 = vpop.f32.mrf.mxu0
  %v5368 = vadd.f32 %v5159, %v5367
  %5369 = vmatmul.f32.gmra.mxu0 %v4519
  %v5370 = vpop.f32.mrf.mxu0
  %v5371 = vadd.f32 %v5162, %v5370
  %5372 = vmatmul.f32.gmra.mxu0 %v4522
  %v5373 = vpop.f32.mrf.mxu0
  %v5374 = vadd.f32 %v5165, %v5373
  %5375 = vmatmul.f32.gmra.mxu0 %v4524
  %v5376 = vpop.f32.mrf.mxu0
  %v5377 = vadd.f32 %v5168, %v5376
  %5378 = vmatmul.f32.gmra.mxu0 %v4527
  %v5379 = vpop.f32.mrf.mxu0
  %v5380 = vadd.f32 %v5171, %v5379
  %5381 = vmatmul.f32.gmra.mxu0 %v4529
  %v5382 = vpop.f32.mrf.mxu0
  %v5383 = vadd.f32 %v5174, %v5382
  %5384 = vmatmul.f32.gmra.mxu0 %v4532
  %v5385 = vpop.f32.mrf.mxu0
  %v5386 = vadd.f32 %v5177, %v5385
  %5387 = vmatmul.f32.gmra.mxu0 %v4534
  %v5388 = vpop.f32.mrf.mxu0
  %v5389 = vadd.f32 %v5180, %v5388
  %5390 = vmatmul.f32.gmra.mxu0 %v4537
  %v5391 = vpop.f32.mrf.mxu0
  %v5392 = vadd.f32 %v5183, %v5391
  %5393 = vmatmul.f32.gmra.mxu0 %v4539
  %v5394 = vpop.f32.mrf.mxu0
  %v5395 = vadd.f32 %v5186, %v5394
  %5396 = vmatmul.f32.gmra.mxu0 %v4542
  %v5397 = vpop.f32.mrf.mxu0
  %v5398 = vadd.f32 %v5189, %v5397
  %5399 = vmatmul.f32.gmra.mxu0 %v4544
  %v5400 = vpop.f32.mrf.mxu0
  %v5401 = vadd.f32 %v5192, %v5400
  %5402 = vmatmul.f32.gmra.mxu0 %v4547
  %v5403 = vpop.f32.mrf.mxu0
  %v5404 = vadd.f32 %v5195, %v5403
  %5405 = vmatmul.f32.gmra.mxu0 %v4549
  %v5406 = vpop.f32.mrf.mxu0
  %v5407 = vadd.f32 %v5198, %v5406
  %5408 = vmatmul.f32.gmra.mxu0 %v4552
  %v5409 = vpop.f32.mrf.mxu0
  %v5410 = vadd.f32 %v5201, %v5409
  %5411 = vmatmul.f32.gmra.mxu0 %v4554
  %v5412 = vpop.f32.mrf.mxu0
  %v5413 = vadd.f32 %v5204, %v5412
  %5414 = vmatmul.f32.gmra.mxu0 %v4557
  %v5415 = vpop.f32.mrf.mxu0
  %v5416 = vadd.f32 %v5207, %v5415
  %5417 = vmatmul.f32.gmra.mxu0 %v4559
  %v5418 = vpop.f32.mrf.mxu0
  %v5419 = vadd.f32 %v5210, %v5418
  %5420 = vmatmul.f32.gmra.mxu0 %v4562
  %v5421 = vpop.f32.mrf.mxu0
  %v5422 = vadd.f32 %v5213, %v5421
  %5423 = vmatmul.f32.gmra.mxu0 %v4564
  %v5424 = vpop.f32.mrf.mxu0
  %v5425 = vadd.f32 %v5216, %v5424
  %5426 = vmatmul.f32.gmra.mxu0 %v4567
  %v5427 = vpop.f32.mrf.mxu0
  %v5428 = vadd.f32 %v5219, %v5427
  %5429 = vmatmul.f32.gmra.mxu0 %v4569
  %v5430 = vpop.f32.mrf.mxu0
  %v5431 = vadd.f32 %v5222, %v5430
  %5432 = vdwg.mxu0
  %5433 = vmatpush.msra.mxu0 %v4725
  %5434 = vmatpush.msra.mxu0 %v4724
  %5435 = vmatpush.msra.mxu0 %v4723
  %5436 = vmatpush.msra.mxu0 %v4722
  %5437 = vmatpush.msra.mxu0 %v4721
  %5438 = vmatpush.msra.mxu0 %v4720
  %5439 = vmatpush.msra.mxu0 %v4719
  %5440 = vmatpush.msra.mxu0 %v4718
  %5441 = vmatpush.msra.mxu0 %v4717
  %5442 = vmatpush.msra.mxu0 %v4716
  %5443 = vmatpush.msra.mxu0 %v4715
  %5444 = vmatpush.msra.mxu0 %v4714
  %5445 = vmatpush.msra.mxu0 %v4713
  %5446 = vmatpush.msra.mxu0 %v4712
  %5447 = vmatpush.msra.mxu0 %v4711
  %5448 = vmatpush.msra.mxu0 %v4710
  %5449 = vmatmul.f32.gmra.mxu0 %v4087
  %v5450 = vpop.f32.mrf.mxu0
  %v5451 = vadd.f32 %v5242, %v5450
  %5452 = vmatmul.f32.gmra.mxu0 %v3835
  %v5453 = vpop.f32.mrf.mxu0
  %v5454 = vadd.f32 %v5245, %v5453
  %5455 = vmatmul.f32.gmra.mxu0 %v4086
  %v5456 = vpop.f32.mrf.mxu0
  %v5457 = vadd.f32 %v5248, %v5456
  %5458 = vmatmul.f32.gmra.mxu0 %v3832
  %v5459 = vpop.f32.mrf.mxu0
  %v5460 = vadd.f32 %v5251, %v5459
  %5461 = vmatmul.f32.gmra.mxu0 %v4088
  %v5462 = vpop.f32.mrf.mxu0
  %v5463 = vadd.f32 %v5254, %v5462
  %5464 = vmatmul.f32.gmra.mxu0 %v3838
  %v5465 = vpop.f32.mrf.mxu0
  %v5466 = vadd.f32 %v5257, %v5465
  %5467 = vmatmul.f32.gmra.mxu0 %v4089
  %v5468 = vpop.f32.mrf.mxu0
  %v5469 = vadd.f32 %v5260, %v5468
  %5470 = vmatmul.f32.gmra.mxu0 %v3841
  %v5471 = vpop.f32.mrf.mxu0
  %v5472 = vadd.f32 %v5263, %v5471
  %5473 = vmatmul.f32.gmra.mxu0 %v4090
  %v5474 = vpop.f32.mrf.mxu0
  %v5475 = vadd.f32 %v5266, %v5474
  %5476 = vmatmul.f32.gmra.mxu0 %v3844
  %v5477 = vpop.f32.mrf.mxu0
  %v5478 = vadd.f32 %v5269, %v5477
  %5479 = vmatmul.f32.gmra.mxu0 %v4091
  %v5480 = vpop.f32.mrf.mxu0
  %v5481 = vadd.f32 %v5272, %v5480
  %5482 = vmatmul.f32.gmra.mxu0 %v3847
  %v5483 = vpop.f32.mrf.mxu0
  %v5484 = vadd.f32 %v5275, %v5483
  %5485 = vmatmul.f32.gmra.mxu0 %v4092
  %v5486 = vpop.f32.mrf.mxu0
  %v5487 = vadd.f32 %v5278, %v5486
  %5488 = vmatmul.f32.gmra.mxu0 %v3850
  %v5489 = vpop.f32.mrf.mxu0
  %v5490 = vadd.f32 %v5281, %v5489
  %5491 = vmatmul.f32.gmra.mxu0 %v4093
  %v5492 = vpop.f32.mrf.mxu0
  %v5493 = vadd.f32 %v5284, %v5492
  %5494 = vmatmul.f32.gmra.mxu0 %v3853
  %v5495 = vpop.f32.mrf.mxu0
  %v5496 = vadd.f32 %v5287, %v5495
  %5497 = vmatmul.f32.gmra.mxu0 %v4094
  %v5498 = vpop.f32.mrf.mxu0
  %v5499 = vadd.f32 %v5290, %v5498
  %5500 = vmatmul.f32.gmra.mxu0 %v3856
  %v5501 = vpop.f32.mrf.mxu0
  %v5502 = vadd.f32 %v5293, %v5501
  %5503 = vmatmul.f32.gmra.mxu0 %v4095
  %v5504 = vpop.f32.mrf.mxu0
  %v5505 = vadd.f32 %v5296, %v5504
  %5506 = vmatmul.f32.gmra.mxu0 %v3859
  %v5507 = vpop.f32.mrf.mxu0
  %v5508 = vadd.f32 %v5299, %v5507
  %5509 = vmatmul.f32.gmra.mxu0 %v4096
  %v5510 = vpop.f32.mrf.mxu0
  %v5511 = vadd.f32 %v5302, %v5510
  %5512 = vmatmul.f32.gmra.mxu0 %v3862
  %v5513 = vpop.f32.mrf.mxu0
  %v5514 = vadd.f32 %v5305, %v5513
  %5515 = vmatmul.f32.gmra.mxu0 %v4097
  %v5516 = vpop.f32.mrf.mxu0
  %v5517 = vadd.f32 %v5308, %v5516
  %5518 = vmatmul.f32.gmra.mxu0 %v3865
  %v5519 = vpop.f32.mrf.mxu0
  %v5520 = vadd.f32 %v5311, %v5519
  %5521 = vmatmul.f32.gmra.mxu0 %v4098
  %v5522 = vpop.f32.mrf.mxu0
  %v5523 = vadd.f32 %v5314, %v5522
  %5524 = vmatmul.f32.gmra.mxu0 %v3868
  %v5525 = vpop.f32.mrf.mxu0
  %v5526 = vadd.f32 %v5317, %v5525
  %5527 = vmatmul.f32.gmra.mxu0 %v4099
  %v5528 = vpop.f32.mrf.mxu0
  %v5529 = vadd.f32 %v5320, %v5528
  %5530 = vmatmul.f32.gmra.mxu0 %v3871
  %v5531 = vpop.f32.mrf.mxu0
  %v5532 = vadd.f32 %v5323, %v5531
  %5533 = vmatmul.f32.gmra.mxu0 %v4100
  %v5534 = vpop.f32.mrf.mxu0
  %v5535 = vadd.f32 %v5326, %v5534
  %5536 = vmatmul.f32.gmra.mxu0 %v3874
  %v5537 = vpop.f32.mrf.mxu0
  %v5538 = vadd.f32 %v5329, %v5537
  %5539 = vmatmul.f32.gmra.mxu0 %v4101
  %v5540 = vpop.f32.mrf.mxu0
  %v5541 = vadd.f32 %v5332, %v5540
  %5542 = vmatmul.f32.gmra.mxu0 %v3877
  %v5543 = vpop.f32.mrf.mxu0
  %v5544 = vadd.f32 %v5335, %v5543
  %5545 = vmatmul.f32.gmra.mxu0 %v4103
  %v5546 = vpop.f32.mrf.mxu0
  %v5547 = vadd.f32 %v5338, %v5546
  %5548 = vmatmul.f32.gmra.mxu0 %v3883
  %v5549 = vpop.f32.mrf.mxu0
  %v5550 = vadd.f32 %v5341, %v5549
  %5551 = vmatmul.f32.gmra.mxu0 %v4102
  %v5552 = vpop.f32.mrf.mxu0
  %v5553 = vadd.f32 %v5344, %v5552
  %5554 = vmatmul.f32.gmra.mxu0 %v3880
  %v5555 = vpop.f32.mrf.mxu0
  %v5556 = vadd.f32 %v5347, %v5555
  %5557 = vmatmul.f32.gmra.mxu0 %v4104
  %v5558 = vpop.f32.mrf.mxu0
  %v5559 = vadd.f32 %v5350, %v5558
  %5560 = vmatmul.f32.gmra.mxu0 %v3886
  %v5561 = vpop.f32.mrf.mxu0
  %v5562 = vadd.f32 %v5353, %v5561
  %5563 = vmatmul.f32.gmra.mxu0 %v4105
  %v5564 = vpop.f32.mrf.mxu0
  %v5565 = vadd.f32 %v5356, %v5564
  %5566 = vmatmul.f32.gmra.mxu0 %v3889
  %v5567 = vpop.f32.mrf.mxu0
  %v5568 = vadd.f32 %v5359, %v5567
  %5569 = vmatmul.f32.gmra.mxu0 %v4106
  %v5570 = vpop.f32.mrf.mxu0
  %v5571 = vadd.f32 %v5362, %v5570
  %5572 = vmatmul.f32.gmra.mxu0 %v3892
  %v5573 = vpop.f32.mrf.mxu0
  %v5574 = vadd.f32 %v5365, %v5573
  %5575 = vmatmul.f32.gmra.mxu0 %v4107
  %v5576 = vpop.f32.mrf.mxu0
  %v5577 = vadd.f32 %v5368, %v5576
  %5578 = vmatmul.f32.gmra.mxu0 %v3895
  %v5579 = vpop.f32.mrf.mxu0
  %v5580 = vadd.f32 %v5371, %v5579
  %5581 = vmatmul.f32.gmra.mxu0 %v4108
  %v5582 = vpop.f32.mrf.mxu0
  %v5583 = vadd.f32 %v5374, %v5582
  %5584 = vmatmul.f32.gmra.mxu0 %v3898
  %v5585 = vpop.f32.mrf.mxu0
  %v5586 = vadd.f32 %v5377, %v5585
  %5587 = vmatmul.f32.gmra.mxu0 %v4109
  %v5588 = vpop.f32.mrf.mxu0
  %v5589 = vadd.f32 %v5380, %v5588
  %5590 = vmatmul.f32.gmra.mxu0 %v3901
  %v5591 = vpop.f32.mrf.mxu0
  %v5592 = vadd.f32 %v5383, %v5591
  %5593 = vmatmul.f32.gmra.mxu0 %v4110
  %v5594 = vpop.f32.mrf.mxu0
  %v5595 = vadd.f32 %v5386, %v5594
  %5596 = vmatmul.f32.gmra.mxu0 %v3904
  %v5597 = vpop.f32.mrf.mxu0
  %v5598 = vadd.f32 %v5389, %v5597
  %5599 = vmatmul.f32.gmra.mxu0 %v4111
  %v5600 = vpop.f32.mrf.mxu0
  %v5601 = vadd.f32 %v5392, %v5600
  %5602 = vmatmul.f32.gmra.mxu0 %v3907
  %v5603 = vpop.f32.mrf.mxu0
  %v5604 = vadd.f32 %v5395, %v5603
  %5605 = vmatmul.f32.gmra.mxu0 %v4112
  %v5606 = vpop.f32.mrf.mxu0
  %v5607 = vadd.f32 %v5398, %v5606
  %5608 = vmatmul.f32.gmra.mxu0 %v3910
  %v5609 = vpop.f32.mrf.mxu0
  %v5610 = vadd.f32 %v5401, %v5609
  %5611 = vmatmul.f32.gmra.mxu0 %v4113
  %v5612 = vpop.f32.mrf.mxu0
  %v5613 = vadd.f32 %v5404, %v5612
  %5614 = vmatmul.f32.gmra.mxu0 %v3913
  %v5615 = vpop.f32.mrf.mxu0
  %v5616 = vadd.f32 %v5407, %v5615
  %5617 = vmatmul.f32.gmra.mxu0 %v4114
  %v5618 = vpop.f32.mrf.mxu0
  %v5619 = vadd.f32 %v5410, %v5618
  %5620 = vmatmul.f32.gmra.mxu0 %v3916
  %v5621 = vpop.f32.mrf.mxu0
  %v5622 = vadd.f32 %v5413, %v5621
  %5623 = vmatmul.f32.gmra.mxu0 %v4115
  %v5624 = vpop.f32.mrf.mxu0
  %v5625 = vadd.f32 %v5416, %v5624
  %5626 = vmatmul.f32.gmra.mxu0 %v3919
  %v5627 = vpop.f32.mrf.mxu0
  %v5628 = vadd.f32 %v5419, %v5627
  %5629 = vmatmul.f32.gmra.mxu0 %v4116
  %v5630 = vpop.f32.mrf.mxu0
  %v5631 = vadd.f32 %v5422, %v5630
  %5632 = vmatmul.f32.gmra.mxu0 %v3922
  %v5633 = vpop.f32.mrf.mxu0
  %v5634 = vadd.f32 %v5425, %v5633
  %5635 = vmatmul.f32.gmra.mxu0 %v4117
  %v5636 = vpop.f32.mrf.mxu0
  %v5637 = vadd.f32 %v5428, %v5636
  %5638 = vmatmul.f32.gmra.mxu0 %v3925
  %v5639 = vpop.f32.mrf.mxu0
  %v5640 = vadd.f32 %v5431, %v5639
  %5641 = vdwg.mxu0
  %5642 = vmatpush.msra.mxu0 %v4741
  %5643 = vmatpush.msra.mxu0 %v4740
  %5644 = vmatpush.msra.mxu0 %v4739
  %5645 = vmatpush.msra.mxu0 %v4738
  %5646 = vmatpush.msra.mxu0 %v4737
  %5647 = vmatpush.msra.mxu0 %v4736
  %5648 = vmatpush.msra.mxu0 %v4735
  %5649 = vmatpush.msra.mxu0 %v4734
  %5650 = vmatpush.msra.mxu0 %v4733
  %5651 = vmatpush.msra.mxu0 %v4732
  %5652 = vmatpush.msra.mxu0 %v4731
  %5653 = vmatpush.msra.mxu0 %v4730
  %5654 = vmatpush.msra.mxu0 %v4729
  %5655 = vmatpush.msra.mxu0 %v4728
  %5656 = vmatpush.msra.mxu0 %v4727
  %5657 = vmatpush.msra.mxu0 %v4726
  %5658 = vmatmul.f32.gmra.mxu0 %v4217
  %v5659 = vpop.f32.mrf.mxu0
  %v5660 = vadd.f32 %v5451, %v5659
  %5661 = vmatmul.f32.gmra.mxu0 %v4219
  %v5662 = vpop.f32.mrf.mxu0
  %v5663 = vadd.f32 %v5454, %v5662
  %5664 = vmatmul.f32.gmra.mxu0 %v4212
  %v5665 = vpop.f32.mrf.mxu0
  %v5666 = vadd.f32 %v5457, %v5665
  %5667 = vmatmul.f32.gmra.mxu0 %v4214
  %v5668 = vpop.f32.mrf.mxu0
  %v5669 = vadd.f32 %v5460, %v5668
  %5670 = vmatmul.f32.gmra.mxu0 %v4222
  %v5671 = vpop.f32.mrf.mxu0
  %v5672 = vadd.f32 %v5463, %v5671
  %5673 = vmatmul.f32.gmra.mxu0 %v4224
  %v5674 = vpop.f32.mrf.mxu0
  %v5675 = vadd.f32 %v5466, %v5674
  %5676 = vmatmul.f32.gmra.mxu0 %v4227
  %v5677 = vpop.f32.mrf.mxu0
  %v5678 = vadd.f32 %v5469, %v5677
  %5679 = vmatmul.f32.gmra.mxu0 %v4229
  %v5680 = vpop.f32.mrf.mxu0
  %v5681 = vadd.f32 %v5472, %v5680
  %5682 = vmatmul.f32.gmra.mxu0 %v4232
  %v5683 = vpop.f32.mrf.mxu0
  %v5684 = vadd.f32 %v5475, %v5683
  %5685 = vmatmul.f32.gmra.mxu0 %v4234
  %v5686 = vpop.f32.mrf.mxu0
  %v5687 = vadd.f32 %v5478, %v5686
  %5688 = vmatmul.f32.gmra.mxu0 %v4237
  %v5689 = vpop.f32.mrf.mxu0
  %v5690 = vadd.f32 %v5481, %v5689
  %5691 = vmatmul.f32.gmra.mxu0 %v4239
  %v5692 = vpop.f32.mrf.mxu0
  %v5693 = vadd.f32 %v5484, %v5692
  %5694 = vmatmul.f32.gmra.mxu0 %v4242
  %v5695 = vpop.f32.mrf.mxu0
  %v5696 = vadd.f32 %v5487, %v5695
  %5697 = vmatmul.f32.gmra.mxu0 %v4244
  %v5698 = vpop.f32.mrf.mxu0
  %v5699 = vadd.f32 %v5490, %v5698
  %5700 = vmatmul.f32.gmra.mxu0 %v4247
  %v5701 = vpop.f32.mrf.mxu0
  %v5702 = vadd.f32 %v5493, %v5701
  %5703 = vmatmul.f32.gmra.mxu0 %v4249
  %v5704 = vpop.f32.mrf.mxu0
  %v5705 = vadd.f32 %v5496, %v5704
  %5706 = vmatmul.f32.gmra.mxu0 %v4252
  %v5707 = vpop.f32.mrf.mxu0
  %v5708 = vadd.f32 %v5499, %v5707
  %5709 = vmatmul.f32.gmra.mxu0 %v4254
  %v5710 = vpop.f32.mrf.mxu0
  %v5711 = vadd.f32 %v5502, %v5710
  %5712 = vmatmul.f32.gmra.mxu0 %v4257
  %v5713 = vpop.f32.mrf.mxu0
  %v5714 = vadd.f32 %v5505, %v5713
  %5715 = vmatmul.f32.gmra.mxu0 %v4259
  %v5716 = vpop.f32.mrf.mxu0
  %v5717 = vadd.f32 %v5508, %v5716
  %5718 = vmatmul.f32.gmra.mxu0 %v4262
  %v5719 = vpop.f32.mrf.mxu0
  %v5720 = vadd.f32 %v5511, %v5719
  %5721 = vmatmul.f32.gmra.mxu0 %v4264
  %v5722 = vpop.f32.mrf.mxu0
  %v5723 = vadd.f32 %v5514, %v5722
  %5724 = vmatmul.f32.gmra.mxu0 %v4267
  %v5725 = vpop.f32.mrf.mxu0
  %v5726 = vadd.f32 %v5517, %v5725
  %5727 = vmatmul.f32.gmra.mxu0 %v4269
  %v5728 = vpop.f32.mrf.mxu0
  %v5729 = vadd.f32 %v5520, %v5728
  %5730 = vmatmul.f32.gmra.mxu0 %v4272
  %v5731 = vpop.f32.mrf.mxu0
  %v5732 = vadd.f32 %v5523, %v5731
  %5733 = vmatmul.f32.gmra.mxu0 %v4274
  %v5734 = vpop.f32.mrf.mxu0
  %v5735 = vadd.f32 %v5526, %v5734
  %5736 = vmatmul.f32.gmra.mxu0 %v4277
  %v5737 = vpop.f32.mrf.mxu0
  %v5738 = vadd.f32 %v5529, %v5737
  %5739 = vmatmul.f32.gmra.mxu0 %v4279
  %v5740 = vpop.f32.mrf.mxu0
  %v5741 = vadd.f32 %v5532, %v5740
  %5742 = vmatmul.f32.gmra.mxu0 %v4282
  %v5743 = vpop.f32.mrf.mxu0
  %v5744 = vadd.f32 %v5535, %v5743
  %5745 = vmatmul.f32.gmra.mxu0 %v4284
  %v5746 = vpop.f32.mrf.mxu0
  %v5747 = vadd.f32 %v5538, %v5746
  %5748 = vmatmul.f32.gmra.mxu0 %v4636
  %v5749 = vpop.f32.mrf.mxu0
  %v5750 = vadd.f32 %v5541, %v5749
  %5751 = vmatmul.f32.gmra.mxu0 %v4638
  %v5752 = vpop.f32.mrf.mxu0
  %v5753 = vadd.f32 %v5544, %v5752
  %5754 = vmatmul.f32.gmra.mxu0 %v4292
  %v5755 = vpop.f32.mrf.mxu0
  %v5756 = vadd.f32 %v5547, %v5755
  %5757 = vmatmul.f32.gmra.mxu0 %v4294
  %v5758 = vpop.f32.mrf.mxu0
  %v5759 = vadd.f32 %v5550, %v5758
  %5760 = vmatmul.f32.gmra.mxu0 %v4287
  %v5761 = vpop.f32.mrf.mxu0
  %v5762 = vadd.f32 %v5553, %v5761
  %5763 = vmatmul.f32.gmra.mxu0 %v4289
  %v5764 = vpop.f32.mrf.mxu0
  %v5765 = vadd.f32 %v5556, %v5764
  %5766 = vmatmul.f32.gmra.mxu0 %v4297
  %v5767 = vpop.f32.mrf.mxu0
  %v5768 = vadd.f32 %v5559, %v5767
  %5769 = vmatmul.f32.gmra.mxu0 %v4299
  %v5770 = vpop.f32.mrf.mxu0
  %v5771 = vadd.f32 %v5562, %v5770
  %5772 = vmatmul.f32.gmra.mxu0 %v4302
  %v5773 = vpop.f32.mrf.mxu0
  %v5774 = vadd.f32 %v5565, %v5773
  %5775 = vmatmul.f32.gmra.mxu0 %v4304
  %v5776 = vpop.f32.mrf.mxu0
  %v5777 = vadd.f32 %v5568, %v5776
  %5778 = vmatmul.f32.gmra.mxu0 %v4307
  %v5779 = vpop.f32.mrf.mxu0
  %v5780 = vadd.f32 %v5571, %v5779
  %5781 = vmatmul.f32.gmra.mxu0 %v4309
  %v5782 = vpop.f32.mrf.mxu0
  %v5783 = vadd.f32 %v5574, %v5782
  %5784 = vmatmul.f32.gmra.mxu0 %v4312
  %v5785 = vpop.f32.mrf.mxu0
  %v5786 = vadd.f32 %v5577, %v5785
  %5787 = vmatmul.f32.gmra.mxu0 %v4314
  %v5788 = vpop.f32.mrf.mxu0
  %v5789 = vadd.f32 %v5580, %v5788
  %5790 = vmatmul.f32.gmra.mxu0 %v4317
  %v5791 = vpop.f32.mrf.mxu0
  %v5792 = vadd.f32 %v5583, %v5791
  %5793 = vmatmul.f32.gmra.mxu0 %v4319
  %v5794 = vpop.f32.mrf.mxu0
  %v5795 = vadd.f32 %v5586, %v5794
  %5796 = vmatmul.f32.gmra.mxu0 %v4322
  %v5797 = vpop.f32.mrf.mxu0
  %v5798 = vadd.f32 %v5589, %v5797
  %5799 = vmatmul.f32.gmra.mxu0 %v4324
  %v5800 = vpop.f32.mrf.mxu0
  %v5801 = vadd.f32 %v5592, %v5800
  %5802 = vmatmul.f32.gmra.mxu0 %v4327
  %v5803 = vpop.f32.mrf.mxu0
  %v5804 = vadd.f32 %v5595, %v5803
  %5805 = vmatmul.f32.gmra.mxu0 %v4329
  %v5806 = vpop.f32.mrf.mxu0
  %v5807 = vadd.f32 %v5598, %v5806
  %5808 = vmatmul.f32.gmra.mxu0 %v4332
  %v5809 = vpop.f32.mrf.mxu0
  %v5810 = vadd.f32 %v5601, %v5809
  %5811 = vmatmul.f32.gmra.mxu0 %v4334
  %v5812 = vpop.f32.mrf.mxu0
  %v5813 = vadd.f32 %v5604, %v5812
  %5814 = vmatmul.f32.gmra.mxu0 %v4337
  %v5815 = vpop.f32.mrf.mxu0
  %v5816 = vadd.f32 %v5607, %v5815
  %5817 = vmatmul.f32.gmra.mxu0 %v4339
  %v5818 = vpop.f32.mrf.mxu0
  %v5819 = vadd.f32 %v5610, %v5818
  %5820 = vmatmul.f32.gmra.mxu0 %v4342
  %v5821 = vpop.f32.mrf.mxu0
  %v5822 = vadd.f32 %v5613, %v5821
  %5823 = vmatmul.f32.gmra.mxu0 %v4344
  %v5824 = vpop.f32.mrf.mxu0
  %v5825 = vadd.f32 %v5616, %v5824
  %5826 = vmatmul.f32.gmra.mxu0 %v4347
  %v5827 = vpop.f32.mrf.mxu0
  %v5828 = vadd.f32 %v5619, %v5827
  %5829 = vmatmul.f32.gmra.mxu0 %v4349
  %v5830 = vpop.f32.mrf.mxu0
  %v5831 = vadd.f32 %v5622, %v5830
  %5832 = vmatmul.f32.gmra.mxu0 %v4352
  %v5833 = vpop.f32.mrf.mxu0
  %v5834 = vadd.f32 %v5625, %v5833
  %5835 = vmatmul.f32.gmra.mxu0 %v4354
  %v5836 = vpop.f32.mrf.mxu0
  %v5837 = vadd.f32 %v5628, %v5836
  %5838 = vmatmul.f32.gmra.mxu0 %v4357
  %v5839 = vpop.f32.mrf.mxu0
  %v5840 = vadd.f32 %v5631, %v5839
  %5841 = vmatmul.f32.gmra.mxu0 %v4359
  %v5842 = vpop.f32.mrf.mxu0
  %v5843 = vadd.f32 %v5634, %v5842
  %5844 = vmatmul.f32.gmra.mxu0 %v4641
  %v5845 = vpop.f32.mrf.mxu0
  %v5846 = vadd.f32 %v5637, %v5845
  %5847 = vmatmul.f32.gmra.mxu0 %v4643
  %v5848 = vpop.f32.mrf.mxu0
  %v5849 = vadd.f32 %v5640, %v5848
  %5850 = vdwg.mxu0
  %5851 = vmatpush.msra.mxu0 %v4757
  %5852 = vmatpush.msra.mxu0 %v4756
  %5853 = vmatpush.msra.mxu0 %v4755
  %5854 = vmatpush.msra.mxu0 %v4754
  %5855 = vmatpush.msra.mxu0 %v4753
  %5856 = vmatpush.msra.mxu0 %v4752
  %5857 = vmatpush.msra.mxu0 %v4751
  %5858 = vmatpush.msra.mxu0 %v4750
  %5859 = vmatpush.msra.mxu0 %v4749
  %5860 = vmatpush.msra.mxu0 %v4748
  %5861 = vmatpush.msra.mxu0 %v4747
  %5862 = vmatpush.msra.mxu0 %v4746
  %5863 = vmatpush.msra.mxu0 %v4745
  %5864 = vmatpush.msra.mxu0 %v4744
  %5865 = vmatpush.msra.mxu0 %v4743
  %5866 = vmatpush.msra.mxu0 %v4742
  %5867 = vmatmul.f32.gmra.mxu0 %v4427
  %v5868 = vpop.f32.mrf.mxu0
  %v5869 = vadd.f32 %v5660, %v5868
  %5870 = vmatmul.f32.gmra.mxu0 %v4429
  %v5871 = vpop.f32.mrf.mxu0
  %v5872 = vadd.f32 %v5663, %v5871
  %5873 = vmatmul.f32.gmra.mxu0 %v4422
  %v5874 = vpop.f32.mrf.mxu0
  %v5875 = vadd.f32 %v5666, %v5874
  %5876 = vmatmul.f32.gmra.mxu0 %v4424
  %v5877 = vpop.f32.mrf.mxu0
  %v5878 = vadd.f32 %v5669, %v5877
  %5879 = vmatmul.f32.gmra.mxu0 %v4432
  %v5880 = vpop.f32.mrf.mxu0
  %v5881 = vadd.f32 %v5672, %v5880
  %5882 = vmatmul.f32.gmra.mxu0 %v4434
  %v5883 = vpop.f32.mrf.mxu0
  %v5884 = vadd.f32 %v5675, %v5883
  %5885 = vmatmul.f32.gmra.mxu0 %v4437
  %v5886 = vpop.f32.mrf.mxu0
  %v5887 = vadd.f32 %v5678, %v5886
  %5888 = vmatmul.f32.gmra.mxu0 %v4439
  %v5889 = vpop.f32.mrf.mxu0
  %v5890 = vadd.f32 %v5681, %v5889
  %5891 = vmatmul.f32.gmra.mxu0 %v4442
  %v5892 = vpop.f32.mrf.mxu0
  %v5893 = vadd.f32 %v5684, %v5892
  %5894 = vmatmul.f32.gmra.mxu0 %v4444
  %v5895 = vpop.f32.mrf.mxu0
  %v5896 = vadd.f32 %v5687, %v5895
  %5897 = vmatmul.f32.gmra.mxu0 %v4447
  %v5898 = vpop.f32.mrf.mxu0
  %v5899 = vadd.f32 %v5690, %v5898
  %5900 = vmatmul.f32.gmra.mxu0 %v4449
  %v5901 = vpop.f32.mrf.mxu0
  %v5902 = vadd.f32 %v5693, %v5901
  %5903 = vmatmul.f32.gmra.mxu0 %v4452
  %v5904 = vpop.f32.mrf.mxu0
  %v5905 = vadd.f32 %v5696, %v5904
  %5906 = vmatmul.f32.gmra.mxu0 %v4454
  %v5907 = vpop.f32.mrf.mxu0
  %v5908 = vadd.f32 %v5699, %v5907
  %5909 = vmatmul.f32.gmra.mxu0 %v4457
  %v5910 = vpop.f32.mrf.mxu0
  %v5911 = vadd.f32 %v5702, %v5910
  %5912 = vmatmul.f32.gmra.mxu0 %v4459
  %v5913 = vpop.f32.mrf.mxu0
  %v5914 = vadd.f32 %v5705, %v5913
  %5915 = vmatmul.f32.gmra.mxu0 %v4462
  %v5916 = vpop.f32.mrf.mxu0
  %v5917 = vadd.f32 %v5708, %v5916
  %5918 = vmatmul.f32.gmra.mxu0 %v4464
  %v5919 = vpop.f32.mrf.mxu0
  %v5920 = vadd.f32 %v5711, %v5919
  %5921 = vmatmul.f32.gmra.mxu0 %v4467
  %v5922 = vpop.f32.mrf.mxu0
  %v5923 = vadd.f32 %v5714, %v5922
  %5924 = vmatmul.f32.gmra.mxu0 %v4469
  %v5925 = vpop.f32.mrf.mxu0
  %v5926 = vadd.f32 %v5717, %v5925
  %5927 = vmatmul.f32.gmra.mxu0 %v4472
  %v5928 = vpop.f32.mrf.mxu0
  %v5929 = vadd.f32 %v5720, %v5928
  %5930 = vmatmul.f32.gmra.mxu0 %v4474
  %v5931 = vpop.f32.mrf.mxu0
  %v5932 = vadd.f32 %v5723, %v5931
  %5933 = vmatmul.f32.gmra.mxu0 %v4477
  %v5934 = vpop.f32.mrf.mxu0
  %v5935 = vadd.f32 %v5726, %v5934
  %5936 = vmatmul.f32.gmra.mxu0 %v4479
  %v5937 = vpop.f32.mrf.mxu0
  %v5938 = vadd.f32 %v5729, %v5937
  %5939 = vmatmul.f32.gmra.mxu0 %v4482
  %v5940 = vpop.f32.mrf.mxu0
  %v5941 = vadd.f32 %v5732, %v5940
  %5942 = vmatmul.f32.gmra.mxu0 %v4484
  %v5943 = vpop.f32.mrf.mxu0
  %v5944 = vadd.f32 %v5735, %v5943
  %5945 = vmatmul.f32.gmra.mxu0 %v4487
  %v5946 = vpop.f32.mrf.mxu0
  %v5947 = vadd.f32 %v5738, %v5946
  %5948 = vmatmul.f32.gmra.mxu0 %v4489
  %v5949 = vpop.f32.mrf.mxu0
  %v5950 = vadd.f32 %v5741, %v5949
  %5951 = vmatmul.f32.gmra.mxu0 %v4492
  %v5952 = vpop.f32.mrf.mxu0
  %v5953 = vadd.f32 %v5744, %v5952
  %5954 = vmatmul.f32.gmra.mxu0 %v4494
  %v5955 = vpop.f32.mrf.mxu0
  %v5956 = vadd.f32 %v5747, %v5955
  %5957 = vmatmul.f32.gmra.mxu0 %v4650
  %v5958 = vpop.f32.mrf.mxu0
  %v5959 = vadd.f32 %v5750, %v5958
  %5960 = vmatmul.f32.gmra.mxu0 %v4652
  %v5961 = vpop.f32.mrf.mxu0
  %v5962 = vadd.f32 %v5753, %v5961
  %5963 = vmatmul.f32.gmra.mxu0 %v4502
  %v5964 = vpop.f32.mrf.mxu0
  %v5965 = vadd.f32 %v5756, %v5964
  %5966 = vmatmul.f32.gmra.mxu0 %v4504
  %v5967 = vpop.f32.mrf.mxu0
  %v5968 = vadd.f32 %v5759, %v5967
  %5969 = vmatmul.f32.gmra.mxu0 %v4497
  %v5970 = vpop.f32.mrf.mxu0
  %v5971 = vadd.f32 %v5762, %v5970
  %5972 = vmatmul.f32.gmra.mxu0 %v4499
  %v5973 = vpop.f32.mrf.mxu0
  %v5974 = vadd.f32 %v5765, %v5973
  %5975 = vmatmul.f32.gmra.mxu0 %v4507
  %v5976 = vpop.f32.mrf.mxu0
  %v5977 = vadd.f32 %v5768, %v5976
  %5978 = vmatmul.f32.gmra.mxu0 %v4509
  %v5979 = vpop.f32.mrf.mxu0
  %v5980 = vadd.f32 %v5771, %v5979
  %5981 = vmatmul.f32.gmra.mxu0 %v4512
  %v5982 = vpop.f32.mrf.mxu0
  %v5983 = vadd.f32 %v5774, %v5982
  %5984 = vmatmul.f32.gmra.mxu0 %v4514
  %v5985 = vpop.f32.mrf.mxu0
  %v5986 = vadd.f32 %v5777, %v5985
  %5987 = vmatmul.f32.gmra.mxu0 %v4517
  %v5988 = vpop.f32.mrf.mxu0
  %v5989 = vadd.f32 %v5780, %v5988
  %5990 = vmatmul.f32.gmra.mxu0 %v4519
  %v5991 = vpop.f32.mrf.mxu0
  %v5992 = vadd.f32 %v5783, %v5991
  %5993 = vmatmul.f32.gmra.mxu0 %v4522
  %v5994 = vpop.f32.mrf.mxu0
  %v5995 = vadd.f32 %v5786, %v5994
  %5996 = vmatmul.f32.gmra.mxu0 %v4524
  %v5997 = vpop.f32.mrf.mxu0
  %v5998 = vadd.f32 %v5789, %v5997
  %5999 = vmatmul.f32.gmra.mxu0 %v4527
  %v6000 = vpop.f32.mrf.mxu0
  %v6001 = vadd.f32 %v5792, %v6000
  %6002 = vmatmul.f32.gmra.mxu0 %v4529
  %v6003 = vpop.f32.mrf.mxu0
  %v6004 = vadd.f32 %v5795, %v6003
  %6005 = vmatmul.f32.gmra.mxu0 %v4532
  %v6006 = vpop.f32.mrf.mxu0
  %v6007 = vadd.f32 %v5798, %v6006
  %6008 = vmatmul.f32.gmra.mxu0 %v4534
  %v6009 = vpop.f32.mrf.mxu0
  %v6010 = vadd.f32 %v5801, %v6009
  %6011 = vmatmul.f32.gmra.mxu0 %v4537
  %v6012 = vpop.f32.mrf.mxu0
  %v6013 = vadd.f32 %v5804, %v6012
  %6014 = vmatmul.f32.gmra.mxu0 %v4539
  %v6015 = vpop.f32.mrf.mxu0
  %v6016 = vadd.f32 %v5807, %v6015
  %6017 = vmatmul.f32.gmra.mxu0 %v4542
  %v6018 = vpop.f32.mrf.mxu0
  %v6019 = vadd.f32 %v5810, %v6018
  %6020 = vmatmul.f32.gmra.mxu0 %v4544
  %v6021 = vpop.f32.mrf.mxu0
  %v6022 = vadd.f32 %v5813, %v6021
  %6023 = vmatmul.f32.gmra.mxu0 %v4547
  %v6024 = vpop.f32.mrf.mxu0
  %v6025 = vadd.f32 %v5816, %v6024
  %6026 = vmatmul.f32.gmra.mxu0 %v4549
  %v6027 = vpop.f32.mrf.mxu0
  %v6028 = vadd.f32 %v5819, %v6027
  %6029 = vmatmul.f32.gmra.mxu0 %v4552
  %v6030 = vpop.f32.mrf.mxu0
  %v6031 = vadd.f32 %v5822, %v6030
  %6032 = vmatmul.f32.gmra.mxu0 %v4554
  %v6033 = vpop.f32.mrf.mxu0
  %v6034 = vadd.f32 %v5825, %v6033
  %6035 = vmatmul.f32.gmra.mxu0 %v4557
  %v6036 = vpop.f32.mrf.mxu0
  %v6037 = vadd.f32 %v5828, %v6036
  %6038 = vmatmul.f32.gmra.mxu0 %v4559
  %v6039 = vpop.f32.mrf.mxu0
  %v6040 = vadd.f32 %v5831, %v6039
  %6041 = vmatmul.f32.gmra.mxu0 %v4562
  %v6042 = vpop.f32.mrf.mxu0
  %v6043 = vadd.f32 %v5834, %v6042
  %6044 = vmatmul.f32.gmra.mxu0 %v4564
  %v6045 = vpop.f32.mrf.mxu0
  %v6046 = vadd.f32 %v5837, %v6045
  %6047 = vmatmul.f32.gmra.mxu0 %v4567
  %v6048 = vpop.f32.mrf.mxu0
  %v6049 = vadd.f32 %v5840, %v6048
  %6050 = vmatmul.f32.gmra.mxu0 %v4569
  %v6051 = vpop.f32.mrf.mxu0
  %v6052 = vadd.f32 %v5843, %v6051
  %6053 = vmatmul.f32.gmra.mxu0 %v4655
  %v6054 = vpop.f32.mrf.mxu0
  %v6055 = vadd.f32 %v5846, %v6054
  %6056 = vmatmul.f32.gmra.mxu0 %v4657
  %v6057 = vpop.f32.mrf.mxu0
  %v6058 = vadd.f32 %v5849, %v6057
  %6059 = vdwg.mxu0
  %6060 = vmatpush.msra.mxu0 %v4773
  %6061 = vmatpush.msra.mxu0 %v4772
  %6062 = vmatpush.msra.mxu0 %v4771
  %6063 = vmatpush.msra.mxu0 %v4770
  %6064 = vmatpush.msra.mxu0 %v4769
  %6065 = vmatpush.msra.mxu0 %v4768
  %6066 = vmatpush.msra.mxu0 %v4767
  %6067 = vmatpush.msra.mxu0 %v4766
  %6068 = vmatpush.msra.mxu0 %v4765
  %6069 = vmatpush.msra.mxu0 %v4764
  %6070 = vmatpush.msra.mxu0 %v4763
  %6071 = vmatpush.msra.mxu0 %v4762
  %6072 = vmatpush.msra.mxu0 %v4761
  %6073 = vmatpush.msra.mxu0 %v4760
  %6074 = vmatpush.msra.mxu0 %v4759
  %6075 = vmatpush.msra.mxu0 %v4758
  %6076 = vmatmul.f32.gmra.mxu0 %v4086
  %v6077 = vpop.f32.mrf.mxu0
  %v6078 = vadd.f32 %v5869, %v6077
  %6079 = vmatmul.f32.gmra.mxu0 %v3832
  %v6080 = vpop.f32.mrf.mxu0
  %v6081 = vadd.f32 %v5872, %v6080
  %6082 = vmatmul.f32.gmra.mxu0 %v4088
  %v6083 = vpop.f32.mrf.mxu0
  %v6084 = vadd.f32 %v5875, %v6083
  %6085 = vmatmul.f32.gmra.mxu0 %v3838
  %v6086 = vpop.f32.mrf.mxu0
  %v6087 = vadd.f32 %v5878, %v6086
  %6088 = vmatmul.f32.gmra.mxu0 %v4089
  %v6089 = vpop.f32.mrf.mxu0
  %v6090 = vadd.f32 %v5881, %v6089
  %6091 = vmatmul.f32.gmra.mxu0 %v3841
  %v6092 = vpop.f32.mrf.mxu0
  %v6093 = vadd.f32 %v5884, %v6092
  %6094 = vmatmul.f32.gmra.mxu0 %v4090
  %v6095 = vpop.f32.mrf.mxu0
  %v6096 = vadd.f32 %v5887, %v6095
  %6097 = vmatmul.f32.gmra.mxu0 %v3844
  %v6098 = vpop.f32.mrf.mxu0
  %v6099 = vadd.f32 %v5890, %v6098
  %6100 = vmatmul.f32.gmra.mxu0 %v4091
  %v6101 = vpop.f32.mrf.mxu0
  %v6102 = vadd.f32 %v5893, %v6101
  %6103 = vmatmul.f32.gmra.mxu0 %v3847
  %v6104 = vpop.f32.mrf.mxu0
  %v6105 = vadd.f32 %v5896, %v6104
  %6106 = vmatmul.f32.gmra.mxu0 %v4092
  %v6107 = vpop.f32.mrf.mxu0
  %v6108 = vadd.f32 %v5899, %v6107
  %6109 = vmatmul.f32.gmra.mxu0 %v3850
  %v6110 = vpop.f32.mrf.mxu0
  %v6111 = vadd.f32 %v5902, %v6110
  %6112 = vmatmul.f32.gmra.mxu0 %v4093
  %v6113 = vpop.f32.mrf.mxu0
  %v6114 = vadd.f32 %v5905, %v6113
  %6115 = vmatmul.f32.gmra.mxu0 %v3853
  %v6116 = vpop.f32.mrf.mxu0
  %v6117 = vadd.f32 %v5908, %v6116
  %6118 = vmatmul.f32.gmra.mxu0 %v4094
  %v6119 = vpop.f32.mrf.mxu0
  %v6120 = vadd.f32 %v5911, %v6119
  %6121 = vmatmul.f32.gmra.mxu0 %v3856
  %v6122 = vpop.f32.mrf.mxu0
  %v6123 = vadd.f32 %v5914, %v6122
  %6124 = vmatmul.f32.gmra.mxu0 %v4095
  %v6125 = vpop.f32.mrf.mxu0
  %v6126 = vadd.f32 %v5917, %v6125
  %6127 = vmatmul.f32.gmra.mxu0 %v3859
  %v6128 = vpop.f32.mrf.mxu0
  %v6129 = vadd.f32 %v5920, %v6128
  %6130 = vmatmul.f32.gmra.mxu0 %v4096
  %v6131 = vpop.f32.mrf.mxu0
  %v6132 = vadd.f32 %v5923, %v6131
  %6133 = vmatmul.f32.gmra.mxu0 %v3862
  %v6134 = vpop.f32.mrf.mxu0
  %v6135 = vadd.f32 %v5926, %v6134
  %6136 = vmatmul.f32.gmra.mxu0 %v4097
  %v6137 = vpop.f32.mrf.mxu0
  %v6138 = vadd.f32 %v5929, %v6137
  %6139 = vmatmul.f32.gmra.mxu0 %v3865
  %v6140 = vpop.f32.mrf.mxu0
  %v6141 = vadd.f32 %v5932, %v6140
  %6142 = vmatmul.f32.gmra.mxu0 %v4098
  %v6143 = vpop.f32.mrf.mxu0
  %v6144 = vadd.f32 %v5935, %v6143
  %6145 = vmatmul.f32.gmra.mxu0 %v3868
  %v6146 = vpop.f32.mrf.mxu0
  %v6147 = vadd.f32 %v5938, %v6146
  %6148 = vmatmul.f32.gmra.mxu0 %v4099
  %v6149 = vpop.f32.mrf.mxu0
  %v6150 = vadd.f32 %v5941, %v6149
  %6151 = vmatmul.f32.gmra.mxu0 %v3871
  %v6152 = vpop.f32.mrf.mxu0
  %v6153 = vadd.f32 %v5944, %v6152
  %6154 = vmatmul.f32.gmra.mxu0 %v4100
  %v6155 = vpop.f32.mrf.mxu0
  %v6156 = vadd.f32 %v5947, %v6155
  %6157 = vmatmul.f32.gmra.mxu0 %v3874
  %v6158 = vpop.f32.mrf.mxu0
  %v6159 = vadd.f32 %v5950, %v6158
  %6160 = vmatmul.f32.gmra.mxu0 %v4101
  %v6161 = vpop.f32.mrf.mxu0
  %v6162 = vadd.f32 %v5953, %v6161
  %6163 = vmatmul.f32.gmra.mxu0 %v3877
  %v6164 = vpop.f32.mrf.mxu0
  %v6165 = vadd.f32 %v5956, %v6164
  %6166 = vmatmul.f32.gmra.mxu0 %v4100
  %v6167 = vpop.f32.mrf.mxu0
  %v6168 = vadd.f32 %v5959, %v6167
  %6169 = vmatmul.f32.gmra.mxu0 %v3874
  %v6170 = vpop.f32.mrf.mxu0
  %v6171 = vadd.f32 %v5962, %v6170
  %6172 = vmatmul.f32.gmra.mxu0 %v4102
  %v6173 = vpop.f32.mrf.mxu0
  %v6174 = vadd.f32 %v5965, %v6173
  %6175 = vmatmul.f32.gmra.mxu0 %v3880
  %v6176 = vpop.f32.mrf.mxu0
  %v6177 = vadd.f32 %v5968, %v6176
  %6178 = vmatmul.f32.gmra.mxu0 %v4104
  %v6179 = vpop.f32.mrf.mxu0
  %v6180 = vadd.f32 %v5971, %v6179
  %6181 = vmatmul.f32.gmra.mxu0 %v3886
  %v6182 = vpop.f32.mrf.mxu0
  %v6183 = vadd.f32 %v5974, %v6182
  %6184 = vmatmul.f32.gmra.mxu0 %v4105
  %v6185 = vpop.f32.mrf.mxu0
  %v6186 = vadd.f32 %v5977, %v6185
  %6187 = vmatmul.f32.gmra.mxu0 %v3889
  %v6188 = vpop.f32.mrf.mxu0
  %v6189 = vadd.f32 %v5980, %v6188
  %6190 = vmatmul.f32.gmra.mxu0 %v4106
  %v6191 = vpop.f32.mrf.mxu0
  %v6192 = vadd.f32 %v5983, %v6191
  %6193 = vmatmul.f32.gmra.mxu0 %v3892
  %v6194 = vpop.f32.mrf.mxu0
  %v6195 = vadd.f32 %v5986, %v6194
  %6196 = vmatmul.f32.gmra.mxu0 %v4107
  %v6197 = vpop.f32.mrf.mxu0
  %v6198 = vadd.f32 %v5989, %v6197
  %6199 = vmatmul.f32.gmra.mxu0 %v3895
  %v6200 = vpop.f32.mrf.mxu0
  %v6201 = vadd.f32 %v5992, %v6200
  %6202 = vmatmul.f32.gmra.mxu0 %v4108
  %v6203 = vpop.f32.mrf.mxu0
  %v6204 = vadd.f32 %v5995, %v6203
  %6205 = vmatmul.f32.gmra.mxu0 %v3898
  %v6206 = vpop.f32.mrf.mxu0
  %v6207 = vadd.f32 %v5998, %v6206
  %6208 = vmatmul.f32.gmra.mxu0 %v4109
  %v6209 = vpop.f32.mrf.mxu0
  %v6210 = vadd.f32 %v6001, %v6209
  %6211 = vmatmul.f32.gmra.mxu0 %v3901
  %v6212 = vpop.f32.mrf.mxu0
  %v6213 = vadd.f32 %v6004, %v6212
  %6214 = vmatmul.f32.gmra.mxu0 %v4110
  %v6215 = vpop.f32.mrf.mxu0
  %v6216 = vadd.f32 %v6007, %v6215
  %6217 = vmatmul.f32.gmra.mxu0 %v3904
  %v6218 = vpop.f32.mrf.mxu0
  %v6219 = vadd.f32 %v6010, %v6218
  %6220 = vmatmul.f32.gmra.mxu0 %v4111
  %v6221 = vpop.f32.mrf.mxu0
  %v6222 = vadd.f32 %v6013, %v6221
  %6223 = vmatmul.f32.gmra.mxu0 %v3907
  %v6224 = vpop.f32.mrf.mxu0
  %v6225 = vadd.f32 %v6016, %v6224
  %6226 = vmatmul.f32.gmra.mxu0 %v4112
  %v6227 = vpop.f32.mrf.mxu0
  %v6228 = vadd.f32 %v6019, %v6227
  %6229 = vmatmul.f32.gmra.mxu0 %v3910
  %v6230 = vpop.f32.mrf.mxu0
  %v6231 = vadd.f32 %v6022, %v6230
  %6232 = vmatmul.f32.gmra.mxu0 %v4113
  %v6233 = vpop.f32.mrf.mxu0
  %v6234 = vadd.f32 %v6025, %v6233
  %6235 = vmatmul.f32.gmra.mxu0 %v3913
  %v6236 = vpop.f32.mrf.mxu0
  %v6237 = vadd.f32 %v6028, %v6236
  %6238 = vmatmul.f32.gmra.mxu0 %v4114
  %v6239 = vpop.f32.mrf.mxu0
  %v6240 = vadd.f32 %v6031, %v6239
  %6241 = vmatmul.f32.gmra.mxu0 %v3916
  %v6242 = vpop.f32.mrf.mxu0
  %v6243 = vadd.f32 %v6034, %v6242
  %6244 = vmatmul.f32.gmra.mxu0 %v4115
  %v6245 = vpop.f32.mrf.mxu0
  %v6246 = vadd.f32 %v6037, %v6245
  %6247 = vmatmul.f32.gmra.mxu0 %v3919
  %v6248 = vpop.f32.mrf.mxu0
  %v6249 = vadd.f32 %v6040, %v6248
  %6250 = vmatmul.f32.gmra.mxu0 %v4116
  %v6251 = vpop.f32.mrf.mxu0
  %v6252 = vadd.f32 %v6043, %v6251
  %6253 = vmatmul.f32.gmra.mxu0 %v3922
  %v6254 = vpop.f32.mrf.mxu0
  %v6255 = vadd.f32 %v6046, %v6254
  %6256 = vmatmul.f32.gmra.mxu0 %v4117
  %v6257 = vpop.f32.mrf.mxu0
  %v6258 = vadd.f32 %v6049, %v6257
  %6259 = vmatmul.f32.gmra.mxu0 %v3925
  %v6260 = vpop.f32.mrf.mxu0
  %v6261 = vadd.f32 %v6052, %v6260
  %6262 = vmatmul.f32.gmra.mxu0 %v4116
  %v6263 = vpop.f32.mrf.mxu0
  %v6264 = vadd.f32 %v6055, %v6263
  %6265 = vmatmul.f32.gmra.mxu0 %v3922
  %v6266 = vpop.f32.mrf.mxu0
  %v6267 = vadd.f32 %v6058, %v6266
  %6268 = vdwg.mxu0
  %6269 = vmatpush.msra.mxu0 %v4789
  %6270 = vmatpush.msra.mxu0 %v4788
  %6271 = vmatpush.msra.mxu0 %v4787
  %6272 = vmatpush.msra.mxu0 %v4786
  %6273 = vmatpush.msra.mxu0 %v4785
  %6274 = vmatpush.msra.mxu0 %v4784
  %6275 = vmatpush.msra.mxu0 %v4783
  %6276 = vmatpush.msra.mxu0 %v4782
  %6277 = vmatpush.msra.mxu0 %v4781
  %6278 = vmatpush.msra.mxu0 %v4780
  %6279 = vmatpush.msra.mxu0 %v4779
  %6280 = vmatpush.msra.mxu0 %v4778
  %6281 = vmatpush.msra.mxu0 %v4777
  %6282 = vmatpush.msra.mxu0 %v4776
  %6283 = vmatpush.msra.mxu0 %v4775
  %6284 = vmatpush.msra.mxu0 %v4774
  %6285 = vmatmul.f32.gmra.mxu0 %v4212
  %v6286 = vpop.f32.mrf.mxu0
  %v6287 = vadd.f32 %v6078, %v6286
  %6288 = vmatmul.f32.gmra.mxu0 %v4214
  %v6289 = vpop.f32.mrf.mxu0
  %v6290 = vadd.f32 %v6081, %v6289
  %6291 = vmatmul.f32.gmra.mxu0 %v4222
  %v6292 = vpop.f32.mrf.mxu0
  %v6293 = vadd.f32 %v6084, %v6292
  %6294 = vmatmul.f32.gmra.mxu0 %v4224
  %v6295 = vpop.f32.mrf.mxu0
  %v6296 = vadd.f32 %v6087, %v6295
  %6297 = vmatmul.f32.gmra.mxu0 %v4227
  %v6298 = vpop.f32.mrf.mxu0
  %v6299 = vadd.f32 %v6090, %v6298
  %6300 = vmatmul.f32.gmra.mxu0 %v4229
  %v6301 = vpop.f32.mrf.mxu0
  %v6302 = vadd.f32 %v6093, %v6301
  %6303 = vmatmul.f32.gmra.mxu0 %v4232
  %v6304 = vpop.f32.mrf.mxu0
  %v6305 = vadd.f32 %v6096, %v6304
  %6306 = vmatmul.f32.gmra.mxu0 %v4234
  %v6307 = vpop.f32.mrf.mxu0
  %v6308 = vadd.f32 %v6099, %v6307
  %6309 = vmatmul.f32.gmra.mxu0 %v4237
  %v6310 = vpop.f32.mrf.mxu0
  %v6311 = vadd.f32 %v6102, %v6310
  %6312 = vmatmul.f32.gmra.mxu0 %v4239
  %v6313 = vpop.f32.mrf.mxu0
  %v6314 = vadd.f32 %v6105, %v6313
  %6315 = vmatmul.f32.gmra.mxu0 %v4242
  %v6316 = vpop.f32.mrf.mxu0
  %v6317 = vadd.f32 %v6108, %v6316
  %6318 = vmatmul.f32.gmra.mxu0 %v4244
  %v6319 = vpop.f32.mrf.mxu0
  %v6320 = vadd.f32 %v6111, %v6319
  %6321 = vmatmul.f32.gmra.mxu0 %v4247
  %v6322 = vpop.f32.mrf.mxu0
  %v6323 = vadd.f32 %v6114, %v6322
  %6324 = vmatmul.f32.gmra.mxu0 %v4249
  %v6325 = vpop.f32.mrf.mxu0
  %v6326 = vadd.f32 %v6117, %v6325
  %6327 = vmatmul.f32.gmra.mxu0 %v4252
  %v6328 = vpop.f32.mrf.mxu0
  %v6329 = vadd.f32 %v6120, %v6328
  %6330 = vmatmul.f32.gmra.mxu0 %v4254
  %v6331 = vpop.f32.mrf.mxu0
  %v6332 = vadd.f32 %v6123, %v6331
  %6333 = vmatmul.f32.gmra.mxu0 %v4257
  %v6334 = vpop.f32.mrf.mxu0
  %v6335 = vadd.f32 %v6126, %v6334
  %6336 = vmatmul.f32.gmra.mxu0 %v4259
  %v6337 = vpop.f32.mrf.mxu0
  %v6338 = vadd.f32 %v6129, %v6337
  %6339 = vmatmul.f32.gmra.mxu0 %v4262
  %v6340 = vpop.f32.mrf.mxu0
  %v6341 = vadd.f32 %v6132, %v6340
  %6342 = vmatmul.f32.gmra.mxu0 %v4264
  %v6343 = vpop.f32.mrf.mxu0
  %v6344 = vadd.f32 %v6135, %v6343
  %6345 = vmatmul.f32.gmra.mxu0 %v4267
  %v6346 = vpop.f32.mrf.mxu0
  %v6347 = vadd.f32 %v6138, %v6346
  %6348 = vmatmul.f32.gmra.mxu0 %v4269
  %v6349 = vpop.f32.mrf.mxu0
  %v6350 = vadd.f32 %v6141, %v6349
  %6351 = vmatmul.f32.gmra.mxu0 %v4272
  %v6352 = vpop.f32.mrf.mxu0
  %v6353 = vadd.f32 %v6144, %v6352
  %6354 = vmatmul.f32.gmra.mxu0 %v4274
  %v6355 = vpop.f32.mrf.mxu0
  %v6356 = vadd.f32 %v6147, %v6355
  %6357 = vmatmul.f32.gmra.mxu0 %v4277
  %v6358 = vpop.f32.mrf.mxu0
  %v6359 = vadd.f32 %v6150, %v6358
  %6360 = vmatmul.f32.gmra.mxu0 %v4279
  %v6361 = vpop.f32.mrf.mxu0
  %v6362 = vadd.f32 %v6153, %v6361
  %6363 = vmatmul.f32.gmra.mxu0 %v4282
  %v6364 = vpop.f32.mrf.mxu0
  %v6365 = vadd.f32 %v6156, %v6364
  %6366 = vmatmul.f32.gmra.mxu0 %v4284
  %v6367 = vpop.f32.mrf.mxu0
  %v6368 = vadd.f32 %v6159, %v6367
  %6369 = vmatmul.f32.gmra.mxu0 %v4636
  %v6370 = vpop.f32.mrf.mxu0
  %v6371 = vadd.f32 %v6162, %v6370
  %6372 = vmatmul.f32.gmra.mxu0 %v4638
  %v6373 = vpop.f32.mrf.mxu0
  %v6374 = vadd.f32 %v6165, %v6373
  %6375 = vmatmul.f32.gmra.mxu0 %v4282
  %v6376 = vpop.f32.mrf.mxu0
  %v6377 = vadd.f32 %v6168, %v6376
  %6378 = vmatmul.f32.gmra.mxu0 %v4284
  %v6379 = vpop.f32.mrf.mxu0
  %v6380 = vadd.f32 %v6171, %v6379
  %6381 = vmatmul.f32.gmra.mxu0 %v4287
  %v6382 = vpop.f32.mrf.mxu0
  %v6383 = vadd.f32 %v6174, %v6382
  %6384 = vmatmul.f32.gmra.mxu0 %v4289
  %v6385 = vpop.f32.mrf.mxu0
  %v6386 = vadd.f32 %v6177, %v6385
  %6387 = vmatmul.f32.gmra.mxu0 %v4297
  %v6388 = vpop.f32.mrf.mxu0
  %v6389 = vadd.f32 %v6180, %v6388
  %6390 = vmatmul.f32.gmra.mxu0 %v4299
  %v6391 = vpop.f32.mrf.mxu0
  %v6392 = vadd.f32 %v6183, %v6391
  %6393 = vmatmul.f32.gmra.mxu0 %v4302
  %v6394 = vpop.f32.mrf.mxu0
  %v6395 = vadd.f32 %v6186, %v6394
  %6396 = vmatmul.f32.gmra.mxu0 %v4304
  %v6397 = vpop.f32.mrf.mxu0
  %v6398 = vadd.f32 %v6189, %v6397
  %6399 = vmatmul.f32.gmra.mxu0 %v4307
  %v6400 = vpop.f32.mrf.mxu0
  %v6401 = vadd.f32 %v6192, %v6400
  %6402 = vmatmul.f32.gmra.mxu0 %v4309
  %v6403 = vpop.f32.mrf.mxu0
  %v6404 = vadd.f32 %v6195, %v6403
  %6405 = vmatmul.f32.gmra.mxu0 %v4312
  %v6406 = vpop.f32.mrf.mxu0
  %v6407 = vadd.f32 %v6198, %v6406
  %6408 = vmatmul.f32.gmra.mxu0 %v4314
  %v6409 = vpop.f32.mrf.mxu0
  %v6410 = vadd.f32 %v6201, %v6409
  %6411 = vmatmul.f32.gmra.mxu0 %v4317
  %v6412 = vpop.f32.mrf.mxu0
  %v6413 = vadd.f32 %v6204, %v6412
  %6414 = vmatmul.f32.gmra.mxu0 %v4319
  %v6415 = vpop.f32.mrf.mxu0
  %v6416 = vadd.f32 %v6207, %v6415
  %6417 = vmatmul.f32.gmra.mxu0 %v4322
  %v6418 = vpop.f32.mrf.mxu0
  %v6419 = vadd.f32 %v6210, %v6418
  %6420 = vmatmul.f32.gmra.mxu0 %v4324
  %v6421 = vpop.f32.mrf.mxu0
  %v6422 = vadd.f32 %v6213, %v6421
  %6423 = vmatmul.f32.gmra.mxu0 %v4327
  %v6424 = vpop.f32.mrf.mxu0
  %v6425 = vadd.f32 %v6216, %v6424
  %6426 = vmatmul.f32.gmra.mxu0 %v4329
  %v6427 = vpop.f32.mrf.mxu0
  %v6428 = vadd.f32 %v6219, %v6427
  %6429 = vmatmul.f32.gmra.mxu0 %v4332
  %v6430 = vpop.f32.mrf.mxu0
  %v6431 = vadd.f32 %v6222, %v6430
  %6432 = vmatmul.f32.gmra.mxu0 %v4334
  %v6433 = vpop.f32.mrf.mxu0
  %v6434 = vadd.f32 %v6225, %v6433
  %6435 = vmatmul.f32.gmra.mxu0 %v4337
  %v6436 = vpop.f32.mrf.mxu0
  %v6437 = vadd.f32 %v6228, %v6436
  %6438 = vmatmul.f32.gmra.mxu0 %v4339
  %v6439 = vpop.f32.mrf.mxu0
  %v6440 = vadd.f32 %v6231, %v6439
  %6441 = vmatmul.f32.gmra.mxu0 %v4342
  %v6442 = vpop.f32.mrf.mxu0
  %v6443 = vadd.f32 %v6234, %v6442
  %6444 = vmatmul.f32.gmra.mxu0 %v4344
  %v6445 = vpop.f32.mrf.mxu0
  %v6446 = vadd.f32 %v6237, %v6445
  %6447 = vmatmul.f32.gmra.mxu0 %v4347
  %v6448 = vpop.f32.mrf.mxu0
  %v6449 = vadd.f32 %v6240, %v6448
  %6450 = vmatmul.f32.gmra.mxu0 %v4349
  %v6451 = vpop.f32.mrf.mxu0
  %v6452 = vadd.f32 %v6243, %v6451
  %6453 = vmatmul.f32.gmra.mxu0 %v4352
  %v6454 = vpop.f32.mrf.mxu0
  %v6455 = vadd.f32 %v6246, %v6454
  %6456 = vmatmul.f32.gmra.mxu0 %v4354
  %v6457 = vpop.f32.mrf.mxu0
  %v6458 = vadd.f32 %v6249, %v6457
  %6459 = vmatmul.f32.gmra.mxu0 %v4357
  %v6460 = vpop.f32.mrf.mxu0
  %v6461 = vadd.f32 %v6252, %v6460
  %6462 = vmatmul.f32.gmra.mxu0 %v4359
  %v6463 = vpop.f32.mrf.mxu0
  %v6464 = vadd.f32 %v6255, %v6463
  %6465 = vmatmul.f32.gmra.mxu0 %v4641
  %v6466 = vpop.f32.mrf.mxu0
  %v6467 = vadd.f32 %v6258, %v6466
  %6468 = vmatmul.f32.gmra.mxu0 %v4643
  %v6469 = vpop.f32.mrf.mxu0
  %v6470 = vadd.f32 %v6261, %v6469
  %6471 = vmatmul.f32.gmra.mxu0 %v4357
  %v6472 = vpop.f32.mrf.mxu0
  %v6473 = vadd.f32 %v6264, %v6472
  %6474 = vmatmul.f32.gmra.mxu0 %v4359
  %v6475 = vpop.f32.mrf.mxu0
  %v6476 = vadd.f32 %v6267, %v6475
  %6477 = vdwg.mxu0
  %6478 = vmatpush.msra.mxu0 %v4805
  %6479 = vmatpush.msra.mxu0 %v4804
  %6480 = vmatpush.msra.mxu0 %v4803
  %6481 = vmatpush.msra.mxu0 %v4802
  %6482 = vmatpush.msra.mxu0 %v4801
  %6483 = vmatpush.msra.mxu0 %v4800
  %6484 = vmatpush.msra.mxu0 %v4799
  %6485 = vmatpush.msra.mxu0 %v4798
  %6486 = vmatpush.msra.mxu0 %v4797
  %6487 = vmatpush.msra.mxu0 %v4796
  %6488 = vmatpush.msra.mxu0 %v4795
  %6489 = vmatpush.msra.mxu0 %v4794
  %6490 = vmatpush.msra.mxu0 %v4793
  %6491 = vmatpush.msra.mxu0 %v4792
  %6492 = vmatpush.msra.mxu0 %v4791
  %6493 = vmatpush.msra.mxu0 %v4790
  %6494 = vmatmul.f32.gmra.mxu0 %v4422
  %v6495 = vpop.f32.mrf.mxu0
  %v6496 = vadd.f32 %v6287, %v6495
  %6497 = vmatmul.f32.gmra.mxu0 %v4424
  %v6498 = vpop.f32.mrf.mxu0
  %v6499 = vadd.f32 %v6290, %v6498
  %6500 = vmatmul.f32.gmra.mxu0 %v4432
  %v6501 = vpop.f32.mrf.mxu0
  %v6502 = vadd.f32 %v6293, %v6501
  %6503 = vmatmul.f32.gmra.mxu0 %v4434
  %v6504 = vpop.f32.mrf.mxu0
  %v6505 = vadd.f32 %v6296, %v6504
  %6506 = vmatmul.f32.gmra.mxu0 %v4437
  %v6507 = vpop.f32.mrf.mxu0
  %v6508 = vadd.f32 %v6299, %v6507
  %6509 = vmatmul.f32.gmra.mxu0 %v4439
  %v6510 = vpop.f32.mrf.mxu0
  %v6511 = vadd.f32 %v6302, %v6510
  %6512 = vmatmul.f32.gmra.mxu0 %v4442
  %v6513 = vpop.f32.mrf.mxu0
  %v6514 = vadd.f32 %v6305, %v6513
  %6515 = vmatmul.f32.gmra.mxu0 %v4444
  %v6516 = vpop.f32.mrf.mxu0
  %v6517 = vadd.f32 %v6308, %v6516
  %6518 = vmatmul.f32.gmra.mxu0 %v4447
  %v6519 = vpop.f32.mrf.mxu0
  %v6520 = vadd.f32 %v6311, %v6519
  %6521 = vmatmul.f32.gmra.mxu0 %v4449
  %v6522 = vpop.f32.mrf.mxu0
  %v6523 = vadd.f32 %v6314, %v6522
  %6524 = vmatmul.f32.gmra.mxu0 %v4452
  %v6525 = vpop.f32.mrf.mxu0
  %v6526 = vadd.f32 %v6317, %v6525
  %6527 = vmatmul.f32.gmra.mxu0 %v4454
  %v6528 = vpop.f32.mrf.mxu0
  %v6529 = vadd.f32 %v6320, %v6528
  %6530 = vmatmul.f32.gmra.mxu0 %v4457
  %v6531 = vpop.f32.mrf.mxu0
  %v6532 = vadd.f32 %v6323, %v6531
  %6533 = vmatmul.f32.gmra.mxu0 %v4459
  %v6534 = vpop.f32.mrf.mxu0
  %v6535 = vadd.f32 %v6326, %v6534
  %6536 = vmatmul.f32.gmra.mxu0 %v4462
  %v6537 = vpop.f32.mrf.mxu0
  %v6538 = vadd.f32 %v6329, %v6537
  %6539 = vmatmul.f32.gmra.mxu0 %v4464
  %v6540 = vpop.f32.mrf.mxu0
  %v6541 = vadd.f32 %v6332, %v6540
  %6542 = vmatmul.f32.gmra.mxu0 %v4467
  %v6543 = vpop.f32.mrf.mxu0
  %v6544 = vadd.f32 %v6335, %v6543
  %6545 = vmatmul.f32.gmra.mxu0 %v4469
  %v6546 = vpop.f32.mrf.mxu0
  %v6547 = vadd.f32 %v6338, %v6546
  %6548 = vmatmul.f32.gmra.mxu0 %v4472
  %v6549 = vpop.f32.mrf.mxu0
  %v6550 = vadd.f32 %v6341, %v6549
  %6551 = vmatmul.f32.gmra.mxu0 %v4474
  %v6552 = vpop.f32.mrf.mxu0
  %v6553 = vadd.f32 %v6344, %v6552
  %6554 = vmatmul.f32.gmra.mxu0 %v4477
  %v6555 = vpop.f32.mrf.mxu0
  %v6556 = vadd.f32 %v6347, %v6555
  %6557 = vmatmul.f32.gmra.mxu0 %v4479
  %v6558 = vpop.f32.mrf.mxu0
  %v6559 = vadd.f32 %v6350, %v6558
  %6560 = vmatmul.f32.gmra.mxu0 %v4482
  %v6561 = vpop.f32.mrf.mxu0
  %v6562 = vadd.f32 %v6353, %v6561
  %6563 = vmatmul.f32.gmra.mxu0 %v4484
  %v6564 = vpop.f32.mrf.mxu0
  %v6565 = vadd.f32 %v6356, %v6564
  %6566 = vmatmul.f32.gmra.mxu0 %v4487
  %v6567 = vpop.f32.mrf.mxu0
  %v6568 = vadd.f32 %v6359, %v6567
  %6569 = vmatmul.f32.gmra.mxu0 %v4489
  %v6570 = vpop.f32.mrf.mxu0
  %v6571 = vadd.f32 %v6362, %v6570
  %6572 = vmatmul.f32.gmra.mxu0 %v4492
  %v6573 = vpop.f32.mrf.mxu0
  %v6574 = vadd.f32 %v6365, %v6573
  %6575 = vmatmul.f32.gmra.mxu0 %v4494
  %v6576 = vpop.f32.mrf.mxu0
  %v6577 = vadd.f32 %v6368, %v6576
  %6578 = vmatmul.f32.gmra.mxu0 %v4650
  %v6579 = vpop.f32.mrf.mxu0
  %v6580 = vadd.f32 %v6371, %v6579
  %6581 = vmatmul.f32.gmra.mxu0 %v4652
  %v6582 = vpop.f32.mrf.mxu0
  %v6583 = vadd.f32 %v6374, %v6582
  %6584 = vmatmul.f32.gmra.mxu0 %v4492
  %v6585 = vpop.f32.mrf.mxu0
  %v6586 = vadd.f32 %v6377, %v6585
  %6587 = vmatmul.f32.gmra.mxu0 %v4494
  %v6588 = vpop.f32.mrf.mxu0
  %v6589 = vadd.f32 %v6380, %v6588
  %6590 = vmatmul.f32.gmra.mxu0 %v4497
  %v6591 = vpop.f32.mrf.mxu0
  %v6592 = vadd.f32 %v6383, %v6591
  %6593 = vmatmul.f32.gmra.mxu0 %v4499
  %v6594 = vpop.f32.mrf.mxu0
  %v6595 = vadd.f32 %v6386, %v6594
  %6596 = vmatmul.f32.gmra.mxu0 %v4507
  %v6597 = vpop.f32.mrf.mxu0
  %v6598 = vadd.f32 %v6389, %v6597
  %6599 = vmatmul.f32.gmra.mxu0 %v4509
  %v6600 = vpop.f32.mrf.mxu0
  %v6601 = vadd.f32 %v6392, %v6600
  %6602 = vmatmul.f32.gmra.mxu0 %v4512
  %v6603 = vpop.f32.mrf.mxu0
  %v6604 = vadd.f32 %v6395, %v6603
  %6605 = vmatmul.f32.gmra.mxu0 %v4514
  %v6606 = vpop.f32.mrf.mxu0
  %v6607 = vadd.f32 %v6398, %v6606
  %6608 = vmatmul.f32.gmra.mxu0 %v4517
  %v6609 = vpop.f32.mrf.mxu0
  %v6610 = vadd.f32 %v6401, %v6609
  %6611 = vmatmul.f32.gmra.mxu0 %v4519
  %v6612 = vpop.f32.mrf.mxu0
  %v6613 = vadd.f32 %v6404, %v6612
  %6614 = vmatmul.f32.gmra.mxu0 %v4522
  %v6615 = vpop.f32.mrf.mxu0
  %v6616 = vadd.f32 %v6407, %v6615
  %6617 = vmatmul.f32.gmra.mxu0 %v4524
  %v6618 = vpop.f32.mrf.mxu0
  %v6619 = vadd.f32 %v6410, %v6618
  %6620 = vmatmul.f32.gmra.mxu0 %v4527
  %v6621 = vpop.f32.mrf.mxu0
  %v6622 = vadd.f32 %v6413, %v6621
  %6623 = vmatmul.f32.gmra.mxu0 %v4529
  %v6624 = vpop.f32.mrf.mxu0
  %v6625 = vadd.f32 %v6416, %v6624
  %6626 = vmatmul.f32.gmra.mxu0 %v4532
  %v6627 = vpop.f32.mrf.mxu0
  %v6628 = vadd.f32 %v6419, %v6627
  %6629 = vmatmul.f32.gmra.mxu0 %v4534
  %v6630 = vpop.f32.mrf.mxu0
  %v6631 = vadd.f32 %v6422, %v6630
  %6632 = vmatmul.f32.gmra.mxu0 %v4537
  %v6633 = vpop.f32.mrf.mxu0
  %v6634 = vadd.f32 %v6425, %v6633
  %6635 = vmatmul.f32.gmra.mxu0 %v4539
  %v6636 = vpop.f32.mrf.mxu0
  %v6637 = vadd.f32 %v6428, %v6636
  %6638 = vmatmul.f32.gmra.mxu0 %v4542
  %v6639 = vpop.f32.mrf.mxu0
  %v6640 = vadd.f32 %v6431, %v6639
  %6641 = vmatmul.f32.gmra.mxu0 %v4544
  %v6642 = vpop.f32.mrf.mxu0
  %v6643 = vadd.f32 %v6434, %v6642
  %6644 = vmatmul.f32.gmra.mxu0 %v4547
  %v6645 = vpop.f32.mrf.mxu0
  %v6646 = vadd.f32 %v6437, %v6645
  %6647 = vmatmul.f32.gmra.mxu0 %v4549
  %v6648 = vpop.f32.mrf.mxu0
  %v6649 = vadd.f32 %v6440, %v6648
  %6650 = vmatmul.f32.gmra.mxu0 %v4552
  %v6651 = vpop.f32.mrf.mxu0
  %v6652 = vadd.f32 %v6443, %v6651
  %6653 = vmatmul.f32.gmra.mxu0 %v4554
  %v6654 = vpop.f32.mrf.mxu0
  %v6655 = vadd.f32 %v6446, %v6654
  %6656 = vmatmul.f32.gmra.mxu0 %v4557
  %v6657 = vpop.f32.mrf.mxu0
  %v6658 = vadd.f32 %v6449, %v6657
  %6659 = vmatmul.f32.gmra.mxu0 %v4559
  %v6660 = vpop.f32.mrf.mxu0
  %v6661 = vadd.f32 %v6452, %v6660
  %6662 = vmatmul.f32.gmra.mxu0 %v4562
  %v6663 = vpop.f32.mrf.mxu0
  %v6664 = vadd.f32 %v6455, %v6663
  %6665 = vmatmul.f32.gmra.mxu0 %v4564
  %v6666 = vpop.f32.mrf.mxu0
  %v6667 = vadd.f32 %v6458, %v6666
  %6668 = vmatmul.f32.gmra.mxu0 %v4567
  %v6669 = vpop.f32.mrf.mxu0
  %v6670 = vadd.f32 %v6461, %v6669
  %6671 = vmatmul.f32.gmra.mxu0 %v4569
  %v6672 = vpop.f32.mrf.mxu0
  %v6673 = vadd.f32 %v6464, %v6672
  %6674 = vmatmul.f32.gmra.mxu0 %v4655
  %v6675 = vpop.f32.mrf.mxu0
  %v6676 = vadd.f32 %v6467, %v6675
  %6677 = vmatmul.f32.gmra.mxu0 %v4657
  %v6678 = vpop.f32.mrf.mxu0
  %v6679 = vadd.f32 %v6470, %v6678
  %6680 = vmatmul.f32.gmra.mxu0 %v4567
  %v6681 = vpop.f32.mrf.mxu0
  %v6682 = vadd.f32 %v6473, %v6681
  %6683 = vmatmul.f32.gmra.mxu0 %v4569
  %v6684 = vpop.f32.mrf.mxu0
  %v6685 = vadd.f32 %v6476, %v6684
  %6686 = vdwg.mxu0
  %v6687 = vperm.slane %v81, 3
  %v6688 = vadd.f32 %v6496, %v6687
  %v6689 = vadd.f32 %v6499, %v6687
  %v6690 = vadd.f32 %v6502, %v6687
  %v6691 = vadd.f32 %v6505, %v6687
  %v6692 = vadd.f32 %v6508, %v6687
  %v6693 = vadd.f32 %v6511, %v6687
  %v6694 = vadd.f32 %v6514, %v6687
  %v6695 = vadd.f32 %v6517, %v6687
  %v6696 = vadd.f32 %v6520, %v6687
  %v6697 = vadd.f32 %v6523, %v6687
  %v6698 = vadd.f32 %v6526, %v6687
  %v6699 = vadd.f32 %v6529, %v6687
  %v6700 = vadd.f32 %v6532, %v6687
  %v6701 = vadd.f32 %v6535, %v6687
  %v6702 = vadd.f32 %v6538, %v6687
  %v6703 = vadd.f32 %v6541, %v6687
  %v6704 = vadd.f32 %v6544, %v6687
  %v6705 = vadd.f32 %v6547, %v6687
  %v6706 = vadd.f32 %v6550, %v6687
  %v6707 = vadd.f32 %v6553, %v6687
  %v6708 = vadd.f32 %v6556, %v6687
  %v6709 = vadd.f32 %v6559, %v6687
  %v6710 = vadd.f32 %v6562, %v6687
  %v6711 = vadd.f32 %v6565, %v6687
  %v6712 = vadd.f32 %v6568, %v6687
  %v6713 = vadd.f32 %v6571, %v6687
  %v6714 = vadd.f32 %v6574, %v6687
  %v6715 = vadd.f32 %v6577, %v6687
  %v6716 = vadd.f32 %v6580, %v6687
  %v6717 = vadd.f32 %v6583, %v6687
  %v6718 = vadd.f32 %v6586, %v6687
  %v6719 = vadd.f32 %v6589, %v6687
  %v6720 = vadd.f32 %v6592, %v6687
  %v6721 = vadd.f32 %v6595, %v6687
  %v6722 = vadd.f32 %v6598, %v6687
  %v6723 = vadd.f32 %v6601, %v6687
  %v6724 = vadd.f32 %v6604, %v6687
  %v6725 = vadd.f32 %v6607, %v6687
  %v6726 = vadd.f32 %v6610, %v6687
  %v6727 = vadd.f32 %v6613, %v6687
  %v6728 = vadd.f32 %v6616, %v6687
  %v6729 = vadd.f32 %v6619, %v6687
  %v6730 = vadd.f32 %v6622, %v6687
  %v6731 = vadd.f32 %v6625, %v6687
  %v6732 = vadd.f32 %v6628, %v6687
  %v6733 = vadd.f32 %v6631, %v6687
  %v6734 = vadd.f32 %v6634, %v6687
  %v6735 = vadd.f32 %v6637, %v6687
  %v6736 = vadd.f32 %v6640, %v6687
  %v6737 = vadd.f32 %v6643, %v6687
  %v6738 = vadd.f32 %v6646, %v6687
  %v6739 = vadd.f32 %v6649, %v6687
  %v6740 = vadd.f32 %v6652, %v6687
  %v6741 = vadd.f32 %v6655, %v6687
  %v6742 = vadd.f32 %v6658, %v6687
  %v6743 = vadd.f32 %v6661, %v6687
  %v6744 = vadd.f32 %v6664, %v6687
  %v6745 = vadd.f32 %v6667, %v6687
  %v6746 = vadd.f32 %v6670, %v6687
  %v6747 = vadd.f32 %v6673, %v6687
  %v6748 = vadd.f32 %v6676, %v6687
  %v6749 = vadd.f32 %v6679, %v6687
  %v6750 = vadd.f32 %v6682, %v6687
  %v6751 = vadd.f32 %v6685, %v6687
  %v6752 = vadd.f32 %v6688, %v6689
  %v6753 = vadd.f32 %v6752, %v6690
  %v6754 = vadd.f32 %v6753, %v6691
  %v6755 = vadd.f32 %v6754, %v6692
  %v6756 = vadd.f32 %v6755, %v6693
  %v6757 = vadd.f32 %v6756, %v6694
  %v6758 = vadd.f32 %v6757, %v6695
  %v6759 = vadd.f32 %v6758, %v6696
  %v6760 = vadd.f32 %v6759, %v6697
  %v6761 = vadd.f32 %v6760, %v6698
  %v6762 = vadd.f32 %v6761, %v6699
  %v6763 = vadd.f32 %v6762, %v6700
  %v6764 = vadd.f32 %v6763, %v6701
  %v6765 = vadd.f32 %v6764, %v6702
  %v6766 = vadd.f32 %v6765, %v6703
  %v6767 = vadd.f32 %v6766, %v6704
  %v6768 = vadd.f32 %v6767, %v6705
  %v6769 = vadd.f32 %v6768, %v6706
  %v6770 = vadd.f32 %v6769, %v6707
  %v6771 = vadd.f32 %v6770, %v6708
  %v6772 = vadd.f32 %v6771, %v6709
  %v6773 = vadd.f32 %v6772, %v6710
  %v6774 = vadd.f32 %v6773, %v6711
  %v6775 = vadd.f32 %v6774, %v6712
  %v6776 = vadd.f32 %v6775, %v6713
  %v6777 = vadd.f32 %v6776, %v6714
  %v6778 = vadd.f32 %v6777, %v6715
  %v6779 = vadd.f32 %v6778, %v6716
  %v6780 = vadd.f32 %v6779, %v6717
  %v6781 = vadd.f32 %v6780, %v6718
  %v6782 = vadd.f32 %v6781, %v6719
  %v6783 = vrot.slane %v6782, 4
  %v6784 = vadd.f32 %v6782, %v6783
  %v6785 = vrot.slane %v6784, 2
  %v6786 = vadd.f32 %v6784, %v6785
  %v6787 = vrot.slane %v6786, 1
  %v6788 = vadd.f32 %v6786, %v6787
  %v6789 = vadd.f32 %v6720, %v6721
  %v6790 = vadd.f32 %v6789, %v6722
  %v6791 = vadd.f32 %v6790, %v6723
  %v6792 = vadd.f32 %v6791, %v6724
  %v6793 = vadd.f32 %v6792, %v6725
  %v6794 = vadd.f32 %v6793, %v6726
  %v6795 = vadd.f32 %v6794, %v6727
  %v6796 = vadd.f32 %v6795, %v6728
  %v6797 = vadd.f32 %v6796, %v6729
  %v6798 = vadd.f32 %v6797, %v6730
  %v6799 = vadd.f32 %v6798, %v6731
  %v6800 = vadd.f32 %v6799, %v6732
  %v6801 = vadd.f32 %v6800, %v6733
  %v6802 = vadd.f32 %v6801, %v6734
  %v6803 = vadd.f32 %v6802, %v6735
  %v6804 = vadd.f32 %v6803, %v6736
  %v6805 = vadd.f32 %v6804, %v6737
  %v6806 = vadd.f32 %v6805, %v6738
  %v6807 = vadd.f32 %v6806, %v6739
  %v6808 = vadd.f32 %v6807, %v6740
  %v6809 = vadd.f32 %v6808, %v6741
  %v6810 = vadd.f32 %v6809, %v6742
  %v6811 = vadd.f32 %v6810, %v6743
  %v6812 = vadd.f32 %v6811, %v6744
  %v6813 = vadd.f32 %v6812, %v6745
  %v6814 = vadd.f32 %v6813, %v6746
  %v6815 = vadd.f32 %v6814, %v6747
  %v6816 = vadd.f32 %v6815, %v6748
  %v6817 = vadd.f32 %v6816, %v6749
  %v6818 = vadd.f32 %v6817, %v6750
  %v6819 = vadd.f32 %v6818, %v6751
  %v6820 = vrot.slane %v6819, 4
  %v6821 = vadd.f32 %v6819, %v6820
  %v6822 = vrot.slane %v6821, 2
  %v6823 = vadd.f32 %v6821, %v6822
  %v6824 = vrot.slane %v6823, 1
  %v6825 = vadd.f32 %v6823, %v6824
  %v6826 = vmul.f32 %v6788, %v3215
  %v6827 = vmul.f32 %v6825, %v3215
  %v6828 = vsub.f32 %v6688, %v6826
  %v6829 = vsub.f32 %v6689, %v6826
  %v6830 = vsub.f32 %v6690, %v6826
  %v6831 = vsub.f32 %v6691, %v6826
  %v6832 = vsub.f32 %v6692, %v6826
  %v6833 = vsub.f32 %v6693, %v6826
  %v6834 = vsub.f32 %v6694, %v6826
  %v6835 = vsub.f32 %v6695, %v6826
  %v6836 = vsub.f32 %v6696, %v6826
  %v6837 = vsub.f32 %v6697, %v6826
  %v6838 = vsub.f32 %v6698, %v6826
  %v6839 = vsub.f32 %v6699, %v6826
  %v6840 = vsub.f32 %v6700, %v6826
  %v6841 = vsub.f32 %v6701, %v6826
  %v6842 = vsub.f32 %v6702, %v6826
  %v6843 = vsub.f32 %v6703, %v6826
  %v6844 = vsub.f32 %v6704, %v6826
  %v6845 = vsub.f32 %v6705, %v6826
  %v6846 = vsub.f32 %v6706, %v6826
  %v6847 = vsub.f32 %v6707, %v6826
  %v6848 = vsub.f32 %v6708, %v6826
  %v6849 = vsub.f32 %v6709, %v6826
  %v6850 = vsub.f32 %v6710, %v6826
  %v6851 = vsub.f32 %v6711, %v6826
  %v6852 = vsub.f32 %v6712, %v6826
  %v6853 = vsub.f32 %v6713, %v6826
  %v6854 = vsub.f32 %v6714, %v6826
  %v6855 = vsub.f32 %v6715, %v6826
  %v6856 = vsub.f32 %v6716, %v6826
  %v6857 = vsub.f32 %v6717, %v6826
  %v6858 = vsub.f32 %v6718, %v6826
  %v6859 = vsub.f32 %v6719, %v6826
  %v6860 = vsub.f32 %v6720, %v6827
  %v6861 = vsub.f32 %v6721, %v6827
  %v6862 = vsub.f32 %v6722, %v6827
  %v6863 = vsub.f32 %v6723, %v6827
  %v6864 = vsub.f32 %v6724, %v6827
  %v6865 = vsub.f32 %v6725, %v6827
  %v6866 = vsub.f32 %v6726, %v6827
  %v6867 = vsub.f32 %v6727, %v6827
  %v6868 = vsub.f32 %v6728, %v6827
  %v6869 = vsub.f32 %v6729, %v6827
  %v6870 = vsub.f32 %v6730, %v6827
  %v6871 = vsub.f32 %v6731, %v6827
  %v6872 = vsub.f32 %v6732, %v6827
  %v6873 = vsub.f32 %v6733, %v6827
  %v6874 = vsub.f32 %v6734, %v6827
  %v6875 = vsub.f32 %v6735, %v6827
  %v6876 = vsub.f32 %v6736, %v6827
  %v6877 = vsub.f32 %v6737, %v6827
  %v6878 = vsub.f32 %v6738, %v6827
  %v6879 = vsub.f32 %v6739, %v6827
  %v6880 = vsub.f32 %v6740, %v6827
  %v6881 = vsub.f32 %v6741, %v6827
  %v6882 = vsub.f32 %v6742, %v6827
  %v6883 = vsub.f32 %v6743, %v6827
  %v6884 = vsub.f32 %v6744, %v6827
  %v6885 = vsub.f32 %v6745, %v6827
  %v6886 = vsub.f32 %v6746, %v6827
  %v6887 = vsub.f32 %v6747, %v6827
  %v6888 = vsub.f32 %v6748, %v6827
  %v6889 = vsub.f32 %v6749, %v6827
  %v6890 = vsub.f32 %v6750, %v6827
  %v6891 = vsub.f32 %v6751, %v6827
  %v6892 = vmul.f32 %v6828, %v6828
  %v6893 = vmul.f32 %v6829, %v6829
  %v6894 = vmul.f32 %v6830, %v6830
  %v6895 = vmul.f32 %v6831, %v6831
  %v6896 = vmul.f32 %v6832, %v6832
  %v6897 = vmul.f32 %v6833, %v6833
  %v6898 = vmul.f32 %v6834, %v6834
  %v6899 = vmul.f32 %v6835, %v6835
  %v6900 = vmul.f32 %v6836, %v6836
  %v6901 = vmul.f32 %v6837, %v6837
  %v6902 = vmul.f32 %v6838, %v6838
  %v6903 = vmul.f32 %v6839, %v6839
  %v6904 = vmul.f32 %v6840, %v6840
  %v6905 = vmul.f32 %v6841, %v6841
  %v6906 = vmul.f32 %v6842, %v6842
  %v6907 = vmul.f32 %v6843, %v6843
  %v6908 = vmul.f32 %v6844, %v6844
  %v6909 = vmul.f32 %v6845, %v6845
  %v6910 = vmul.f32 %v6846, %v6846
  %v6911 = vmul.f32 %v6847, %v6847
  %v6912 = vmul.f32 %v6848, %v6848
  %v6913 = vmul.f32 %v6849, %v6849
  %v6914 = vmul.f32 %v6850, %v6850
  %v6915 = vmul.f32 %v6851, %v6851
  %v6916 = vmul.f32 %v6852, %v6852
  %v6917 = vmul.f32 %v6853, %v6853
  %v6918 = vmul.f32 %v6854, %v6854
  %v6919 = vmul.f32 %v6855, %v6855
  %v6920 = vmul.f32 %v6856, %v6856
  %v6921 = vmul.f32 %v6857, %v6857
  %v6922 = vmul.f32 %v6858, %v6858
  %v6923 = vmul.f32 %v6859, %v6859
  %v6924 = vmul.f32 %v6860, %v6860
  %v6925 = vmul.f32 %v6861, %v6861
  %v6926 = vmul.f32 %v6862, %v6862
  %v6927 = vmul.f32 %v6863, %v6863
  %v6928 = vmul.f32 %v6864, %v6864
  %v6929 = vmul.f32 %v6865, %v6865
  %v6930 = vmul.f32 %v6866, %v6866
  %v6931 = vmul.f32 %v6867, %v6867
  %v6932 = vmul.f32 %v6868, %v6868
  %v6933 = vmul.f32 %v6869, %v6869
  %v6934 = vmul.f32 %v6870, %v6870
  %v6935 = vmul.f32 %v6871, %v6871
  %v6936 = vmul.f32 %v6872, %v6872
  %v6937 = vmul.f32 %v6873, %v6873
  %v6938 = vmul.f32 %v6874, %v6874
  %v6939 = vmul.f32 %v6875, %v6875
  %v6940 = vmul.f32 %v6876, %v6876
  %v6941 = vmul.f32 %v6877, %v6877
  %v6942 = vmul.f32 %v6878, %v6878
  %v6943 = vmul.f32 %v6879, %v6879
  %v6944 = vmul.f32 %v6880, %v6880
  %v6945 = vmul.f32 %v6881, %v6881
  %v6946 = vmul.f32 %v6882, %v6882
  %v6947 = vmul.f32 %v6883, %v6883
  %v6948 = vmul.f32 %v6884, %v6884
  %v6949 = vmul.f32 %v6885, %v6885
  %v6950 = vmul.f32 %v6886, %v6886
  %v6951 = vmul.f32 %v6887, %v6887
  %v6952 = vmul.f32 %v6888, %v6888
  %v6953 = vmul.f32 %v6889, %v6889
  %v6954 = vmul.f32 %v6890, %v6890
  %v6955 = vmul.f32 %v6891, %v6891
  %v6956 = vadd.f32 %v6892, %v6893
  %v6957 = vadd.f32 %v6956, %v6894
  %v6958 = vadd.f32 %v6957, %v6895
  %v6959 = vadd.f32 %v6958, %v6896
  %v6960 = vadd.f32 %v6959, %v6897
  %v6961 = vadd.f32 %v6960, %v6898
  %v6962 = vadd.f32 %v6961, %v6899
  %v6963 = vadd.f32 %v6962, %v6900
  %v6964 = vadd.f32 %v6963, %v6901
  %v6965 = vadd.f32 %v6964, %v6902
  %v6966 = vadd.f32 %v6965, %v6903
  %v6967 = vadd.f32 %v6966, %v6904
  %v6968 = vadd.f32 %v6967, %v6905
  %v6969 = vadd.f32 %v6968, %v6906
  %v6970 = vadd.f32 %v6969, %v6907
  %v6971 = vadd.f32 %v6970, %v6908
  %v6972 = vadd.f32 %v6971, %v6909
  %v6973 = vadd.f32 %v6972, %v6910
  %v6974 = vadd.f32 %v6973, %v6911
  %v6975 = vadd.f32 %v6974, %v6912
  %v6976 = vadd.f32 %v6975, %v6913
  %v6977 = vadd.f32 %v6976, %v6914
  %v6978 = vadd.f32 %v6977, %v6915
  %v6979 = vadd.f32 %v6978, %v6916
  %v6980 = vadd.f32 %v6979, %v6917
  %v6981 = vadd.f32 %v6980, %v6918
  %v6982 = vadd.f32 %v6981, %v6919
  %v6983 = vadd.f32 %v6982, %v6920
  %v6984 = vadd.f32 %v6983, %v6921
  %v6985 = vadd.f32 %v6984, %v6922
  %v6986 = vadd.f32 %v6985, %v6923
  %v6987 = vrot.slane %v6986, 4
  %v6988 = vadd.f32 %v6986, %v6987
  %v6989 = vrot.slane %v6988, 2
  %v6990 = vadd.f32 %v6988, %v6989
  %v6991 = vrot.slane %v6990, 1
  %v6992 = vadd.f32 %v6990, %v6991
  %v6993 = vadd.f32 %v6924, %v6925
  %v6994 = vadd.f32 %v6993, %v6926
  %v6995 = vadd.f32 %v6994, %v6927
  %v6996 = vadd.f32 %v6995, %v6928
  %v6997 = vadd.f32 %v6996, %v6929
  %v6998 = vadd.f32 %v6997, %v6930
  %v6999 = vadd.f32 %v6998, %v6931
  %v7000 = vadd.f32 %v6999, %v6932
  %v7001 = vadd.f32 %v7000, %v6933
  %v7002 = vadd.f32 %v7001, %v6934
  %v7003 = vadd.f32 %v7002, %v6935
  %v7004 = vadd.f32 %v7003, %v6936
  %v7005 = vadd.f32 %v7004, %v6937
  %v7006 = vadd.f32 %v7005, %v6938
  %v7007 = vadd.f32 %v7006, %v6939
  %v7008 = vadd.f32 %v7007, %v6940
  %v7009 = vadd.f32 %v7008, %v6941
  %v7010 = vadd.f32 %v7009, %v6942
  %v7011 = vadd.f32 %v7010, %v6943
  %v7012 = vadd.f32 %v7011, %v6944
  %v7013 = vadd.f32 %v7012, %v6945
  %v7014 = vadd.f32 %v7013, %v6946
  %v7015 = vadd.f32 %v7014, %v6947
  %v7016 = vadd.f32 %v7015, %v6948
  %v7017 = vadd.f32 %v7016, %v6949
  %v7018 = vadd.f32 %v7017, %v6950
  %v7019 = vadd.f32 %v7018, %v6951
  %v7020 = vadd.f32 %v7019, %v6952
  %v7021 = vadd.f32 %v7020, %v6953
  %v7022 = vadd.f32 %v7021, %v6954
  %v7023 = vadd.f32 %v7022, %v6955
  %v7024 = vrot.slane %v7023, 4
  %v7025 = vadd.f32 %v7023, %v7024
  %v7026 = vrot.slane %v7025, 2
  %v7027 = vadd.f32 %v7025, %v7026
  %v7028 = vrot.slane %v7027, 1
  %v7029 = vadd.f32 %v7027, %v7028
  %v7030 = vmul.f32 %v6992, %v3215
  %v7031 = vmul.f32 %v7029, %v3215
  %v7032 = vadd.f32 %v7030, 1e-05
  %v7033 = vadd.f32 %v7031, 1e-05
  %v7034 = vrsqrt.pop %v7032
  %v7035 = vmul.f32 %v7034, %v7032
  %v7036 = vmul.f32 %v7035, %v7034
  %v7037 = vmul.f32 0.5, %v7036
  %v7038 = vsub.f32 1.5, %v7037
  %v7039 = vmul.f32 %v7034, %v7038
  %vm7040 = vweird.f32 %v7032
  %vm7041 = vweird.f32 %v7034
  %vm7042 = vmor %vm7040, %vm7041
  %v7043 = vsel %vm7042, %v7034, %v7039
  %v7044 = vrsqrt.pop %v7033
  %v7045 = vmul.f32 %v7044, %v7033
  %v7046 = vmul.f32 %v7045, %v7044
  %v7047 = vmul.f32 0.5, %v7046
  %v7048 = vsub.f32 1.5, %v7047
  %v7049 = vmul.f32 %v7044, %v7048
  %vm7050 = vweird.f32 %v7033
  %vm7051 = vweird.f32 %v7044
  %vm7052 = vmor %vm7050, %vm7051
  %v7053 = vsel %vm7052, %v7044, %v7049
  %v7054 = vmul.f32 %v6828, %v7043
  %v7055 = vmul.f32 %v6829, %v7043
  %v7056 = vmul.f32 %v6830, %v7043
  %v7057 = vmul.f32 %v6831, %v7043
  %v7058 = vmul.f32 %v6832, %v7043
  %v7059 = vmul.f32 %v6833, %v7043
  %v7060 = vmul.f32 %v6834, %v7043
  %v7061 = vmul.f32 %v6835, %v7043
  %v7062 = vmul.f32 %v6836, %v7043
  %v7063 = vmul.f32 %v6837, %v7043
  %v7064 = vmul.f32 %v6838, %v7043
  %v7065 = vmul.f32 %v6839, %v7043
  %v7066 = vmul.f32 %v6840, %v7043
  %v7067 = vmul.f32 %v6841, %v7043
  %v7068 = vmul.f32 %v6842, %v7043
  %v7069 = vmul.f32 %v6843, %v7043
  %v7070 = vmul.f32 %v6844, %v7043
  %v7071 = vmul.f32 %v6845, %v7043
  %v7072 = vmul.f32 %v6846, %v7043
  %v7073 = vmul.f32 %v6847, %v7043
  %v7074 = vmul.f32 %v6848, %v7043
  %v7075 = vmul.f32 %v6849, %v7043
  %v7076 = vmul.f32 %v6850, %v7043
  %v7077 = vmul.f32 %v6851, %v7043
  %v7078 = vmul.f32 %v6852, %v7043
  %v7079 = vmul.f32 %v6853, %v7043
  %v7080 = vmul.f32 %v6854, %v7043
  %v7081 = vmul.f32 %v6855, %v7043
  %v7082 = vmul.f32 %v6856, %v7043
  %v7083 = vmul.f32 %v6857, %v7043
  %v7084 = vmul.f32 %v6858, %v7043
  %v7085 = vmul.f32 %v6859, %v7043
  %v7086 = vmul.f32 %v6860, %v7053
  %v7087 = vmul.f32 %v6861, %v7053
  %v7088 = vmul.f32 %v6862, %v7053
  %v7089 = vmul.f32 %v6863, %v7053
  %v7090 = vmul.f32 %v6864, %v7053
  %v7091 = vmul.f32 %v6865, %v7053
  %v7092 = vmul.f32 %v6866, %v7053
  %v7093 = vmul.f32 %v6867, %v7053
  %v7094 = vmul.f32 %v6868, %v7053
  %v7095 = vmul.f32 %v6869, %v7053
  %v7096 = vmul.f32 %v6870, %v7053
  %v7097 = vmul.f32 %v6871, %v7053
  %v7098 = vmul.f32 %v6872, %v7053
  %v7099 = vmul.f32 %v6873, %v7053
  %v7100 = vmul.f32 %v6874, %v7053
  %v7101 = vmul.f32 %v6875, %v7053
  %v7102 = vmul.f32 %v6876, %v7053
  %v7103 = vmul.f32 %v6877, %v7053
  %v7104 = vmul.f32 %v6878, %v7053
  %v7105 = vmul.f32 %v6879, %v7053
  %v7106 = vmul.f32 %v6880, %v7053
  %v7107 = vmul.f32 %v6881, %v7053
  %v7108 = vmul.f32 %v6882, %v7053
  %v7109 = vmul.f32 %v6883, %v7053
  %v7110 = vmul.f32 %v6884, %v7053
  %v7111 = vmul.f32 %v6885, %v7053
  %v7112 = vmul.f32 %v6886, %v7053
  %v7113 = vmul.f32 %v6887, %v7053
  %v7114 = vmul.f32 %v6888, %v7053
  %v7115 = vmul.f32 %v6889, %v7053
  %v7116 = vmul.f32 %v6890, %v7053
  %v7117 = vmul.f32 %v6891, %v7053
  %v7118 = vperm.slane %v81, 4
  %v7119 = vmul.f32 %v7054, %v7118
  %v7120 = vmul.f32 %v7055, %v7118
  %v7121 = vmul.f32 %v7056, %v7118
  %v7122 = vmul.f32 %v7057, %v7118
  %v7123 = vmul.f32 %v7058, %v7118
  %v7124 = vmul.f32 %v7059, %v7118
  %v7125 = vmul.f32 %v7060, %v7118
  %v7126 = vmul.f32 %v7061, %v7118
  %v7127 = vmul.f32 %v7062, %v7118
  %v7128 = vmul.f32 %v7063, %v7118
  %v7129 = vmul.f32 %v7064, %v7118
  %v7130 = vmul.f32 %v7065, %v7118
  %v7131 = vmul.f32 %v7066, %v7118
  %v7132 = vmul.f32 %v7067, %v7118
  %v7133 = vmul.f32 %v7068, %v7118
  %v7134 = vmul.f32 %v7069, %v7118
  %v7135 = vmul.f32 %v7070, %v7118
  %v7136 = vmul.f32 %v7071, %v7118
  %v7137 = vmul.f32 %v7072, %v7118
  %v7138 = vmul.f32 %v7073, %v7118
  %v7139 = vmul.f32 %v7074, %v7118
  %v7140 = vmul.f32 %v7075, %v7118
  %v7141 = vmul.f32 %v7076, %v7118
  %v7142 = vmul.f32 %v7077, %v7118
  %v7143 = vmul.f32 %v7078, %v7118
  %v7144 = vmul.f32 %v7079, %v7118
  %v7145 = vmul.f32 %v7080, %v7118
  %v7146 = vmul.f32 %v7081, %v7118
  %v7147 = vmul.f32 %v7082, %v7118
  %v7148 = vmul.f32 %v7083, %v7118
  %v7149 = vmul.f32 %v7084, %v7118
  %v7150 = vmul.f32 %v7085, %v7118
  %v7151 = vmul.f32 %v7086, %v7118
  %v7152 = vmul.f32 %v7087, %v7118
  %v7153 = vmul.f32 %v7088, %v7118
  %v7154 = vmul.f32 %v7089, %v7118
  %v7155 = vmul.f32 %v7090, %v7118
  %v7156 = vmul.f32 %v7091, %v7118
  %v7157 = vmul.f32 %v7092, %v7118
  %v7158 = vmul.f32 %v7093, %v7118
  %v7159 = vmul.f32 %v7094, %v7118
  %v7160 = vmul.f32 %v7095, %v7118
  %v7161 = vmul.f32 %v7096, %v7118
  %v7162 = vmul.f32 %v7097, %v7118
  %v7163 = vmul.f32 %v7098, %v7118
  %v7164 = vmul.f32 %v7099, %v7118
  %v7165 = vmul.f32 %v7100, %v7118
  %v7166 = vmul.f32 %v7101, %v7118
  %v7167 = vmul.f32 %v7102, %v7118
  %v7168 = vmul.f32 %v7103, %v7118
  %v7169 = vmul.f32 %v7104, %v7118
  %v7170 = vmul.f32 %v7105, %v7118
  %v7171 = vmul.f32 %v7106, %v7118
  %v7172 = vmul.f32 %v7107, %v7118
  %v7173 = vmul.f32 %v7108, %v7118
  %v7174 = vmul.f32 %v7109, %v7118
  %v7175 = vmul.f32 %v7110, %v7118
  %v7176 = vmul.f32 %v7111, %v7118
  %v7177 = vmul.f32 %v7112, %v7118
  %v7178 = vmul.f32 %v7113, %v7118
  %v7179 = vmul.f32 %v7114, %v7118
  %v7180 = vmul.f32 %v7115, %v7118
  %v7181 = vmul.f32 %v7116, %v7118
  %v7182 = vmul.f32 %v7117, %v7118
  %v7183 = vperm.slane %v81, 5
  %v7184 = vadd.f32 %v7119, %v7183
  %v7185 = vadd.f32 %v7120, %v7183
  %v7186 = vadd.f32 %v7121, %v7183
  %v7187 = vadd.f32 %v7122, %v7183
  %v7188 = vadd.f32 %v7123, %v7183
  %v7189 = vadd.f32 %v7124, %v7183
  %v7190 = vadd.f32 %v7125, %v7183
  %v7191 = vadd.f32 %v7126, %v7183
  %v7192 = vadd.f32 %v7127, %v7183
  %v7193 = vadd.f32 %v7128, %v7183
  %v7194 = vadd.f32 %v7129, %v7183
  %v7195 = vadd.f32 %v7130, %v7183
  %v7196 = vadd.f32 %v7131, %v7183
  %v7197 = vadd.f32 %v7132, %v7183
  %v7198 = vadd.f32 %v7133, %v7183
  %v7199 = vadd.f32 %v7134, %v7183
  %v7200 = vadd.f32 %v7135, %v7183
  %v7201 = vadd.f32 %v7136, %v7183
  %v7202 = vadd.f32 %v7137, %v7183
  %v7203 = vadd.f32 %v7138, %v7183
  %v7204 = vadd.f32 %v7139, %v7183
  %v7205 = vadd.f32 %v7140, %v7183
  %v7206 = vadd.f32 %v7141, %v7183
  %v7207 = vadd.f32 %v7142, %v7183
  %v7208 = vadd.f32 %v7143, %v7183
  %v7209 = vadd.f32 %v7144, %v7183
  %v7210 = vadd.f32 %v7145, %v7183
  %v7211 = vadd.f32 %v7146, %v7183
  %v7212 = vadd.f32 %v7147, %v7183
  %v7213 = vadd.f32 %v7148, %v7183
  %v7214 = vadd.f32 %v7149, %v7183
  %v7215 = vadd.f32 %v7150, %v7183
  %v7216 = vadd.f32 %v7151, %v7183
  %v7217 = vadd.f32 %v7152, %v7183
  %v7218 = vadd.f32 %v7153, %v7183
  %v7219 = vadd.f32 %v7154, %v7183
  %v7220 = vadd.f32 %v7155, %v7183
  %v7221 = vadd.f32 %v7156, %v7183
  %v7222 = vadd.f32 %v7157, %v7183
  %v7223 = vadd.f32 %v7158, %v7183
  %v7224 = vadd.f32 %v7159, %v7183
  %v7225 = vadd.f32 %v7160, %v7183
  %v7226 = vadd.f32 %v7161, %v7183
  %v7227 = vadd.f32 %v7162, %v7183
  %v7228 = vadd.f32 %v7163, %v7183
  %v7229 = vadd.f32 %v7164, %v7183
  %v7230 = vadd.f32 %v7165, %v7183
  %v7231 = vadd.f32 %v7166, %v7183
  %v7232 = vadd.f32 %v7167, %v7183
  %v7233 = vadd.f32 %v7168, %v7183
  %v7234 = vadd.f32 %v7169, %v7183
  %v7235 = vadd.f32 %v7170, %v7183
  %v7236 = vadd.f32 %v7171, %v7183
  %v7237 = vadd.f32 %v7172, %v7183
  %v7238 = vadd.f32 %v7173, %v7183
  %v7239 = vadd.f32 %v7174, %v7183
  %v7240 = vadd.f32 %v7175, %v7183
  %v7241 = vadd.f32 %v7176, %v7183
  %v7242 = vadd.f32 %v7177, %v7183
  %v7243 = vadd.f32 %v7178, %v7183
  %v7244 = vadd.f32 %v7179, %v7183
  %v7245 = vadd.f32 %v7180, %v7183
  %v7246 = vadd.f32 %v7181, %v7183
  %v7247 = vadd.f32 %v7182, %v7183
  %v7248 = vadd.f32 %v7184, %v17
  %v7249 = vadd.f32 %v7185, %v18
  %v7250 = vadd.f32 %v7186, %v19
  %v7251 = vadd.f32 %v7187, %v20
  %v7252 = vadd.f32 %v7188, %v21
  %v7253 = vadd.f32 %v7189, %v22
  %v7254 = vadd.f32 %v7190, %v23
  %v7255 = vadd.f32 %v7191, %v24
  %v7256 = vadd.f32 %v7192, %v25
  %v7257 = vadd.f32 %v7193, %v26
  %v7258 = vadd.f32 %v7194, %v27
  %v7259 = vadd.f32 %v7195, %v28
  %v7260 = vadd.f32 %v7196, %v29
  %v7261 = vadd.f32 %v7197, %v30
  %v7262 = vadd.f32 %v7198, %v31
  %v7263 = vadd.f32 %v7199, %v32
  %v7264 = vadd.f32 %v7200, %v33
  %v7265 = vadd.f32 %v7201, %v34
  %v7266 = vadd.f32 %v7202, %v35
  %v7267 = vadd.f32 %v7203, %v36
  %v7268 = vadd.f32 %v7204, %v37
  %v7269 = vadd.f32 %v7205, %v38
  %v7270 = vadd.f32 %v7206, %v39
  %v7271 = vadd.f32 %v7207, %v40
  %v7272 = vadd.f32 %v7208, %v41
  %v7273 = vadd.f32 %v7209, %v42
  %v7274 = vadd.f32 %v7210, %v43
  %v7275 = vadd.f32 %v7211, %v44
  %v7276 = vadd.f32 %v7212, %v45
  %v7277 = vadd.f32 %v7213, %v46
  %v7278 = vadd.f32 %v7214, %v47
  %v7279 = vadd.f32 %v7215, %v48
  %v7280 = vadd.f32 %v7216, %v49
  %v7281 = vadd.f32 %v7217, %v50
  %v7282 = vadd.f32 %v7218, %v51
  %v7283 = vadd.f32 %v7219, %v52
  %v7284 = vadd.f32 %v7220, %v53
  %v7285 = vadd.f32 %v7221, %v54
  %v7286 = vadd.f32 %v7222, %v55
  %v7287 = vadd.f32 %v7223, %v56
  %v7288 = vadd.f32 %v7224, %v57
  %v7289 = vadd.f32 %v7225, %v58
  %v7290 = vadd.f32 %v7226, %v59
  %v7291 = vadd.f32 %v7227, %v60
  %v7292 = vadd.f32 %v7228, %v61
  %v7293 = vadd.f32 %v7229, %v62
  %v7294 = vadd.f32 %v7230, %v63
  %v7295 = vadd.f32 %v7231, %v64
  %v7296 = vadd.f32 %v7232, %v65
  %v7297 = vadd.f32 %v7233, %v66
  %v7298 = vadd.f32 %v7234, %v67
  %v7299 = vadd.f32 %v7235, %v68
  %v7300 = vadd.f32 %v7236, %v69
  %v7301 = vadd.f32 %v7237, %v70
  %v7302 = vadd.f32 %v7238, %v71
  %v7303 = vadd.f32 %v7239, %v72
  %v7304 = vadd.f32 %v7240, %v73
  %v7305 = vadd.f32 %v7241, %v74
  %v7306 = vadd.f32 %v7242, %v75
  %v7307 = vadd.f32 %v7243, %v76
  %v7308 = vadd.f32 %v7244, %v77
  %v7309 = vadd.f32 %v7245, %v78
  %v7310 = vadd.f32 %v7246, %v79
  %v7311 = vadd.f32 %v7247, %v80
  %7312 = vst [vmem:[%s4] sm:$0xff] %v7248
  %7313 = vst [vmem:[%s4 + $0x8] sm:$0xff] %v7249
  %7314 = vst [vmem:[%s4 + $0x10] sm:$0xff] %v7250
  %7315 = vst [vmem:[%s4 + $0x18] sm:$0xff] %v7251
  %7316 = vst [vmem:[%s4 + $0x20] sm:$0xff] %v7252
  %7317 = vst [vmem:[%s4 + $0x28] sm:$0xff] %v7253
  %7318 = vst [vmem:[%s4 + $0x30] sm:$0xff] %v7254
  %7319 = vst [vmem:[%s4 + $0x38] sm:$0xff] %v7255
  %7320 = vst [vmem:[%s4 + $0x40] sm:$0xff] %v7256
  %7321 = vst [vmem:[%s4 + $0x48] sm:$0xff] %v7257
  %7322 = vst [vmem:[%s4 + $0x50] sm:$0xff] %v7258
  %7323 = vst [vmem:[%s4 + $0x58] sm:$0xff] %v7259
  %7324 = vst [vmem:[%s4 + $0x60] sm:$0xff] %v7260
  %7325 = vst [vmem:[%s4 + $0x68] sm:$0xff] %v7261
  %7326 = vst [vmem:[%s4 + $0x70] sm:$0xff] %v7262
  %7327 = vst [vmem:[%s4 + $0x78] sm:$0xff] %v7263
  %7328 = vst [vmem:[%s4 + $0x80] sm:$0xff] %v7264
  %7329 = vst [vmem:[%s4 + $0x88] sm:$0xff] %v7265
  %7330 = vst [vmem:[%s4 + $0x90] sm:$0xff] %v7266
  %7331 = vst [vmem:[%s4 + $0x98] sm:$0xff] %v7267
  %7332 = vst [vmem:[%s4 + $0xa0] sm:$0xff] %v7268
  %7333 = vst [vmem:[%s4 + $0xa8] sm:$0xff] %v7269
  %7334 = vst [vmem:[%s4 + $0xb0] sm:$0xff] %v7270
  %7335 = vst [vmem:[%s4 + $0xb8] sm:$0xff] %v7271
  %7336 = vst [vmem:[%s4 + $0xc0] sm:$0xff] %v7272
  %7337 = vst [vmem:[%s4 + $0xc8] sm:$0xff] %v7273
  %7338 = vst [vmem:[%s4 + $0xd0] sm:$0xff] %v7274
  %7339 = vst [vmem:[%s4 + $0xd8] sm:$0xff] %v7275
  %7340 = vst [vmem:[%s4 + $0xe0] sm:$0xff] %v7276
  %7341 = vst [vmem:[%s4 + $0xe8] sm:$0xff] %v7277
  %7342 = vst [vmem:[%s4 + $0xf0] sm:$0xff] %v7278
  %7343 = vst [vmem:[%s4 + $0xf8] sm:$0xff] %v7279
  %7344 = vst [vmem:[%s4 + $0x100] sm:$0xff] %v7280
  %7345 = vst [vmem:[%s4 + $0x108] sm:$0xff] %v7281
  %7346 = vst [vmem:[%s4 + $0x110] sm:$0xff] %v7282
  %7347 = vst [vmem:[%s4 + $0x118] sm:$0xff] %v7283
  %7348 = vst [vmem:[%s4 + $0x120] sm:$0xff] %v7284
  %7349 = vst [vmem:[%s4 + $0x128] sm:$0xff] %v7285
  %7350 = vst [vmem:[%s4 + $0x130] sm:$0xff] %v7286
  %7351 = vst [vmem:[%s4 + $0x138] sm:$0xff] %v7287
  %7352 = vst [vmem:[%s4 + $0x140] sm:$0xff] %v7288
  %7353 = vst [vmem:[%s4 + $0x148] sm:$0xff] %v7289
  %7354 = vst [vmem:[%s4 + $0x150] sm:$0xff] %v7290
  %7355 = vst [vmem:[%s4 + $0x158] sm:$0xff] %v7291
  %7356 = vst [vmem:[%s4 + $0x160] sm:$0xff] %v7292
  %7357 = vst [vmem:[%s4 + $0x168] sm:$0xff] %v7293
  %7358 = vst [vmem:[%s4 + $0x170] sm:$0xff] %v7294
  %7359 = vst [vmem:[%s4 + $0x178] sm:$0xff] %v7295
  %7360 = vst [vmem:[%s4 + $0x180] sm:$0xff] %v7296
  %7361 = vst [vmem:[%s4 + $0x188] sm:$0xff] %v7297
  %7362 = vst [vmem:[%s4 + $0x190] sm:$0xff] %v7298
  %7363 = vst [vmem:[%s4 + $0x198] sm:$0xff] %v7299
  %7364 = vst [vmem:[%s4 + $0x1a0] sm:$0xff] %v7300
  %7365 = vst [vmem:[%s4 + $0x1a8] sm:$0xff] %v7301
  %7366 = vst [vmem:[%s4 + $0x1b0] sm:$0xff] %v7302
  %7367 = vst [vmem:[%s4 + $0x1b8] sm:$0xff] %v7303
  %7368 = vst [vmem:[%s4 + $0x1c0] sm:$0xff] %v7304
  %7369 = vst [vmem:[%s4 + $0x1c8] sm:$0xff] %v7305
  %7370 = vst [vmem:[%s4 + $0x1d0] sm:$0xff] %v7306
  %7371 = vst [vmem:[%s4 + $0x1d8] sm:$0xff] %v7307
  %7372 = vst [vmem:[%s4 + $0x1e0] sm:$0xff] %v7308
  %7373 = vst [vmem:[%s4 + $0x1e8] sm:$0xff] %v7309
  %7374 = vst [vmem:[%s4 + $0x1f0] sm:$0xff] %v7310
  %7375 = vst [vmem:[%s4 + $0x1f8] sm:$0xff] %v7311
  // Predicated region
  $region18: #{_lambda_.1} parent=0 // pred_check
    _
  $region19: #{_lambda_.1} parent=0 // pred_check_branch
    %7377 = sbr.rel (0) target = $region21
  $region20: #{_lambda_.1} parent=0 // pred_region
    _
  $region21: #{_lambda_.1} parent=0 // pred_fallthru
    _
  // Predicated region
  $region22: #{_lambda_.1} parent=0 // pred_check
    _
  $region23: #{_lambda_.1} parent=0 // pred_check_branch
    %7379 = sbr.rel (0) target = $region25
  $region24: #{_lambda_.1} parent=0 // pred_region
    _
  $region25: #{_lambda_.1} parent=0 // pred_fallthru
    _

</llo_original>
